<compile_context>
chip_gen: v6e
topology: v6e:2x2x1
jax: 0.10.0
libtpu: 0.0.40
codegen_flags: <defaults>
</compile_context>

<pallas_src>
import functools

import jax
import jax.numpy as jnp
from jax.experimental import pallas as pl
from jax.experimental.pallas import tpu as pltpu

_EPS = 1e-5
_LANES = 128
_VMEM_LIMIT = 48 * 1024 * 1024   # safe on v7x (64 MiB physical) and below


def _round_up(x, m):
    return ((x + m - 1) // m) * m


def _pick_tile_h(H, W, cin, cout_p, budget_bytes=12 * 1024 * 1024):
    """Largest divisor of H whose per-tile working set fits a conservative VMEM budget."""
    per_row = W * (4 * cin * 2        # input tile, double-buffered (<= f32)
                   + 2 * cout_p * 2   # bf16 output tile, double-buffered
                   + 2 * cin          # padded-tile VMEM scratch (bf16)
                   + 2 * 9 * cin      # im2col VMEM scratch (bf16)
                   + 4 * cout_p)      # f32 matmul result
    max_rows = max(1, budget_bytes // max(per_row, 1))
    best = 1
    for d in range(1, H + 1):
        if H % d == 0 and d <= max_rows:
            best = d
    return best


def _make_conv_kernel(prenorm, single_dot, TH, W, Cin, Cout_p):
    """3x3 conv (+bias) on one row tile, emitting per-tile BN statistics.

    If `prenorm`, the previous block's BatchNorm+ReLU (per-channel scale/shift)
    is fused onto the input while it is loaded.
    """
    taps = tuple((dy, dx) for dy in range(3) for dx in range(3))

    def kernel(*refs):
        if prenorm:
            (xm_ref, xt_ref, xb_ref, w_ref, b_ref, sc_ref, sh_ref, *rest) = refs
        else:
            (xm_ref, xt_ref, xb_ref, w_ref, b_ref, *rest) = refs
            sc_ref = sh_ref = None
        if single_dot:
            y_ref, s1_ref, s2_ref, xpad_ref, col_ref = rest
        else:
            y_ref, s1_ref, s2_ref, xpad_ref = rest

        h = pl.program_id(1)
        nh = pl.num_programs(1)

        def prep(v):
            v = v.astype(jnp.float32)
            if prenorm:
                # fused BatchNorm(prev) + ReLU applied to the previous conv's
                # raw (pre-norm) output — saves one full HBM round trip.
                v = jnp.maximum(v * sc_ref[...] + sh_ref[...], 0.0)
            return v.astype(jnp.bfloat16)

        mid = prep(xm_ref[0])     # (TH, W, Cin)
        top = prep(xt_ref[0])     # (1, W, Cin) halo row above the tile
        bot = prep(xb_ref[0])     # (1, W, Cin) halo row below the tile

        zrow = jnp.zeros((1, W, Cin), jnp.bfloat16)
        zcol = jnp.zeros((TH + 2, 1, Cin), jnp.bfloat16)

        # Assemble the zero-padded (TH+2, W+2, Cin) working tile in VMEM.
        # Every element is written on every grid step, so no zero-init needed.
        xpad_ref[:, 0:1, :] = zcol
        xpad_ref[:, W + 1:W + 2, :] = zcol
        xpad_ref[1:TH + 1, 1:W + 1, :] = mid

        @pl.when(h > 0)
        def _():
            xpad_ref[0:1, 1:W + 1, :] = top

        @pl.when(h == 0)
        def _():
            xpad_ref[0:1, 1:W + 1, :] = zrow

        @pl.when(h < nh - 1)
        def _():
            xpad_ref[TH + 1:TH + 2, 1:W + 1, :] = bot

        @pl.when(h == nh - 1)
        def _():
            xpad_ref[TH + 1:TH + 2, 1:W + 1, :] = zrow

        if single_dot:
            # im2col into a VMEM scratch, then ONE bf16 MXU matmul with K=9*Cin.
            for t, (dy, dx) in enumerate(taps):
                col_ref[:, t * Cin:(t + 1) * Cin] = (
                    xpad_ref[dy:dy + TH, dx:dx + W, :].reshape(TH * W, Cin))
            acc = jnp.dot(col_ref[...], w_ref[...],
                          preferred_element_type=jnp.float32)      # (TH*W, Cout_p)
        else:
            # Cin not lane-aligned: 9 shifted bf16 matmuls, f32 accumulation,
            # with lazy per-tap slices of the small padded-tile scratch.
            acc = jnp.zeros((TH * W, Cout_p), jnp.float32)
            for t, (dy, dx) in enumerate(taps):
                slab = xpad_ref[dy:dy + TH, dx:dx + W, :].reshape(TH * W, Cin)
                acc = acc + jnp.dot(slab, w_ref[t],
                                    preferred_element_type=jnp.float32)

        acc = acc + b_ref[...]                                     # f32 bias

        # Per-tile BatchNorm statistics (reduced across the grid outside).
        s1_ref[...] = jnp.sum(acc, axis=0, keepdims=True).reshape(1, 1, Cout_p)
        s2_ref[...] = jnp.sum(acc * acc, axis=0, keepdims=True).reshape(1, 1, Cout_p)

        y_ref[...] = acc.reshape(1, TH, W, Cout_p).astype(y_ref.dtype)

    return kernel


def _conv_pass(x, wmat, bias, *, tile_h, prenorm_scale=None, prenorm_shift=None):
    """3x3 same-padding conv (+bias) over row tiles.

    Returns (raw conv output in bf16 with lane-padded channels,
             per-channel sum, per-channel sum-of-squares) for the BN pass.
    """
    N, H, W, Cin = x.shape
    Cout_p = wmat.shape[-1]
    nh = H // tile_h
    prenorm = prenorm_scale is not None
    single_dot = (Cin % _LANES == 0)

    wk = wmat.astype(jnp.bfloat16)
    if single_dot:
        wk = wk.reshape(9 * Cin, Cout_p)

    kernel = _make_conv_kernel(prenorm, single_dot, tile_h, W, Cin, Cout_p)

    in_specs = [
        # output-row tile of the input
        pl.BlockSpec((1, tile_h, W, Cin), lambda n, h: (n, h, 0, 0)),
        # one-row halo above / below (edge-clamped; masked inside the kernel)
        pl.BlockSpec((1, 1, W, Cin),
                     lambda n, h: (n, jnp.maximum(h * tile_h - 1, 0), 0, 0)),
        pl.BlockSpec((1, 1, W, Cin),
                     lambda n, h: (n, jnp.minimum(h * tile_h + tile_h, H - 1), 0, 0)),
        # weights / bias: same block every step -> stay resident in VMEM
        pl.BlockSpec(wk.shape, lambda n, h: (0,) * wk.ndim),
        pl.BlockSpec((1, Cout_p), lambda n, h: (0, 0)),
    ]
    args = [x, x, x, wk, bias]
    if prenorm:
        in_specs += [pl.BlockSpec((1, 1, Cin), lambda n, h: (0, 0, 0))] * 2
        args += [prenorm_scale.reshape(1, 1, Cin),
                 prenorm_shift.reshape(1, 1, Cin)]

    G = N * nh
    out_shape = (
        jax.ShapeDtypeStruct((N, H, W, Cout_p), jnp.bfloat16),   # raw conv out
        jax.ShapeDtypeStruct((G, 1, Cout_p), jnp.float32),       # per-tile sum
        jax.ShapeDtypeStruct((G, 1, Cout_p), jnp.float32),       # per-tile sum sq
    )
    out_specs = (
        pl.BlockSpec((1, tile_h, W, Cout_p), lambda n, h: (n, h, 0, 0)),
        pl.BlockSpec((1, 1, Cout_p), lambda n, h: (n * nh + h, 0, 0)),
        pl.BlockSpec((1, 1, Cout_p), lambda n, h: (n * nh + h, 0, 0)),
    )

    scratch = [pltpu.VMEM((tile_h + 2, W + 2, Cin), jnp.bfloat16)]
    if single_dot:
        scratch.append(pltpu.VMEM((tile_h * W, 9 * Cin), jnp.bfloat16))

    y, s_sum, s_sq = pl.pallas_call(
        kernel,
        out_shape=out_shape,
        grid_spec=pltpu.PrefetchScalarGridSpec(
            num_scalar_prefetch=0,
            grid=(N, nh),
            in_specs=in_specs,
            out_specs=out_specs,
            scratch_shapes=scratch,
        ),
        compiler_params=pltpu.CompilerParams(
            dimension_semantics=("parallel", "parallel"),
            vmem_limit_bytes=_VMEM_LIMIT),
    )(*args)
    return y, jnp.sum(s_sum, axis=(0, 1)), jnp.sum(s_sq, axis=(0, 1))


def _bn_relu_kernel(y_ref, sc_ref, sh_ref, o_ref):
    v = y_ref[...].astype(jnp.float32)
    o_ref[...] = jnp.maximum(v * sc_ref[...] + sh_ref[...], 0.0)


def _bn_relu_pass(y, scale, shift, *, tile_h):
    """Lane-dense epilogue: y * scale + shift, ReLU (per-channel scale/shift)."""
    N, H, W, Cp = y.shape
    nh = H // tile_h
    return pl.pallas_call(
        _bn_relu_kernel,
        out_shape=jax.ShapeDtypeStruct((N, H, W, Cp), jnp.float32),
        grid_spec=pltpu.PrefetchScalarGridSpec(
            num_scalar_prefetch=0,
            grid=(N, nh),
            in_specs=[
                pl.BlockSpec((1, tile_h, W, Cp), lambda n, h: (n, h, 0, 0)),
                pl.BlockSpec((1, 1, Cp), lambda n, h: (0, 0, 0)),
                pl.BlockSpec((1, 1, Cp), lambda n, h: (0, 0, 0)),
            ],
            out_specs=pl.BlockSpec((1, tile_h, W, Cp), lambda n, h: (n, h, 0, 0)),
        ),
        compiler_params=pltpu.CompilerParams(
            dimension_semantics=("parallel", "parallel"),
            vmem_limit_bytes=_VMEM_LIMIT),
    )(y, scale.reshape(1, 1, Cp), shift.reshape(1, 1, Cp))


def _bn_scale_shift(total_sum, total_sq, count, gamma_p, beta_p):
    """Training-mode BatchNorm: global batch stats -> per-channel scale/shift."""
    mean = total_sum / count
    var = jnp.maximum(total_sq / count - mean * mean, 0.0)   # biased variance
    inv = jax.lax.rsqrt(var + _EPS)
    scale = gamma_p * inv
    shift = beta_p - mean * scale
    return scale, shift


def init_double_conv(key, in_channels, out_channels, mid_channels=None):
    """Deterministic synthetic init (PyTorch-style uniform bounds)."""
    if not mid_channels:
        mid_channels = out_channels
    k1, k2, k3, k4 = jax.random.split(key, 4)

    def conv_init(kw, kb, cin, cout):
        bound = 1.0 / jnp.sqrt(cin * 9.0)
        w = jax.random.uniform(kw, (3, 3, cin, cout), jnp.float32, -bound, bound)
        b = jax.random.uniform(kb, (cout,), jnp.float32, -bound, bound)
        return w, b

    w1, b1 = conv_init(k1, k2, in_channels, mid_channels)
    w2, b2 = conv_init(k3, k4, mid_channels, out_channels)
    return dict(
        w1=w1, b1=b1, g1=jnp.ones((mid_channels,), jnp.float32),
        be1=jnp.zeros((mid_channels,), jnp.float32),
        w2=w2, b2=b2, g2=jnp.ones((out_channels,), jnp.float32),
        be2=jnp.zeros((out_channels,), jnp.float32),
    )


@functools.partial(jax.jit, static_argnames=("tile_h",))
def double_conv(x_nchw, params, tile_h=None):
    """Forward pass of DoubleConv on NCHW input (like the nn.Module)."""
    x = jnp.transpose(x_nchw, (0, 2, 3, 1))                   # NCHW -> NHWC
    N, H, W, Cin = x.shape
    w1, b1 = params["w1"], params["b1"]
    w2, b2 = params["w2"], params["b2"]
    g1, be1, g2, be2 = params["g1"], params["be1"], params["g2"], params["be2"]
    Cmid, Cout = w1.shape[-1], w2.shape[-1]
    Cmid_p, Cout_p = _round_up(Cmid, _LANES), _round_up(Cout, _LANES)

    th = tile_h if tile_h is not None else _pick_tile_h(
        H, W, max(Cin, Cmid_p), max(Cmid_p, Cout_p))
    assert H % th == 0, (H, th)

    count = jnp.float32(N * H * W)

    # ---- conv1 (+ bias) with per-tile BN statistics --------------------------
    w1p = jnp.pad(w1, ((0, 0), (0, 0), (0, 0), (0, Cmid_p - Cmid)))
    w1p = w1p.reshape(9, Cin, Cmid_p)
    b1p = jnp.pad(b1, (0, Cmid_p - Cmid)).reshape(1, Cmid_p).astype(jnp.float32)
    y1, s1, q1 = _conv_pass(x, w1p, b1p, tile_h=th)
    sc1, sh1 = _bn_scale_shift(s1, q1, count,
                               jnp.pad(g1, (0, Cmid_p - Cmid)),
                               jnp.pad(be1, (0, Cmid_p - Cmid)))

    # ---- fused (BN1 + ReLU) -> conv2 (+ bias) with per-tile BN statistics ----
    w2p = jnp.pad(w2, ((0, 0), (0, 0), (0, Cmid_p - Cmid), (0, Cout_p - Cout)))
    w2p = w2p.reshape(9, Cmid_p, Cout_p)
    b2p = jnp.pad(b2, (0, Cout_p - Cout)).reshape(1, Cout_p).astype(jnp.float32)
    y2, s2, q2 = _conv_pass(y1, w2p, b2p, tile_h=th,
                            prenorm_scale=sc1, prenorm_shift=sh1)
    sc2, sh2 = _bn_scale_shift(s2, q2, count,
                               jnp.pad(g2, (0, Cout_p - Cout)),
                               jnp.pad(be2, (0, Cout_p - Cout)))

    # ---- BN2 + ReLU epilogue --------------------------------------------------
    out = _bn_relu_pass(y2, sc2, sh2, tile_h=th)[..., :Cout]
    return jnp.transpose(out, (0, 3, 1, 2)).astype(x_nchw.dtype)  # NHWC -> NCHW


def _ref_conv_bn_relu(x_nhwc, w, b, gamma, beta):
    """Pure-JAX f32 reference for correctness checking."""
    y = jax.lax.conv_general_dilated(
        x_nhwc, w, window_strides=(1, 1), padding="SAME",
        dimension_numbers=("NHWC", "HWIO", "NHWC"))
    y = y + b
    mean = jnp.mean(y, axis=(0, 1, 2), keepdims=True)
    var = jnp.mean((y - mean) ** 2, axis=(0, 1, 2), keepdims=True)
    y = (y - mean) * jax.lax.rsqrt(var + _EPS) * gamma + beta
    return jnp.maximum(y, 0.0)


if __name__ == "__main__":
    key = jax.random.PRNGKey(0)
    kx, kp = jax.random.split(key)

    N, C_IN, C_OUT, H, W = 2, 4, 8, 16, 16
    x = jax.random.normal(kx, (N, C_IN, H, W), jnp.float32)   # PyTorch NCHW
    params = init_double_conv(kp, C_IN, C_OUT)

    # tile_h=8 -> 2 row tiles per image, so the halo/masking paths are exercised.
    out = jax.block_until_ready(double_conv(x, params, tile_h=8))
    assert out.shape == (N, C_OUT, H, W), out.shape

    # Verify against a plain-JAX f32 reference of the same semantics.
    xh = jnp.transpose(x, (0, 2, 3, 1))
    r = _ref_conv_bn_relu(xh, params["w1"], params["b1"], params["g1"], params["be1"])
    r = _ref_conv_bn_relu(r, params["w2"], params["b2"], params["g2"], params["be2"])
    r = jnp.transpose(r, (0, 3, 1, 2))

    err = jnp.abs(out - r)
    # bf16 MXU inputs + bf16 intermediate activation => ~1e-2-level deviations.
    assert float(err.max()) < 1e-1, float(err.max())
    assert float(err.mean()) < 3e-2, float(err.mean())

    print("KERNEL_OK")
</pallas_src>

<mosaic_0001>
module attributes {stable_mosaic.version = 11 : i64} {
  func.func @kernel(%arg0: i32, %arg1: i32, %arg2: memref<1x8x16x4xf32, #tpu.memory_space<vmem>>, %arg3: memref<1x1x16x4xf32, #tpu.memory_space<vmem>>, %arg4: memref<1x1x16x4xf32, #tpu.memory_space<vmem>>, %arg5: memref<9x4x128xbf16, #tpu.memory_space<vmem>>, %arg6: memref<1x128xf32, #tpu.memory_space<vmem>>, %arg7: memref<1x8x16x128xbf16, #tpu.memory_space<vmem>>, %arg8: memref<1x1x128xf32, #tpu.memory_space<vmem>>, %arg9: memref<1x1x128xf32, #tpu.memory_space<vmem>>, %arg10: memref<10x18x4xbf16, #tpu.memory_space<vmem>>) attributes {dimension_semantics = [#tpu.dimension_semantics<parallel>, #tpu.dimension_semantics<parallel>], iteration_bounds = array<i64: 2, 2>, scalar_prefetch = 0 : i64, scratch_operands = 1 : i64, tpu.core_type = #tpu.core_type<tc>, window_params = [{transform_indices = @transform_0, window_bounds = array<i64: 1, 8, 16, 4>}, {transform_indices = @transform_1, window_bounds = array<i64: 1, 1, 16, 4>}, {transform_indices = @transform_2, window_bounds = array<i64: 1, 1, 16, 4>}, {pipeline_mode = #tpu.pipeline_mode<synchronous>, transform_indices = @transform_3, window_bounds = array<i64: 9, 4, 128>}, {pipeline_mode = #tpu.pipeline_mode<synchronous>, transform_indices = @transform_4, window_bounds = array<i64: 1, 128>}, {transform_indices = @transform_5, window_bounds = array<i64: 1, 8, 16, 128>}, {transform_indices = @transform_6, window_bounds = array<i64: 1, 1, 128>}, {transform_indices = @transform_7, window_bounds = array<i64: 1, 1, 128>}]} {
    %c0 = arith.constant 0 : index
    %c0_0 = arith.constant 0 : index
    %c0_1 = arith.constant 0 : index
    %c0_2 = arith.constant 0 : index
    %0 = vector.load %arg2[%c0, %c0_0, %c0_1, %c0_2] : memref<1x8x16x4xf32, #tpu.memory_space<vmem>>, vector<1x8x16x4xf32>
    %1 = vector.shape_cast %0 : vector<1x8x16x4xf32> to vector<8x16x4xf32>
    %2 = arith.truncf %1 : vector<8x16x4xf32> to vector<8x16x4xbf16>
    %c0_3 = arith.constant 0 : index
    %c0_4 = arith.constant 0 : index
    %c0_5 = arith.constant 0 : index
    %c0_6 = arith.constant 0 : index
    %3 = vector.load %arg3[%c0_3, %c0_4, %c0_5, %c0_6] : memref<1x1x16x4xf32, #tpu.memory_space<vmem>>, vector<1x1x16x4xf32>
    %4 = vector.shape_cast %3 : vector<1x1x16x4xf32> to vector<1x16x4xf32>
    %5 = arith.truncf %4 : vector<1x16x4xf32> to vector<1x16x4xbf16>
    %c0_7 = arith.constant 0 : index
    %c0_8 = arith.constant 0 : index
    %c0_9 = arith.constant 0 : index
    %c0_10 = arith.constant 0 : index
    %6 = vector.load %arg4[%c0_7, %c0_8, %c0_9, %c0_10] : memref<1x1x16x4xf32, #tpu.memory_space<vmem>>, vector<1x1x16x4xf32>
    %7 = vector.shape_cast %6 : vector<1x1x16x4xf32> to vector<1x16x4xf32>
    %8 = arith.truncf %7 : vector<1x16x4xf32> to vector<1x16x4xbf16>
    %cst = arith.constant 0.000000e+00 : bf16
    %9 = vector.broadcast %cst : bf16 to vector<1x16x4xbf16>
    %cst_11 = arith.constant 0.000000e+00 : bf16
    %10 = vector.broadcast %cst_11 : bf16 to vector<10x1x4xbf16>
    %c0_12 = arith.constant 0 : index
    %c0_13 = arith.constant 0 : index
    %c0_14 = arith.constant 0 : index
    %11 = vector.load %arg10[%c0_12, %c0_13, %c0_14] : memref<10x18x4xbf16, #tpu.memory_space<vmem>>, vector<10x1x4xbf16>
    tpu.vector_store %arg10[%c0_12, %c0_13, %c0_14], %10 {strides = array<i32>} : memref<10x18x4xbf16, #tpu.memory_space<vmem>>, vector<10x1x4xbf16>,
    %c0_15 = arith.constant 0 : index
    %c17 = arith.constant 17 : index
    %c0_16 = arith.constant 0 : index
    %12 = vector.load %arg10[%c0_15, %c17, %c0_16] : memref<10x18x4xbf16, #tpu.memory_space<vmem>>, vector<10x1x4xbf16>
    tpu.vector_store %arg10[%c0_15, %c17, %c0_16], %10 {strides = array<i32>} : memref<10x18x4xbf16, #tpu.memory_space<vmem>>, vector<10x1x4xbf16>,
    %c1 = arith.constant 1 : index
    %c1_17 = arith.constant 1 : index
    %c0_18 = arith.constant 0 : index
    %13 = vector.load %arg10[%c1, %c1_17, %c0_18] : memref<10x18x4xbf16, #tpu.memory_space<vmem>>, vector<8x16x4xbf16>
    tpu.vector_store %arg10[%c1, %c1_17, %c0_18], %2 {strides = array<i32>} : memref<10x18x4xbf16, #tpu.memory_space<vmem>>, vector<8x16x4xbf16>,
    %c0_i32 = arith.constant 0 : i32
    %14 = arith.cmpi sgt, %arg1, %c0_i32 : i32
    %15 = arith.extui %14 : i1 to i32
    %c0_i32_19 = arith.constant 0 : i32
    %16 = arith.cmpi ne, %15, %c0_i32_19 : i32
    scf.if %16 {
      %c0_96 = arith.constant 0 : index
      %c1_97 = arith.constant 1 : index
      %c0_98 = arith.constant 0 : index
      %96 = vector.load %arg10[%c0_96, %c1_97, %c0_98] : memref<10x18x4xbf16, #tpu.memory_space<vmem>>, vector<1x16x4xbf16>
      tpu.vector_store %arg10[%c0_96, %c1_97, %c0_98], %5 {strides = array<i32>} : memref<10x18x4xbf16, #tpu.memory_space<vmem>>, vector<1x16x4xbf16>,
    } else {
    }
    %c0_i32_20 = arith.constant 0 : i32
    %17 = arith.cmpi eq, %arg1, %c0_i32_20 : i32
    %18 = arith.extui %17 : i1 to i32
    %c0_i32_21 = arith.constant 0 : i32
    %19 = arith.cmpi ne, %18, %c0_i32_21 : i32
    scf.if %19 {
      %c0_96 = arith.constant 0 : index
      %c1_97 = arith.constant 1 : index
      %c0_98 = arith.constant 0 : index
      %96 = vector.load %arg10[%c0_96, %c1_97, %c0_98] : memref<10x18x4xbf16, #tpu.memory_space<vmem>>, vector<1x16x4xbf16>
      tpu.vector_store %arg10[%c0_96, %c1_97, %c0_98], %9 {strides = array<i32>} : memref<10x18x4xbf16, #tpu.memory_space<vmem>>, vector<1x16x4xbf16>,
    } else {
    }
    %c1_i32 = arith.constant 1 : i32
    %20 = arith.cmpi slt, %arg1, %c1_i32 : i32
    %21 = arith.extui %20 : i1 to i32
    %c0_i32_22 = arith.constant 0 : i32
    %22 = arith.cmpi ne, %21, %c0_i32_22 : i32
    scf.if %22 {
      %c9 = arith.constant 9 : index
      %c1_96 = arith.constant 1 : index
      %c0_97 = arith.constant 0 : index
      %96 = vector.load %arg10[%c9, %c1_96, %c0_97] : memref<10x18x4xbf16, #tpu.memory_space<vmem>>, vector<1x16x4xbf16>
      tpu.vector_store %arg10[%c9, %c1_96, %c0_97], %8 {strides = array<i32>} : memref<10x18x4xbf16, #tpu.memory_space<vmem>>, vector<1x16x4xbf16>,
    } else {
    }
    %c1_i32_23 = arith.constant 1 : i32
    %23 = arith.cmpi eq, %arg1, %c1_i32_23 : i32
    %24 = arith.extui %23 : i1 to i32
    %c0_i32_24 = arith.constant 0 : i32
    %25 = arith.cmpi ne, %24, %c0_i32_24 : i32
    scf.if %25 {
      %c9 = arith.constant 9 : index
      %c1_96 = arith.constant 1 : index
      %c0_97 = arith.constant 0 : index
      %96 = vector.load %arg10[%c9, %c1_96, %c0_97] : memref<10x18x4xbf16, #tpu.memory_space<vmem>>, vector<1x16x4xbf16>
      tpu.vector_store %arg10[%c9, %c1_96, %c0_97], %9 {strides = array<i32>} : memref<10x18x4xbf16, #tpu.memory_space<vmem>>, vector<1x16x4xbf16>,
    } else {
    }
    %cst_25 = arith.constant 0.000000e+00 : f32
    %26 = vector.broadcast %cst_25 : f32 to vector<128x128xf32>
    %c0_26 = arith.constant 0 : index
    %c0_27 = arith.constant 0 : index
    %c0_28 = arith.constant 0 : index
    %27 = vector.load %arg10[%c0_26, %c0_27, %c0_28] : memref<10x18x4xbf16, #tpu.memory_space<vmem>>, vector<8x16x4xbf16>
    %28 = vector.shape_cast %27 : vector<8x16x4xbf16> to vector<128x4xbf16>
    %c0_29 = arith.constant 0 : index
    %c0_30 = arith.constant 0 : index
    %c0_31 = arith.constant 0 : index
    %29 = vector.load %arg5[%c0_29, %c0_30, %c0_31] : memref<9x4x128xbf16, #tpu.memory_space<vmem>>, vector<1x4x128xbf16>
    %30 = vector.shape_cast %29 : vector<1x4x128xbf16> to vector<4x128xbf16>
    %cst_32 = arith.constant dense<0.000000e+00> : vector<128x128xf32>
    %31 = tpu.matmul %28, %30, %cst_32 {dimension_numbers = #tpu.dot_dimension_numbers<[1], [0], [0], [1], [0, 0, 1, 1], [], []>} : vector<128x4xbf16>, vector<4x128xbf16>, vector<128x128xf32> -> vector<128x128xf32>
    %32 = arith.addf %26, %31 : vector<128x128xf32>
    %c0_33 = arith.constant 0 : index
    %c1_34 = arith.constant 1 : index
    %c0_35 = arith.constant 0 : index
    %33 = vector.load %arg10[%c0_33, %c1_34, %c0_35] : memref<10x18x4xbf16, #tpu.memory_space<vmem>>, vector<8x16x4xbf16>
    %34 = vector.shape_cast %33 : vector<8x16x4xbf16> to vector<128x4xbf16>
    %c1_36 = arith.constant 1 : index
    %c0_37 = arith.constant 0 : index
    %c0_38 = arith.constant 0 : index
    %35 = vector.load %arg5[%c1_36, %c0_37, %c0_38] : memref<9x4x128xbf16, #tpu.memory_space<vmem>>, vector<1x4x128xbf16>
    %36 = vector.shape_cast %35 : vector<1x4x128xbf16> to vector<4x128xbf16>
    %cst_39 = arith.constant dense<0.000000e+00> : vector<128x128xf32>
    %37 = tpu.matmul %34, %36, %cst_39 {dimension_numbers = #tpu.dot_dimension_numbers<[1], [0], [0], [1], [0, 0, 1, 1], [], []>} : vector<128x4xbf16>, vector<4x128xbf16>, vector<128x128xf32> -> vector<128x128xf32>
    %38 = arith.addf %32, %37 : vector<128x128xf32>
    %c0_40 = arith.constant 0 : index
    %c2 = arith.constant 2 : index
    %c0_41 = arith.constant 0 : index
    %39 = vector.load %arg10[%c0_40, %c2, %c0_41] : memref<10x18x4xbf16, #tpu.memory_space<vmem>>, vector<8x16x4xbf16>
    %40 = vector.shape_cast %39 : vector<8x16x4xbf16> to vector<128x4xbf16>
    %c2_42 = arith.constant 2 : index
    %c0_43 = arith.constant 0 : index
    %c0_44 = arith.constant 0 : index
    %41 = vector.load %arg5[%c2_42, %c0_43, %c0_44] : memref<9x4x128xbf16, #tpu.memory_space<vmem>>, vector<1x4x128xbf16>
    %42 = vector.shape_cast %41 : vector<1x4x128xbf16> to vector<4x128xbf16>
    %cst_45 = arith.constant dense<0.000000e+00> : vector<128x128xf32>
    %43 = tpu.matmul %40, %42, %cst_45 {dimension_numbers = #tpu.dot_dimension_numbers<[1], [0], [0], [1], [0, 0, 1, 1], [], []>} : vector<128x4xbf16>, vector<4x128xbf16>, vector<128x128xf32> -> vector<128x128xf32>
    %44 = arith.addf %38, %43 : vector<128x128xf32>
    %c1_46 = arith.constant 1 : index
    %c0_47 = arith.constant 0 : index
    %c0_48 = arith.constant 0 : index
    %45 = vector.load %arg10[%c1_46, %c0_47, %c0_48] : memref<10x18x4xbf16, #tpu.memory_space<vmem>>, vector<8x16x4xbf16>
    %46 = vector.shape_cast %45 : vector<8x16x4xbf16> to vector<128x4xbf16>
    %c3 = arith.constant 3 : index
    %c0_49 = arith.constant 0 : index
    %c0_50 = arith.constant 0 : index
    %47 = vector.load %arg5[%c3, %c0_49, %c0_50] : memref<9x4x128xbf16, #tpu.memory_space<vmem>>, vector<1x4x128xbf16>
    %48 = vector.shape_cast %47 : vector<1x4x128xbf16> to vector<4x128xbf16>
    %cst_51 = arith.constant dense<0.000000e+00> : vector<128x128xf32>
    %49 = tpu.matmul %46, %48, %cst_51 {dimension_numbers = #tpu.dot_dimension_numbers<[1], [0], [0], [1], [0, 0, 1, 1], [], []>} : vector<128x4xbf16>, vector<4x128xbf16>, vector<128x128xf32> -> vector<128x128xf32>
    %50 = arith.addf %44, %49 : vector<128x128xf32>
    %c1_52 = arith.constant 1 : index
    %c1_53 = arith.constant 1 : index
    %c0_54 = arith.constant 0 : index
    %51 = vector.load %arg10[%c1_52, %c1_53, %c0_54] : memref<10x18x4xbf16, #tpu.memory_space<vmem>>, vector<8x16x4xbf16>
    %52 = vector.shape_cast %51 : vector<8x16x4xbf16> to vector<128x4xbf16>
    %c4 = arith.constant 4 : index
    %c0_55 = arith.constant 0 : index
    %c0_56 = arith.constant 0 : index
    %53 = vector.load %arg5[%c4, %c0_55, %c0_56] : memref<9x4x128xbf16, #tpu.memory_space<vmem>>, vector<1x4x128xbf16>
    %54 = vector.shape_cast %53 : vector<1x4x128xbf16> to vector<4x128xbf16>
    %cst_57 = arith.constant dense<0.000000e+00> : vector<128x128xf32>
    %55 = tpu.matmul %52, %54, %cst_57 {dimension_numbers = #tpu.dot_dimension_numbers<[1], [0], [0], [1], [0, 0, 1, 1], [], []>} : vector<128x4xbf16>, vector<4x128xbf16>, vector<128x128xf32> -> vector<128x128xf32>
    %56 = arith.addf %50, %55 : vector<128x128xf32>
    %c1_58 = arith.constant 1 : index
    %c2_59 = arith.constant 2 : index
    %c0_60 = arith.constant 0 : index
    %57 = vector.load %arg10[%c1_58, %c2_59, %c0_60] : memref<10x18x4xbf16, #tpu.memory_space<vmem>>, vector<8x16x4xbf16>
    %58 = vector.shape_cast %57 : vector<8x16x4xbf16> to vector<128x4xbf16>
    %c5 = arith.constant 5 : index
    %c0_61 = arith.constant 0 : index
    %c0_62 = arith.constant 0 : index
    %59 = vector.load %arg5[%c5, %c0_61, %c0_62] : memref<9x4x128xbf16, #tpu.memory_space<vmem>>, vector<1x4x128xbf16>
    %60 = vector.shape_cast %59 : vector<1x4x128xbf16> to vector<4x128xbf16>
    %cst_63 = arith.constant dense<0.000000e+00> : vector<128x128xf32>
    %61 = tpu.matmul %58, %60, %cst_63 {dimension_numbers = #tpu.dot_dimension_numbers<[1], [0], [0], [1], [0, 0, 1, 1], [], []>} : vector<128x4xbf16>, vector<4x128xbf16>, vector<128x128xf32> -> vector<128x128xf32>
    %62 = arith.addf %56, %61 : vector<128x128xf32>
    %c2_64 = arith.constant 2 : index
    %c0_65 = arith.constant 0 : index
    %c0_66 = arith.constant 0 : index
    %63 = vector.load %arg10[%c2_64, %c0_65, %c0_66] : memref<10x18x4xbf16, #tpu.memory_space<vmem>>, vector<8x16x4xbf16>
    %64 = vector.shape_cast %63 : vector<8x16x4xbf16> to vector<128x4xbf16>
    %c6 = arith.constant 6 : index
    %c0_67 = arith.constant 0 : index
    %c0_68 = arith.constant 0 : index
    %65 = vector.load %arg5[%c6, %c0_67, %c0_68] : memref<9x4x128xbf16, #tpu.memory_space<vmem>>, vector<1x4x128xbf16>
    %66 = vector.shape_cast %65 : vector<1x4x128xbf16> to vector<4x128xbf16>
    %cst_69 = arith.constant dense<0.000000e+00> : vector<128x128xf32>
    %67 = tpu.matmul %64, %66, %cst_69 {dimension_numbers = #tpu.dot_dimension_numbers<[1], [0], [0], [1], [0, 0, 1, 1], [], []>} : vector<128x4xbf16>, vector<4x128xbf16>, vector<128x128xf32> -> vector<128x128xf32>
    %68 = arith.addf %62, %67 : vector<128x128xf32>
    %c2_70 = arith.constant 2 : index
    %c1_71 = arith.constant 1 : index
    %c0_72 = arith.constant 0 : index
    %69 = vector.load %arg10[%c2_70, %c1_71, %c0_72] : memref<10x18x4xbf16, #tpu.memory_space<vmem>>, vector<8x16x4xbf16>
    %70 = vector.shape_cast %69 : vector<8x16x4xbf16> to vector<128x4xbf16>
    %c7 = arith.constant 7 : index
    %c0_73 = arith.constant 0 : index
    %c0_74 = arith.constant 0 : index
    %71 = vector.load %arg5[%c7, %c0_73, %c0_74] : memref<9x4x128xbf16, #tpu.memory_space<vmem>>, vector<1x4x128xbf16>
    %72 = vector.shape_cast %71 : vector<1x4x128xbf16> to vector<4x128xbf16>
    %cst_75 = arith.constant dense<0.000000e+00> : vector<128x128xf32>
    %73 = tpu.matmul %70, %72, %cst_75 {dimension_numbers = #tpu.dot_dimension_numbers<[1], [0], [0], [1], [0, 0, 1, 1], [], []>} : vector<128x4xbf16>, vector<4x128xbf16>, vector<128x128xf32> -> vector<128x128xf32>
    %74 = arith.addf %68, %73 : vector<128x128xf32>
    %c2_76 = arith.constant 2 : index
    %c2_77 = arith.constant 2 : index
    %c0_78 = arith.constant 0 : index
    %75 = vector.load %arg10[%c2_76, %c2_77, %c0_78] : memref<10x18x4xbf16, #tpu.memory_space<vmem>>, vector<8x16x4xbf16>
    %76 = vector.shape_cast %75 : vector<8x16x4xbf16> to vector<128x4xbf16>
    %c8 = arith.constant 8 : index
    %c0_79 = arith.constant 0 : index
    %c0_80 = arith.constant 0 : index
    %77 = vector.load %arg5[%c8, %c0_79, %c0_80] : memref<9x4x128xbf16, #tpu.memory_space<vmem>>, vector<1x4x128xbf16>
    %78 = vector.shape_cast %77 : vector<1x4x128xbf16> to vector<4x128xbf16>
    %cst_81 = arith.constant dense<0.000000e+00> : vector<128x128xf32>
    %79 = tpu.matmul %76, %78, %cst_81 {dimension_numbers = #tpu.dot_dimension_numbers<[1], [0], [0], [1], [0, 0, 1, 1], [], []>} : vector<128x4xbf16>, vector<4x128xbf16>, vector<128x128xf32> -> vector<128x128xf32>
    %80 = arith.addf %74, %79 : vector<128x128xf32>
    %c0_82 = arith.constant 0 : index
    %c0_83 = arith.constant 0 : index
    %81 = vector.load %arg6[%c0_82, %c0_83] : memref<1x128xf32, #tpu.memory_space<vmem>>, vector<1x128xf32>
    %82 = vector.broadcast %81 : vector<1x128xf32> to vector<128x128xf32>
    %83 = arith.addf %80, %82 : vector<128x128xf32>
    %cst_84 = arith.constant dense<0.000000e+00> : vector<128xf32>
    %84 = vector.multi_reduction <add>, %83, %cst_84 [0] : vector<128x128xf32> to vector<128xf32>
    %85 = vector.shape_cast %84 : vector<128xf32> to vector<1x128xf32>
    %86 = vector.shape_cast %85 : vector<1x128xf32> to vector<1x1x128xf32>
    %c0_85 = arith.constant 0 : index
    %c0_86 = arith.constant 0 : index
    %c0_87 = arith.constant 0 : index
    %87 = vector.load %arg8[%c0_85, %c0_86, %c0_87] : memref<1x1x128xf32, #tpu.memory_space<vmem>>, vector<1x1x128xf32>
    tpu.vector_store %arg8[%c0_85, %c0_86, %c0_87], %86 {strides = array<i32>} : memref<1x1x128xf32, #tpu.memory_space<vmem>>, vector<1x1x128xf32>,
    %88 = arith.mulf %83, %83 : vector<128x128xf32>
    %cst_88 = arith.constant dense<0.000000e+00> : vector<128xf32>
    %89 = vector.multi_reduction <add>, %88, %cst_88 [0] : vector<128x128xf32> to vector<128xf32>
    %90 = vector.shape_cast %89 : vector<128xf32> to vector<1x128xf32>
    %91 = vector.shape_cast %90 : vector<1x128xf32> to vector<1x1x128xf32>
    %c0_89 = arith.constant 0 : index
    %c0_90 = arith.constant 0 : index
    %c0_91 = arith.constant 0 : index
    %92 = vector.load %arg9[%c0_89, %c0_90, %c0_91] : memref<1x1x128xf32, #tpu.memory_space<vmem>>, vector<1x1x128xf32>
    tpu.vector_store %arg9[%c0_89, %c0_90, %c0_91], %91 {strides = array<i32>} : memref<1x1x128xf32, #tpu.memory_space<vmem>>, vector<1x1x128xf32>,
    %93 = vector.shape_cast %83 : vector<128x128xf32> to vector<1x8x16x128xf32>
    %94 = arith.truncf %93 : vector<1x8x16x128xf32> to vector<1x8x16x128xbf16>
    %c0_92 = arith.constant 0 : index
    %c0_93 = arith.constant 0 : index
    %c0_94 = arith.constant 0 : index
    %c0_95 = arith.constant 0 : index
    %95 = vector.load %arg7[%c0_92, %c0_93, %c0_94, %c0_95] : memref<1x8x16x128xbf16, #tpu.memory_space<vmem>>, vector<1x8x16x128xbf16>
    tpu.vector_store %arg7[%c0_92, %c0_93, %c0_94, %c0_95], %94 {strides = array<i32>} : memref<1x8x16x128xbf16, #tpu.memory_space<vmem>>, vector<1x8x16x128xbf16>,
    return
  }
  func.func @transform_0(%arg0: i32, %arg1: i32) -> (i32, i32, i32, i32) {
    %c0_i32 = arith.constant 0 : i32
    %c0_i32_0 = arith.constant 0 : i32
    %c0_i32_1 = arith.constant 0 : i32
    return %arg0, %arg1, %c0_i32, %c0_i32_0 : i32, i32, i32, i32
  }
  func.func @transform_1(%arg0: i32, %arg1: i32) -> (i32, i32, i32, i32) {
    %c8_i32 = arith.constant 8 : i32
    %0 = arith.muli %arg1, %c8_i32 : i32
    %c1_i32 = arith.constant 1 : i32
    %1 = arith.subi %0, %c1_i32 : i32
    %c0_i32 = arith.constant 0 : i32
    %2 = arith.maxsi %1, %c0_i32 : i32
    %c0_i32_0 = arith.constant 0 : i32
    %c0_i32_1 = arith.constant 0 : i32
    %c0_i32_2 = arith.constant 0 : i32
    return %arg0, %2, %c0_i32_0, %c0_i32_1 : i32, i32, i32, i32
  }
  func.func @transform_2(%arg0: i32, %arg1: i32) -> (i32, i32, i32, i32) {
    %c8_i32 = arith.constant 8 : i32
    %0 = arith.muli %arg1, %c8_i32 : i32
    %c8_i32_0 = arith.constant 8 : i32
    %1 = arith.addi %0, %c8_i32_0 : i32
    %c15_i32 = arith.constant 15 : i32
    %2 = arith.minsi %1, %c15_i32 : i32
    %c0_i32 = arith.constant 0 : i32
    %c0_i32_1 = arith.constant 0 : i32
    %c0_i32_2 = arith.constant 0 : i32
    return %arg0, %2, %c0_i32, %c0_i32_1 : i32, i32, i32, i32
  }
  func.func @transform_3(%arg0: i32, %arg1: i32) -> (i32, i32, i32) {
    %c0_i32 = arith.constant 0 : i32
    %c0_i32_0 = arith.constant 0 : i32
    %c0_i32_1 = arith.constant 0 : i32
    %c0_i32_2 = arith.constant 0 : i32
    return %c0_i32, %c0_i32_0, %c0_i32_1 : i32, i32, i32
  }
  func.func @transform_4(%arg0: i32, %arg1: i32) -> (i32, i32) {
    %c0_i32 = arith.constant 0 : i32
    %c0_i32_0 = arith.constant 0 : i32
    %c0_i32_1 = arith.constant 0 : i32
    return %c0_i32, %c0_i32_0 : i32, i32
  }
  func.func @transform_5(%arg0: i32, %arg1: i32) -> (i32, i32, i32, i32) {
    %c0_i32 = arith.constant 0 : i32
    %c0_i32_0 = arith.constant 0 : i32
    %c0_i32_1 = arith.constant 0 : i32
    return %arg0, %arg1, %c0_i32, %c0_i32_0 : i32, i32, i32, i32
  }
  func.func @transform_6(%arg0: i32, %arg1: i32) -> (i32, i32, i32) {
    %c2_i32 = arith.constant 2 : i32
    %0 = arith.muli %arg0, %c2_i32 : i32
    %1 = arith.addi %0, %arg1 : i32
    %c0_i32 = arith.constant 0 : i32
    %c0_i32_0 = arith.constant 0 : i32
    %c0_i32_1 = arith.constant 0 : i32
    return %1, %c0_i32, %c0_i32_0 : i32, i32, i32
  }
  func.func @transform_7(%arg0: i32, %arg1: i32) -> (i32, i32, i32) {
    %c2_i32 = arith.constant 2 : i32
    %0 = arith.muli %arg0, %c2_i32 : i32
    %1 = arith.addi %0, %arg1 : i32
    %c0_i32 = arith.constant 0 : i32
    %c0_i32_0 = arith.constant 0 : i32
    %c0_i32_1 = arith.constant 0 : i32
    return %1, %c0_i32, %c0_i32_0 : i32, i32, i32
  }
}

module attributes {stable_mosaic.version = 11 : i64} {
  func.func @kernel(%arg0: i32, %arg1: i32, %arg2: memref<1x8x16x128xbf16, #tpu.memory_space<vmem>>, %arg3: memref<1x1x16x128xbf16, #tpu.memory_space<vmem>>, %arg4: memref<1x1x16x128xbf16, #tpu.memory_space<vmem>>, %arg5: memref<1152x128xbf16, #tpu.memory_space<vmem>>, %arg6: memref<1x128xf32, #tpu.memory_space<vmem>>, %arg7: memref<1x1x128xf32, #tpu.memory_space<vmem>>, %arg8: memref<1x1x128xf32, #tpu.memory_space<vmem>>, %arg9: memref<1x8x16x128xbf16, #tpu.memory_space<vmem>>, %arg10: memref<1x1x128xf32, #tpu.memory_space<vmem>>, %arg11: memref<1x1x128xf32, #tpu.memory_space<vmem>>, %arg12: memref<10x18x128xbf16, #tpu.memory_space<vmem>>, %arg13: memref<128x1152xbf16, #tpu.memory_space<vmem>>) attributes {dimension_semantics = [#tpu.dimension_semantics<parallel>, #tpu.dimension_semantics<parallel>], iteration_bounds = array<i64: 2, 2>, scalar_prefetch = 0 : i64, scratch_operands = 2 : i64, tpu.core_type = #tpu.core_type<tc>, window_params = [{transform_indices = @transform_0, window_bounds = array<i64: 1, 8, 16, 128>}, {transform_indices = @transform_1, window_bounds = array<i64: 1, 1, 16, 128>}, {transform_indices = @transform_2, window_bounds = array<i64: 1, 1, 16, 128>}, {pipeline_mode = #tpu.pipeline_mode<synchronous>, transform_indices = @transform_3, window_bounds = array<i64: 1152, 128>}, {pipeline_mode = #tpu.pipeline_mode<synchronous>, transform_indices = @transform_4, window_bounds = array<i64: 1, 128>}, {pipeline_mode = #tpu.pipeline_mode<synchronous>, transform_indices = @transform_5, window_bounds = array<i64: 1, 1, 128>}, {pipeline_mode = #tpu.pipeline_mode<synchronous>, transform_indices = @transform_6, window_bounds = array<i64: 1, 1, 128>}, {transform_indices = @transform_7, window_bounds = array<i64: 1, 8, 16, 128>}, {transform_indices = @transform_8, window_bounds = array<i64: 1, 1, 128>}, {transform_indices = @transform_9, window_bounds = array<i64: 1, 1, 128>}]} {
    %c0 = arith.constant 0 : index
    %c0_0 = arith.constant 0 : index
    %c0_1 = arith.constant 0 : index
    %c0_2 = arith.constant 0 : index
    %0 = vector.load %arg2[%c0, %c0_0, %c0_1, %c0_2] : memref<1x8x16x128xbf16, #tpu.memory_space<vmem>>, vector<1x8x16x128xbf16>
    %1 = vector.shape_cast %0 : vector<1x8x16x128xbf16> to vector<8x16x128xbf16>
    %2 = arith.extf %1 : vector<8x16x128xbf16> to vector<8x16x128xf32>
    %c0_3 = arith.constant 0 : index
    %c0_4 = arith.constant 0 : index
    %c0_5 = arith.constant 0 : index
    %3 = vector.load %arg7[%c0_3, %c0_4, %c0_5] : memref<1x1x128xf32, #tpu.memory_space<vmem>>, vector<1x1x128xf32>
    %4 = vector.broadcast %3 : vector<1x1x128xf32> to vector<8x16x128xf32>
    %5 = arith.mulf %2, %4 : vector<8x16x128xf32>
    %c0_6 = arith.constant 0 : index
    %c0_7 = arith.constant 0 : index
    %c0_8 = arith.constant 0 : index
    %6 = vector.load %arg8[%c0_6, %c0_7, %c0_8] : memref<1x1x128xf32, #tpu.memory_space<vmem>>, vector<1x1x128xf32>
    %7 = vector.broadcast %6 : vector<1x1x128xf32> to vector<8x16x128xf32>
    %8 = arith.addf %5, %7 : vector<8x16x128xf32>
    %cst = arith.constant 0.000000e+00 : f32
    %9 = vector.broadcast %cst : f32 to vector<8x16x128xf32>
    %10 = arith.maximumf %8, %9 : vector<8x16x128xf32>
    %11 = arith.truncf %10 : vector<8x16x128xf32> to vector<8x16x128xbf16>
    %c0_9 = arith.constant 0 : index
    %c0_10 = arith.constant 0 : index
    %c0_11 = arith.constant 0 : index
    %c0_12 = arith.constant 0 : index
    %12 = vector.load %arg3[%c0_9, %c0_10, %c0_11, %c0_12] : memref<1x1x16x128xbf16, #tpu.memory_space<vmem>>, vector<1x1x16x128xbf16>
    %13 = vector.shape_cast %12 : vector<1x1x16x128xbf16> to vector<1x16x128xbf16>
    %14 = arith.extf %13 : vector<1x16x128xbf16> to vector<1x16x128xf32>
    %c0_13 = arith.constant 0 : index
    %c0_14 = arith.constant 0 : index
    %c0_15 = arith.constant 0 : index
    %15 = vector.load %arg7[%c0_13, %c0_14, %c0_15] : memref<1x1x128xf32, #tpu.memory_space<vmem>>, vector<1x1x128xf32>
    %16 = vector.broadcast %15 : vector<1x1x128xf32> to vector<1x16x128xf32>
    %17 = arith.mulf %14, %16 : vector<1x16x128xf32>
    %c0_16 = arith.constant 0 : index
    %c0_17 = arith.constant 0 : index
    %c0_18 = arith.constant 0 : index
    %18 = vector.load %arg8[%c0_16, %c0_17, %c0_18] : memref<1x1x128xf32, #tpu.memory_space<vmem>>, vector<1x1x128xf32>
    %19 = vector.broadcast %18 : vector<1x1x128xf32> to vector<1x16x128xf32>
    %20 = arith.addf %17, %19 : vector<1x16x128xf32>
    %cst_19 = arith.constant 0.000000e+00 : f32
    %21 = vector.broadcast %cst_19 : f32 to vector<1x16x128xf32>
    %22 = arith.maximumf %20, %21 : vector<1x16x128xf32>
    %23 = arith.truncf %22 : vector<1x16x128xf32> to vector<1x16x128xbf16>
    %c0_20 = arith.constant 0 : index
    %c0_21 = arith.constant 0 : index
    %c0_22 = arith.constant 0 : index
    %c0_23 = arith.constant 0 : index
    %24 = vector.load %arg4[%c0_20, %c0_21, %c0_22, %c0_23] : memref<1x1x16x128xbf16, #tpu.memory_space<vmem>>, vector<1x1x16x128xbf16>
    %25 = vector.shape_cast %24 : vector<1x1x16x128xbf16> to vector<1x16x128xbf16>
    %26 = arith.extf %25 : vector<1x16x128xbf16> to vector<1x16x128xf32>
    %c0_24 = arith.constant 0 : index
    %c0_25 = arith.constant 0 : index
    %c0_26 = arith.constant 0 : index
    %27 = vector.load %arg7[%c0_24, %c0_25, %c0_26] : memref<1x1x128xf32, #tpu.memory_space<vmem>>, vector<1x1x128xf32>
    %28 = vector.broadcast %27 : vector<1x1x128xf32> to vector<1x16x128xf32>
    %29 = arith.mulf %26, %28 : vector<1x16x128xf32>
    %c0_27 = arith.constant 0 : index
    %c0_28 = arith.constant 0 : index
    %c0_29 = arith.constant 0 : index
    %30 = vector.load %arg8[%c0_27, %c0_28, %c0_29] : memref<1x1x128xf32, #tpu.memory_space<vmem>>, vector<1x1x128xf32>
    %31 = vector.broadcast %30 : vector<1x1x128xf32> to vector<1x16x128xf32>
    %32 = arith.addf %29, %31 : vector<1x16x128xf32>
    %cst_30 = arith.constant 0.000000e+00 : f32
    %33 = vector.broadcast %cst_30 : f32 to vector<1x16x128xf32>
    %34 = arith.maximumf %32, %33 : vector<1x16x128xf32>
    %35 = arith.truncf %34 : vector<1x16x128xf32> to vector<1x16x128xbf16>
    %cst_31 = arith.constant 0.000000e+00 : bf16
    %36 = vector.broadcast %cst_31 : bf16 to vector<1x16x128xbf16>
    %cst_32 = arith.constant 0.000000e+00 : bf16
    %37 = vector.broadcast %cst_32 : bf16 to vector<10x1x128xbf16>
    %c0_33 = arith.constant 0 : index
    %c0_34 = arith.constant 0 : index
    %c0_35 = arith.constant 0 : index
    %38 = vector.load %arg12[%c0_33, %c0_34, %c0_35] : memref<10x18x128xbf16, #tpu.memory_space<vmem>>, vector<10x1x128xbf16>
    tpu.vector_store %arg12[%c0_33, %c0_34, %c0_35], %37 {strides = array<i32>} : memref<10x18x128xbf16, #tpu.memory_space<vmem>>, vector<10x1x128xbf16>,
    %c0_36 = arith.constant 0 : index
    %c17 = arith.constant 17 : index
    %c0_37 = arith.constant 0 : index
    %39 = vector.load %arg12[%c0_36, %c17, %c0_37] : memref<10x18x128xbf16, #tpu.memory_space<vmem>>, vector<10x1x128xbf16>
    tpu.vector_store %arg12[%c0_36, %c17, %c0_37], %37 {strides = array<i32>} : memref<10x18x128xbf16, #tpu.memory_space<vmem>>, vector<10x1x128xbf16>,
    %c1 = arith.constant 1 : index
    %c1_38 = arith.constant 1 : index
    %c0_39 = arith.constant 0 : index
    %40 = vector.load %arg12[%c1, %c1_38, %c0_39] : memref<10x18x128xbf16, #tpu.memory_space<vmem>>, vector<8x16x128xbf16>
    tpu.vector_store %arg12[%c1, %c1_38, %c0_39], %11 {strides = array<i32>} : memref<10x18x128xbf16, #tpu.memory_space<vmem>>, vector<8x16x128xbf16>,
    %c0_i32 = arith.constant 0 : i32
    %41 = arith.cmpi sgt, %arg1, %c0_i32 : i32
    %42 = arith.extui %41 : i1 to i32
    %c0_i32_40 = arith.constant 0 : i32
    %43 = arith.cmpi ne, %42, %c0_i32_40 : i32
    scf.if %43 {
      %c0_101 = arith.constant 0 : index
      %c1_102 = arith.constant 1 : index
      %c0_103 = arith.constant 0 : index
      %98 = vector.load %arg12[%c0_101, %c1_102, %c0_103] : memref<10x18x128xbf16, #tpu.memory_space<vmem>>, vector<1x16x128xbf16>
      tpu.vector_store %arg12[%c0_101, %c1_102, %c0_103], %23 {strides = array<i32>} : memref<10x18x128xbf16, #tpu.memory_space<vmem>>, vector<1x16x128xbf16>,
    } else {
    }
    %c0_i32_41 = arith.constant 0 : i32
    %44 = arith.cmpi eq, %arg1, %c0_i32_41 : i32
    %45 = arith.extui %44 : i1 to i32
    %c0_i32_42 = arith.constant 0 : i32
    %46 = arith.cmpi ne, %45, %c0_i32_42 : i32
    scf.if %46 {
      %c0_101 = arith.constant 0 : index
      %c1_102 = arith.constant 1 : index
      %c0_103 = arith.constant 0 : index
      %98 = vector.load %arg12[%c0_101, %c1_102, %c0_103] : memref<10x18x128xbf16, #tpu.memory_space<vmem>>, vector<1x16x128xbf16>
      tpu.vector_store %arg12[%c0_101, %c1_102, %c0_103], %36 {strides = array<i32>} : memref<10x18x128xbf16, #tpu.memory_space<vmem>>, vector<1x16x128xbf16>,
    } else {
    }
    %c1_i32 = arith.constant 1 : i32
    %47 = arith.cmpi slt, %arg1, %c1_i32 : i32
    %48 = arith.extui %47 : i1 to i32
    %c0_i32_43 = arith.constant 0 : i32
    %49 = arith.cmpi ne, %48, %c0_i32_43 : i32
    scf.if %49 {
      %c9 = arith.constant 9 : index
      %c1_101 = arith.constant 1 : index
      %c0_102 = arith.constant 0 : index
      %98 = vector.load %arg12[%c9, %c1_101, %c0_102] : memref<10x18x128xbf16, #tpu.memory_space<vmem>>, vector<1x16x128xbf16>
      tpu.vector_store %arg12[%c9, %c1_101, %c0_102], %35 {strides = array<i32>} : memref<10x18x128xbf16, #tpu.memory_space<vmem>>, vector<1x16x128xbf16>,
    } else {
    }
    %c1_i32_44 = arith.constant 1 : i32
    %50 = arith.cmpi eq, %arg1, %c1_i32_44 : i32
    %51 = arith.extui %50 : i1 to i32
    %c0_i32_45 = arith.constant 0 : i32
    %52 = arith.cmpi ne, %51, %c0_i32_45 : i32
    scf.if %52 {
      %c9 = arith.constant 9 : index
      %c1_101 = arith.constant 1 : index
      %c0_102 = arith.constant 0 : index
      %98 = vector.load %arg12[%c9, %c1_101, %c0_102] : memref<10x18x128xbf16, #tpu.memory_space<vmem>>, vector<1x16x128xbf16>
      tpu.vector_store %arg12[%c9, %c1_101, %c0_102], %36 {strides = array<i32>} : memref<10x18x128xbf16, #tpu.memory_space<vmem>>, vector<1x16x128xbf16>,
    } else {
    }
    %c0_46 = arith.constant 0 : index
    %c0_47 = arith.constant 0 : index
    %c0_48 = arith.constant 0 : index
    %53 = vector.load %arg12[%c0_46, %c0_47, %c0_48] : memref<10x18x128xbf16, #tpu.memory_space<vmem>>, vector<8x16x128xbf16>
    %54 = vector.shape_cast %53 : vector<8x16x128xbf16> to vector<128x128xbf16>
    %c0_49 = arith.constant 0 : index
    %c0_50 = arith.constant 0 : index
    %55 = vector.load %arg13[%c0_49, %c0_50] : memref<128x1152xbf16, #tpu.memory_space<vmem>>, vector<128x128xbf16>
    tpu.vector_store %arg13[%c0_49, %c0_50], %54 {strides = array<i32>} : memref<128x1152xbf16, #tpu.memory_space<vmem>>, vector<128x128xbf16>,
    %c0_51 = arith.constant 0 : index
    %c1_52 = arith.constant 1 : index
    %c0_53 = arith.constant 0 : index
    %56 = vector.load %arg12[%c0_51, %c1_52, %c0_53] : memref<10x18x128xbf16, #tpu.memory_space<vmem>>, vector<8x16x128xbf16>
    %57 = vector.shape_cast %56 : vector<8x16x128xbf16> to vector<128x128xbf16>
    %c0_54 = arith.constant 0 : index
    %c128 = arith.constant 128 : index
    %58 = vector.load %arg13[%c0_54, %c128] : memref<128x1152xbf16, #tpu.memory_space<vmem>>, vector<128x128xbf16>
    tpu.vector_store %arg13[%c0_54, %c128], %57 {strides = array<i32>} : memref<128x1152xbf16, #tpu.memory_space<vmem>>, vector<128x128xbf16>,
    %c0_55 = arith.constant 0 : index
    %c2 = arith.constant 2 : index
    %c0_56 = arith.constant 0 : index
    %59 = vector.load %arg12[%c0_55, %c2, %c0_56] : memref<10x18x128xbf16, #tpu.memory_space<vmem>>, vector<8x16x128xbf16>
    %60 = vector.shape_cast %59 : vector<8x16x128xbf16> to vector<128x128xbf16>
    %c0_57 = arith.constant 0 : index
    %c256 = arith.constant 256 : index
    %61 = vector.load %arg13[%c0_57, %c256] : memref<128x1152xbf16, #tpu.memory_space<vmem>>, vector<128x128xbf16>
    tpu.vector_store %arg13[%c0_57, %c256], %60 {strides = array<i32>} : memref<128x1152xbf16, #tpu.memory_space<vmem>>, vector<128x128xbf16>,
    %c1_58 = arith.constant 1 : index
    %c0_59 = arith.constant 0 : index
    %c0_60 = arith.constant 0 : index
    %62 = vector.load %arg12[%c1_58, %c0_59, %c0_60] : memref<10x18x128xbf16, #tpu.memory_space<vmem>>, vector<8x16x128xbf16>
    %63 = vector.shape_cast %62 : vector<8x16x128xbf16> to vector<128x128xbf16>
    %c0_61 = arith.constant 0 : index
    %c384 = arith.constant 384 : index
    %64 = vector.load %arg13[%c0_61, %c384] : memref<128x1152xbf16, #tpu.memory_space<vmem>>, vector<128x128xbf16>
    tpu.vector_store %arg13[%c0_61, %c384], %63 {strides = array<i32>} : memref<128x1152xbf16, #tpu.memory_space<vmem>>, vector<128x128xbf16>,
    %c1_62 = arith.constant 1 : index
    %c1_63 = arith.constant 1 : index
    %c0_64 = arith.constant 0 : index
    %65 = vector.load %arg12[%c1_62, %c1_63, %c0_64] : memref<10x18x128xbf16, #tpu.memory_space<vmem>>, vector<8x16x128xbf16>
    %66 = vector.shape_cast %65 : vector<8x16x128xbf16> to vector<128x128xbf16>
    %c0_65 = arith.constant 0 : index
    %c512 = arith.constant 512 : index
    %67 = vector.load %arg13[%c0_65, %c512] : memref<128x1152xbf16, #tpu.memory_space<vmem>>, vector<128x128xbf16>
    tpu.vector_store %arg13[%c0_65, %c512], %66 {strides = array<i32>} : memref<128x1152xbf16, #tpu.memory_space<vmem>>, vector<128x128xbf16>,
    %c1_66 = arith.constant 1 : index
    %c2_67 = arith.constant 2 : index
    %c0_68 = arith.constant 0 : index
    %68 = vector.load %arg12[%c1_66, %c2_67, %c0_68] : memref<10x18x128xbf16, #tpu.memory_space<vmem>>, vector<8x16x128xbf16>
    %69 = vector.shape_cast %68 : vector<8x16x128xbf16> to vector<128x128xbf16>
    %c0_69 = arith.constant 0 : index
    %c640 = arith.constant 640 : index
    %70 = vector.load %arg13[%c0_69, %c640] : memref<128x1152xbf16, #tpu.memory_space<vmem>>, vector<128x128xbf16>
    tpu.vector_store %arg13[%c0_69, %c640], %69 {strides = array<i32>} : memref<128x1152xbf16, #tpu.memory_space<vmem>>, vector<128x128xbf16>,
    %c2_70 = arith.constant 2 : index
    %c0_71 = arith.constant 0 : index
    %c0_72 = arith.constant 0 : index
    %71 = vector.load %arg12[%c2_70, %c0_71, %c0_72] : memref<10x18x128xbf16, #tpu.memory_space<vmem>>, vector<8x16x128xbf16>
    %72 = vector.shape_cast %71 : vector<8x16x128xbf16> to vector<128x128xbf16>
    %c0_73 = arith.constant 0 : index
    %c768 = arith.constant 768 : index
    %73 = vector.load %arg13[%c0_73, %c768] : memref<128x1152xbf16, #tpu.memory_space<vmem>>, vector<128x128xbf16>
    tpu.vector_store %arg13[%c0_73, %c768], %72 {strides = array<i32>} : memref<128x1152xbf16, #tpu.memory_space<vmem>>, vector<128x128xbf16>,
    %c2_74 = arith.constant 2 : index
    %c1_75 = arith.constant 1 : index
    %c0_76 = arith.constant 0 : index
    %74 = vector.load %arg12[%c2_74, %c1_75, %c0_76] : memref<10x18x128xbf16, #tpu.memory_space<vmem>>, vector<8x16x128xbf16>
    %75 = vector.shape_cast %74 : vector<8x16x128xbf16> to vector<128x128xbf16>
    %c0_77 = arith.constant 0 : index
    %c896 = arith.constant 896 : index
    %76 = vector.load %arg13[%c0_77, %c896] : memref<128x1152xbf16, #tpu.memory_space<vmem>>, vector<128x128xbf16>
    tpu.vector_store %arg13[%c0_77, %c896], %75 {strides = array<i32>} : memref<128x1152xbf16, #tpu.memory_space<vmem>>, vector<128x128xbf16>,
    %c2_78 = arith.constant 2 : index
    %c2_79 = arith.constant 2 : index
    %c0_80 = arith.constant 0 : index
    %77 = vector.load %arg12[%c2_78, %c2_79, %c0_80] : memref<10x18x128xbf16, #tpu.memory_space<vmem>>, vector<8x16x128xbf16>
    %78 = vector.shape_cast %77 : vector<8x16x128xbf16> to vector<128x128xbf16>
    %c0_81 = arith.constant 0 : index
    %c1024 = arith.constant 1024 : index
    %79 = vector.load %arg13[%c0_81, %c1024] : memref<128x1152xbf16, #tpu.memory_space<vmem>>, vector<128x128xbf16>
    tpu.vector_store %arg13[%c0_81, %c1024], %78 {strides = array<i32>} : memref<128x1152xbf16, #tpu.memory_space<vmem>>, vector<128x128xbf16>,
    %c0_82 = arith.constant 0 : index
    %c0_83 = arith.constant 0 : index
    %80 = vector.load %arg13[%c0_82, %c0_83] : memref<128x1152xbf16, #tpu.memory_space<vmem>>, vector<128x1152xbf16>
    %c0_84 = arith.constant 0 : index
    %c0_85 = arith.constant 0 : index
    %81 = vector.load %arg5[%c0_84, %c0_85] : memref<1152x128xbf16, #tpu.memory_space<vmem>>, vector<1152x128xbf16>
    %cst_86 = arith.constant dense<0.000000e+00> : vector<128x128xf32>
    %82 = tpu.matmul %80, %81, %cst_86 {dimension_numbers = #tpu.dot_dimension_numbers<[1], [0], [0], [1], [0, 0, 1, 1], [], []>} : vector<128x1152xbf16>, vector<1152x128xbf16>, vector<128x128xf32> -> vector<128x128xf32>
    %c0_87 = arith.constant 0 : index
    %c0_88 = arith.constant 0 : index
    %83 = vector.load %arg6[%c0_87, %c0_88] : memref<1x128xf32, #tpu.memory_space<vmem>>, vector<1x128xf32>
    %84 = vector.broadcast %83 : vector<1x128xf32> to vector<128x128xf32>
    %85 = arith.addf %82, %84 : vector<128x128xf32>
    %cst_89 = arith.constant dense<0.000000e+00> : vector<128xf32>
    %86 = vector.multi_reduction <add>, %85, %cst_89 [0] : vector<128x128xf32> to vector<128xf32>
    %87 = vector.shape_cast %86 : vector<128xf32> to vector<1x128xf32>
    %88 = vector.shape_cast %87 : vector<1x128xf32> to vector<1x1x128xf32>
    %c0_90 = arith.constant 0 : index
    %c0_91 = arith.constant 0 : index
    %c0_92 = arith.constant 0 : index
    %89 = vector.load %arg10[%c0_90, %c0_91, %c0_92] : memref<1x1x128xf32, #tpu.memory_space<vmem>>, vector<1x1x128xf32>
    tpu.vector_store %arg10[%c0_90, %c0_91, %c0_92], %88 {strides = array<i32>} : memref<1x1x128xf32, #tpu.memory_space<vmem>>, vector<1x1x128xf32>,
    %90 = arith.mulf %85, %85 : vector<128x128xf32>
    %cst_93 = arith.constant dense<0.000000e+00> : vector<128xf32>
    %91 = vector.multi_reduction <add>, %90, %cst_93 [0] : vector<128x128xf32> to vector<128xf32>
    %92 = vector.shape_cast %91 : vector<128xf32> to vector<1x128xf32>
    %93 = vector.shape_cast %92 : vector<1x128xf32> to vector<1x1x128xf32>
    %c0_94 = arith.constant 0 : index
    %c0_95 = arith.constant 0 : index
    %c0_96 = arith.constant 0 : index
    %94 = vector.load %arg11[%c0_94, %c0_95, %c0_96] : memref<1x1x128xf32, #tpu.memory_space<vmem>>, vector<1x1x128xf32>
    tpu.vector_store %arg11[%c0_94, %c0_95, %c0_96], %93 {strides = array<i32>} : memref<1x1x128xf32, #tpu.memory_space<vmem>>, vector<1x1x128xf32>,
    %95 = vector.shape_cast %85 : vector<128x128xf32> to vector<1x8x16x128xf32>
    %96 = arith.truncf %95 : vector<1x8x16x128xf32> to vector<1x8x16x128xbf16>
    %c0_97 = arith.constant 0 : index
    %c0_98 = arith.constant 0 : index
    %c0_99 = arith.constant 0 : index
    %c0_100 = arith.constant 0 : index
    %97 = vector.load %arg9[%c0_97, %c0_98, %c0_99, %c0_100] : memref<1x8x16x128xbf16, #tpu.memory_space<vmem>>, vector<1x8x16x128xbf16>
    tpu.vector_store %arg9[%c0_97, %c0_98, %c0_99, %c0_100], %96 {strides = array<i32>} : memref<1x8x16x128xbf16, #tpu.memory_space<vmem>>, vector<1x8x16x128xbf16>,
    return
  }
  func.func @transform_0(%arg0: i32, %arg1: i32) -> (i32, i32, i32, i32) {
    %c0_i32 = arith.constant 0 : i32
    %c0_i32_0 = arith.constant 0 : i32
    %c0_i32_1 = arith.constant 0 : i32
    return %arg0, %arg1, %c0_i32, %c0_i32_0 : i32, i32, i32, i32
  }
  func.func @transform_1(%arg0: i32, %arg1: i32) -> (i32, i32, i32, i32) {
    %c8_i32 = arith.constant 8 : i32
    %0 = arith.muli %arg1, %c8_i32 : i32
    %c1_i32 = arith.constant 1 : i32
    %1 = arith.subi %0, %c1_i32 : i32
    %c0_i32 = arith.constant 0 : i32
    %2 = arith.maxsi %1, %c0_i32 : i32
    %c0_i32_0 = arith.constant 0 : i32
    %c0_i32_1 = arith.constant 0 : i32
    %c0_i32_2 = arith.constant 0 : i32
    return %arg0, %2, %c0_i32_0, %c0_i32_1 : i32, i32, i32, i32
  }
  func.func @transform_2(%arg0: i32, %arg1: i32) -> (i32, i32, i32, i32) {
    %c8_i32 = arith.constant 8 : i32
    %0 = arith.muli %arg1, %c8_i32 : i32
    %c8_i32_0 = arith.constant 8 : i32
    %1 = arith.addi %0, %c8_i32_0 : i32
    %c15_i32 = arith.constant 15 : i32
    %2 = arith.minsi %1, %c15_i32 : i32
    %c0_i32 = arith.constant 0 : i32
    %c0_i32_1 = arith.constant 0 : i32
    %c0_i32_2 = arith.constant 0 : i32
    return %arg0, %2, %c0_i32, %c0_i32_1 : i32, i32, i32, i32
  }
  func.func @transform_3(%arg0: i32, %arg1: i32) -> (i32, i32) {
    %c0_i32 = arith.constant 0 : i32
    %c0_i32_0 = arith.constant 0 : i32
    %c0_i32_1 = arith.constant 0 : i32
    return %c0_i32, %c0_i32_0 : i32, i32
  }
  func.func @transform_4(%arg0: i32, %arg1: i32) -> (i32, i32) {
    %c0_i32 = arith.constant 0 : i32
    %c0_i32_0 = arith.constant 0 : i32
    %c0_i32_1 = arith.constant 0 : i32
    return %c0_i32, %c0_i32_0 : i32, i32
  }
  func.func @transform_5(%arg0: i32, %arg1: i32) -> (i32, i32, i32) {
    %c0_i32 = arith.constant 0 : i32
    %c0_i32_0 = arith.constant 0 : i32
    %c0_i32_1 = arith.constant 0 : i32
    %c0_i32_2 = arith.constant 0 : i32
    return %c0_i32, %c0_i32_0, %c0_i32_1 : i32, i32, i32
  }
  func.func @transform_6(%arg0: i32, %arg1: i32) -> (i32, i32, i32) {
    %c0_i32 = arith.constant 0 : i32
    %c0_i32_0 = arith.constant 0 : i32
    %c0_i32_1 = arith.constant 0 : i32
    %c0_i32_2 = arith.constant 0 : i32
    return %c0_i32, %c0_i32_0, %c0_i32_1 : i32, i32, i32
  }
  func.func @transform_7(%arg0: i32, %arg1: i32) -> (i32, i32, i32, i32) {
    %c0_i32 = arith.constant 0 : i32
    %c0_i32_0 = arith.constant 0 : i32
    %c0_i32_1 = arith.constant 0 : i32
    return %arg0, %arg1, %c0_i32, %c0_i32_0 : i32, i32, i32, i32
  }
  func.func @transform_8(%arg0: i32, %arg1: i32) -> (i32, i32, i32) {
    %c2_i32 = arith.constant 2 : i32
    %0 = arith.muli %arg0, %c2_i32 : i32
    %1 = arith.addi %0, %arg1 : i32
    %c0_i32 = arith.constant 0 : i32
    %c0_i32_0 = arith.constant 0 : i32
    %c0_i32_1 = arith.constant 0 : i32
    return %1, %c0_i32, %c0_i32_0 : i32, i32, i32
  }
  func.func @transform_9(%arg0: i32, %arg1: i32) -> (i32, i32, i32) {
    %c2_i32 = arith.constant 2 : i32
    %0 = arith.muli %arg0, %c2_i32 : i32
    %1 = arith.addi %0, %arg1 : i32
    %c0_i32 = arith.constant 0 : i32
    %c0_i32_0 = arith.constant 0 : i32
    %c0_i32_1 = arith.constant 0 : i32
    return %1, %c0_i32, %c0_i32_0 : i32, i32, i32
  }
}

module attributes {stable_mosaic.version = 11 : i64} {
  func.func @_bn_relu_kernel(%arg0: i32, %arg1: i32, %arg2: memref<1x8x16x128xbf16, #tpu.memory_space<vmem>>, %arg3: memref<1x1x128xf32, #tpu.memory_space<vmem>>, %arg4: memref<1x1x128xf32, #tpu.memory_space<vmem>>, %arg5: memref<1x8x16x128xf32, #tpu.memory_space<vmem>>) attributes {dimension_semantics = [#tpu.dimension_semantics<parallel>, #tpu.dimension_semantics<parallel>], iteration_bounds = array<i64: 2, 2>, scalar_prefetch = 0 : i64, scratch_operands = 0 : i64, tpu.core_type = #tpu.core_type<tc>, window_params = [{transform_indices = @transform_0, window_bounds = array<i64: 1, 8, 16, 128>}, {pipeline_mode = #tpu.pipeline_mode<synchronous>, transform_indices = @transform_1, window_bounds = array<i64: 1, 1, 128>}, {pipeline_mode = #tpu.pipeline_mode<synchronous>, transform_indices = @transform_2, window_bounds = array<i64: 1, 1, 128>}, {transform_indices = @transform_3, window_bounds = array<i64: 1, 8, 16, 128>}]} {
    %c0 = arith.constant 0 : index
    %c0_0 = arith.constant 0 : index
    %c0_1 = arith.constant 0 : index
    %c0_2 = arith.constant 0 : index
    %0 = vector.load %arg2[%c0, %c0_0, %c0_1, %c0_2] : memref<1x8x16x128xbf16, #tpu.memory_space<vmem>>, vector<1x8x16x128xbf16>
    %1 = arith.extf %0 : vector<1x8x16x128xbf16> to vector<1x8x16x128xf32>
    %c0_3 = arith.constant 0 : index
    %c0_4 = arith.constant 0 : index
    %c0_5 = arith.constant 0 : index
    %2 = vector.load %arg3[%c0_3, %c0_4, %c0_5] : memref<1x1x128xf32, #tpu.memory_space<vmem>>, vector<1x1x128xf32>
    %3 = vector.shape_cast %2 : vector<1x1x128xf32> to vector<1x1x1x128xf32>
    %4 = vector.broadcast %3 : vector<1x1x1x128xf32> to vector<1x8x16x128xf32>
    %5 = arith.mulf %1, %4 : vector<1x8x16x128xf32>
    %c0_6 = arith.constant 0 : index
    %c0_7 = arith.constant 0 : index
    %c0_8 = arith.constant 0 : index
    %6 = vector.load %arg4[%c0_6, %c0_7, %c0_8] : memref<1x1x128xf32, #tpu.memory_space<vmem>>, vector<1x1x128xf32>
    %7 = vector.shape_cast %6 : vector<1x1x128xf32> to vector<1x1x1x128xf32>
    %8 = vector.broadcast %7 : vector<1x1x1x128xf32> to vector<1x8x16x128xf32>
    %9 = arith.addf %5, %8 : vector<1x8x16x128xf32>
    %cst = arith.constant 0.000000e+00 : f32
    %10 = vector.broadcast %cst : f32 to vector<1x8x16x128xf32>
    %11 = arith.maximumf %9, %10 : vector<1x8x16x128xf32>
    %c0_9 = arith.constant 0 : index
    %c0_10 = arith.constant 0 : index
    %c0_11 = arith.constant 0 : index
    %c0_12 = arith.constant 0 : index
    %12 = vector.load %arg5[%c0_9, %c0_10, %c0_11, %c0_12] : memref<1x8x16x128xf32, #tpu.memory_space<vmem>>, vector<1x8x16x128xf32>
    tpu.vector_store %arg5[%c0_9, %c0_10, %c0_11, %c0_12], %11 {strides = array<i32>} : memref<1x8x16x128xf32, #tpu.memory_space<vmem>>, vector<1x8x16x128xf32>,
    return
  }
  func.func @transform_0(%arg0: i32, %arg1: i32) -> (i32, i32, i32, i32) {
    %c0_i32 = arith.constant 0 : i32
    %c0_i32_0 = arith.constant 0 : i32
    %c0_i32_1 = arith.constant 0 : i32
    return %arg0, %arg1, %c0_i32, %c0_i32_0 : i32, i32, i32, i32
  }
  func.func @transform_1(%arg0: i32, %arg1: i32) -> (i32, i32, i32) {
    %c0_i32 = arith.constant 0 : i32
    %c0_i32_0 = arith.constant 0 : i32
    %c0_i32_1 = arith.constant 0 : i32
    %c0_i32_2 = arith.constant 0 : i32
    return %c0_i32, %c0_i32_0, %c0_i32_1 : i32, i32, i32
  }
  func.func @transform_2(%arg0: i32, %arg1: i32) -> (i32, i32, i32) {
    %c0_i32 = arith.constant 0 : i32
    %c0_i32_0 = arith.constant 0 : i32
    %c0_i32_1 = arith.constant 0 : i32
    %c0_i32_2 = arith.constant 0 : i32
    return %c0_i32, %c0_i32_0, %c0_i32_1 : i32, i32, i32
  }
  func.func @transform_3(%arg0: i32, %arg1: i32) -> (i32, i32, i32, i32) {
    %c0_i32 = arith.constant 0 : i32
    %c0_i32_0 = arith.constant 0 : i32
    %c0_i32_1 = arith.constant 0 : i32
    return %arg0, %arg1, %c0_i32, %c0_i32_0 : i32, i32, i32, i32
  }
}

</mosaic_0001>

<llo_original>
// kernel: double_conv.5
$region0: #{double_conv.5}
  #allocation0 [shape = 'u32[]', space=smem, size = 0x4, offset = 0x4, fixed_abs, tag = 'smem constant byte address 0x4 - core index']
  #allocation1 [shape = 'u32[144,128]{1,0:T(1,128)}', space=vmem, size = 0x12000, scoped, tag = 'internal scratch']
  %s0 = inlined_call_operand.vmem [shape: bf16[2,16,16,128], index: 0, kind: input, shape index: {}]
  %s1 = inlined_call_operand.vmem [shape: f32[1,1,128], index: 1, kind: input, shape index: {}]
  %s2 = inlined_call_operand.vmem [shape: f32[1,1,128], index: 2, kind: input, shape index: {}]
  %s3 = inlined_call_operand.vmem [shape: f32[2,16,16,128], index: 3, kind: output, shape index: {}]
  %s4 = sld [smem:[#allocation0]]
  $region45: #{double_conv.5} parent=0
    _
  %s6 = ssub.s32 1, %s4
  %s7 = scalar_select 0, %s6, %s4
  loop: start=0, step=1, limit=6
  $region2: #{double_conv.5} parent=0 // loop_pre_header
    _
  $region3: #{double_conv.5} parent=0 // loop_header
    %s9 = sphi 0, %s13
    %p10 = scmp.ge.s32.totalorder %s9, 6
    %s16 = sphi 0, %s28
    %s17 = sphi 0, %s24
    %s18 = sphi 0, %s16
    %s19 = sphi 0, %s17
    %s20 = sphi 0, %s18
    %s21 = sphi 0, %s19
    %s33 = sphi 0, %s35
    %s36 = sphi 0, %s33
    %s37 = sphi 0, %s36
    %s53 = sphi 0, %s37
    %s57 = sphi 0, %s57
    %s59 = sphi 0, %s57
    %s60 = sphi 0, %s59
    %s74 = sphi 0, %s60
    %s78 = sphi 0, %s78
    %s80 = sphi 0, %s78
    %s81 = sphi 0, %s80
    %s95 = sphi 0, %s81
    %s103 = sphi 0, %s105
    %s106 = sphi 0, %s103
    %s107 = sphi 0, %s106
    %s123 = sphi 0, %s107
  $region4: #{double_conv.5} parent=0 // loop_header_branch
    %12 = sbr.rel (%p10) target = $region8
  $region5: #{double_conv.5} parent=0 // loop_body
    %s14 = ssub.s32 %s9, 1
    %s15 = ssub.s32 %s9, 2
    %s22 = sadd.s32 1, %s17
    %p23 = scmp.ge.s32.totalorder %s22, 2
    %s24 = scalar_select %p23, 0, %s22
    %s25 = sadd.s32 1, %s16
    %s26 = scalar_select %p23, %s25, %s16
    %p27 = scmp.ge.s32.totalorder %s26, 2
    %s28 = scalar_select %p27, 0, %s26
    %s29 = ssub.s32 %s16, %s28
    %s30 = ssub.s32 %s17, %s24
    %s31 = sor.u32 %s29, %s30
    %p32 = scmp.eq.s32.totalorder %s31, 0
    %s34 = sadd.s32 %s33, 1
    %s35 = scalar_select %p32, %s33, %s34
    %p38 = pneg %p32
    %p39 = scmp.eq.s32.totalorder %s9, 3
    %p40 = por %p38, %p39
    %p41 = scmp.ne.s32.totalorder %s33, %s36
    %p42 = scmp.eq.s32.totalorder %s9, 0
    %p43 = por %p41, %p42
    %p44 = scmp.ne.s32.totalorder %s33, %s36
    %p45 = scmp.eq.s32.totalorder %s14, 3
    %p46 = por %p44, %p45
    %p47 = scmp.ne.s32.totalorder %s36, %s37
    %p48 = scmp.eq.s32.totalorder %s14, 0
    %p49 = por %p47, %p48
    %p50 = scmp.ne.s32.totalorder %s36, %s37
    %p51 = scmp.eq.s32.totalorder %s15, 3
    %p52 = por %p50, %p51
    %p54 = scmp.ne.s32.totalorder %s37, %s53
    %p55 = scmp.eq.s32.totalorder %s15, 0
    %p56 = por %p54, %p55
    %s58 = sadd.s32 %s57, 1
    %p61 = scmp.eq.s32.totalorder %s9, 3
    %p62 = scmp.ne.s32.totalorder %s57, %s59
    %p63 = scmp.eq.s32.totalorder %s9, 0
    %p64 = por %p62, %p63
    %p65 = scmp.ne.s32.totalorder %s57, %s59
    %p66 = scmp.eq.s32.totalorder %s14, 3
    %p67 = por %p65, %p66
    %p68 = scmp.ne.s32.totalorder %s59, %s60
    %p69 = scmp.eq.s32.totalorder %s14, 0
    %p70 = por %p68, %p69
    %p71 = scmp.ne.s32.totalorder %s59, %s60
    %p72 = scmp.eq.s32.totalorder %s15, 3
    %p73 = por %p71, %p72
    %p75 = scmp.ne.s32.totalorder %s60, %s74
    %p76 = scmp.eq.s32.totalorder %s15, 0
    %p77 = por %p75, %p76
    %s79 = sadd.s32 %s78, 1
    %p82 = scmp.eq.s32.totalorder %s9, 3
    %p83 = scmp.ne.s32.totalorder %s78, %s80
    %p84 = scmp.eq.s32.totalorder %s9, 0
    %p85 = por %p83, %p84
    %p86 = scmp.ne.s32.totalorder %s78, %s80
    %p87 = scmp.eq.s32.totalorder %s14, 3
    %p88 = por %p86, %p87
    %p89 = scmp.ne.s32.totalorder %s80, %s81
    %p90 = scmp.eq.s32.totalorder %s14, 0
    %p91 = por %p89, %p90
    %p92 = scmp.ne.s32.totalorder %s80, %s81
    %p93 = scmp.eq.s32.totalorder %s15, 3
    %p94 = por %p92, %p93
    %p96 = scmp.ne.s32.totalorder %s81, %s95
    %p97 = scmp.eq.s32.totalorder %s15, 0
    %p98 = por %p96, %p97
    %s99 = ssub.s32 %s16, %s28
    %s100 = ssub.s32 %s17, %s24
    %s101 = sor.u32 %s99, %s100
    %p102 = scmp.eq.s32.totalorder %s101, 0
    %s104 = sadd.s32 %s103, 1
    %s105 = scalar_select %p102, %s103, %s104
    %p108 = pneg %p102
    %p109 = scmp.eq.s32.totalorder %s9, 3
    %p110 = por %p108, %p109
    %p111 = scmp.ne.s32.totalorder %s103, %s106
    %p112 = scmp.eq.s32.totalorder %s9, 0
    %p113 = por %p111, %p112
    %p114 = scmp.ne.s32.totalorder %s103, %s106
    %p115 = scmp.eq.s32.totalorder %s14, 3
    %p116 = por %p114, %p115
    %p117 = scmp.ne.s32.totalorder %s106, %s107
    %p118 = scmp.eq.s32.totalorder %s14, 0
    %p119 = por %p117, %p118
    %p120 = scmp.ne.s32.totalorder %s106, %s107
    %p121 = scmp.eq.s32.totalorder %s15, 3
    %p122 = por %p120, %p121
    %p124 = scmp.ne.s32.totalorder %s107, %s123
    %p125 = scmp.eq.s32.totalorder %s15, 0
    %p126 = por %p124, %p125
    %p127 = scmp.le.s32.totalorder 1, %s9
    %p128 = scmp.lt.s32.totalorder %s9, 5
    %p129 = pnand %p127, %p128
    %p130 = pneg %p129
    // Predicated region
    $region9: #{double_conv.5} parent=5 // pred_check
      _
    $region10: #{double_conv.5} parent=5 // pred_check_branch
      %132 = sbr.rel (%p129) target = $region12
    $region11: #{double_conv.5} parent=5 // pred_region
      %s133 = ssub.s32 %s9, 1
      // Predicated region
      $region13: #{double_conv.5} parent=11 // pred_check
        %p134 = pneg %p70
      $region14: #{double_conv.5} parent=11 // pred_check_branch
        %136 = sbr.rel (%p134) target = $region16
      $region15: #{double_conv.5} parent=11 // pred_region
        _
      $region16: #{double_conv.5} parent=11 // pred_fallthru
        _
      // Predicated region
      $region17: #{double_conv.5} parent=11 // pred_check
        %p137 = pneg %p91
      $region18: #{double_conv.5} parent=11 // pred_check_branch
        %139 = sbr.rel (%p137) target = $region20
      $region19: #{double_conv.5} parent=11 // pred_region
        _
      $region20: #{double_conv.5} parent=11 // pred_fallthru
        _
    $region12: #{double_conv.5} parent=5 // pred_fallthru
      _
    %p140 = scmp.lt.s32.totalorder %s9, 4
    // Predicated region
    $region21: #{double_conv.5} parent=5 // pred_check
      %p141 = pneg %p140
    $region22: #{double_conv.5} parent=5 // pred_check_branch
      %143 = sbr.rel (%p141) target = $region24
    $region23: #{double_conv.5} parent=5 // pred_region
      // Predicated region
      $region25: #{double_conv.5} parent=23 // pred_check
        %p144 = pneg %p43
      $region26: #{double_conv.5} parent=23 // pred_check_branch
        %146 = sbr.rel (%p144) target = $region28
      $region27: #{double_conv.5} parent=23 // pred_region
        %s147 = smul.u32 8, %s17
        %p148 = scmp.lt.s32.totalorder %s16, 1
        %s149 = scalar_select %p148, %s16, 1
        %p150 = scmp.lt.s32.totalorder %s147, 15
        %s151 = scalar_select %p150, %s147, 15
        %s152 = smul.addr %s151, 2
        %s153 = smul.addr %s149, 32
        %s154 = sadd.s32 %s152, %s153
        %s155 = smul.addr %s154, 4
        %s156 = scalar_lea.vmem %s0, %s155
        %s157 = smul.u32 8, %s17
      $region28: #{double_conv.5} parent=23 // pred_fallthru
        _
    $region24: #{double_conv.5} parent=5 // pred_fallthru
      _
    %p158 = scmp.le.s32.totalorder 1, %s9
    %p159 = scmp.lt.s32.totalorder %s9, 5
    %p160 = pnand %p158, %p159
    %p161 = pneg %p160
    // Predicated region
    $region29: #{double_conv.5} parent=5 // pred_check
      _
    $region30: #{double_conv.5} parent=5 // pred_check_branch
      %163 = sbr.rel (%p160) target = $region32
    $region31: #{double_conv.5} parent=5 // pred_region
      %s164 = ssub.s32 %s9, 1
      %s165 = smul.u32 8, %s19
      %p166 = scmp.lt.s32.totalorder %s18, 1
      %s167 = scalar_select %p166, %s18, 1
      %p168 = scmp.lt.s32.totalorder %s165, 15
      %s169 = scalar_select %p168, %s165, 15
      %s170 = smul.addr %s169, 2
      %s171 = smul.addr %s167, 32
      %s172 = sadd.s32 %s170, %s171
      %s173 = smul.addr %s172, 4
      %s174 = scalar_lea.vmem %s0, %s173
      %p175 = pneg %p49
      %p176 = pneg %p46
      %p177 = pneg %p70
      %p178 = pneg %p67
      %p179 = pneg %p91
      %p180 = pneg %p88
      %p181 = pneg %p119
      %p182 = pneg %p116
      %s183 = smul.u32 8, %s19
      %p184 = scmp.lt.s32.totalorder %s18, 1
      %s185 = scalar_select %p184, %s18, 1
      %p186 = scmp.lt.s32.totalorder %s183, 15
      %s187 = scalar_select %p186, %s183, 15
      %s188 = smul.addr %s187, 2
      %s189 = smul.addr %s185, 32
      %s190 = sadd.s32 %s188, %s189
      %s191 = smul.addr %s190, 8
      %s192 = scalar_lea.vmem %s3, %s191
      %s193 = smul.u32 8, %s19
      %p194 = scmp.lt.s32.totalorder %s18, 1
      %s195 = scalar_select %p194, %s18, 1
      %p196 = scmp.lt.s32.totalorder %s193, 15
      %s197 = scalar_select %p196, %s193, 15
      %s198 = smul.addr %s197, 2
      %s199 = smul.addr %s195, 32
      %s200 = sadd.s32 %s198, %s199
      %s201 = smul.addr %s200, 4
      %s202 = scalar_lea.vmem %s0, %s201
      %s203 = smul.u32 8, %s19
      %s204 = smul.u32 8, %s19
      %p205 = scmp.lt.s32.totalorder %s18, 1
      %s206 = scalar_select %p205, %s18, 1
      %p207 = scmp.lt.s32.totalorder %s204, 15
      %s208 = scalar_select %p207, %s204, 15
      %s209 = smul.addr %s208, 2
      %s210 = smul.addr %s206, 32
      %s211 = sadd.s32 %s209, %s210
      %s212 = smul.addr %s211, 8
      %s213 = scalar_lea.vmem %s3, %s212
      %s214 = smul.u32 8, %s19
      %v215 = vld [vmem:[%s202] sm:$0xf]
      %v216 = vld [vmem:[%s202 + $0x4] sm:$0xf]
      %v217 = vld [vmem:[%s202 + $0x8] sm:$0xf]
      %v218 = vld [vmem:[%s202 + $0xc] sm:$0xf]
      %v219 = vld [vmem:[%s202 + $0x10] sm:$0xf]
      %v220 = vld [vmem:[%s202 + $0x14] sm:$0xf]
      %v221 = vld [vmem:[%s202 + $0x18] sm:$0xf]
      %v222 = vld [vmem:[%s202 + $0x1c] sm:$0xf]
      %v223 = vld [vmem:[%s202 + $0x20] sm:$0xf]
      %v224 = vld [vmem:[%s202 + $0x24] sm:$0xf]
      %v225 = vld [vmem:[%s202 + $0x28] sm:$0xf]
      %v226 = vld [vmem:[%s202 + $0x2c] sm:$0xf]
      %v227 = vld [vmem:[%s202 + $0x30] sm:$0xf]
      %v228 = vld [vmem:[%s202 + $0x34] sm:$0xf]
      %v229 = vld [vmem:[%s202 + $0x38] sm:$0xf]
      %v230 = vld [vmem:[%s202 + $0x3c] sm:$0xf]
      %v231 = vunpack.c.l.bf16 %v215
      %v232 = vunpack.c.l.bf16 %v216
      %v233 = vunpack.c.l.bf16 %v217
      %v234 = vunpack.c.l.bf16 %v218
      %v235 = vunpack.c.l.bf16 %v219
      %v236 = vunpack.c.l.bf16 %v220
      %v237 = vunpack.c.l.bf16 %v221
      %v238 = vunpack.c.l.bf16 %v222
      %v239 = vunpack.c.l.bf16 %v223
      %v240 = vunpack.c.l.bf16 %v224
      %v241 = vunpack.c.l.bf16 %v225
      %v242 = vunpack.c.l.bf16 %v226
      %v243 = vunpack.c.l.bf16 %v227
      %v244 = vunpack.c.l.bf16 %v228
      %v245 = vunpack.c.l.bf16 %v229
      %v246 = vunpack.c.l.bf16 %v230
      %v247 = vld [vmem:[%s1] sm:$0x1]
      %v249 = vlaneseq
      %v250 = vshrl.u32 %v249, 7
      %v251 = vsub.s32 0, %v250
      %v252 = vrot.slane %v247, %v251
      %v254 = vmul.f32 %v231, %v252
      %v255 = vmul.f32 %v232, %v252
      %v256 = vmul.f32 %v233, %v252
      %v257 = vmul.f32 %v234, %v252
      %v258 = vmul.f32 %v235, %v252
      %v259 = vmul.f32 %v236, %v252
      %v260 = vmul.f32 %v237, %v252
      %v261 = vmul.f32 %v238, %v252
      %v262 = vmul.f32 %v239, %v252
      %v263 = vmul.f32 %v240, %v252
      %v264 = vmul.f32 %v241, %v252
      %v265 = vmul.f32 %v242, %v252
      %v266 = vmul.f32 %v243, %v252
      %v267 = vmul.f32 %v244, %v252
      %v268 = vmul.f32 %v245, %v252
      %v269 = vmul.f32 %v246, %v252
      %v270 = vld [vmem:[%s2] sm:$0x1]
      %v272 = vlaneseq
      %v273 = vshrl.u32 %v272, 7
      %v274 = vsub.s32 0, %v273
      %v275 = vrot.slane %v270, %v274
      %v277 = vadd.f32 %v254, %v275
      %v278 = vadd.f32 %v255, %v275
      %v279 = vadd.f32 %v256, %v275
      %v280 = vadd.f32 %v257, %v275
      %v281 = vadd.f32 %v258, %v275
      %v282 = vadd.f32 %v259, %v275
      %v283 = vadd.f32 %v260, %v275
      %v284 = vadd.f32 %v261, %v275
      %v285 = vadd.f32 %v262, %v275
      %v286 = vadd.f32 %v263, %v275
      %v287 = vadd.f32 %v264, %v275
      %v288 = vadd.f32 %v265, %v275
      %v289 = vadd.f32 %v266, %v275
      %v290 = vadd.f32 %v267, %v275
      %v291 = vadd.f32 %v268, %v275
      %v292 = vadd.f32 %v269, %v275
      %v293 = vmax.f32 %v277, 0.0
      %v294 = vmax.f32 %v278, 0.0
      %v295 = vmax.f32 %v279, 0.0
      %v296 = vmax.f32 %v280, 0.0
      %v297 = vmax.f32 %v281, 0.0
      %v298 = vmax.f32 %v282, 0.0
      %v299 = vmax.f32 %v283, 0.0
      %v300 = vmax.f32 %v284, 0.0
      %v301 = vmax.f32 %v285, 0.0
      %v302 = vmax.f32 %v286, 0.0
      %v303 = vmax.f32 %v287, 0.0
      %v304 = vmax.f32 %v288, 0.0
      %v305 = vmax.f32 %v289, 0.0
      %v306 = vmax.f32 %v290, 0.0
      %v307 = vmax.f32 %v291, 0.0
      %v308 = vmax.f32 %v292, 0.0
      %309 = vst [vmem:[%s213] sm:$0xff] %v293
      %310 = vst [vmem:[%s213 + $0x8] sm:$0xff] %v294
      %311 = vst [vmem:[%s213 + $0x10] sm:$0xff] %v295
      %312 = vst [vmem:[%s213 + $0x18] sm:$0xff] %v296
      %313 = vst [vmem:[%s213 + $0x20] sm:$0xff] %v297
      %314 = vst [vmem:[%s213 + $0x28] sm:$0xff] %v298
      %315 = vst [vmem:[%s213 + $0x30] sm:$0xff] %v299
      %316 = vst [vmem:[%s213 + $0x38] sm:$0xff] %v300
      %317 = vst [vmem:[%s213 + $0x40] sm:$0xff] %v301
      %318 = vst [vmem:[%s213 + $0x48] sm:$0xff] %v302
      %319 = vst [vmem:[%s213 + $0x50] sm:$0xff] %v303
      %320 = vst [vmem:[%s213 + $0x58] sm:$0xff] %v304
      %321 = vst [vmem:[%s213 + $0x60] sm:$0xff] %v305
      %322 = vst [vmem:[%s213 + $0x68] sm:$0xff] %v306
      %323 = vst [vmem:[%s213 + $0x70] sm:$0xff] %v307
      %324 = vst [vmem:[%s213 + $0x78] sm:$0xff] %v308
      %s325 = smul.u32 8, %s19
      %p326 = scmp.lt.s32.totalorder %s18, 1
      %s327 = scalar_select %p326, %s18, 1
      %p328 = scmp.lt.s32.totalorder %s325, 15
      %s329 = scalar_select %p328, %s325, 15
      %s330 = smul.addr %s329, 2
      %s331 = smul.addr %s327, 32
      %s332 = sadd.s32 %s330, %s331
      %s333 = smul.addr %s332, 8
      %s334 = scalar_lea.vmem %s3, %s333
      // Predicated region
      $region33: #{double_conv.5} parent=31 // pred_check
        %p335 = pneg %p116
      $region34: #{double_conv.5} parent=31 // pred_check_branch
        %337 = sbr.rel (%p335) target = $region36
      $region35: #{double_conv.5} parent=31 // pred_region
        %s338 = smul.u32 8, %s19
      $region36: #{double_conv.5} parent=31 // pred_fallthru
        _
    $region32: #{double_conv.5} parent=5 // pred_fallthru
      _
    %p339 = scmp.le.s32.totalorder 2, %s9
    // Predicated region
    $region37: #{double_conv.5} parent=5 // pred_check
      %p340 = pneg %p339
    $region38: #{double_conv.5} parent=5 // pred_check_branch
      %342 = sbr.rel (%p340) target = $region40
    $region39: #{double_conv.5} parent=5 // pred_region
      %s343 = ssub.s32 %s9, 2
      // Predicated region
      $region41: #{double_conv.5} parent=39 // pred_check
        %p344 = pneg %p122
      $region42: #{double_conv.5} parent=39 // pred_check_branch
        %346 = sbr.rel (%p344) target = $region44
      $region43: #{double_conv.5} parent=39 // pred_region
        %s347 = smul.u32 8, %s21
        %p348 = scmp.lt.s32.totalorder %s20, 1
        %s349 = scalar_select %p348, %s20, 1
        %p350 = scmp.lt.s32.totalorder %s347, 15
        %s351 = scalar_select %p350, %s347, 15
        %s352 = smul.addr %s351, 2
        %s353 = smul.addr %s349, 32
        %s354 = sadd.s32 %s352, %s353
        %s355 = smul.addr %s354, 8
        %s356 = scalar_lea.vmem %s3, %s355
      $region44: #{double_conv.5} parent=39 // pred_fallthru
        _
    $region40: #{double_conv.5} parent=5 // pred_fallthru
      _
  $region6: #{double_conv.5} parent=0 // loop_footer
    %s13 = sadd.s32 1, %s9
  $region7: #{double_conv.5} parent=0 // loop_footer_branch
    %8 = sbr.rel target = $region3
  $region8: #{double_conv.5} parent=0 // loop_exit
    _

// kernel: double_conv.3
$region0: #{double_conv.3}
  #allocation0 [shape = 'u32[]', space=smem, size = 0x4, offset = 0x4, fixed_abs, tag = 'smem constant byte address 0x4 - core index']
  #allocation1 [shape = 'u32[144,128]{1,0:T(1,128)}', space=vmem, size = 0x12000, scoped, tag = 'internal scratch']
  #allocation2 [shape = 'bf16[10,18,4]{2,1,0:T(8,128)(2,1)}', space=vmem, size = 0xf000, scoped, tag = 'scratch operand']
  %s0 = inlined_call_operand.vmem [shape: f32[2,16,16,4], index: 0, kind: input, shape index: {}, may-alias: {0,1,2}]
  %s1 = inlined_call_operand.vmem [shape: f32[2,16,16,4], index: 1, kind: input, shape index: {}, may-alias: {0,1,2}]
  %s2 = inlined_call_operand.vmem [shape: f32[2,16,16,4], index: 2, kind: input, shape index: {}, may-alias: {0,1,2}]
  %s3 = inlined_call_operand.vmem [shape: bf16[9,4,128], index: 3, kind: input, shape index: {}]
  %s4 = inlined_call_operand.vmem [shape: f32[1,128], index: 4, kind: input, shape index: {}]
  %s5 = inlined_call_operand.vmem [shape: bf16[2,16,16,128], index: 5, kind: output, shape index: {0}]
  %s6 = inlined_call_operand.vmem [shape: f32[4,1,128], index: 6, kind: output, shape index: {1}]
  %s7 = inlined_call_operand.vmem [shape: f32[4,1,128], index: 7, kind: output, shape index: {2}]
  %8 = xla_tuple %s5, %s6, %s7
  %s9 = sld [smem:[#allocation0]]
  $region85: #{double_conv.3} parent=0
    _
  %s11 = ssub.s32 1, %s9
  %s12 = scalar_select 0, %s11, %s9
  loop: start=0, step=1, limit=6
  $region2: #{double_conv.3} parent=0 // loop_pre_header
    _
  $region3: #{double_conv.3} parent=0 // loop_header
    %s14 = sphi 0, %s18
    %p15 = scmp.ge.s32.totalorder %s14, 6
    %s21 = sphi 0, %s33
    %s22 = sphi 0, %s29
    %s23 = sphi 0, %s21
    %s24 = sphi 0, %s22
    %s25 = sphi 0, %s23
    %s26 = sphi 0, %s24
    %s38 = sphi 0, %s40
    %s41 = sphi 0, %s38
    %s42 = sphi 0, %s41
    %s58 = sphi 0, %s42
    %s74 = sphi 0, %s76
    %s77 = sphi 0, %s74
    %s78 = sphi 0, %s77
    %s94 = sphi 0, %s78
    %s110 = sphi 0, %s112
    %s113 = sphi 0, %s110
    %s114 = sphi 0, %s113
    %s130 = sphi 0, %s114
    %s134 = sphi 0, %s134
    %s136 = sphi 0, %s134
    %s137 = sphi 0, %s136
    %s151 = sphi 0, %s137
    %s155 = sphi 0, %s155
    %s157 = sphi 0, %s155
    %s158 = sphi 0, %s157
    %s172 = sphi 0, %s158
    %s180 = sphi 0, %s182
    %s183 = sphi 0, %s180
    %s184 = sphi 0, %s183
    %s200 = sphi 0, %s184
    %s210 = sphi 0, %s212
    %s213 = sphi 0, %s210
    %s214 = sphi 0, %s213
    %s230 = sphi 0, %s214
    %s240 = sphi 0, %s242
    %s243 = sphi 0, %s240
    %s244 = sphi 0, %s243
    %s260 = sphi 0, %s244
  $region4: #{double_conv.3} parent=0 // loop_header_branch
    %17 = sbr.rel (%p15) target = $region8
  $region5: #{double_conv.3} parent=0 // loop_body
    %s19 = ssub.s32 %s14, 1
    %s20 = ssub.s32 %s14, 2
    %s27 = sadd.s32 1, %s22
    %p28 = scmp.ge.s32.totalorder %s27, 2
    %s29 = scalar_select %p28, 0, %s27
    %s30 = sadd.s32 1, %s21
    %s31 = scalar_select %p28, %s30, %s21
    %p32 = scmp.ge.s32.totalorder %s31, 2
    %s33 = scalar_select %p32, 0, %s31
    %s34 = ssub.s32 %s21, %s33
    %s35 = ssub.s32 %s22, %s29
    %s36 = sor.u32 %s34, %s35
    %p37 = scmp.eq.s32.totalorder %s36, 0
    %s39 = sadd.s32 %s38, 1
    %s40 = scalar_select %p37, %s38, %s39
    %p43 = pneg %p37
    %p44 = scmp.eq.s32.totalorder %s14, 3
    %p45 = por %p43, %p44
    %p46 = scmp.ne.s32.totalorder %s38, %s41
    %p47 = scmp.eq.s32.totalorder %s14, 0
    %p48 = por %p46, %p47
    %p49 = scmp.ne.s32.totalorder %s38, %s41
    %p50 = scmp.eq.s32.totalorder %s19, 3
    %p51 = por %p49, %p50
    %p52 = scmp.ne.s32.totalorder %s41, %s42
    %p53 = scmp.eq.s32.totalorder %s19, 0
    %p54 = por %p52, %p53
    %p55 = scmp.ne.s32.totalorder %s41, %s42
    %p56 = scmp.eq.s32.totalorder %s20, 3
    %p57 = por %p55, %p56
    %p59 = scmp.ne.s32.totalorder %s42, %s58
    %p60 = scmp.eq.s32.totalorder %s20, 0
    %p61 = por %p59, %p60
    %s62 = smul.u32 %s22, 8
    %s63 = ssub.s32 %s62, 1
    %p64 = scmp.gt.s32.totalorder %s63, 0
    %s65 = scalar_select %p64, %s63, 0
    %s66 = smul.u32 %s29, 8
    %s67 = ssub.s32 %s66, 1
    %p68 = scmp.gt.s32.totalorder %s67, 0
    %s69 = scalar_select %p68, %s67, 0
    %s70 = ssub.s32 %s21, %s33
    %s71 = ssub.s32 %s65, %s69
    %s72 = sor.u32 %s70, %s71
    %p73 = scmp.eq.s32.totalorder %s72, 0
    %s75 = sadd.s32 %s74, 1
    %s76 = scalar_select %p73, %s74, %s75
    %p79 = pneg %p73
    %p80 = scmp.eq.s32.totalorder %s14, 3
    %p81 = por %p79, %p80
    %p82 = scmp.ne.s32.totalorder %s74, %s77
    %p83 = scmp.eq.s32.totalorder %s14, 0
    %p84 = por %p82, %p83
    %p85 = scmp.ne.s32.totalorder %s74, %s77
    %p86 = scmp.eq.s32.totalorder %s19, 3
    %p87 = por %p85, %p86
    %p88 = scmp.ne.s32.totalorder %s77, %s78
    %p89 = scmp.eq.s32.totalorder %s19, 0
    %p90 = por %p88, %p89
    %p91 = scmp.ne.s32.totalorder %s77, %s78
    %p92 = scmp.eq.s32.totalorder %s20, 3
    %p93 = por %p91, %p92
    %p95 = scmp.ne.s32.totalorder %s78, %s94
    %p96 = scmp.eq.s32.totalorder %s20, 0
    %p97 = por %p95, %p96
    %s98 = smul.u32 %s22, 8
    %s99 = sadd.s32 %s98, 8
    %p100 = scmp.lt.s32.totalorder %s99, 15
    %s101 = scalar_select %p100, %s99, 15
    %s102 = smul.u32 %s29, 8
    %s103 = sadd.s32 %s102, 8
    %p104 = scmp.lt.s32.totalorder %s103, 15
    %s105 = scalar_select %p104, %s103, 15
    %s106 = ssub.s32 %s21, %s33
    %s107 = ssub.s32 %s101, %s105
    %s108 = sor.u32 %s106, %s107
    %p109 = scmp.eq.s32.totalorder %s108, 0
    %s111 = sadd.s32 %s110, 1
    %s112 = scalar_select %p109, %s110, %s111
    %p115 = pneg %p109
    %p116 = scmp.eq.s32.totalorder %s14, 3
    %p117 = por %p115, %p116
    %p118 = scmp.ne.s32.totalorder %s110, %s113
    %p119 = scmp.eq.s32.totalorder %s14, 0
    %p120 = por %p118, %p119
    %p121 = scmp.ne.s32.totalorder %s110, %s113
    %p122 = scmp.eq.s32.totalorder %s19, 3
    %p123 = por %p121, %p122
    %p124 = scmp.ne.s32.totalorder %s113, %s114
    %p125 = scmp.eq.s32.totalorder %s19, 0
    %p126 = por %p124, %p125
    %p127 = scmp.ne.s32.totalorder %s113, %s114
    %p128 = scmp.eq.s32.totalorder %s20, 3
    %p129 = por %p127, %p128
    %p131 = scmp.ne.s32.totalorder %s114, %s130
    %p132 = scmp.eq.s32.totalorder %s20, 0
    %p133 = por %p131, %p132
    %s135 = sadd.s32 %s134, 1
    %p138 = scmp.eq.s32.totalorder %s14, 3
    %p139 = scmp.ne.s32.totalorder %s134, %s136
    %p140 = scmp.eq.s32.totalorder %s14, 0
    %p141 = por %p139, %p140
    %p142 = scmp.ne.s32.totalorder %s134, %s136
    %p143 = scmp.eq.s32.totalorder %s19, 3
    %p144 = por %p142, %p143
    %p145 = scmp.ne.s32.totalorder %s136, %s137
    %p146 = scmp.eq.s32.totalorder %s19, 0
    %p147 = por %p145, %p146
    %p148 = scmp.ne.s32.totalorder %s136, %s137
    %p149 = scmp.eq.s32.totalorder %s20, 3
    %p150 = por %p148, %p149
    %p152 = scmp.ne.s32.totalorder %s137, %s151
    %p153 = scmp.eq.s32.totalorder %s20, 0
    %p154 = por %p152, %p153
    %s156 = sadd.s32 %s155, 1
    %p159 = scmp.eq.s32.totalorder %s14, 3
    %p160 = scmp.ne.s32.totalorder %s155, %s157
    %p161 = scmp.eq.s32.totalorder %s14, 0
    %p162 = por %p160, %p161
    %p163 = scmp.ne.s32.totalorder %s155, %s157
    %p164 = scmp.eq.s32.totalorder %s19, 3
    %p165 = por %p163, %p164
    %p166 = scmp.ne.s32.totalorder %s157, %s158
    %p167 = scmp.eq.s32.totalorder %s19, 0
    %p168 = por %p166, %p167
    %p169 = scmp.ne.s32.totalorder %s157, %s158
    %p170 = scmp.eq.s32.totalorder %s20, 3
    %p171 = por %p169, %p170
    %p173 = scmp.ne.s32.totalorder %s158, %s172
    %p174 = scmp.eq.s32.totalorder %s20, 0
    %p175 = por %p173, %p174
    %s176 = ssub.s32 %s21, %s33
    %s177 = ssub.s32 %s22, %s29
    %s178 = sor.u32 %s176, %s177
    %p179 = scmp.eq.s32.totalorder %s178, 0
    %s181 = sadd.s32 %s180, 1
    %s182 = scalar_select %p179, %s180, %s181
    %p185 = pneg %p179
    %p186 = scmp.eq.s32.totalorder %s14, 3
    %p187 = por %p185, %p186
    %p188 = scmp.ne.s32.totalorder %s180, %s183
    %p189 = scmp.eq.s32.totalorder %s14, 0
    %p190 = por %p188, %p189
    %p191 = scmp.ne.s32.totalorder %s180, %s183
    %p192 = scmp.eq.s32.totalorder %s19, 3
    %p193 = por %p191, %p192
    %p194 = scmp.ne.s32.totalorder %s183, %s184
    %p195 = scmp.eq.s32.totalorder %s19, 0
    %p196 = por %p194, %p195
    %p197 = scmp.ne.s32.totalorder %s183, %s184
    %p198 = scmp.eq.s32.totalorder %s20, 3
    %p199 = por %p197, %p198
    %p201 = scmp.ne.s32.totalorder %s184, %s200
    %p202 = scmp.eq.s32.totalorder %s20, 0
    %p203 = por %p201, %p202
    %s204 = smul.u32 %s21, 2
    %s205 = sadd.s32 %s204, %s22
    %s206 = smul.u32 %s33, 2
    %s207 = sadd.s32 %s206, %s29
    %s208 = ssub.s32 %s205, %s207
    %p209 = scmp.eq.s32.totalorder %s208, 0
    %s211 = sadd.s32 %s210, 1
    %s212 = scalar_select %p209, %s210, %s211
    %p215 = pneg %p209
    %p216 = scmp.eq.s32.totalorder %s14, 3
    %p217 = por %p215, %p216
    %p218 = scmp.ne.s32.totalorder %s210, %s213
    %p219 = scmp.eq.s32.totalorder %s14, 0
    %p220 = por %p218, %p219
    %p221 = scmp.ne.s32.totalorder %s210, %s213
    %p222 = scmp.eq.s32.totalorder %s19, 3
    %p223 = por %p221, %p222
    %p224 = scmp.ne.s32.totalorder %s213, %s214
    %p225 = scmp.eq.s32.totalorder %s19, 0
    %p226 = por %p224, %p225
    %p227 = scmp.ne.s32.totalorder %s213, %s214
    %p228 = scmp.eq.s32.totalorder %s20, 3
    %p229 = por %p227, %p228
    %p231 = scmp.ne.s32.totalorder %s214, %s230
    %p232 = scmp.eq.s32.totalorder %s20, 0
    %p233 = por %p231, %p232
    %s234 = smul.u32 %s21, 2
    %s235 = sadd.s32 %s234, %s22
    %s236 = smul.u32 %s33, 2
    %s237 = sadd.s32 %s236, %s29
    %s238 = ssub.s32 %s235, %s237
    %p239 = scmp.eq.s32.totalorder %s238, 0
    %s241 = sadd.s32 %s240, 1
    %s242 = scalar_select %p239, %s240, %s241
    %p245 = pneg %p239
    %p246 = scmp.eq.s32.totalorder %s14, 3
    %p247 = por %p245, %p246
    %p248 = scmp.ne.s32.totalorder %s240, %s243
    %p249 = scmp.eq.s32.totalorder %s14, 0
    %p250 = por %p248, %p249
    %p251 = scmp.ne.s32.totalorder %s240, %s243
    %p252 = scmp.eq.s32.totalorder %s19, 3
    %p253 = por %p251, %p252
    %p254 = scmp.ne.s32.totalorder %s243, %s244
    %p255 = scmp.eq.s32.totalorder %s19, 0
    %p256 = por %p254, %p255
    %p257 = scmp.ne.s32.totalorder %s243, %s244
    %p258 = scmp.eq.s32.totalorder %s20, 3
    %p259 = por %p257, %p258
    %p261 = scmp.ne.s32.totalorder %s244, %s260
    %p262 = scmp.eq.s32.totalorder %s20, 0
    %p263 = por %p261, %p262
    %p264 = scmp.le.s32.totalorder 1, %s14
    %p265 = scmp.lt.s32.totalorder %s14, 5
    %p266 = pnand %p264, %p265
    %p267 = pneg %p266
    // Predicated region
    $region9: #{double_conv.3} parent=5 // pred_check
      _
    $region10: #{double_conv.3} parent=5 // pred_check_branch
      %269 = sbr.rel (%p266) target = $region12
    $region11: #{double_conv.3} parent=5 // pred_region
      %s270 = ssub.s32 %s14, 1
      // Predicated region
      $region13: #{double_conv.3} parent=11 // pred_check
        %p271 = pneg %p147
      $region14: #{double_conv.3} parent=11 // pred_check_branch
        %273 = sbr.rel (%p271) target = $region16
      $region15: #{double_conv.3} parent=11 // pred_region
        _
      $region16: #{double_conv.3} parent=11 // pred_fallthru
        _
      // Predicated region
      $region17: #{double_conv.3} parent=11 // pred_check
        %p274 = pneg %p168
      $region18: #{double_conv.3} parent=11 // pred_check_branch
        %276 = sbr.rel (%p274) target = $region20
      $region19: #{double_conv.3} parent=11 // pred_region
        _
      $region20: #{double_conv.3} parent=11 // pred_fallthru
        _
    $region12: #{double_conv.3} parent=5 // pred_fallthru
      _
    %p277 = scmp.lt.s32.totalorder %s14, 4
    // Predicated region
    $region21: #{double_conv.3} parent=5 // pred_check
      %p278 = pneg %p277
    $region22: #{double_conv.3} parent=5 // pred_check_branch
      %280 = sbr.rel (%p278) target = $region24
    $region23: #{double_conv.3} parent=5 // pred_region
      // Predicated region
      $region25: #{double_conv.3} parent=23 // pred_check
        %p281 = pneg %p48
      $region26: #{double_conv.3} parent=23 // pred_check_branch
        %283 = sbr.rel (%p281) target = $region28
      $region27: #{double_conv.3} parent=23 // pred_region
        %s284 = smul.u32 8, %s22
        %p285 = scmp.lt.s32.totalorder %s21, 1
        %s286 = scalar_select %p285, %s21, 1
        %p287 = scmp.lt.s32.totalorder %s284, 15
        %s288 = scalar_select %p287, %s284, 15
        %s289 = smul.addr %s288, 2
        %s290 = smul.addr %s286, 32
        %s291 = sadd.s32 %s289, %s290
        %s292 = smul.addr %s291, 8
        %s293 = scalar_lea.vmem %s0, %s292
        %s294 = smul.u32 8, %s22
      $region28: #{double_conv.3} parent=23 // pred_fallthru
        _
      // Predicated region
      $region29: #{double_conv.3} parent=23 // pred_check
        %p295 = pneg %p84
      $region30: #{double_conv.3} parent=23 // pred_check_branch
        %297 = sbr.rel (%p295) target = $region32
      $region31: #{double_conv.3} parent=23 // pred_region
        %s298 = smul.u32 %s22, 8
        %s299 = ssub.s32 %s298, 1
        %p300 = scmp.gt.s32.totalorder %s299, 0
        %s301 = scalar_select %p300, %s299, 0
        %p302 = scmp.lt.s32.totalorder %s21, 1
        %s303 = scalar_select %p302, %s21, 1
        %p304 = scmp.lt.s32.totalorder %s301, 15
        %s305 = scalar_select %p304, %s301, 15
        %s306 = smul.addr %s305, 2
        %s307 = smul.addr %s303, 32
        %s308 = sadd.s32 %s306, %s307
        %s309 = smul.addr %s308, 8
        %s310 = scalar_lea.vmem %s1, %s309
        %s311 = smul.u32 %s22, 8
        %s312 = ssub.s32 %s311, 1
        %p313 = scmp.gt.s32.totalorder %s312, 0
        %s314 = scalar_select %p313, %s312, 0
      $region32: #{double_conv.3} parent=23 // pred_fallthru
        _
      // Predicated region
      $region33: #{double_conv.3} parent=23 // pred_check
        %p315 = pneg %p120
      $region34: #{double_conv.3} parent=23 // pred_check_branch
        %317 = sbr.rel (%p315) target = $region36
      $region35: #{double_conv.3} parent=23 // pred_region
        %s318 = smul.u32 %s22, 8
        %s319 = sadd.s32 %s318, 8
        %p320 = scmp.lt.s32.totalorder %s319, 15
        %s321 = scalar_select %p320, %s319, 15
        %p322 = scmp.lt.s32.totalorder %s21, 1
        %s323 = scalar_select %p322, %s21, 1
        %p324 = scmp.lt.s32.totalorder %s321, 15
        %s325 = scalar_select %p324, %s321, 15
        %s326 = smul.addr %s325, 2
        %s327 = smul.addr %s323, 32
        %s328 = sadd.s32 %s326, %s327
        %s329 = smul.addr %s328, 8
        %s330 = scalar_lea.vmem %s2, %s329
        %s331 = smul.u32 %s22, 8
        %s332 = sadd.s32 %s331, 8
        %p333 = scmp.lt.s32.totalorder %s332, 15
        %s334 = scalar_select %p333, %s332, 15
      $region36: #{double_conv.3} parent=23 // pred_fallthru
        _
    $region24: #{double_conv.3} parent=5 // pred_fallthru
      _
    %p335 = scmp.le.s32.totalorder 1, %s14
    %p336 = scmp.lt.s32.totalorder %s14, 5
    %p337 = pnand %p335, %p336
    %p338 = pneg %p337
    // Predicated region
    $region37: #{double_conv.3} parent=5 // pred_check
      _
    $region38: #{double_conv.3} parent=5 // pred_check_branch
      %340 = sbr.rel (%p337) target = $region40
    $region39: #{double_conv.3} parent=5 // pred_region
      %s341 = ssub.s32 %s14, 1
      %s342 = smul.u32 8, %s24
      %p343 = scmp.lt.s32.totalorder %s23, 1
      %s344 = scalar_select %p343, %s23, 1
      %p345 = scmp.lt.s32.totalorder %s342, 15
      %s346 = scalar_select %p345, %s342, 15
      %s347 = smul.addr %s346, 2
      %s348 = smul.addr %s344, 32
      %s349 = sadd.s32 %s347, %s348
      %s350 = smul.addr %s349, 8
      %s351 = scalar_lea.vmem %s0, %s350
      %p352 = pneg %p54
      %p353 = pneg %p51
      %s354 = smul.u32 %s24, 8
      %s355 = ssub.s32 %s354, 1
      %p356 = scmp.gt.s32.totalorder %s355, 0
      %s357 = scalar_select %p356, %s355, 0
      %p358 = scmp.lt.s32.totalorder %s23, 1
      %s359 = scalar_select %p358, %s23, 1
      %p360 = scmp.lt.s32.totalorder %s357, 15
      %s361 = scalar_select %p360, %s357, 15
      %s362 = smul.addr %s361, 2
      %s363 = smul.addr %s359, 32
      %s364 = sadd.s32 %s362, %s363
      %s365 = smul.addr %s364, 8
      %s366 = scalar_lea.vmem %s1, %s365
      %p367 = pneg %p90
      %p368 = pneg %p87
      %s369 = smul.u32 %s24, 8
      %s370 = sadd.s32 %s369, 8
      %p371 = scmp.lt.s32.totalorder %s370, 15
      %s372 = scalar_select %p371, %s370, 15
      %p373 = scmp.lt.s32.totalorder %s23, 1
      %s374 = scalar_select %p373, %s23, 1
      %p375 = scmp.lt.s32.totalorder %s372, 15
      %s376 = scalar_select %p375, %s372, 15
      %s377 = smul.addr %s376, 2
      %s378 = smul.addr %s374, 32
      %s379 = sadd.s32 %s377, %s378
      %s380 = smul.addr %s379, 8
      %s381 = scalar_lea.vmem %s2, %s380
      %p382 = pneg %p126
      %p383 = pneg %p123
      %p384 = pneg %p147
      %p385 = pneg %p144
      %p386 = pneg %p168
      %p387 = pneg %p165
      %p388 = pneg %p196
      %p389 = pneg %p193
      %s390 = smul.u32 8, %s24
      %p391 = scmp.lt.s32.totalorder %s23, 1
      %s392 = scalar_select %p391, %s23, 1
      %p393 = scmp.lt.s32.totalorder %s390, 15
      %s394 = scalar_select %p393, %s390, 15
      %s395 = smul.addr %s394, 2
      %s396 = smul.addr %s392, 32
      %s397 = sadd.s32 %s395, %s396
      %s398 = smul.addr %s397, 4
      %s399 = scalar_lea.vmem %s5, %s398
      %p400 = pneg %p226
      %p401 = pneg %p223
      %s402 = smul.u32 %s23, 2
      %s403 = sadd.s32 %s402, %s24
      %p404 = scmp.lt.s32.totalorder %s403, 3
      %s405 = scalar_select %p404, %s403, 3
      %s406 = scalar_lea.vmem %s6, %s405
      %p407 = pneg %p256
      %p408 = pneg %p253
      %s409 = smul.u32 %s23, 2
      %s410 = sadd.s32 %s409, %s24
      %p411 = scmp.lt.s32.totalorder %s410, 3
      %s412 = scalar_select %p411, %s410, 3
      %s413 = scalar_lea.vmem %s7, %s412
      %s414 = smul.u32 8, %s24
      %p415 = scmp.lt.s32.totalorder %s23, 1
      %s416 = scalar_select %p415, %s23, 1
      %p417 = scmp.lt.s32.totalorder %s414, 15
      %s418 = scalar_select %p417, %s414, 15
      %s419 = smul.addr %s418, 2
      %s420 = smul.addr %s416, 32
      %s421 = sadd.s32 %s419, %s420
      %s422 = smul.addr %s421, 8
      %s423 = scalar_lea.vmem %s0, %s422
      %s424 = smul.u32 8, %s24
      %s425 = smul.u32 %s24, 8
      %s426 = ssub.s32 %s425, 1
      %p427 = scmp.gt.s32.totalorder %s426, 0
      %s428 = scalar_select %p427, %s426, 0
      %p429 = scmp.lt.s32.totalorder %s23, 1
      %s430 = scalar_select %p429, %s23, 1
      %p431 = scmp.lt.s32.totalorder %s428, 15
      %s432 = scalar_select %p431, %s428, 15
      %s433 = smul.addr %s432, 2
      %s434 = smul.addr %s430, 32
      %s435 = sadd.s32 %s433, %s434
      %s436 = smul.addr %s435, 8
      %s437 = scalar_lea.vmem %s1, %s436
      %s438 = smul.u32 %s24, 8
      %s439 = ssub.s32 %s438, 1
      %p440 = scmp.gt.s32.totalorder %s439, 0
      %s441 = scalar_select %p440, %s439, 0
      %s442 = smul.u32 %s24, 8
      %s443 = sadd.s32 %s442, 8
      %p444 = scmp.lt.s32.totalorder %s443, 15
      %s445 = scalar_select %p444, %s443, 15
      %p446 = scmp.lt.s32.totalorder %s23, 1
      %s447 = scalar_select %p446, %s23, 1
      %p448 = scmp.lt.s32.totalorder %s445, 15
      %s449 = scalar_select %p448, %s445, 15
      %s450 = smul.addr %s449, 2
      %s451 = smul.addr %s447, 32
      %s452 = sadd.s32 %s450, %s451
      %s453 = smul.addr %s452, 8
      %s454 = scalar_lea.vmem %s2, %s453
      %s455 = smul.u32 %s24, 8
      %s456 = sadd.s32 %s455, 8
      %p457 = scmp.lt.s32.totalorder %s456, 15
      %s458 = scalar_select %p457, %s456, 15
      %s459 = smul.u32 8, %s24
      %p460 = scmp.lt.s32.totalorder %s23, 1
      %s461 = scalar_select %p460, %s23, 1
      %p462 = scmp.lt.s32.totalorder %s459, 15
      %s463 = scalar_select %p462, %s459, 15
      %s464 = smul.addr %s463, 2
      %s465 = smul.addr %s461, 32
      %s466 = sadd.s32 %s464, %s465
      %s467 = smul.addr %s466, 4
      %s468 = scalar_lea.vmem %s5, %s467
      %s469 = smul.u32 8, %s24
      %s470 = smul.u32 %s23, 2
      %s471 = sadd.s32 %s470, %s24
      %p472 = scmp.lt.s32.totalorder %s471, 3
      %s473 = scalar_select %p472, %s471, 3
      %s474 = scalar_lea.vmem %s6, %s473
      %s475 = smul.u32 %s23, 2
      %s476 = sadd.s32 %s475, %s24
      %s477 = smul.u32 %s23, 2
      %s478 = sadd.s32 %s477, %s24
      %p479 = scmp.lt.s32.totalorder %s478, 3
      %s480 = scalar_select %p479, %s478, 3
      %s481 = scalar_lea.vmem %s7, %s480
      %s482 = smul.u32 %s23, 2
      %s483 = sadd.s32 %s482, %s24
      %v485 = vld [vmem:[%s423] sm:$0xff]
      %v486 = vld [vmem:[%s423 + $0x8] sm:$0xff]
      %v487 = vld [vmem:[%s423 + $0x10] sm:$0xff]
      %v488 = vld [vmem:[%s423 + $0x18] sm:$0xff]
      %v489 = vld [vmem:[%s423 + $0x20] sm:$0xff]
      %v490 = vld [vmem:[%s423 + $0x28] sm:$0xff]
      %v491 = vld [vmem:[%s423 + $0x30] sm:$0xff]
      %v492 = vld [vmem:[%s423 + $0x38] sm:$0xff]
      %v493 = vld [vmem:[%s423 + $0x40] sm:$0xff]
      %v494 = vld [vmem:[%s423 + $0x48] sm:$0xff]
      %v495 = vld [vmem:[%s423 + $0x50] sm:$0xff]
      %v496 = vld [vmem:[%s423 + $0x58] sm:$0xff]
      %v497 = vld [vmem:[%s423 + $0x60] sm:$0xff]
      %v498 = vld [vmem:[%s423 + $0x68] sm:$0xff]
      %v499 = vld [vmem:[%s423 + $0x70] sm:$0xff]
      %v500 = vld [vmem:[%s423 + $0x78] sm:$0xff]
      %v501 = vpack.c.bf16 %v486, %v485
      %v502 = vpack.c.bf16 %v488, %v487
      %v503 = vpack.c.bf16 %v490, %v489
      %v504 = vpack.c.bf16 %v492, %v491
      %v505 = vpack.c.bf16 %v494, %v493
      %v506 = vpack.c.bf16 %v496, %v495
      %v507 = vpack.c.bf16 %v498, %v497
      %v508 = vpack.c.bf16 %v500, %v499
      %v509 = vld [vmem:[%s437] sm:$0xff]
      %v510 = vld [vmem:[%s437 + $0x8] sm:$0xff]
      %v511 = vpack.c.bf16 %v510, %v509
      %v512 = vld [vmem:[%s454] sm:$0xff]
      %v513 = vld [vmem:[%s454 + $0x8] sm:$0xff]
      %v514 = vpack.c.bf16 %v513, %v512
      %vm515 = vcmask 24576
      %vm516 = vsmask.f32 256
      %vm517 = vmand %vm515, %vm516
      %v518 = vld [vmem:[#allocation2] sm:$0x1]
      %v519 = vsel %vm517, 0, %v518
      %520 = vst [vmem:[#allocation2] sm:$0x1] %v519
      %v521 = vld [vmem:[#allocation2 + $0xc] sm:$0x1]
      %v522 = vsel %vm517, 0, %v521
      %523 = vst [vmem:[#allocation2 + $0xc] sm:$0x1] %v522
      %v524 = vld [vmem:[#allocation2 + $0x18] sm:$0x1]
      %v525 = vsel %vm517, 0, %v524
      %526 = vst [vmem:[#allocation2 + $0x18] sm:$0x1] %v525
      %v527 = vld [vmem:[#allocation2 + $0x24] sm:$0x1]
      %v528 = vsel %vm517, 0, %v527
      %529 = vst [vmem:[#allocation2 + $0x24] sm:$0x1] %v528
      %v530 = vld [vmem:[#allocation2 + $0x30] sm:$0x1]
      %v531 = vsel %vm517, 0, %v530
      %532 = vst [vmem:[#allocation2 + $0x30] sm:$0x1] %v531
      %v533 = vld [vmem:[#allocation2 + $0x3c] sm:$0x1]
      %v534 = vsel %vm517, 0, %v533
      %535 = vst [vmem:[#allocation2 + $0x3c] sm:$0x1] %v534
      %v536 = vld [vmem:[#allocation2 + $0x48] sm:$0x1]
      %v537 = vsel %vm517, 0, %v536
      %538 = vst [vmem:[#allocation2 + $0x48] sm:$0x1] %v537
      %v539 = vld [vmem:[#allocation2 + $0x54] sm:$0x1]
      %v540 = vsel %vm517, 0, %v539
      %541 = vst [vmem:[#allocation2 + $0x54] sm:$0x1] %v540
      %v542 = vld [vmem:[#allocation2 + $0x60] sm:$0x1]
      %v543 = vsel %vm517, 0, %v542
      %544 = vst [vmem:[#allocation2 + $0x60] sm:$0x1] %v543
      %v545 = vld [vmem:[#allocation2 + $0x6c] sm:$0x1]
      %v546 = vsel %vm517, 0, %v545
      %547 = vst [vmem:[#allocation2 + $0x6c] sm:$0x1] %v546
      %vm548 = vsmask.f32 7938
      %vm549 = vmand %vm515, %vm548
      %v550 = vld [vmem:[#allocation2 + $0x8] sm:$0x1]
      %v551 = vsel %vm549, 0, %v550
      %552 = vst [vmem:[#allocation2 + $0x8] sm:$0x1] %v551
      %v553 = vld [vmem:[#allocation2 + $0x14] sm:$0x1]
      %v554 = vsel %vm549, 0, %v553
      %555 = vst [vmem:[#allocation2 + $0x14] sm:$0x1] %v554
      %v556 = vld [vmem:[#allocation2 + $0x20] sm:$0x1]
      %v557 = vsel %vm549, 0, %v556
      %558 = vst [vmem:[#allocation2 + $0x20] sm:$0x1] %v557
      %v559 = vld [vmem:[#allocation2 + $0x2c] sm:$0x1]
      %v560 = vsel %vm549, 0, %v559
      %561 = vst [vmem:[#allocation2 + $0x2c] sm:$0x1] %v560
      %v562 = vld [vmem:[#allocation2 + $0x38] sm:$0x1]
      %v563 = vsel %vm549, 0, %v562
      %564 = vst [vmem:[#allocation2 + $0x38] sm:$0x1] %v563
      %v565 = vld [vmem:[#allocation2 + $0x44] sm:$0x1]
      %v566 = vsel %vm549, 0, %v565
      %567 = vst [vmem:[#allocation2 + $0x44] sm:$0x1] %v566
      %v568 = vld [vmem:[#allocation2 + $0x50] sm:$0x1]
      %v569 = vsel %vm549, 0, %v568
      %570 = vst [vmem:[#allocation2 + $0x50] sm:$0x1] %v569
      %v571 = vld [vmem:[#allocation2 + $0x5c] sm:$0x1]
      %v572 = vsel %vm549, 0, %v571
      %573 = vst [vmem:[#allocation2 + $0x5c] sm:$0x1] %v572
      %v574 = vld [vmem:[#allocation2 + $0x68] sm:$0x1]
      %v575 = vsel %vm549, 0, %v574
      %576 = vst [vmem:[#allocation2 + $0x68] sm:$0x1] %v575
      %v577 = vld [vmem:[#allocation2 + $0x74] sm:$0x1]
      %v578 = vsel %vm549, 0, %v577
      %579 = vst [vmem:[#allocation2 + $0x74] sm:$0x1] %v578
      %v588 = vunpack.c.l.b16 %v501
      %v589 = vunpack.c.h.b16 %v501
      %v590 = vunpack.c.l.b16 %v502
      %v591 = vunpack.c.h.b16 %v502
      %v592 = vunpack.c.l.b16 %v503
      %v593 = vunpack.c.h.b16 %v503
      %v594 = vunpack.c.l.b16 %v504
      %v595 = vunpack.c.h.b16 %v504
      %v596 = vunpack.c.l.b16 %v505
      %v597 = vunpack.c.h.b16 %v505
      %v598 = vunpack.c.l.b16 %v506
      %v599 = vunpack.c.h.b16 %v506
      %v600 = vunpack.c.l.b16 %v507
      %v601 = vunpack.c.h.b16 %v507
      %v602 = vunpack.c.l.b16 %v508
      %v603 = vunpack.c.h.b16 %v508
      %v604 = vpack.c.b16 %v588, %v588
      %v605 = vpack.c.b16 %v589, %v589
      %v606 = vpack.c.b16 %v590, %v590
      %v607 = vpack.c.b16 %v591, %v591
      %v608 = vpack.c.b16 %v592, %v592
      %v609 = vpack.c.b16 %v593, %v593
      %v610 = vpack.c.b16 %v594, %v594
      %v611 = vpack.c.b16 %v595, %v595
      %v612 = vpack.c.b16 %v596, %v596
      %v613 = vpack.c.b16 %v597, %v597
      %v614 = vpack.c.b16 %v598, %v598
      %v615 = vpack.c.b16 %v599, %v599
      %v616 = vpack.c.b16 %v600, %v600
      %v617 = vpack.c.b16 %v601, %v601
      %v618 = vpack.c.b16 %v602, %v602
      %v619 = vpack.c.b16 %v603, %v603
      %vm620 = vsmask.f32 4368
      %vm621 = vmor %vm516, %vm620
      %v623 = vshrl.u32 %v604, 16
      %v625 = vrot.slane %v623, 7
      %v626 = vshll.u32 %v604, 16
      %v628 = vor.u32 %v625, %v626
      %v629 = vrot.slane %v625, 4
      %v631 = vshrl.u32 %v605, 16
      %v633 = vrot.slane %v631, 7
      %v634 = vshll.u32 %v605, 16
      %v636 = vor.u32 %v633, %v634
      %v637 = vsel %vm621, %v629, %v636
      %v638 = vrot.slane %v633, 4
      %v640 = vshrl.u32 %v606, 16
      %v642 = vrot.slane %v640, 7
      %v643 = vshll.u32 %v606, 16
      %v645 = vor.u32 %v642, %v643
      %v646 = vrot.slane %v642, 4
      %v648 = vshrl.u32 %v607, 16
      %v650 = vrot.slane %v648, 7
      %v651 = vshll.u32 %v607, 16
      %v653 = vor.u32 %v650, %v651
      %v654 = vsel %vm621, %v646, %v653
      %v655 = vrot.slane %v650, 4
      %v657 = vshrl.u32 %v608, 16
      %v659 = vrot.slane %v657, 7
      %v660 = vshll.u32 %v608, 16
      %v662 = vor.u32 %v659, %v660
      %v663 = vrot.slane %v659, 4
      %v665 = vshrl.u32 %v609, 16
      %v667 = vrot.slane %v665, 7
      %v668 = vshll.u32 %v609, 16
      %v670 = vor.u32 %v667, %v668
      %v671 = vsel %vm621, %v663, %v670
      %v672 = vrot.slane %v667, 4
      %v674 = vshrl.u32 %v610, 16
      %v676 = vrot.slane %v674, 7
      %v677 = vshll.u32 %v610, 16
      %v679 = vor.u32 %v676, %v677
      %v680 = vrot.slane %v676, 4
      %v682 = vshrl.u32 %v611, 16
      %v684 = vrot.slane %v682, 7
      %v685 = vshll.u32 %v611, 16
      %v687 = vor.u32 %v684, %v685
      %v688 = vsel %vm621, %v680, %v687
      %v689 = vrot.slane %v684, 4
      %v691 = vshrl.u32 %v612, 16
      %v693 = vrot.slane %v691, 7
      %v694 = vshll.u32 %v612, 16
      %v696 = vor.u32 %v693, %v694
      %v697 = vrot.slane %v693, 4
      %v699 = vshrl.u32 %v613, 16
      %v701 = vrot.slane %v699, 7
      %v702 = vshll.u32 %v613, 16
      %v704 = vor.u32 %v701, %v702
      %v705 = vsel %vm621, %v697, %v704
      %v706 = vrot.slane %v701, 4
      %v708 = vshrl.u32 %v614, 16
      %v710 = vrot.slane %v708, 7
      %v711 = vshll.u32 %v614, 16
      %v713 = vor.u32 %v710, %v711
      %v714 = vrot.slane %v710, 4
      %v716 = vshrl.u32 %v615, 16
      %v718 = vrot.slane %v716, 7
      %v719 = vshll.u32 %v615, 16
      %v721 = vor.u32 %v718, %v719
      %v722 = vsel %vm621, %v714, %v721
      %v723 = vrot.slane %v718, 4
      %v725 = vshrl.u32 %v616, 16
      %v727 = vrot.slane %v725, 7
      %v728 = vshll.u32 %v616, 16
      %v730 = vor.u32 %v727, %v728
      %v731 = vrot.slane %v727, 4
      %v733 = vshrl.u32 %v617, 16
      %v735 = vrot.slane %v733, 7
      %v736 = vshll.u32 %v617, 16
      %v738 = vor.u32 %v735, %v736
      %v739 = vsel %vm621, %v731, %v738
      %v740 = vrot.slane %v735, 4
      %v742 = vshrl.u32 %v618, 16
      %v744 = vrot.slane %v742, 7
      %v745 = vshll.u32 %v618, 16
      %v747 = vor.u32 %v744, %v745
      %v748 = vrot.slane %v744, 4
      %v750 = vshrl.u32 %v619, 16
      %v752 = vrot.slane %v750, 7
      %v753 = vshll.u32 %v619, 16
      %v755 = vor.u32 %v752, %v753
      %v756 = vsel %vm621, %v748, %v755
      %v757 = vrot.slane %v752, 4
      %s782 = scalar_lea.vmem [#allocation2], 12
      %vm783 = vcmask 27648
      %vm784 = vmand %vm783, %vm548
      %v785 = vld [vmem:[%s782] sm:$0xf]
      %v786 = vsel %vm784, %v628, %v785
      %787 = vst [vmem:[%s782] sm:$0xf] %v786
      %vm788 = vcmask 27648
      %789 = vst.msk [vmem:[%s782 + $0x4] sm:$0xf] %vm788, %v637
      %v790 = vld [vmem:[%s782 + $0x8] sm:$0x1]
      %v791 = vsel %vm517, %v638, %v790
      %792 = vst [vmem:[%s782 + $0x8] sm:$0x1] %v791
      %v793 = vld [vmem:[%s782 + $0xc] sm:$0xf]
      %v794 = vsel %vm784, %v645, %v793
      %795 = vst [vmem:[%s782 + $0xc] sm:$0xf] %v794
      %796 = vst.msk [vmem:[%s782 + $0x10] sm:$0xf] %vm788, %v654
      %v797 = vld [vmem:[%s782 + $0x14] sm:$0x1]
      %v798 = vsel %vm517, %v655, %v797
      %799 = vst [vmem:[%s782 + $0x14] sm:$0x1] %v798
      %v800 = vld [vmem:[%s782 + $0x18] sm:$0xf]
      %v801 = vsel %vm784, %v662, %v800
      %802 = vst [vmem:[%s782 + $0x18] sm:$0xf] %v801
      %803 = vst.msk [vmem:[%s782 + $0x1c] sm:$0xf] %vm788, %v671
      %v804 = vld [vmem:[%s782 + $0x20] sm:$0x1]
      %v805 = vsel %vm517, %v672, %v804
      %806 = vst [vmem:[%s782 + $0x20] sm:$0x1] %v805
      %v807 = vld [vmem:[%s782 + $0x24] sm:$0xf]
      %v808 = vsel %vm784, %v679, %v807
      %809 = vst [vmem:[%s782 + $0x24] sm:$0xf] %v808
      %810 = vst.msk [vmem:[%s782 + $0x28] sm:$0xf] %vm788, %v688
      %v811 = vld [vmem:[%s782 + $0x2c] sm:$0x1]
      %v812 = vsel %vm517, %v689, %v811
      %813 = vst [vmem:[%s782 + $0x2c] sm:$0x1] %v812
      %v814 = vld [vmem:[%s782 + $0x30] sm:$0xf]
      %v815 = vsel %vm784, %v696, %v814
      %816 = vst [vmem:[%s782 + $0x30] sm:$0xf] %v815
      %817 = vst.msk [vmem:[%s782 + $0x34] sm:$0xf] %vm788, %v705
      %v818 = vld [vmem:[%s782 + $0x38] sm:$0x1]
      %v819 = vsel %vm517, %v706, %v818
      %820 = vst [vmem:[%s782 + $0x38] sm:$0x1] %v819
      %v821 = vld [vmem:[%s782 + $0x3c] sm:$0xf]
      %v822 = vsel %vm784, %v713, %v821
      %823 = vst [vmem:[%s782 + $0x3c] sm:$0xf] %v822
      %824 = vst.msk [vmem:[%s782 + $0x40] sm:$0xf] %vm788, %v722
      %v825 = vld [vmem:[%s782 + $0x44] sm:$0x1]
      %v826 = vsel %vm517, %v723, %v825
      %827 = vst [vmem:[%s782 + $0x44] sm:$0x1] %v826
      %v828 = vld [vmem:[%s782 + $0x48] sm:$0xf]
      %v829 = vsel %vm784, %v730, %v828
      %830 = vst [vmem:[%s782 + $0x48] sm:$0xf] %v829
      %831 = vst.msk [vmem:[%s782 + $0x4c] sm:$0xf] %vm788, %v739
      %v832 = vld [vmem:[%s782 + $0x50] sm:$0x1]
      %v833 = vsel %vm517, %v740, %v832
      %834 = vst [vmem:[%s782 + $0x50] sm:$0x1] %v833
      %v835 = vld [vmem:[%s782 + $0x54] sm:$0xf]
      %v836 = vsel %vm784, %v747, %v835
      %837 = vst [vmem:[%s782 + $0x54] sm:$0xf] %v836
      %838 = vst.msk [vmem:[%s782 + $0x58] sm:$0xf] %vm788, %v756
      %v839 = vld [vmem:[%s782 + $0x5c] sm:$0x1]
      %v840 = vsel %vm517, %v757, %v839
      %841 = vst [vmem:[%s782 + $0x5c] sm:$0x1] %v840
      %p842 = scmp.gt.s32.totalorder %s24, 0
      // Predicated region
      $region41: #{double_conv.3} parent=39 // pred_check
        %p843 = pneg %p842
      $region42: #{double_conv.3} parent=39 // pred_check_branch
        %845 = sbr.rel (%p843) target = $region44
      $region43: #{double_conv.3} parent=39 // pred_region
        %v847 = vunpack.c.l.b16 %v511
        %v848 = vunpack.c.h.b16 %v511
        %v849 = vpack.c.b16 %v847, %v847
        %v850 = vpack.c.b16 %v848, %v848
        %v852 = vshrl.u32 %v849, 16
        %v854 = vrot.slane %v852, 7
        %v855 = vshll.u32 %v849, 16
        %v857 = vor.u32 %v854, %v855
        %v858 = vrot.slane %v854, 4
        %v860 = vshrl.u32 %v850, 16
        %v862 = vrot.slane %v860, 7
        %v863 = vshll.u32 %v850, 16
        %v865 = vor.u32 %v862, %v863
        %v866 = vsel %vm621, %v858, %v865
        %v867 = vrot.slane %v862, 4
        %v871 = vld [vmem:[#allocation2] sm:$0xf]
        %v872 = vsel %vm784, %v857, %v871
        %873 = vst [vmem:[#allocation2] sm:$0xf] %v872
        %874 = vst.msk [vmem:[#allocation2 + $0x4] sm:$0xf] %vm788, %v866
        %v875 = vld [vmem:[#allocation2 + $0x8] sm:$0x1]
        %v876 = vsel %vm517, %v867, %v875
        %877 = vst [vmem:[#allocation2 + $0x8] sm:$0x1] %v876
      $region44: #{double_conv.3} parent=39 // pred_fallthru
        _
      %p878 = scmp.eq.s32.totalorder %s24, 0
      // Predicated region
      $region45: #{double_conv.3} parent=39 // pred_check
        %p879 = pneg %p878
      $region46: #{double_conv.3} parent=39 // pred_check_branch
        %881 = sbr.rel (%p879) target = $region48
      $region47: #{double_conv.3} parent=39 // pred_region
        %v882 = vld [vmem:[#allocation2] sm:$0xf]
        %v883 = vsel %vm784, 0, %v882
        %884 = vst [vmem:[#allocation2] sm:$0xf] %v883
        %885 = vst.msk [vmem:[#allocation2 + $0x4] sm:$0xf] %vm788, 0
        %v886 = vld [vmem:[#allocation2 + $0x8] sm:$0x1]
        %v887 = vsel %vm517, 0, %v886
        %888 = vst [vmem:[#allocation2 + $0x8] sm:$0x1] %v887
      $region48: #{double_conv.3} parent=39 // pred_fallthru
        _
      %p889 = scmp.lt.s32.totalorder %s24, 1
      // Predicated region
      $region49: #{double_conv.3} parent=39 // pred_check
        %p890 = pneg %p889
      $region50: #{double_conv.3} parent=39 // pred_check_branch
        %892 = sbr.rel (%p890) target = $region52
      $region51: #{double_conv.3} parent=39 // pred_region
        %v894 = vunpack.c.l.b16 %v514
        %v895 = vunpack.c.h.b16 %v514
        %v896 = vpack.c.b16 %v894, %v894
        %v897 = vpack.c.b16 %v895, %v895
        %v899 = vshrl.u32 %v896, 16
        %v901 = vrot.slane %v899, 7
        %v902 = vshll.u32 %v896, 16
        %v904 = vor.u32 %v901, %v902
        %v905 = vrot.slane %v901, 4
        %v907 = vshrl.u32 %v897, 16
        %v909 = vrot.slane %v907, 7
        %v910 = vshll.u32 %v897, 16
        %v912 = vor.u32 %v909, %v910
        %v913 = vsel %vm621, %v905, %v912
        %v914 = vrot.slane %v909, 4
        %s918 = scalar_lea.vmem [#allocation2], 108
        %v919 = vld [vmem:[%s918] sm:$0xf]
        %v920 = vsel %vm784, %v904, %v919
        %921 = vst [vmem:[%s918] sm:$0xf] %v920
        %922 = vst.msk [vmem:[%s918 + $0x4] sm:$0xf] %vm788, %v913
        %v923 = vld [vmem:[%s918 + $0x8] sm:$0x1]
        %v924 = vsel %vm517, %v914, %v923
        %925 = vst [vmem:[%s918 + $0x8] sm:$0x1] %v924
      $region52: #{double_conv.3} parent=39 // pred_fallthru
        _
      %p926 = scmp.eq.s32.totalorder %s24, 1
      // Predicated region
      $region53: #{double_conv.3} parent=39 // pred_check
        %p927 = pneg %p926
      $region54: #{double_conv.3} parent=39 // pred_check_branch
        %929 = sbr.rel (%p927) target = $region56
      $region55: #{double_conv.3} parent=39 // pred_region
        %s930 = scalar_lea.vmem [#allocation2], 108
        %v931 = vld [vmem:[%s930] sm:$0xf]
        %v932 = vsel %vm784, 0, %v931
        %933 = vst [vmem:[%s930] sm:$0xf] %v932
        %934 = vst.msk [vmem:[%s930 + $0x4] sm:$0xf] %vm788, 0
        %v935 = vld [vmem:[%s930 + $0x8] sm:$0x1]
        %v936 = vsel %vm517, 0, %v935
        %937 = vst [vmem:[%s930 + $0x8] sm:$0x1] %v936
      $region56: #{double_conv.3} parent=39 // pred_fallthru
        _
      %v938 = vld [vmem:[#allocation2] sm:$0xf]
      %v939 = vld [vmem:[#allocation2 + $0x4] sm:$0xf]
      %v940 = vld [vmem:[#allocation2 + $0xc] sm:$0xf]
      %v941 = vld [vmem:[#allocation2 + $0x10] sm:$0xf]
      %v942 = vld [vmem:[#allocation2 + $0x18] sm:$0xf]
      %v943 = vld [vmem:[#allocation2 + $0x1c] sm:$0xf]
      %v944 = vld [vmem:[#allocation2 + $0x24] sm:$0xf]
      %v945 = vld [vmem:[#allocation2 + $0x28] sm:$0xf]
      %v946 = vld [vmem:[#allocation2 + $0x30] sm:$0xf]
      %v947 = vld [vmem:[#allocation2 + $0x34] sm:$0xf]
      %v948 = vld [vmem:[#allocation2 + $0x3c] sm:$0xf]
      %v949 = vld [vmem:[#allocation2 + $0x40] sm:$0xf]
      %v950 = vld [vmem:[#allocation2 + $0x48] sm:$0xf]
      %v951 = vld [vmem:[#allocation2 + $0x4c] sm:$0xf]
      %v952 = vld [vmem:[#allocation2 + $0x54] sm:$0xf]
      %v953 = vld [vmem:[#allocation2 + $0x58] sm:$0xf]
      %v954 = vld [vmem:[%s3] sm:$0x3]
      %v955 = vld [vmem:[#allocation2 + $0x8] sm:$0x1]
      %v956 = vld [vmem:[#allocation2 + $0x14] sm:$0x1]
      %v957 = vld [vmem:[#allocation2 + $0x20] sm:$0x1]
      %v958 = vld [vmem:[#allocation2 + $0x2c] sm:$0x1]
      %v959 = vld [vmem:[#allocation2 + $0x38] sm:$0x1]
      %v960 = vld [vmem:[#allocation2 + $0x44] sm:$0x1]
      %v961 = vld [vmem:[#allocation2 + $0x50] sm:$0x1]
      %v962 = vld [vmem:[#allocation2 + $0x5c] sm:$0x1]
      %vm963 = vsmask.f32 3328
      %vm964 = vsmask.f32 7440
      %vm965 = vmor %vm963, %vm964
      %v967 = vshrl.u32 %v938, 16
      %v969 = vrot.slane %v967, 4
      %v970 = vshll.u32 %v938, 16
      %v972 = vrot.slane %v970, 5
      %v973 = vor.u32 %v969, %v972
      %v974 = vrot.slane %v973, 4
      %v976 = vshll.u32 %v939, 16
      %v978 = vrot.slane %v976, 5
      %v979 = vsel %vm965, %v974, %v978
      %v980 = vshrl.u32 %v939, 16
      %v982 = vrot.slane %v980, 4
      %v983 = vor.u32 %v982, %v978
      %v984 = vrot.slane %v983, 4
      %v986 = vshll.u32 %v955, 16
      %v988 = vrot.slane %v986, 5
      %v989 = vsel %vm965, %v984, %v988
      %v991 = vshrl.u32 %v940, 16
      %v993 = vrot.slane %v991, 4
      %v994 = vshll.u32 %v940, 16
      %v996 = vrot.slane %v994, 5
      %v997 = vor.u32 %v993, %v996
      %v998 = vrot.slane %v997, 4
      %v1000 = vshll.u32 %v941, 16
      %v1002 = vrot.slane %v1000, 5
      %v1003 = vsel %vm965, %v998, %v1002
      %v1004 = vshrl.u32 %v941, 16
      %v1006 = vrot.slane %v1004, 4
      %v1007 = vor.u32 %v1006, %v1002
      %v1008 = vrot.slane %v1007, 4
      %v1010 = vshll.u32 %v956, 16
      %v1012 = vrot.slane %v1010, 5
      %v1013 = vsel %vm965, %v1008, %v1012
      %v1015 = vshrl.u32 %v942, 16
      %v1017 = vrot.slane %v1015, 4
      %v1018 = vshll.u32 %v942, 16
      %v1020 = vrot.slane %v1018, 5
      %v1021 = vor.u32 %v1017, %v1020
      %v1022 = vrot.slane %v1021, 4
      %v1024 = vshll.u32 %v943, 16
      %v1026 = vrot.slane %v1024, 5
      %v1027 = vsel %vm965, %v1022, %v1026
      %v1028 = vshrl.u32 %v943, 16
      %v1030 = vrot.slane %v1028, 4
      %v1031 = vor.u32 %v1030, %v1026
      %v1032 = vrot.slane %v1031, 4
      %v1034 = vshll.u32 %v957, 16
      %v1036 = vrot.slane %v1034, 5
      %v1037 = vsel %vm965, %v1032, %v1036
      %v1039 = vshrl.u32 %v944, 16
      %v1041 = vrot.slane %v1039, 4
      %v1042 = vshll.u32 %v944, 16
      %v1044 = vrot.slane %v1042, 5
      %v1045 = vor.u32 %v1041, %v1044
      %v1046 = vrot.slane %v1045, 4
      %v1048 = vshll.u32 %v945, 16
      %v1050 = vrot.slane %v1048, 5
      %v1051 = vsel %vm965, %v1046, %v1050
      %v1052 = vshrl.u32 %v945, 16
      %v1054 = vrot.slane %v1052, 4
      %v1055 = vor.u32 %v1054, %v1050
      %v1056 = vrot.slane %v1055, 4
      %v1058 = vshll.u32 %v958, 16
      %v1060 = vrot.slane %v1058, 5
      %v1061 = vsel %vm965, %v1056, %v1060
      %v1063 = vshrl.u32 %v946, 16
      %v1065 = vrot.slane %v1063, 4
      %v1066 = vshll.u32 %v946, 16
      %v1068 = vrot.slane %v1066, 5
      %v1069 = vor.u32 %v1065, %v1068
      %v1070 = vrot.slane %v1069, 4
      %v1072 = vshll.u32 %v947, 16
      %v1074 = vrot.slane %v1072, 5
      %v1075 = vsel %vm965, %v1070, %v1074
      %v1076 = vshrl.u32 %v947, 16
      %v1078 = vrot.slane %v1076, 4
      %v1079 = vor.u32 %v1078, %v1074
      %v1080 = vrot.slane %v1079, 4
      %v1082 = vshll.u32 %v959, 16
      %v1084 = vrot.slane %v1082, 5
      %v1085 = vsel %vm965, %v1080, %v1084
      %v1087 = vshrl.u32 %v948, 16
      %v1089 = vrot.slane %v1087, 4
      %v1090 = vshll.u32 %v948, 16
      %v1092 = vrot.slane %v1090, 5
      %v1093 = vor.u32 %v1089, %v1092
      %v1094 = vrot.slane %v1093, 4
      %v1096 = vshll.u32 %v949, 16
      %v1098 = vrot.slane %v1096, 5
      %v1099 = vsel %vm965, %v1094, %v1098
      %v1100 = vshrl.u32 %v949, 16
      %v1102 = vrot.slane %v1100, 4
      %v1103 = vor.u32 %v1102, %v1098
      %v1104 = vrot.slane %v1103, 4
      %v1106 = vshll.u32 %v960, 16
      %v1108 = vrot.slane %v1106, 5
      %v1109 = vsel %vm965, %v1104, %v1108
      %v1111 = vshrl.u32 %v950, 16
      %v1113 = vrot.slane %v1111, 4
      %v1114 = vshll.u32 %v950, 16
      %v1116 = vrot.slane %v1114, 5
      %v1117 = vor.u32 %v1113, %v1116
      %v1118 = vrot.slane %v1117, 4
      %v1120 = vshll.u32 %v951, 16
      %v1122 = vrot.slane %v1120, 5
      %v1123 = vsel %vm965, %v1118, %v1122
      %v1124 = vshrl.u32 %v951, 16
      %v1126 = vrot.slane %v1124, 4
      %v1127 = vor.u32 %v1126, %v1122
      %v1128 = vrot.slane %v1127, 4
      %v1130 = vshll.u32 %v961, 16
      %v1132 = vrot.slane %v1130, 5
      %v1133 = vsel %vm965, %v1128, %v1132
      %v1135 = vshrl.u32 %v952, 16
      %v1137 = vrot.slane %v1135, 4
      %v1138 = vshll.u32 %v952, 16
      %v1140 = vrot.slane %v1138, 5
      %v1141 = vor.u32 %v1137, %v1140
      %v1142 = vrot.slane %v1141, 4
      %v1144 = vshll.u32 %v953, 16
      %v1146 = vrot.slane %v1144, 5
      %v1147 = vsel %vm965, %v1142, %v1146
      %v1148 = vshrl.u32 %v953, 16
      %v1150 = vrot.slane %v1148, 4
      %v1151 = vor.u32 %v1150, %v1146
      %v1152 = vrot.slane %v1151, 4
      %v1154 = vshll.u32 %v962, 16
      %v1156 = vrot.slane %v1154, 5
      %v1157 = vsel %vm965, %v1152, %v1156
      %s1158 = scalar_lea.vmem %s3, 2
      %v1159 = vld [vmem:[%s1158] sm:$0x3]
      %v1160 = vunpack.c.l.b16 %v979
      %v1161 = vunpack.c.l.b16 %v989
      %v1162 = vunpack.c.l.b16 %v1003
      %v1163 = vunpack.c.l.b16 %v1013
      %v1164 = vunpack.c.l.b16 %v1027
      %v1165 = vunpack.c.l.b16 %v1037
      %v1166 = vunpack.c.l.b16 %v1051
      %v1167 = vunpack.c.l.b16 %v1061
      %v1168 = vunpack.c.l.b16 %v1075
      %v1169 = vunpack.c.l.b16 %v1085
      %v1170 = vunpack.c.l.b16 %v1099
      %v1171 = vunpack.c.l.b16 %v1109
      %v1172 = vunpack.c.l.b16 %v1123
      %v1173 = vunpack.c.l.b16 %v1133
      %v1174 = vunpack.c.l.b16 %v1147
      %v1175 = vunpack.c.l.b16 %v1157
      %v1176 = vpack.c.b16 %v1161, %v1160
      %v1177 = vpack.c.b16 %v1163, %v1162
      %v1178 = vpack.c.b16 %v1165, %v1164
      %v1179 = vpack.c.b16 %v1167, %v1166
      %v1180 = vpack.c.b16 %v1169, %v1168
      %v1181 = vpack.c.b16 %v1171, %v1170
      %v1182 = vpack.c.b16 %v1173, %v1172
      %v1183 = vpack.c.b16 %v1175, %v1174
      %vm1184 = vcmask 31744
      %v1186 = vsel %vm1184, %v1176, 0
      %v1189 = vsel %vm1184, %v1177, 0
      %v1192 = vsel %vm1184, %v1178, 0
      %v1195 = vsel %vm1184, %v1179, 0
      %v1198 = vsel %vm1184, %v1180, 0
      %v1201 = vsel %vm1184, %v1181, 0
      %v1204 = vsel %vm1184, %v1182, 0
      %v1207 = vsel %vm1184, %v1183, 0
      %vm1209 = vcmask 1041408
      %v1211 = vsel %vm1209, %v1159, 0
      %1213 = vmatprep.subr.bf16.mxu0 0
      %1214 = vmatpush1.bf16.msra.mxu0 0
      %1215 = vmatprep.subr.bf16.mxu0 0
      %1216 = vmatpush1.bf16.msra.mxu0 0
      %1217 = vmatprep.subr.bf16.mxu0 0
      %1218 = vmatpush1.bf16.msra.mxu0 0
      %1219 = vmatprep.subr.bf16.mxu0 0
      %1220 = vmatpush1.bf16.msra.mxu0 0
      %1221 = vmatprep.subr.bf16.mxu0 0
      %1222 = vmatpush1.bf16.msra.mxu0 0
      %1223 = vmatprep.subr.bf16.mxu0 0
      %1224 = vmatpush1.bf16.msra.mxu0 0
      %1225 = vmatprep.subr.bf16.mxu0 0
      %1226 = vmatpush1.bf16.msra.mxu0 0
      %1227 = vmatprep.subr.bf16.mxu0 0
      %1228 = vmatpush1.bf16.msra.mxu0 %v1211
      %1229 = vmatprep.subr.bf16.mxu0 0
      %1230 = vmatpush2.bf16.msra.mxu0 0
      %1231 = vmatprep.subr.bf16.mxu0 0
      %1232 = vmatpush2.bf16.msra.mxu0 0
      %1233 = vmatprep.subr.bf16.mxu0 0
      %1234 = vmatpush2.bf16.msra.mxu0 0
      %1235 = vmatprep.subr.bf16.mxu0 0
      %1236 = vmatpush2.bf16.msra.mxu0 0
      %1237 = vmatprep.subr.bf16.mxu0 0
      %1238 = vmatpush2.bf16.msra.mxu0 0
      %1239 = vmatprep.subr.bf16.mxu0 0
      %1240 = vmatpush2.bf16.msra.mxu0 0
      %1241 = vmatprep.subr.bf16.mxu0 0
      %1242 = vmatpush2.bf16.msra.mxu0 0
      %1243 = vmatprep.subr.bf16.mxu0 0
      %1244 = vmatpush2.bf16.msra.mxu0 0
      %1245 = vmatprep.mubr.bf16.mxu0 0
      %1246 = vmatmul.mubr.bf16.gmra.mxu0 %v1186
      %v1247 = vpop.f32.mrf.mxu0
      %v1248 = vadd.f32 0.0, %v1247
      %v1249 = vpop.f32.mrf.mxu0
      %v1250 = vpop.f32.mrf.mxu0
      %v1251 = vadd.f32 0.0, %v1250
      %v1252 = vpop.f32.mrf.mxu0
      %1253 = vmatprep.mubr.bf16.mxu0 0
      %1254 = vmatmul.mubr.bf16.gmra.mxu0 %v1189
      %v1255 = vpop.f32.mrf.mxu0
      %v1256 = vadd.f32 0.0, %v1255
      %v1257 = vpop.f32.mrf.mxu0
      %v1258 = vpop.f32.mrf.mxu0
      %v1259 = vadd.f32 0.0, %v1258
      %v1260 = vpop.f32.mrf.mxu0
      %1261 = vmatprep.mubr.bf16.mxu0 0
      %1262 = vmatmul.mubr.bf16.gmra.mxu0 %v1192
      %v1263 = vpop.f32.mrf.mxu0
      %v1264 = vadd.f32 0.0, %v1263
      %v1265 = vpop.f32.mrf.mxu0
      %v1266 = vpop.f32.mrf.mxu0
      %v1267 = vadd.f32 0.0, %v1266
      %v1268 = vpop.f32.mrf.mxu0
      %1269 = vmatprep.mubr.bf16.mxu0 0
      %1270 = vmatmul.mubr.bf16.gmra.mxu0 %v1195
      %v1271 = vpop.f32.mrf.mxu0
      %v1272 = vadd.f32 0.0, %v1271
      %v1273 = vpop.f32.mrf.mxu0
      %v1274 = vpop.f32.mrf.mxu0
      %v1275 = vadd.f32 0.0, %v1274
      %v1276 = vpop.f32.mrf.mxu0
      %1277 = vmatprep.mubr.bf16.mxu0 0
      %1278 = vmatmul.mubr.bf16.gmra.mxu0 %v1198
      %v1279 = vpop.f32.mrf.mxu0
      %v1280 = vadd.f32 0.0, %v1279
      %v1281 = vpop.f32.mrf.mxu0
      %v1282 = vpop.f32.mrf.mxu0
      %v1283 = vadd.f32 0.0, %v1282
      %v1284 = vpop.f32.mrf.mxu0
      %1285 = vmatprep.mubr.bf16.mxu0 0
      %1286 = vmatmul.mubr.bf16.gmra.mxu0 %v1201
      %v1287 = vpop.f32.mrf.mxu0
      %v1288 = vadd.f32 0.0, %v1287
      %v1289 = vpop.f32.mrf.mxu0
      %v1290 = vpop.f32.mrf.mxu0
      %v1291 = vadd.f32 0.0, %v1290
      %v1292 = vpop.f32.mrf.mxu0
      %1293 = vmatprep.mubr.bf16.mxu0 0
      %1294 = vmatmul.mubr.bf16.gmra.mxu0 %v1204
      %v1295 = vpop.f32.mrf.mxu0
      %v1296 = vadd.f32 0.0, %v1295
      %v1297 = vpop.f32.mrf.mxu0
      %v1298 = vpop.f32.mrf.mxu0
      %v1299 = vadd.f32 0.0, %v1298
      %v1300 = vpop.f32.mrf.mxu0
      %1301 = vmatprep.mubr.bf16.mxu0 0
      %1302 = vmatmul.mubr.bf16.gmra.mxu0 %v1207
      %v1303 = vpop.f32.mrf.mxu0
      %v1304 = vadd.f32 0.0, %v1303
      %v1305 = vpop.f32.mrf.mxu0
      %v1306 = vpop.f32.mrf.mxu0
      %v1307 = vadd.f32 0.0, %v1306
      %v1308 = vpop.f32.mrf.mxu0
      %1309 = vdwg.mxu0
      %v1326 = vunpack.c.l.b16 %v938
      %v1327 = vunpack.c.l.b16 %v939
      %v1328 = vunpack.c.l.b16 %v940
      %v1329 = vunpack.c.l.b16 %v941
      %v1330 = vunpack.c.l.b16 %v942
      %v1331 = vunpack.c.l.b16 %v943
      %v1332 = vunpack.c.l.b16 %v944
      %v1333 = vunpack.c.l.b16 %v945
      %v1334 = vunpack.c.l.b16 %v946
      %v1335 = vunpack.c.l.b16 %v947
      %v1336 = vunpack.c.l.b16 %v948
      %v1337 = vunpack.c.l.b16 %v949
      %v1338 = vunpack.c.l.b16 %v950
      %v1339 = vunpack.c.l.b16 %v951
      %v1340 = vunpack.c.l.b16 %v952
      %v1341 = vunpack.c.l.b16 %v953
      %v1342 = vpack.c.b16 %v1327, %v1326
      %v1343 = vpack.c.b16 %v1329, %v1328
      %v1344 = vpack.c.b16 %v1331, %v1330
      %v1345 = vpack.c.b16 %v1333, %v1332
      %v1346 = vpack.c.b16 %v1335, %v1334
      %v1347 = vpack.c.b16 %v1337, %v1336
      %v1348 = vpack.c.b16 %v1339, %v1338
      %v1349 = vpack.c.b16 %v1341, %v1340
      %v1351 = vsel %vm1184, %v1342, 0
      %v1354 = vsel %vm1184, %v1343, 0
      %v1357 = vsel %vm1184, %v1344, 0
      %v1360 = vsel %vm1184, %v1345, 0
      %v1363 = vsel %vm1184, %v1346, 0
      %v1366 = vsel %vm1184, %v1347, 0
      %v1369 = vsel %vm1184, %v1348, 0
      %v1372 = vsel %vm1184, %v1349, 0
      %v1375 = vsel %vm1209, %v954, 0
      %1377 = vmatprep.subr.bf16.mxu0 0
      %1378 = vmatpush1.bf16.msra.mxu0 0
      %1379 = vmatprep.subr.bf16.mxu0 0
      %1380 = vmatpush1.bf16.msra.mxu0 0
      %1381 = vmatprep.subr.bf16.mxu0 0
      %1382 = vmatpush1.bf16.msra.mxu0 0
      %1383 = vmatprep.subr.bf16.mxu0 0
      %1384 = vmatpush1.bf16.msra.mxu0 0
      %1385 = vmatprep.subr.bf16.mxu0 0
      %1386 = vmatpush1.bf16.msra.mxu0 0
      %1387 = vmatprep.subr.bf16.mxu0 0
      %1388 = vmatpush1.bf16.msra.mxu0 0
      %1389 = vmatprep.subr.bf16.mxu0 0
      %1390 = vmatpush1.bf16.msra.mxu0 0
      %1391 = vmatprep.subr.bf16.mxu0 0
      %1392 = vmatpush1.bf16.msra.mxu0 %v1375
      %1393 = vmatprep.subr.bf16.mxu0 0
      %1394 = vmatpush2.bf16.msra.mxu0 0
      %1395 = vmatprep.subr.bf16.mxu0 0
      %1396 = vmatpush2.bf16.msra.mxu0 0
      %1397 = vmatprep.subr.bf16.mxu0 0
      %1398 = vmatpush2.bf16.msra.mxu0 0
      %1399 = vmatprep.subr.bf16.mxu0 0
      %1400 = vmatpush2.bf16.msra.mxu0 0
      %1401 = vmatprep.subr.bf16.mxu0 0
      %1402 = vmatpush2.bf16.msra.mxu0 0
      %1403 = vmatprep.subr.bf16.mxu0 0
      %1404 = vmatpush2.bf16.msra.mxu0 0
      %1405 = vmatprep.subr.bf16.mxu0 0
      %1406 = vmatpush2.bf16.msra.mxu0 0
      %1407 = vmatprep.subr.bf16.mxu0 0
      %1408 = vmatpush2.bf16.msra.mxu0 0
      %1409 = vmatprep.mubr.bf16.mxu0 0
      %1410 = vmatmul.mubr.bf16.gmra.mxu0 %v1351
      %v1411 = vpop.f32.mrf.mxu0
      %v1412 = vadd.f32 %v1248, %v1411
      %v1413 = vpop.f32.mrf.mxu0
      %v1414 = vpop.f32.mrf.mxu0
      %v1415 = vadd.f32 %v1251, %v1414
      %v1416 = vpop.f32.mrf.mxu0
      %1417 = vmatprep.mubr.bf16.mxu0 0
      %1418 = vmatmul.mubr.bf16.gmra.mxu0 %v1354
      %v1419 = vpop.f32.mrf.mxu0
      %v1420 = vadd.f32 %v1256, %v1419
      %v1421 = vpop.f32.mrf.mxu0
      %v1422 = vpop.f32.mrf.mxu0
      %v1423 = vadd.f32 %v1259, %v1422
      %v1424 = vpop.f32.mrf.mxu0
      %1425 = vmatprep.mubr.bf16.mxu0 0
      %1426 = vmatmul.mubr.bf16.gmra.mxu0 %v1357
      %v1427 = vpop.f32.mrf.mxu0
      %v1428 = vadd.f32 %v1264, %v1427
      %v1429 = vpop.f32.mrf.mxu0
      %v1430 = vpop.f32.mrf.mxu0
      %v1431 = vadd.f32 %v1267, %v1430
      %v1432 = vpop.f32.mrf.mxu0
      %1433 = vmatprep.mubr.bf16.mxu0 0
      %1434 = vmatmul.mubr.bf16.gmra.mxu0 %v1360
      %v1435 = vpop.f32.mrf.mxu0
      %v1436 = vadd.f32 %v1272, %v1435
      %v1437 = vpop.f32.mrf.mxu0
      %v1438 = vpop.f32.mrf.mxu0
      %v1439 = vadd.f32 %v1275, %v1438
      %v1440 = vpop.f32.mrf.mxu0
      %1441 = vmatprep.mubr.bf16.mxu0 0
      %1442 = vmatmul.mubr.bf16.gmra.mxu0 %v1363
      %v1443 = vpop.f32.mrf.mxu0
      %v1444 = vadd.f32 %v1280, %v1443
      %v1445 = vpop.f32.mrf.mxu0
      %v1446 = vpop.f32.mrf.mxu0
      %v1447 = vadd.f32 %v1283, %v1446
      %v1448 = vpop.f32.mrf.mxu0
      %1449 = vmatprep.mubr.bf16.mxu0 0
      %1450 = vmatmul.mubr.bf16.gmra.mxu0 %v1366
      %v1451 = vpop.f32.mrf.mxu0
      %v1452 = vadd.f32 %v1288, %v1451
      %v1453 = vpop.f32.mrf.mxu0
      %v1454 = vpop.f32.mrf.mxu0
      %v1455 = vadd.f32 %v1291, %v1454
      %v1456 = vpop.f32.mrf.mxu0
      %1457 = vmatprep.mubr.bf16.mxu0 0
      %1458 = vmatmul.mubr.bf16.gmra.mxu0 %v1369
      %v1459 = vpop.f32.mrf.mxu0
      %v1460 = vadd.f32 %v1296, %v1459
      %v1461 = vpop.f32.mrf.mxu0
      %v1462 = vpop.f32.mrf.mxu0
      %v1463 = vadd.f32 %v1299, %v1462
      %v1464 = vpop.f32.mrf.mxu0
      %1465 = vmatprep.mubr.bf16.mxu0 0
      %1466 = vmatmul.mubr.bf16.gmra.mxu0 %v1372
      %v1467 = vpop.f32.mrf.mxu0
      %v1468 = vadd.f32 %v1304, %v1467
      %v1469 = vpop.f32.mrf.mxu0
      %v1470 = vpop.f32.mrf.mxu0
      %v1471 = vadd.f32 %v1307, %v1470
      %v1472 = vpop.f32.mrf.mxu0
      %1473 = vdwg.mxu0
      %v1474 = vld [vmem:[#allocation2] sm:$0xe]
      %v1475 = vld [vmem:[#allocation2 + $0xc] sm:$0xe]
      %v1476 = vld [vmem:[#allocation2 + $0x18] sm:$0xe]
      %v1477 = vld [vmem:[#allocation2 + $0x24] sm:$0xe]
      %v1478 = vld [vmem:[#allocation2 + $0x30] sm:$0xe]
      %v1479 = vld [vmem:[#allocation2 + $0x3c] sm:$0xe]
      %v1480 = vld [vmem:[#allocation2 + $0x48] sm:$0xe]
      %v1481 = vld [vmem:[#allocation2 + $0x54] sm:$0xe]
      %vm1498 = vcmask 1042432
      %vm1499 = vcmask 1046532
      %vm1500 = vmor %vm1498, %vm1499
      %v1501 = vrot.slane %v1474, 5
      %v1502 = vrot.slane %v1501, 4
      %v1503 = vrot.slane %v939, 5
      %v1504 = vsel %vm1500, %v1502, %v1503
      %v1505 = vrot.slane %v1503, 4
      %v1506 = vrot.slane %v955, 5
      %v1507 = vsel %vm1500, %v1505, %v1506
      %v1508 = vrot.slane %v1475, 5
      %v1509 = vrot.slane %v1508, 4
      %v1510 = vrot.slane %v941, 5
      %v1511 = vsel %vm1500, %v1509, %v1510
      %v1512 = vrot.slane %v1510, 4
      %v1513 = vrot.slane %v956, 5
      %v1514 = vsel %vm1500, %v1512, %v1513
      %v1515 = vrot.slane %v1476, 5
      %v1516 = vrot.slane %v1515, 4
      %v1517 = vrot.slane %v943, 5
      %v1518 = vsel %vm1500, %v1516, %v1517
      %v1519 = vrot.slane %v1517, 4
      %v1520 = vrot.slane %v957, 5
      %v1521 = vsel %vm1500, %v1519, %v1520
      %v1522 = vrot.slane %v1477, 5
      %v1523 = vrot.slane %v1522, 4
      %v1524 = vrot.slane %v945, 5
      %v1525 = vsel %vm1500, %v1523, %v1524
      %v1526 = vrot.slane %v1524, 4
      %v1527 = vrot.slane %v958, 5
      %v1528 = vsel %vm1500, %v1526, %v1527
      %v1529 = vrot.slane %v1478, 5
      %v1530 = vrot.slane %v1529, 4
      %v1531 = vrot.slane %v947, 5
      %v1532 = vsel %vm1500, %v1530, %v1531
      %v1533 = vrot.slane %v1531, 4
      %v1534 = vrot.slane %v959, 5
      %v1535 = vsel %vm1500, %v1533, %v1534
      %v1536 = vrot.slane %v1479, 5
      %v1537 = vrot.slane %v1536, 4
      %v1538 = vrot.slane %v949, 5
      %v1539 = vsel %vm1500, %v1537, %v1538
      %v1540 = vrot.slane %v1538, 4
      %v1541 = vrot.slane %v960, 5
      %v1542 = vsel %vm1500, %v1540, %v1541
      %v1543 = vrot.slane %v1480, 5
      %v1544 = vrot.slane %v1543, 4
      %v1545 = vrot.slane %v951, 5
      %v1546 = vsel %vm1500, %v1544, %v1545
      %v1547 = vrot.slane %v1545, 4
      %v1548 = vrot.slane %v961, 5
      %v1549 = vsel %vm1500, %v1547, %v1548
      %v1550 = vrot.slane %v1481, 5
      %v1551 = vrot.slane %v1550, 4
      %v1552 = vrot.slane %v953, 5
      %v1553 = vsel %vm1500, %v1551, %v1552
      %v1554 = vrot.slane %v1552, 4
      %v1555 = vrot.slane %v962, 5
      %v1556 = vsel %vm1500, %v1554, %v1555
      %s1557 = scalar_lea.vmem %s3, 4
      %v1558 = vld [vmem:[%s1557] sm:$0x3]
      %v1559 = vunpack.c.l.b16 %v1504
      %v1560 = vunpack.c.l.b16 %v1507
      %v1561 = vunpack.c.l.b16 %v1511
      %v1562 = vunpack.c.l.b16 %v1514
      %v1563 = vunpack.c.l.b16 %v1518
      %v1564 = vunpack.c.l.b16 %v1521
      %v1565 = vunpack.c.l.b16 %v1525
      %v1566 = vunpack.c.l.b16 %v1528
      %v1567 = vunpack.c.l.b16 %v1532
      %v1568 = vunpack.c.l.b16 %v1535
      %v1569 = vunpack.c.l.b16 %v1539
      %v1570 = vunpack.c.l.b16 %v1542
      %v1571 = vunpack.c.l.b16 %v1546
      %v1572 = vunpack.c.l.b16 %v1549
      %v1573 = vunpack.c.l.b16 %v1553
      %v1574 = vunpack.c.l.b16 %v1556
      %v1575 = vpack.c.b16 %v1560, %v1559
      %v1576 = vpack.c.b16 %v1562, %v1561
      %v1577 = vpack.c.b16 %v1564, %v1563
      %v1578 = vpack.c.b16 %v1566, %v1565
      %v1579 = vpack.c.b16 %v1568, %v1567
      %v1580 = vpack.c.b16 %v1570, %v1569
      %v1581 = vpack.c.b16 %v1572, %v1571
      %v1582 = vpack.c.b16 %v1574, %v1573
      %v1584 = vsel %vm1184, %v1575, 0
      %v1587 = vsel %vm1184, %v1576, 0
      %v1590 = vsel %vm1184, %v1577, 0
      %v1593 = vsel %vm1184, %v1578, 0
      %v1596 = vsel %vm1184, %v1579, 0
      %v1599 = vsel %vm1184, %v1580, 0
      %v1602 = vsel %vm1184, %v1581, 0
      %v1605 = vsel %vm1184, %v1582, 0
      %v1608 = vsel %vm1209, %v1558, 0
      %1610 = vmatprep.subr.bf16.mxu0 0
      %1611 = vmatpush1.bf16.msra.mxu0 0
      %1612 = vmatprep.subr.bf16.mxu0 0
      %1613 = vmatpush1.bf16.msra.mxu0 0
      %1614 = vmatprep.subr.bf16.mxu0 0
      %1615 = vmatpush1.bf16.msra.mxu0 0
      %1616 = vmatprep.subr.bf16.mxu0 0
      %1617 = vmatpush1.bf16.msra.mxu0 0
      %1618 = vmatprep.subr.bf16.mxu0 0
      %1619 = vmatpush1.bf16.msra.mxu0 0
      %1620 = vmatprep.subr.bf16.mxu0 0
      %1621 = vmatpush1.bf16.msra.mxu0 0
      %1622 = vmatprep.subr.bf16.mxu0 0
      %1623 = vmatpush1.bf16.msra.mxu0 0
      %1624 = vmatprep.subr.bf16.mxu0 0
      %1625 = vmatpush1.bf16.msra.mxu0 %v1608
      %1626 = vmatprep.subr.bf16.mxu0 0
      %1627 = vmatpush2.bf16.msra.mxu0 0
      %1628 = vmatprep.subr.bf16.mxu0 0
      %1629 = vmatpush2.bf16.msra.mxu0 0
      %1630 = vmatprep.subr.bf16.mxu0 0
      %1631 = vmatpush2.bf16.msra.mxu0 0
      %1632 = vmatprep.subr.bf16.mxu0 0
      %1633 = vmatpush2.bf16.msra.mxu0 0
      %1634 = vmatprep.subr.bf16.mxu0 0
      %1635 = vmatpush2.bf16.msra.mxu0 0
      %1636 = vmatprep.subr.bf16.mxu0 0
      %1637 = vmatpush2.bf16.msra.mxu0 0
      %1638 = vmatprep.subr.bf16.mxu0 0
      %1639 = vmatpush2.bf16.msra.mxu0 0
      %1640 = vmatprep.subr.bf16.mxu0 0
      %1641 = vmatpush2.bf16.msra.mxu0 0
      %1642 = vmatprep.mubr.bf16.mxu0 0
      %1643 = vmatmul.mubr.bf16.gmra.mxu0 %v1584
      %v1644 = vpop.f32.mrf.mxu0
      %v1645 = vadd.f32 0.0, %v1644
      %v1646 = vpop.f32.mrf.mxu0
      %v1647 = vpop.f32.mrf.mxu0
      %v1648 = vadd.f32 0.0, %v1647
      %v1649 = vpop.f32.mrf.mxu0
      %1650 = vmatprep.mubr.bf16.mxu0 0
      %1651 = vmatmul.mubr.bf16.gmra.mxu0 %v1587
      %v1652 = vpop.f32.mrf.mxu0
      %v1653 = vadd.f32 0.0, %v1652
      %v1654 = vpop.f32.mrf.mxu0
      %v1655 = vpop.f32.mrf.mxu0
      %v1656 = vadd.f32 0.0, %v1655
      %v1657 = vpop.f32.mrf.mxu0
      %1658 = vmatprep.mubr.bf16.mxu0 0
      %1659 = vmatmul.mubr.bf16.gmra.mxu0 %v1590
      %v1660 = vpop.f32.mrf.mxu0
      %v1661 = vadd.f32 0.0, %v1660
      %v1662 = vpop.f32.mrf.mxu0
      %v1663 = vpop.f32.mrf.mxu0
      %v1664 = vadd.f32 0.0, %v1663
      %v1665 = vpop.f32.mrf.mxu0
      %1666 = vmatprep.mubr.bf16.mxu0 0
      %1667 = vmatmul.mubr.bf16.gmra.mxu0 %v1593
      %v1668 = vpop.f32.mrf.mxu0
      %v1669 = vadd.f32 0.0, %v1668
      %v1670 = vpop.f32.mrf.mxu0
      %v1671 = vpop.f32.mrf.mxu0
      %v1672 = vadd.f32 0.0, %v1671
      %v1673 = vpop.f32.mrf.mxu0
      %1674 = vmatprep.mubr.bf16.mxu0 0
      %1675 = vmatmul.mubr.bf16.gmra.mxu0 %v1596
      %v1676 = vpop.f32.mrf.mxu0
      %v1677 = vadd.f32 0.0, %v1676
      %v1678 = vpop.f32.mrf.mxu0
      %v1679 = vpop.f32.mrf.mxu0
      %v1680 = vadd.f32 0.0, %v1679
      %v1681 = vpop.f32.mrf.mxu0
      %1682 = vmatprep.mubr.bf16.mxu0 0
      %1683 = vmatmul.mubr.bf16.gmra.mxu0 %v1599
      %v1684 = vpop.f32.mrf.mxu0
      %v1685 = vadd.f32 0.0, %v1684
      %v1686 = vpop.f32.mrf.mxu0
      %v1687 = vpop.f32.mrf.mxu0
      %v1688 = vadd.f32 0.0, %v1687
      %v1689 = vpop.f32.mrf.mxu0
      %1690 = vmatprep.mubr.bf16.mxu0 0
      %1691 = vmatmul.mubr.bf16.gmra.mxu0 %v1602
      %v1692 = vpop.f32.mrf.mxu0
      %v1693 = vadd.f32 0.0, %v1692
      %v1694 = vpop.f32.mrf.mxu0
      %v1695 = vpop.f32.mrf.mxu0
      %v1696 = vadd.f32 0.0, %v1695
      %v1697 = vpop.f32.mrf.mxu0
      %1698 = vmatprep.mubr.bf16.mxu0 0
      %1699 = vmatmul.mubr.bf16.gmra.mxu0 %v1605
      %v1700 = vpop.f32.mrf.mxu0
      %v1701 = vadd.f32 0.0, %v1700
      %v1702 = vpop.f32.mrf.mxu0
      %v1703 = vpop.f32.mrf.mxu0
      %v1704 = vadd.f32 0.0, %v1703
      %v1705 = vpop.f32.mrf.mxu0
      %1706 = vdwg.mxu0
      %v1707 = vadd.f32 %v1412, %v1645
      %v1708 = vadd.f32 %v1415, %v1648
      %v1709 = vadd.f32 %v1420, %v1653
      %v1710 = vadd.f32 %v1423, %v1656
      %v1711 = vadd.f32 %v1428, %v1661
      %v1712 = vadd.f32 %v1431, %v1664
      %v1713 = vadd.f32 %v1436, %v1669
      %v1714 = vadd.f32 %v1439, %v1672
      %v1715 = vadd.f32 %v1444, %v1677
      %v1716 = vadd.f32 %v1447, %v1680
      %v1717 = vadd.f32 %v1452, %v1685
      %v1718 = vadd.f32 %v1455, %v1688
      %v1719 = vadd.f32 %v1460, %v1693
      %v1720 = vadd.f32 %v1463, %v1696
      %v1721 = vadd.f32 %v1468, %v1701
      %v1722 = vadd.f32 %v1471, %v1704
      %v1723 = vld [vmem:[%s782] sm:$0xf]
      %v1724 = vld [vmem:[%s782 + $0x4] sm:$0xf]
      %v1725 = vld [vmem:[%s782 + $0xc] sm:$0xf]
      %v1726 = vld [vmem:[%s782 + $0x10] sm:$0xf]
      %v1727 = vld [vmem:[%s782 + $0x18] sm:$0xf]
      %v1728 = vld [vmem:[%s782 + $0x1c] sm:$0xf]
      %v1729 = vld [vmem:[%s782 + $0x24] sm:$0xf]
      %v1730 = vld [vmem:[%s782 + $0x28] sm:$0xf]
      %v1731 = vld [vmem:[%s782 + $0x30] sm:$0xf]
      %v1732 = vld [vmem:[%s782 + $0x34] sm:$0xf]
      %v1733 = vld [vmem:[%s782 + $0x3c] sm:$0xf]
      %v1734 = vld [vmem:[%s782 + $0x40] sm:$0xf]
      %v1735 = vld [vmem:[%s782 + $0x48] sm:$0xf]
      %v1736 = vld [vmem:[%s782 + $0x4c] sm:$0xf]
      %v1737 = vld [vmem:[%s782 + $0x54] sm:$0xf]
      %v1738 = vld [vmem:[%s782 + $0x58] sm:$0xf]
      %s1739 = scalar_lea.vmem %s3, 6
      %v1740 = vld [vmem:[%s1739] sm:$0x3]
      %v1757 = vunpack.c.l.b16 %v1723
      %v1758 = vunpack.c.l.b16 %v1724
      %v1759 = vunpack.c.l.b16 %v1725
      %v1760 = vunpack.c.l.b16 %v1726
      %v1761 = vunpack.c.l.b16 %v1727
      %v1762 = vunpack.c.l.b16 %v1728
      %v1763 = vunpack.c.l.b16 %v1729
      %v1764 = vunpack.c.l.b16 %v1730
      %v1765 = vunpack.c.l.b16 %v1731
      %v1766 = vunpack.c.l.b16 %v1732
      %v1767 = vunpack.c.l.b16 %v1733
      %v1768 = vunpack.c.l.b16 %v1734
      %v1769 = vunpack.c.l.b16 %v1735
      %v1770 = vunpack.c.l.b16 %v1736
      %v1771 = vunpack.c.l.b16 %v1737
      %v1772 = vunpack.c.l.b16 %v1738
      %v1773 = vpack.c.b16 %v1758, %v1757
      %v1774 = vpack.c.b16 %v1760, %v1759
      %v1775 = vpack.c.b16 %v1762, %v1761
      %v1776 = vpack.c.b16 %v1764, %v1763
      %v1777 = vpack.c.b16 %v1766, %v1765
      %v1778 = vpack.c.b16 %v1768, %v1767
      %v1779 = vpack.c.b16 %v1770, %v1769
      %v1780 = vpack.c.b16 %v1772, %v1771
      %v1782 = vsel %vm1184, %v1773, 0
      %v1785 = vsel %vm1184, %v1774, 0
      %v1788 = vsel %vm1184, %v1775, 0
      %v1791 = vsel %vm1184, %v1776, 0
      %v1794 = vsel %vm1184, %v1777, 0
      %v1797 = vsel %vm1184, %v1778, 0
      %v1800 = vsel %vm1184, %v1779, 0
      %v1803 = vsel %vm1184, %v1780, 0
      %v1806 = vsel %vm1209, %v1740, 0
      %1808 = vmatprep.subr.bf16.mxu0 0
      %1809 = vmatpush1.bf16.msra.mxu0 0
      %1810 = vmatprep.subr.bf16.mxu0 0
      %1811 = vmatpush1.bf16.msra.mxu0 0
      %1812 = vmatprep.subr.bf16.mxu0 0
      %1813 = vmatpush1.bf16.msra.mxu0 0
      %1814 = vmatprep.subr.bf16.mxu0 0
      %1815 = vmatpush1.bf16.msra.mxu0 0
      %1816 = vmatprep.subr.bf16.mxu0 0
      %1817 = vmatpush1.bf16.msra.mxu0 0
      %1818 = vmatprep.subr.bf16.mxu0 0
      %1819 = vmatpush1.bf16.msra.mxu0 0
      %1820 = vmatprep.subr.bf16.mxu0 0
      %1821 = vmatpush1.bf16.msra.mxu0 0
      %1822 = vmatprep.subr.bf16.mxu0 0
      %1823 = vmatpush1.bf16.msra.mxu0 %v1806
      %1824 = vmatprep.subr.bf16.mxu0 0
      %1825 = vmatpush2.bf16.msra.mxu0 0
      %1826 = vmatprep.subr.bf16.mxu0 0
      %1827 = vmatpush2.bf16.msra.mxu0 0
      %1828 = vmatprep.subr.bf16.mxu0 0
      %1829 = vmatpush2.bf16.msra.mxu0 0
      %1830 = vmatprep.subr.bf16.mxu0 0
      %1831 = vmatpush2.bf16.msra.mxu0 0
      %1832 = vmatprep.subr.bf16.mxu0 0
      %1833 = vmatpush2.bf16.msra.mxu0 0
      %1834 = vmatprep.subr.bf16.mxu0 0
      %1835 = vmatpush2.bf16.msra.mxu0 0
      %1836 = vmatprep.subr.bf16.mxu0 0
      %1837 = vmatpush2.bf16.msra.mxu0 0
      %1838 = vmatprep.subr.bf16.mxu0 0
      %1839 = vmatpush2.bf16.msra.mxu0 0
      %1840 = vmatprep.mubr.bf16.mxu0 0
      %1841 = vmatmul.mubr.bf16.gmra.mxu0 %v1782
      %v1842 = vpop.f32.mrf.mxu0
      %v1843 = vadd.f32 0.0, %v1842
      %v1844 = vpop.f32.mrf.mxu0
      %v1845 = vpop.f32.mrf.mxu0
      %v1846 = vadd.f32 0.0, %v1845
      %v1847 = vpop.f32.mrf.mxu0
      %1848 = vmatprep.mubr.bf16.mxu0 0
      %1849 = vmatmul.mubr.bf16.gmra.mxu0 %v1785
      %v1850 = vpop.f32.mrf.mxu0
      %v1851 = vadd.f32 0.0, %v1850
      %v1852 = vpop.f32.mrf.mxu0
      %v1853 = vpop.f32.mrf.mxu0
      %v1854 = vadd.f32 0.0, %v1853
      %v1855 = vpop.f32.mrf.mxu0
      %1856 = vmatprep.mubr.bf16.mxu0 0
      %1857 = vmatmul.mubr.bf16.gmra.mxu0 %v1788
      %v1858 = vpop.f32.mrf.mxu0
      %v1859 = vadd.f32 0.0, %v1858
      %v1860 = vpop.f32.mrf.mxu0
      %v1861 = vpop.f32.mrf.mxu0
      %v1862 = vadd.f32 0.0, %v1861
      %v1863 = vpop.f32.mrf.mxu0
      %1864 = vmatprep.mubr.bf16.mxu0 0
      %1865 = vmatmul.mubr.bf16.gmra.mxu0 %v1791
      %v1866 = vpop.f32.mrf.mxu0
      %v1867 = vadd.f32 0.0, %v1866
      %v1868 = vpop.f32.mrf.mxu0
      %v1869 = vpop.f32.mrf.mxu0
      %v1870 = vadd.f32 0.0, %v1869
      %v1871 = vpop.f32.mrf.mxu0
      %1872 = vmatprep.mubr.bf16.mxu0 0
      %1873 = vmatmul.mubr.bf16.gmra.mxu0 %v1794
      %v1874 = vpop.f32.mrf.mxu0
      %v1875 = vadd.f32 0.0, %v1874
      %v1876 = vpop.f32.mrf.mxu0
      %v1877 = vpop.f32.mrf.mxu0
      %v1878 = vadd.f32 0.0, %v1877
      %v1879 = vpop.f32.mrf.mxu0
      %1880 = vmatprep.mubr.bf16.mxu0 0
      %1881 = vmatmul.mubr.bf16.gmra.mxu0 %v1797
      %v1882 = vpop.f32.mrf.mxu0
      %v1883 = vadd.f32 0.0, %v1882
      %v1884 = vpop.f32.mrf.mxu0
      %v1885 = vpop.f32.mrf.mxu0
      %v1886 = vadd.f32 0.0, %v1885
      %v1887 = vpop.f32.mrf.mxu0
      %1888 = vmatprep.mubr.bf16.mxu0 0
      %1889 = vmatmul.mubr.bf16.gmra.mxu0 %v1800
      %v1890 = vpop.f32.mrf.mxu0
      %v1891 = vadd.f32 0.0, %v1890
      %v1892 = vpop.f32.mrf.mxu0
      %v1893 = vpop.f32.mrf.mxu0
      %v1894 = vadd.f32 0.0, %v1893
      %v1895 = vpop.f32.mrf.mxu0
      %1896 = vmatprep.mubr.bf16.mxu0 0
      %1897 = vmatmul.mubr.bf16.gmra.mxu0 %v1803
      %v1898 = vpop.f32.mrf.mxu0
      %v1899 = vadd.f32 0.0, %v1898
      %v1900 = vpop.f32.mrf.mxu0
      %v1901 = vpop.f32.mrf.mxu0
      %v1902 = vadd.f32 0.0, %v1901
      %v1903 = vpop.f32.mrf.mxu0
      %1904 = vdwg.mxu0
      %v1905 = vadd.f32 %v1707, %v1843
      %v1906 = vadd.f32 %v1708, %v1846
      %v1907 = vadd.f32 %v1709, %v1851
      %v1908 = vadd.f32 %v1710, %v1854
      %v1909 = vadd.f32 %v1711, %v1859
      %v1910 = vadd.f32 %v1712, %v1862
      %v1911 = vadd.f32 %v1713, %v1867
      %v1912 = vadd.f32 %v1714, %v1870
      %v1913 = vadd.f32 %v1715, %v1875
      %v1914 = vadd.f32 %v1716, %v1878
      %v1915 = vadd.f32 %v1717, %v1883
      %v1916 = vadd.f32 %v1718, %v1886
      %v1917 = vadd.f32 %v1719, %v1891
      %v1918 = vadd.f32 %v1720, %v1894
      %v1919 = vadd.f32 %v1721, %v1899
      %v1920 = vadd.f32 %v1722, %v1902
      %v1921 = vld [vmem:[%s782] sm:$0xf]
      %v1922 = vld [vmem:[%s782 + $0x4] sm:$0xf]
      %v1923 = vld [vmem:[%s782 + $0x8] sm:$0x1]
      %v1924 = vld [vmem:[%s782 + $0xc] sm:$0xf]
      %v1925 = vld [vmem:[%s782 + $0x10] sm:$0xf]
      %v1926 = vld [vmem:[%s782 + $0x14] sm:$0x1]
      %v1927 = vld [vmem:[%s782 + $0x18] sm:$0xf]
      %v1928 = vld [vmem:[%s782 + $0x1c] sm:$0xf]
      %v1929 = vld [vmem:[%s782 + $0x20] sm:$0x1]
      %v1930 = vld [vmem:[%s782 + $0x24] sm:$0xf]
      %v1931 = vld [vmem:[%s782 + $0x28] sm:$0xf]
      %v1932 = vld [vmem:[%s782 + $0x2c] sm:$0x1]
      %v1933 = vld [vmem:[%s782 + $0x30] sm:$0xf]
      %v1934 = vld [vmem:[%s782 + $0x34] sm:$0xf]
      %v1935 = vld [vmem:[%s782 + $0x38] sm:$0x1]
      %v1936 = vld [vmem:[%s782 + $0x3c] sm:$0xf]
      %v1937 = vld [vmem:[%s782 + $0x40] sm:$0xf]
      %v1938 = vld [vmem:[%s782 + $0x44] sm:$0x1]
      %v1939 = vld [vmem:[%s782 + $0x48] sm:$0xf]
      %v1940 = vld [vmem:[%s782 + $0x4c] sm:$0xf]
      %v1941 = vld [vmem:[%s782 + $0x50] sm:$0x1]
      %v1942 = vld [vmem:[%s782 + $0x54] sm:$0xf]
      %v1943 = vld [vmem:[%s782 + $0x58] sm:$0xf]
      %v1944 = vld [vmem:[%s782 + $0x5c] sm:$0x1]
      %v1946 = vshrl.u32 %v1921, 16
      %v1948 = vrot.slane %v1946, 4
      %v1949 = vshll.u32 %v1921, 16
      %v1951 = vrot.slane %v1949, 5
      %v1952 = vor.u32 %v1948, %v1951
      %v1953 = vrot.slane %v1952, 4
      %v1955 = vshll.u32 %v1922, 16
      %v1957 = vrot.slane %v1955, 5
      %v1958 = vsel %vm965, %v1953, %v1957
      %v1959 = vshrl.u32 %v1922, 16
      %v1961 = vrot.slane %v1959, 4
      %v1962 = vor.u32 %v1961, %v1957
      %v1963 = vrot.slane %v1962, 4
      %v1965 = vshll.u32 %v1923, 16
      %v1967 = vrot.slane %v1965, 5
      %v1968 = vsel %vm965, %v1963, %v1967
      %v1970 = vshrl.u32 %v1924, 16
      %v1972 = vrot.slane %v1970, 4
      %v1973 = vshll.u32 %v1924, 16
      %v1975 = vrot.slane %v1973, 5
      %v1976 = vor.u32 %v1972, %v1975
      %v1977 = vrot.slane %v1976, 4
      %v1979 = vshll.u32 %v1925, 16
      %v1981 = vrot.slane %v1979, 5
      %v1982 = vsel %vm965, %v1977, %v1981
      %v1983 = vshrl.u32 %v1925, 16
      %v1985 = vrot.slane %v1983, 4
      %v1986 = vor.u32 %v1985, %v1981
      %v1987 = vrot.slane %v1986, 4
      %v1989 = vshll.u32 %v1926, 16
      %v1991 = vrot.slane %v1989, 5
      %v1992 = vsel %vm965, %v1987, %v1991
      %v1994 = vshrl.u32 %v1927, 16
      %v1996 = vrot.slane %v1994, 4
      %v1997 = vshll.u32 %v1927, 16
      %v1999 = vrot.slane %v1997, 5
      %v2000 = vor.u32 %v1996, %v1999
      %v2001 = vrot.slane %v2000, 4
      %v2003 = vshll.u32 %v1928, 16
      %v2005 = vrot.slane %v2003, 5
      %v2006 = vsel %vm965, %v2001, %v2005
      %v2007 = vshrl.u32 %v1928, 16
      %v2009 = vrot.slane %v2007, 4
      %v2010 = vor.u32 %v2009, %v2005
      %v2011 = vrot.slane %v2010, 4
      %v2013 = vshll.u32 %v1929, 16
      %v2015 = vrot.slane %v2013, 5
      %v2016 = vsel %vm965, %v2011, %v2015
      %v2018 = vshrl.u32 %v1930, 16
      %v2020 = vrot.slane %v2018, 4
      %v2021 = vshll.u32 %v1930, 16
      %v2023 = vrot.slane %v2021, 5
      %v2024 = vor.u32 %v2020, %v2023
      %v2025 = vrot.slane %v2024, 4
      %v2027 = vshll.u32 %v1931, 16
      %v2029 = vrot.slane %v2027, 5
      %v2030 = vsel %vm965, %v2025, %v2029
      %v2031 = vshrl.u32 %v1931, 16
      %v2033 = vrot.slane %v2031, 4
      %v2034 = vor.u32 %v2033, %v2029
      %v2035 = vrot.slane %v2034, 4
      %v2037 = vshll.u32 %v1932, 16
      %v2039 = vrot.slane %v2037, 5
      %v2040 = vsel %vm965, %v2035, %v2039
      %v2042 = vshrl.u32 %v1933, 16
      %v2044 = vrot.slane %v2042, 4
      %v2045 = vshll.u32 %v1933, 16
      %v2047 = vrot.slane %v2045, 5
      %v2048 = vor.u32 %v2044, %v2047
      %v2049 = vrot.slane %v2048, 4
      %v2051 = vshll.u32 %v1934, 16
      %v2053 = vrot.slane %v2051, 5
      %v2054 = vsel %vm965, %v2049, %v2053
      %v2055 = vshrl.u32 %v1934, 16
      %v2057 = vrot.slane %v2055, 4
      %v2058 = vor.u32 %v2057, %v2053
      %v2059 = vrot.slane %v2058, 4
      %v2061 = vshll.u32 %v1935, 16
      %v2063 = vrot.slane %v2061, 5
      %v2064 = vsel %vm965, %v2059, %v2063
      %v2066 = vshrl.u32 %v1936, 16
      %v2068 = vrot.slane %v2066, 4
      %v2069 = vshll.u32 %v1936, 16
      %v2071 = vrot.slane %v2069, 5
      %v2072 = vor.u32 %v2068, %v2071
      %v2073 = vrot.slane %v2072, 4
      %v2075 = vshll.u32 %v1937, 16
      %v2077 = vrot.slane %v2075, 5
      %v2078 = vsel %vm965, %v2073, %v2077
      %v2079 = vshrl.u32 %v1937, 16
      %v2081 = vrot.slane %v2079, 4
      %v2082 = vor.u32 %v2081, %v2077
      %v2083 = vrot.slane %v2082, 4
      %v2085 = vshll.u32 %v1938, 16
      %v2087 = vrot.slane %v2085, 5
      %v2088 = vsel %vm965, %v2083, %v2087
      %v2090 = vshrl.u32 %v1939, 16
      %v2092 = vrot.slane %v2090, 4
      %v2093 = vshll.u32 %v1939, 16
      %v2095 = vrot.slane %v2093, 5
      %v2096 = vor.u32 %v2092, %v2095
      %v2097 = vrot.slane %v2096, 4
      %v2099 = vshll.u32 %v1940, 16
      %v2101 = vrot.slane %v2099, 5
      %v2102 = vsel %vm965, %v2097, %v2101
      %v2103 = vshrl.u32 %v1940, 16
      %v2105 = vrot.slane %v2103, 4
      %v2106 = vor.u32 %v2105, %v2101
      %v2107 = vrot.slane %v2106, 4
      %v2109 = vshll.u32 %v1941, 16
      %v2111 = vrot.slane %v2109, 5
      %v2112 = vsel %vm965, %v2107, %v2111
      %v2114 = vshrl.u32 %v1942, 16
      %v2116 = vrot.slane %v2114, 4
      %v2117 = vshll.u32 %v1942, 16
      %v2119 = vrot.slane %v2117, 5
      %v2120 = vor.u32 %v2116, %v2119
      %v2121 = vrot.slane %v2120, 4
      %v2123 = vshll.u32 %v1943, 16
      %v2125 = vrot.slane %v2123, 5
      %v2126 = vsel %vm965, %v2121, %v2125
      %v2127 = vshrl.u32 %v1943, 16
      %v2129 = vrot.slane %v2127, 4
      %v2130 = vor.u32 %v2129, %v2125
      %v2131 = vrot.slane %v2130, 4
      %v2133 = vshll.u32 %v1944, 16
      %v2135 = vrot.slane %v2133, 5
      %v2136 = vsel %vm965, %v2131, %v2135
      %s2137 = scalar_lea.vmem %s3, 8
      %v2138 = vld [vmem:[%s2137] sm:$0x3]
      %v2139 = vunpack.c.l.b16 %v1958
      %v2140 = vunpack.c.l.b16 %v1968
      %v2141 = vunpack.c.l.b16 %v1982
      %v2142 = vunpack.c.l.b16 %v1992
      %v2143 = vunpack.c.l.b16 %v2006
      %v2144 = vunpack.c.l.b16 %v2016
      %v2145 = vunpack.c.l.b16 %v2030
      %v2146 = vunpack.c.l.b16 %v2040
      %v2147 = vunpack.c.l.b16 %v2054
      %v2148 = vunpack.c.l.b16 %v2064
      %v2149 = vunpack.c.l.b16 %v2078
      %v2150 = vunpack.c.l.b16 %v2088
      %v2151 = vunpack.c.l.b16 %v2102
      %v2152 = vunpack.c.l.b16 %v2112
      %v2153 = vunpack.c.l.b16 %v2126
      %v2154 = vunpack.c.l.b16 %v2136
      %v2155 = vpack.c.b16 %v2140, %v2139
      %v2156 = vpack.c.b16 %v2142, %v2141
      %v2157 = vpack.c.b16 %v2144, %v2143
      %v2158 = vpack.c.b16 %v2146, %v2145
      %v2159 = vpack.c.b16 %v2148, %v2147
      %v2160 = vpack.c.b16 %v2150, %v2149
      %v2161 = vpack.c.b16 %v2152, %v2151
      %v2162 = vpack.c.b16 %v2154, %v2153
      %v2164 = vsel %vm1184, %v2155, 0
      %v2167 = vsel %vm1184, %v2156, 0
      %v2170 = vsel %vm1184, %v2157, 0
      %v2173 = vsel %vm1184, %v2158, 0
      %v2176 = vsel %vm1184, %v2159, 0
      %v2179 = vsel %vm1184, %v2160, 0
      %v2182 = vsel %vm1184, %v2161, 0
      %v2185 = vsel %vm1184, %v2162, 0
      %v2188 = vsel %vm1209, %v2138, 0
      %2190 = vmatprep.subr.bf16.mxu0 0
      %2191 = vmatpush1.bf16.msra.mxu0 0
      %2192 = vmatprep.subr.bf16.mxu0 0
      %2193 = vmatpush1.bf16.msra.mxu0 0
      %2194 = vmatprep.subr.bf16.mxu0 0
      %2195 = vmatpush1.bf16.msra.mxu0 0
      %2196 = vmatprep.subr.bf16.mxu0 0
      %2197 = vmatpush1.bf16.msra.mxu0 0
      %2198 = vmatprep.subr.bf16.mxu0 0
      %2199 = vmatpush1.bf16.msra.mxu0 0
      %2200 = vmatprep.subr.bf16.mxu0 0
      %2201 = vmatpush1.bf16.msra.mxu0 0
      %2202 = vmatprep.subr.bf16.mxu0 0
      %2203 = vmatpush1.bf16.msra.mxu0 0
      %2204 = vmatprep.subr.bf16.mxu0 0
      %2205 = vmatpush1.bf16.msra.mxu0 %v2188
      %2206 = vmatprep.subr.bf16.mxu0 0
      %2207 = vmatpush2.bf16.msra.mxu0 0
      %2208 = vmatprep.subr.bf16.mxu0 0
      %2209 = vmatpush2.bf16.msra.mxu0 0
      %2210 = vmatprep.subr.bf16.mxu0 0
      %2211 = vmatpush2.bf16.msra.mxu0 0
      %2212 = vmatprep.subr.bf16.mxu0 0
      %2213 = vmatpush2.bf16.msra.mxu0 0
      %2214 = vmatprep.subr.bf16.mxu0 0
      %2215 = vmatpush2.bf16.msra.mxu0 0
      %2216 = vmatprep.subr.bf16.mxu0 0
      %2217 = vmatpush2.bf16.msra.mxu0 0
      %2218 = vmatprep.subr.bf16.mxu0 0
      %2219 = vmatpush2.bf16.msra.mxu0 0
      %2220 = vmatprep.subr.bf16.mxu0 0
      %2221 = vmatpush2.bf16.msra.mxu0 0
      %2222 = vmatprep.mubr.bf16.mxu0 0
      %2223 = vmatmul.mubr.bf16.gmra.mxu0 %v2164
      %v2224 = vpop.f32.mrf.mxu0
      %v2225 = vadd.f32 0.0, %v2224
      %v2226 = vpop.f32.mrf.mxu0
      %v2227 = vpop.f32.mrf.mxu0
      %v2228 = vadd.f32 0.0, %v2227
      %v2229 = vpop.f32.mrf.mxu0
      %2230 = vmatprep.mubr.bf16.mxu0 0
      %2231 = vmatmul.mubr.bf16.gmra.mxu0 %v2167
      %v2232 = vpop.f32.mrf.mxu0
      %v2233 = vadd.f32 0.0, %v2232
      %v2234 = vpop.f32.mrf.mxu0
      %v2235 = vpop.f32.mrf.mxu0
      %v2236 = vadd.f32 0.0, %v2235
      %v2237 = vpop.f32.mrf.mxu0
      %2238 = vmatprep.mubr.bf16.mxu0 0
      %2239 = vmatmul.mubr.bf16.gmra.mxu0 %v2170
      %v2240 = vpop.f32.mrf.mxu0
      %v2241 = vadd.f32 0.0, %v2240
      %v2242 = vpop.f32.mrf.mxu0
      %v2243 = vpop.f32.mrf.mxu0
      %v2244 = vadd.f32 0.0, %v2243
      %v2245 = vpop.f32.mrf.mxu0
      %2246 = vmatprep.mubr.bf16.mxu0 0
      %2247 = vmatmul.mubr.bf16.gmra.mxu0 %v2173
      %v2248 = vpop.f32.mrf.mxu0
      %v2249 = vadd.f32 0.0, %v2248
      %v2250 = vpop.f32.mrf.mxu0
      %v2251 = vpop.f32.mrf.mxu0
      %v2252 = vadd.f32 0.0, %v2251
      %v2253 = vpop.f32.mrf.mxu0
      %2254 = vmatprep.mubr.bf16.mxu0 0
      %2255 = vmatmul.mubr.bf16.gmra.mxu0 %v2176
      %v2256 = vpop.f32.mrf.mxu0
      %v2257 = vadd.f32 0.0, %v2256
      %v2258 = vpop.f32.mrf.mxu0
      %v2259 = vpop.f32.mrf.mxu0
      %v2260 = vadd.f32 0.0, %v2259
      %v2261 = vpop.f32.mrf.mxu0
      %2262 = vmatprep.mubr.bf16.mxu0 0
      %2263 = vmatmul.mubr.bf16.gmra.mxu0 %v2179
      %v2264 = vpop.f32.mrf.mxu0
      %v2265 = vadd.f32 0.0, %v2264
      %v2266 = vpop.f32.mrf.mxu0
      %v2267 = vpop.f32.mrf.mxu0
      %v2268 = vadd.f32 0.0, %v2267
      %v2269 = vpop.f32.mrf.mxu0
      %2270 = vmatprep.mubr.bf16.mxu0 0
      %2271 = vmatmul.mubr.bf16.gmra.mxu0 %v2182
      %v2272 = vpop.f32.mrf.mxu0
      %v2273 = vadd.f32 0.0, %v2272
      %v2274 = vpop.f32.mrf.mxu0
      %v2275 = vpop.f32.mrf.mxu0
      %v2276 = vadd.f32 0.0, %v2275
      %v2277 = vpop.f32.mrf.mxu0
      %2278 = vmatprep.mubr.bf16.mxu0 0
      %2279 = vmatmul.mubr.bf16.gmra.mxu0 %v2185
      %v2280 = vpop.f32.mrf.mxu0
      %v2281 = vadd.f32 0.0, %v2280
      %v2282 = vpop.f32.mrf.mxu0
      %v2283 = vpop.f32.mrf.mxu0
      %v2284 = vadd.f32 0.0, %v2283
      %v2285 = vpop.f32.mrf.mxu0
      %2286 = vdwg.mxu0
      %v2287 = vadd.f32 %v1905, %v2225
      %v2288 = vadd.f32 %v1906, %v2228
      %v2289 = vadd.f32 %v1907, %v2233
      %v2290 = vadd.f32 %v1908, %v2236
      %v2291 = vadd.f32 %v1909, %v2241
      %v2292 = vadd.f32 %v1910, %v2244
      %v2293 = vadd.f32 %v1911, %v2249
      %v2294 = vadd.f32 %v1912, %v2252
      %v2295 = vadd.f32 %v1913, %v2257
      %v2296 = vadd.f32 %v1914, %v2260
      %v2297 = vadd.f32 %v1915, %v2265
      %v2298 = vadd.f32 %v1916, %v2268
      %v2299 = vadd.f32 %v1917, %v2273
      %v2300 = vadd.f32 %v1918, %v2276
      %v2301 = vadd.f32 %v1919, %v2281
      %v2302 = vadd.f32 %v1920, %v2284
      %v2303 = vld [vmem:[%s782] sm:$0xe]
      %v2304 = vld [vmem:[%s782 + $0xc] sm:$0xe]
      %v2305 = vld [vmem:[%s782 + $0x18] sm:$0xe]
      %v2306 = vld [vmem:[%s782 + $0x24] sm:$0xe]
      %v2307 = vld [vmem:[%s782 + $0x30] sm:$0xe]
      %v2308 = vld [vmem:[%s782 + $0x3c] sm:$0xe]
      %v2309 = vld [vmem:[%s782 + $0x48] sm:$0xe]
      %v2310 = vld [vmem:[%s782 + $0x54] sm:$0xe]
      %v2335 = vrot.slane %v2303, 5
      %v2336 = vrot.slane %v2335, 4
      %v2337 = vrot.slane %v1922, 5
      %v2338 = vsel %vm1500, %v2336, %v2337
      %v2339 = vrot.slane %v2337, 4
      %v2340 = vrot.slane %v1923, 5
      %v2341 = vsel %vm1500, %v2339, %v2340
      %v2342 = vrot.slane %v2304, 5
      %v2343 = vrot.slane %v2342, 4
      %v2344 = vrot.slane %v1925, 5
      %v2345 = vsel %vm1500, %v2343, %v2344
      %v2346 = vrot.slane %v2344, 4
      %v2347 = vrot.slane %v1926, 5
      %v2348 = vsel %vm1500, %v2346, %v2347
      %v2349 = vrot.slane %v2305, 5
      %v2350 = vrot.slane %v2349, 4
      %v2351 = vrot.slane %v1928, 5
      %v2352 = vsel %vm1500, %v2350, %v2351
      %v2353 = vrot.slane %v2351, 4
      %v2354 = vrot.slane %v1929, 5
      %v2355 = vsel %vm1500, %v2353, %v2354
      %v2356 = vrot.slane %v2306, 5
      %v2357 = vrot.slane %v2356, 4
      %v2358 = vrot.slane %v1931, 5
      %v2359 = vsel %vm1500, %v2357, %v2358
      %v2360 = vrot.slane %v2358, 4
      %v2361 = vrot.slane %v1932, 5
      %v2362 = vsel %vm1500, %v2360, %v2361
      %v2363 = vrot.slane %v2307, 5
      %v2364 = vrot.slane %v2363, 4
      %v2365 = vrot.slane %v1934, 5
      %v2366 = vsel %vm1500, %v2364, %v2365
      %v2367 = vrot.slane %v2365, 4
      %v2368 = vrot.slane %v1935, 5
      %v2369 = vsel %vm1500, %v2367, %v2368
      %v2370 = vrot.slane %v2308, 5
      %v2371 = vrot.slane %v2370, 4
      %v2372 = vrot.slane %v1937, 5
      %v2373 = vsel %vm1500, %v2371, %v2372
      %v2374 = vrot.slane %v2372, 4
      %v2375 = vrot.slane %v1938, 5
      %v2376 = vsel %vm1500, %v2374, %v2375
      %v2377 = vrot.slane %v2309, 5
      %v2378 = vrot.slane %v2377, 4
      %v2379 = vrot.slane %v1940, 5
      %v2380 = vsel %vm1500, %v2378, %v2379
      %v2381 = vrot.slane %v2379, 4
      %v2382 = vrot.slane %v1941, 5
      %v2383 = vsel %vm1500, %v2381, %v2382
      %v2384 = vrot.slane %v2310, 5
      %v2385 = vrot.slane %v2384, 4
      %v2386 = vrot.slane %v1943, 5
      %v2387 = vsel %vm1500, %v2385, %v2386
      %v2388 = vrot.slane %v2386, 4
      %v2389 = vrot.slane %v1944, 5
      %v2390 = vsel %vm1500, %v2388, %v2389
      %s2391 = scalar_lea.vmem %s3, 10
      %v2392 = vld [vmem:[%s2391] sm:$0x3]
      %v2393 = vunpack.c.l.b16 %v2338
      %v2394 = vunpack.c.l.b16 %v2341
      %v2395 = vunpack.c.l.b16 %v2345
      %v2396 = vunpack.c.l.b16 %v2348
      %v2397 = vunpack.c.l.b16 %v2352
      %v2398 = vunpack.c.l.b16 %v2355
      %v2399 = vunpack.c.l.b16 %v2359
      %v2400 = vunpack.c.l.b16 %v2362
      %v2401 = vunpack.c.l.b16 %v2366
      %v2402 = vunpack.c.l.b16 %v2369
      %v2403 = vunpack.c.l.b16 %v2373
      %v2404 = vunpack.c.l.b16 %v2376
      %v2405 = vunpack.c.l.b16 %v2380
      %v2406 = vunpack.c.l.b16 %v2383
      %v2407 = vunpack.c.l.b16 %v2387
      %v2408 = vunpack.c.l.b16 %v2390
      %v2409 = vpack.c.b16 %v2394, %v2393
      %v2410 = vpack.c.b16 %v2396, %v2395
      %v2411 = vpack.c.b16 %v2398, %v2397
      %v2412 = vpack.c.b16 %v2400, %v2399
      %v2413 = vpack.c.b16 %v2402, %v2401
      %v2414 = vpack.c.b16 %v2404, %v2403
      %v2415 = vpack.c.b16 %v2406, %v2405
      %v2416 = vpack.c.b16 %v2408, %v2407
      %v2418 = vsel %vm1184, %v2409, 0
      %v2421 = vsel %vm1184, %v2410, 0
      %v2424 = vsel %vm1184, %v2411, 0
      %v2427 = vsel %vm1184, %v2412, 0
      %v2430 = vsel %vm1184, %v2413, 0
      %v2433 = vsel %vm1184, %v2414, 0
      %v2436 = vsel %vm1184, %v2415, 0
      %v2439 = vsel %vm1184, %v2416, 0
      %v2442 = vsel %vm1209, %v2392, 0
      %2444 = vmatprep.subr.bf16.mxu0 0
      %2445 = vmatpush1.bf16.msra.mxu0 0
      %2446 = vmatprep.subr.bf16.mxu0 0
      %2447 = vmatpush1.bf16.msra.mxu0 0
      %2448 = vmatprep.subr.bf16.mxu0 0
      %2449 = vmatpush1.bf16.msra.mxu0 0
      %2450 = vmatprep.subr.bf16.mxu0 0
      %2451 = vmatpush1.bf16.msra.mxu0 0
      %2452 = vmatprep.subr.bf16.mxu0 0
      %2453 = vmatpush1.bf16.msra.mxu0 0
      %2454 = vmatprep.subr.bf16.mxu0 0
      %2455 = vmatpush1.bf16.msra.mxu0 0
      %2456 = vmatprep.subr.bf16.mxu0 0
      %2457 = vmatpush1.bf16.msra.mxu0 0
      %2458 = vmatprep.subr.bf16.mxu0 0
      %2459 = vmatpush1.bf16.msra.mxu0 %v2442
      %2460 = vmatprep.subr.bf16.mxu0 0
      %2461 = vmatpush2.bf16.msra.mxu0 0
      %2462 = vmatprep.subr.bf16.mxu0 0
      %2463 = vmatpush2.bf16.msra.mxu0 0
      %2464 = vmatprep.subr.bf16.mxu0 0
      %2465 = vmatpush2.bf16.msra.mxu0 0
      %2466 = vmatprep.subr.bf16.mxu0 0
      %2467 = vmatpush2.bf16.msra.mxu0 0
      %2468 = vmatprep.subr.bf16.mxu0 0
      %2469 = vmatpush2.bf16.msra.mxu0 0
      %2470 = vmatprep.subr.bf16.mxu0 0
      %2471 = vmatpush2.bf16.msra.mxu0 0
      %2472 = vmatprep.subr.bf16.mxu0 0
      %2473 = vmatpush2.bf16.msra.mxu0 0
      %2474 = vmatprep.subr.bf16.mxu0 0
      %2475 = vmatpush2.bf16.msra.mxu0 0
      %2476 = vmatprep.mubr.bf16.mxu0 0
      %2477 = vmatmul.mubr.bf16.gmra.mxu0 %v2418
      %v2478 = vpop.f32.mrf.mxu0
      %v2479 = vadd.f32 0.0, %v2478
      %v2480 = vpop.f32.mrf.mxu0
      %v2481 = vpop.f32.mrf.mxu0
      %v2482 = vadd.f32 0.0, %v2481
      %v2483 = vpop.f32.mrf.mxu0
      %2484 = vmatprep.mubr.bf16.mxu0 0
      %2485 = vmatmul.mubr.bf16.gmra.mxu0 %v2421
      %v2486 = vpop.f32.mrf.mxu0
      %v2487 = vadd.f32 0.0, %v2486
      %v2488 = vpop.f32.mrf.mxu0
      %v2489 = vpop.f32.mrf.mxu0
      %v2490 = vadd.f32 0.0, %v2489
      %v2491 = vpop.f32.mrf.mxu0
      %2492 = vmatprep.mubr.bf16.mxu0 0
      %2493 = vmatmul.mubr.bf16.gmra.mxu0 %v2424
      %v2494 = vpop.f32.mrf.mxu0
      %v2495 = vadd.f32 0.0, %v2494
      %v2496 = vpop.f32.mrf.mxu0
      %v2497 = vpop.f32.mrf.mxu0
      %v2498 = vadd.f32 0.0, %v2497
      %v2499 = vpop.f32.mrf.mxu0
      %2500 = vmatprep.mubr.bf16.mxu0 0
      %2501 = vmatmul.mubr.bf16.gmra.mxu0 %v2427
      %v2502 = vpop.f32.mrf.mxu0
      %v2503 = vadd.f32 0.0, %v2502
      %v2504 = vpop.f32.mrf.mxu0
      %v2505 = vpop.f32.mrf.mxu0
      %v2506 = vadd.f32 0.0, %v2505
      %v2507 = vpop.f32.mrf.mxu0
      %2508 = vmatprep.mubr.bf16.mxu0 0
      %2509 = vmatmul.mubr.bf16.gmra.mxu0 %v2430
      %v2510 = vpop.f32.mrf.mxu0
      %v2511 = vadd.f32 0.0, %v2510
      %v2512 = vpop.f32.mrf.mxu0
      %v2513 = vpop.f32.mrf.mxu0
      %v2514 = vadd.f32 0.0, %v2513
      %v2515 = vpop.f32.mrf.mxu0
      %2516 = vmatprep.mubr.bf16.mxu0 0
      %2517 = vmatmul.mubr.bf16.gmra.mxu0 %v2433
      %v2518 = vpop.f32.mrf.mxu0
      %v2519 = vadd.f32 0.0, %v2518
      %v2520 = vpop.f32.mrf.mxu0
      %v2521 = vpop.f32.mrf.mxu0
      %v2522 = vadd.f32 0.0, %v2521
      %v2523 = vpop.f32.mrf.mxu0
      %2524 = vmatprep.mubr.bf16.mxu0 0
      %2525 = vmatmul.mubr.bf16.gmra.mxu0 %v2436
      %v2526 = vpop.f32.mrf.mxu0
      %v2527 = vadd.f32 0.0, %v2526
      %v2528 = vpop.f32.mrf.mxu0
      %v2529 = vpop.f32.mrf.mxu0
      %v2530 = vadd.f32 0.0, %v2529
      %v2531 = vpop.f32.mrf.mxu0
      %2532 = vmatprep.mubr.bf16.mxu0 0
      %2533 = vmatmul.mubr.bf16.gmra.mxu0 %v2439
      %v2534 = vpop.f32.mrf.mxu0
      %v2535 = vadd.f32 0.0, %v2534
      %v2536 = vpop.f32.mrf.mxu0
      %v2537 = vpop.f32.mrf.mxu0
      %v2538 = vadd.f32 0.0, %v2537
      %v2539 = vpop.f32.mrf.mxu0
      %2540 = vdwg.mxu0
      %v2541 = vadd.f32 %v2287, %v2479
      %v2542 = vadd.f32 %v2288, %v2482
      %v2543 = vadd.f32 %v2289, %v2487
      %v2544 = vadd.f32 %v2290, %v2490
      %v2545 = vadd.f32 %v2291, %v2495
      %v2546 = vadd.f32 %v2292, %v2498
      %v2547 = vadd.f32 %v2293, %v2503
      %v2548 = vadd.f32 %v2294, %v2506
      %v2549 = vadd.f32 %v2295, %v2511
      %v2550 = vadd.f32 %v2296, %v2514
      %v2551 = vadd.f32 %v2297, %v2519
      %v2552 = vadd.f32 %v2298, %v2522
      %v2553 = vadd.f32 %v2299, %v2527
      %v2554 = vadd.f32 %v2300, %v2530
      %v2555 = vadd.f32 %v2301, %v2535
      %v2556 = vadd.f32 %v2302, %v2538
      %s2557 = scalar_lea.vmem [#allocation2], 24
      %v2558 = vld [vmem:[%s2557] sm:$0xf]
      %v2559 = vld [vmem:[%s2557 + $0x4] sm:$0xf]
      %v2560 = vld [vmem:[%s2557 + $0xc] sm:$0xf]
      %v2561 = vld [vmem:[%s2557 + $0x10] sm:$0xf]
      %v2562 = vld [vmem:[%s2557 + $0x18] sm:$0xf]
      %v2563 = vld [vmem:[%s2557 + $0x1c] sm:$0xf]
      %v2564 = vld [vmem:[%s2557 + $0x24] sm:$0xf]
      %v2565 = vld [vmem:[%s2557 + $0x28] sm:$0xf]
      %v2566 = vld [vmem:[%s2557 + $0x30] sm:$0xf]
      %v2567 = vld [vmem:[%s2557 + $0x34] sm:$0xf]
      %v2568 = vld [vmem:[%s2557 + $0x3c] sm:$0xf]
      %v2569 = vld [vmem:[%s2557 + $0x40] sm:$0xf]
      %v2570 = vld [vmem:[%s2557 + $0x48] sm:$0xf]
      %v2571 = vld [vmem:[%s2557 + $0x4c] sm:$0xf]
      %v2572 = vld [vmem:[%s2557 + $0x54] sm:$0xf]
      %v2573 = vld [vmem:[%s2557 + $0x58] sm:$0xf]
      %s2574 = scalar_lea.vmem %s3, 12
      %v2575 = vld [vmem:[%s2574] sm:$0x3]
      %v2592 = vunpack.c.l.b16 %v2558
      %v2593 = vunpack.c.l.b16 %v2559
      %v2594 = vunpack.c.l.b16 %v2560
      %v2595 = vunpack.c.l.b16 %v2561
      %v2596 = vunpack.c.l.b16 %v2562
      %v2597 = vunpack.c.l.b16 %v2563
      %v2598 = vunpack.c.l.b16 %v2564
      %v2599 = vunpack.c.l.b16 %v2565
      %v2600 = vunpack.c.l.b16 %v2566
      %v2601 = vunpack.c.l.b16 %v2567
      %v2602 = vunpack.c.l.b16 %v2568
      %v2603 = vunpack.c.l.b16 %v2569
      %v2604 = vunpack.c.l.b16 %v2570
      %v2605 = vunpack.c.l.b16 %v2571
      %v2606 = vunpack.c.l.b16 %v2572
      %v2607 = vunpack.c.l.b16 %v2573
      %v2608 = vpack.c.b16 %v2593, %v2592
      %v2609 = vpack.c.b16 %v2595, %v2594
      %v2610 = vpack.c.b16 %v2597, %v2596
      %v2611 = vpack.c.b16 %v2599, %v2598
      %v2612 = vpack.c.b16 %v2601, %v2600
      %v2613 = vpack.c.b16 %v2603, %v2602
      %v2614 = vpack.c.b16 %v2605, %v2604
      %v2615 = vpack.c.b16 %v2607, %v2606
      %v2617 = vsel %vm1184, %v2608, 0
      %v2620 = vsel %vm1184, %v2609, 0
      %v2623 = vsel %vm1184, %v2610, 0
      %v2626 = vsel %vm1184, %v2611, 0
      %v2629 = vsel %vm1184, %v2612, 0
      %v2632 = vsel %vm1184, %v2613, 0
      %v2635 = vsel %vm1184, %v2614, 0
      %v2638 = vsel %vm1184, %v2615, 0
      %v2641 = vsel %vm1209, %v2575, 0
      %2643 = vmatprep.subr.bf16.mxu0 0
      %2644 = vmatpush1.bf16.msra.mxu0 0
      %2645 = vmatprep.subr.bf16.mxu0 0
      %2646 = vmatpush1.bf16.msra.mxu0 0
      %2647 = vmatprep.subr.bf16.mxu0 0
      %2648 = vmatpush1.bf16.msra.mxu0 0
      %2649 = vmatprep.subr.bf16.mxu0 0
      %2650 = vmatpush1.bf16.msra.mxu0 0
      %2651 = vmatprep.subr.bf16.mxu0 0
      %2652 = vmatpush1.bf16.msra.mxu0 0
      %2653 = vmatprep.subr.bf16.mxu0 0
      %2654 = vmatpush1.bf16.msra.mxu0 0
      %2655 = vmatprep.subr.bf16.mxu0 0
      %2656 = vmatpush1.bf16.msra.mxu0 0
      %2657 = vmatprep.subr.bf16.mxu0 0
      %2658 = vmatpush1.bf16.msra.mxu0 %v2641
      %2659 = vmatprep.subr.bf16.mxu0 0
      %2660 = vmatpush2.bf16.msra.mxu0 0
      %2661 = vmatprep.subr.bf16.mxu0 0
      %2662 = vmatpush2.bf16.msra.mxu0 0
      %2663 = vmatprep.subr.bf16.mxu0 0
      %2664 = vmatpush2.bf16.msra.mxu0 0
      %2665 = vmatprep.subr.bf16.mxu0 0
      %2666 = vmatpush2.bf16.msra.mxu0 0
      %2667 = vmatprep.subr.bf16.mxu0 0
      %2668 = vmatpush2.bf16.msra.mxu0 0
      %2669 = vmatprep.subr.bf16.mxu0 0
      %2670 = vmatpush2.bf16.msra.mxu0 0
      %2671 = vmatprep.subr.bf16.mxu0 0
      %2672 = vmatpush2.bf16.msra.mxu0 0
      %2673 = vmatprep.subr.bf16.mxu0 0
      %2674 = vmatpush2.bf16.msra.mxu0 0
      %2675 = vmatprep.mubr.bf16.mxu0 0
      %2676 = vmatmul.mubr.bf16.gmra.mxu0 %v2617
      %v2677 = vpop.f32.mrf.mxu0
      %v2678 = vadd.f32 0.0, %v2677
      %v2679 = vpop.f32.mrf.mxu0
      %v2680 = vpop.f32.mrf.mxu0
      %v2681 = vadd.f32 0.0, %v2680
      %v2682 = vpop.f32.mrf.mxu0
      %2683 = vmatprep.mubr.bf16.mxu0 0
      %2684 = vmatmul.mubr.bf16.gmra.mxu0 %v2620
      %v2685 = vpop.f32.mrf.mxu0
      %v2686 = vadd.f32 0.0, %v2685
      %v2687 = vpop.f32.mrf.mxu0
      %v2688 = vpop.f32.mrf.mxu0
      %v2689 = vadd.f32 0.0, %v2688
      %v2690 = vpop.f32.mrf.mxu0
      %2691 = vmatprep.mubr.bf16.mxu0 0
      %2692 = vmatmul.mubr.bf16.gmra.mxu0 %v2623
      %v2693 = vpop.f32.mrf.mxu0
      %v2694 = vadd.f32 0.0, %v2693
      %v2695 = vpop.f32.mrf.mxu0
      %v2696 = vpop.f32.mrf.mxu0
      %v2697 = vadd.f32 0.0, %v2696
      %v2698 = vpop.f32.mrf.mxu0
      %2699 = vmatprep.mubr.bf16.mxu0 0
      %2700 = vmatmul.mubr.bf16.gmra.mxu0 %v2626
      %v2701 = vpop.f32.mrf.mxu0
      %v2702 = vadd.f32 0.0, %v2701
      %v2703 = vpop.f32.mrf.mxu0
      %v2704 = vpop.f32.mrf.mxu0
      %v2705 = vadd.f32 0.0, %v2704
      %v2706 = vpop.f32.mrf.mxu0
      %2707 = vmatprep.mubr.bf16.mxu0 0
      %2708 = vmatmul.mubr.bf16.gmra.mxu0 %v2629
      %v2709 = vpop.f32.mrf.mxu0
      %v2710 = vadd.f32 0.0, %v2709
      %v2711 = vpop.f32.mrf.mxu0
      %v2712 = vpop.f32.mrf.mxu0
      %v2713 = vadd.f32 0.0, %v2712
      %v2714 = vpop.f32.mrf.mxu0
      %2715 = vmatprep.mubr.bf16.mxu0 0
      %2716 = vmatmul.mubr.bf16.gmra.mxu0 %v2632
      %v2717 = vpop.f32.mrf.mxu0
      %v2718 = vadd.f32 0.0, %v2717
      %v2719 = vpop.f32.mrf.mxu0
      %v2720 = vpop.f32.mrf.mxu0
      %v2721 = vadd.f32 0.0, %v2720
      %v2722 = vpop.f32.mrf.mxu0
      %2723 = vmatprep.mubr.bf16.mxu0 0
      %2724 = vmatmul.mubr.bf16.gmra.mxu0 %v2635
      %v2725 = vpop.f32.mrf.mxu0
      %v2726 = vadd.f32 0.0, %v2725
      %v2727 = vpop.f32.mrf.mxu0
      %v2728 = vpop.f32.mrf.mxu0
      %v2729 = vadd.f32 0.0, %v2728
      %v2730 = vpop.f32.mrf.mxu0
      %2731 = vmatprep.mubr.bf16.mxu0 0
      %2732 = vmatmul.mubr.bf16.gmra.mxu0 %v2638
      %v2733 = vpop.f32.mrf.mxu0
      %v2734 = vadd.f32 0.0, %v2733
      %v2735 = vpop.f32.mrf.mxu0
      %v2736 = vpop.f32.mrf.mxu0
      %v2737 = vadd.f32 0.0, %v2736
      %v2738 = vpop.f32.mrf.mxu0
      %2739 = vdwg.mxu0
      %v2740 = vadd.f32 %v2541, %v2678
      %v2741 = vadd.f32 %v2542, %v2681
      %v2742 = vadd.f32 %v2543, %v2686
      %v2743 = vadd.f32 %v2544, %v2689
      %v2744 = vadd.f32 %v2545, %v2694
      %v2745 = vadd.f32 %v2546, %v2697
      %v2746 = vadd.f32 %v2547, %v2702
      %v2747 = vadd.f32 %v2548, %v2705
      %v2748 = vadd.f32 %v2549, %v2710
      %v2749 = vadd.f32 %v2550, %v2713
      %v2750 = vadd.f32 %v2551, %v2718
      %v2751 = vadd.f32 %v2552, %v2721
      %v2752 = vadd.f32 %v2553, %v2726
      %v2753 = vadd.f32 %v2554, %v2729
      %v2754 = vadd.f32 %v2555, %v2734
      %v2755 = vadd.f32 %v2556, %v2737
      %v2756 = vld [vmem:[%s2557] sm:$0xf]
      %v2757 = vld [vmem:[%s2557 + $0x4] sm:$0xf]
      %v2758 = vld [vmem:[%s2557 + $0x8] sm:$0x1]
      %v2759 = vld [vmem:[%s2557 + $0xc] sm:$0xf]
      %v2760 = vld [vmem:[%s2557 + $0x10] sm:$0xf]
      %v2761 = vld [vmem:[%s2557 + $0x14] sm:$0x1]
      %v2762 = vld [vmem:[%s2557 + $0x18] sm:$0xf]
      %v2763 = vld [vmem:[%s2557 + $0x1c] sm:$0xf]
      %v2764 = vld [vmem:[%s2557 + $0x20] sm:$0x1]
      %v2765 = vld [vmem:[%s2557 + $0x24] sm:$0xf]
      %v2766 = vld [vmem:[%s2557 + $0x28] sm:$0xf]
      %v2767 = vld [vmem:[%s2557 + $0x2c] sm:$0x1]
      %v2768 = vld [vmem:[%s2557 + $0x30] sm:$0xf]
      %v2769 = vld [vmem:[%s2557 + $0x34] sm:$0xf]
      %v2770 = vld [vmem:[%s2557 + $0x38] sm:$0x1]
      %v2771 = vld [vmem:[%s2557 + $0x3c] sm:$0xf]
      %v2772 = vld [vmem:[%s2557 + $0x40] sm:$0xf]
      %v2773 = vld [vmem:[%s2557 + $0x44] sm:$0x1]
      %v2774 = vld [vmem:[%s2557 + $0x48] sm:$0xf]
      %v2775 = vld [vmem:[%s2557 + $0x4c] sm:$0xf]
      %v2776 = vld [vmem:[%s2557 + $0x50] sm:$0x1]
      %v2777 = vld [vmem:[%s2557 + $0x54] sm:$0xf]
      %v2778 = vld [vmem:[%s2557 + $0x58] sm:$0xf]
      %v2779 = vld [vmem:[%s2557 + $0x5c] sm:$0x1]
      %v2781 = vshrl.u32 %v2756, 16
      %v2783 = vrot.slane %v2781, 4
      %v2784 = vshll.u32 %v2756, 16
      %v2786 = vrot.slane %v2784, 5
      %v2787 = vor.u32 %v2783, %v2786
      %v2788 = vrot.slane %v2787, 4
      %v2790 = vshll.u32 %v2757, 16
      %v2792 = vrot.slane %v2790, 5
      %v2793 = vsel %vm965, %v2788, %v2792
      %v2794 = vshrl.u32 %v2757, 16
      %v2796 = vrot.slane %v2794, 4
      %v2797 = vor.u32 %v2796, %v2792
      %v2798 = vrot.slane %v2797, 4
      %v2800 = vshll.u32 %v2758, 16
      %v2802 = vrot.slane %v2800, 5
      %v2803 = vsel %vm965, %v2798, %v2802
      %v2805 = vshrl.u32 %v2759, 16
      %v2807 = vrot.slane %v2805, 4
      %v2808 = vshll.u32 %v2759, 16
      %v2810 = vrot.slane %v2808, 5
      %v2811 = vor.u32 %v2807, %v2810
      %v2812 = vrot.slane %v2811, 4
      %v2814 = vshll.u32 %v2760, 16
      %v2816 = vrot.slane %v2814, 5
      %v2817 = vsel %vm965, %v2812, %v2816
      %v2818 = vshrl.u32 %v2760, 16
      %v2820 = vrot.slane %v2818, 4
      %v2821 = vor.u32 %v2820, %v2816
      %v2822 = vrot.slane %v2821, 4
      %v2824 = vshll.u32 %v2761, 16
      %v2826 = vrot.slane %v2824, 5
      %v2827 = vsel %vm965, %v2822, %v2826
      %v2829 = vshrl.u32 %v2762, 16
      %v2831 = vrot.slane %v2829, 4
      %v2832 = vshll.u32 %v2762, 16
      %v2834 = vrot.slane %v2832, 5
      %v2835 = vor.u32 %v2831, %v2834
      %v2836 = vrot.slane %v2835, 4
      %v2838 = vshll.u32 %v2763, 16
      %v2840 = vrot.slane %v2838, 5
      %v2841 = vsel %vm965, %v2836, %v2840
      %v2842 = vshrl.u32 %v2763, 16
      %v2844 = vrot.slane %v2842, 4
      %v2845 = vor.u32 %v2844, %v2840
      %v2846 = vrot.slane %v2845, 4
      %v2848 = vshll.u32 %v2764, 16
      %v2850 = vrot.slane %v2848, 5
      %v2851 = vsel %vm965, %v2846, %v2850
      %v2853 = vshrl.u32 %v2765, 16
      %v2855 = vrot.slane %v2853, 4
      %v2856 = vshll.u32 %v2765, 16
      %v2858 = vrot.slane %v2856, 5
      %v2859 = vor.u32 %v2855, %v2858
      %v2860 = vrot.slane %v2859, 4
      %v2862 = vshll.u32 %v2766, 16
      %v2864 = vrot.slane %v2862, 5
      %v2865 = vsel %vm965, %v2860, %v2864
      %v2866 = vshrl.u32 %v2766, 16
      %v2868 = vrot.slane %v2866, 4
      %v2869 = vor.u32 %v2868, %v2864
      %v2870 = vrot.slane %v2869, 4
      %v2872 = vshll.u32 %v2767, 16
      %v2874 = vrot.slane %v2872, 5
      %v2875 = vsel %vm965, %v2870, %v2874
      %v2877 = vshrl.u32 %v2768, 16
      %v2879 = vrot.slane %v2877, 4
      %v2880 = vshll.u32 %v2768, 16
      %v2882 = vrot.slane %v2880, 5
      %v2883 = vor.u32 %v2879, %v2882
      %v2884 = vrot.slane %v2883, 4
      %v2886 = vshll.u32 %v2769, 16
      %v2888 = vrot.slane %v2886, 5
      %v2889 = vsel %vm965, %v2884, %v2888
      %v2890 = vshrl.u32 %v2769, 16
      %v2892 = vrot.slane %v2890, 4
      %v2893 = vor.u32 %v2892, %v2888
      %v2894 = vrot.slane %v2893, 4
      %v2896 = vshll.u32 %v2770, 16
      %v2898 = vrot.slane %v2896, 5
      %v2899 = vsel %vm965, %v2894, %v2898
      %v2901 = vshrl.u32 %v2771, 16
      %v2903 = vrot.slane %v2901, 4
      %v2904 = vshll.u32 %v2771, 16
      %v2906 = vrot.slane %v2904, 5
      %v2907 = vor.u32 %v2903, %v2906
      %v2908 = vrot.slane %v2907, 4
      %v2910 = vshll.u32 %v2772, 16
      %v2912 = vrot.slane %v2910, 5
      %v2913 = vsel %vm965, %v2908, %v2912
      %v2914 = vshrl.u32 %v2772, 16
      %v2916 = vrot.slane %v2914, 4
      %v2917 = vor.u32 %v2916, %v2912
      %v2918 = vrot.slane %v2917, 4
      %v2920 = vshll.u32 %v2773, 16
      %v2922 = vrot.slane %v2920, 5
      %v2923 = vsel %vm965, %v2918, %v2922
      %v2925 = vshrl.u32 %v2774, 16
      %v2927 = vrot.slane %v2925, 4
      %v2928 = vshll.u32 %v2774, 16
      %v2930 = vrot.slane %v2928, 5
      %v2931 = vor.u32 %v2927, %v2930
      %v2932 = vrot.slane %v2931, 4
      %v2934 = vshll.u32 %v2775, 16
      %v2936 = vrot.slane %v2934, 5
      %v2937 = vsel %vm965, %v2932, %v2936
      %v2938 = vshrl.u32 %v2775, 16
      %v2940 = vrot.slane %v2938, 4
      %v2941 = vor.u32 %v2940, %v2936
      %v2942 = vrot.slane %v2941, 4
      %v2944 = vshll.u32 %v2776, 16
      %v2946 = vrot.slane %v2944, 5
      %v2947 = vsel %vm965, %v2942, %v2946
      %v2949 = vshrl.u32 %v2777, 16
      %v2951 = vrot.slane %v2949, 4
      %v2952 = vshll.u32 %v2777, 16
      %v2954 = vrot.slane %v2952, 5
      %v2955 = vor.u32 %v2951, %v2954
      %v2956 = vrot.slane %v2955, 4
      %v2958 = vshll.u32 %v2778, 16
      %v2960 = vrot.slane %v2958, 5
      %v2961 = vsel %vm965, %v2956, %v2960
      %v2962 = vshrl.u32 %v2778, 16
      %v2964 = vrot.slane %v2962, 4
      %v2965 = vor.u32 %v2964, %v2960
      %v2966 = vrot.slane %v2965, 4
      %v2968 = vshll.u32 %v2779, 16
      %v2970 = vrot.slane %v2968, 5
      %v2971 = vsel %vm965, %v2966, %v2970
      %s2972 = scalar_lea.vmem %s3, 14
      %v2973 = vld [vmem:[%s2972] sm:$0x3]
      %v2974 = vunpack.c.l.b16 %v2793
      %v2975 = vunpack.c.l.b16 %v2803
      %v2976 = vunpack.c.l.b16 %v2817
      %v2977 = vunpack.c.l.b16 %v2827
      %v2978 = vunpack.c.l.b16 %v2841
      %v2979 = vunpack.c.l.b16 %v2851
      %v2980 = vunpack.c.l.b16 %v2865
      %v2981 = vunpack.c.l.b16 %v2875
      %v2982 = vunpack.c.l.b16 %v2889
      %v2983 = vunpack.c.l.b16 %v2899
      %v2984 = vunpack.c.l.b16 %v2913
      %v2985 = vunpack.c.l.b16 %v2923
      %v2986 = vunpack.c.l.b16 %v2937
      %v2987 = vunpack.c.l.b16 %v2947
      %v2988 = vunpack.c.l.b16 %v2961
      %v2989 = vunpack.c.l.b16 %v2971
      %v2990 = vpack.c.b16 %v2975, %v2974
      %v2991 = vpack.c.b16 %v2977, %v2976
      %v2992 = vpack.c.b16 %v2979, %v2978
      %v2993 = vpack.c.b16 %v2981, %v2980
      %v2994 = vpack.c.b16 %v2983, %v2982
      %v2995 = vpack.c.b16 %v2985, %v2984
      %v2996 = vpack.c.b16 %v2987, %v2986
      %v2997 = vpack.c.b16 %v2989, %v2988
      %v2999 = vsel %vm1184, %v2990, 0
      %v3002 = vsel %vm1184, %v2991, 0
      %v3005 = vsel %vm1184, %v2992, 0
      %v3008 = vsel %vm1184, %v2993, 0
      %v3011 = vsel %vm1184, %v2994, 0
      %v3014 = vsel %vm1184, %v2995, 0
      %v3017 = vsel %vm1184, %v2996, 0
      %v3020 = vsel %vm1184, %v2997, 0
      %v3023 = vsel %vm1209, %v2973, 0
      %3025 = vmatprep.subr.bf16.mxu0 0
      %3026 = vmatpush1.bf16.msra.mxu0 0
      %3027 = vmatprep.subr.bf16.mxu0 0
      %3028 = vmatpush1.bf16.msra.mxu0 0
      %3029 = vmatprep.subr.bf16.mxu0 0
      %3030 = vmatpush1.bf16.msra.mxu0 0
      %3031 = vmatprep.subr.bf16.mxu0 0
      %3032 = vmatpush1.bf16.msra.mxu0 0
      %3033 = vmatprep.subr.bf16.mxu0 0
      %3034 = vmatpush1.bf16.msra.mxu0 0
      %3035 = vmatprep.subr.bf16.mxu0 0
      %3036 = vmatpush1.bf16.msra.mxu0 0
      %3037 = vmatprep.subr.bf16.mxu0 0
      %3038 = vmatpush1.bf16.msra.mxu0 0
      %3039 = vmatprep.subr.bf16.mxu0 0
      %3040 = vmatpush1.bf16.msra.mxu0 %v3023
      %3041 = vmatprep.subr.bf16.mxu0 0
      %3042 = vmatpush2.bf16.msra.mxu0 0
      %3043 = vmatprep.subr.bf16.mxu0 0
      %3044 = vmatpush2.bf16.msra.mxu0 0
      %3045 = vmatprep.subr.bf16.mxu0 0
      %3046 = vmatpush2.bf16.msra.mxu0 0
      %3047 = vmatprep.subr.bf16.mxu0 0
      %3048 = vmatpush2.bf16.msra.mxu0 0
      %3049 = vmatprep.subr.bf16.mxu0 0
      %3050 = vmatpush2.bf16.msra.mxu0 0
      %3051 = vmatprep.subr.bf16.mxu0 0
      %3052 = vmatpush2.bf16.msra.mxu0 0
      %3053 = vmatprep.subr.bf16.mxu0 0
      %3054 = vmatpush2.bf16.msra.mxu0 0
      %3055 = vmatprep.subr.bf16.mxu0 0
      %3056 = vmatpush2.bf16.msra.mxu0 0
      %3057 = vmatprep.mubr.bf16.mxu0 0
      %3058 = vmatmul.mubr.bf16.gmra.mxu0 %v2999
      %v3059 = vpop.f32.mrf.mxu0
      %v3060 = vadd.f32 0.0, %v3059
      %v3061 = vpop.f32.mrf.mxu0
      %v3062 = vpop.f32.mrf.mxu0
      %v3063 = vadd.f32 0.0, %v3062
      %v3064 = vpop.f32.mrf.mxu0
      %3065 = vmatprep.mubr.bf16.mxu0 0
      %3066 = vmatmul.mubr.bf16.gmra.mxu0 %v3002
      %v3067 = vpop.f32.mrf.mxu0
      %v3068 = vadd.f32 0.0, %v3067
      %v3069 = vpop.f32.mrf.mxu0
      %v3070 = vpop.f32.mrf.mxu0
      %v3071 = vadd.f32 0.0, %v3070
      %v3072 = vpop.f32.mrf.mxu0
      %3073 = vmatprep.mubr.bf16.mxu0 0
      %3074 = vmatmul.mubr.bf16.gmra.mxu0 %v3005
      %v3075 = vpop.f32.mrf.mxu0
      %v3076 = vadd.f32 0.0, %v3075
      %v3077 = vpop.f32.mrf.mxu0
      %v3078 = vpop.f32.mrf.mxu0
      %v3079 = vadd.f32 0.0, %v3078
      %v3080 = vpop.f32.mrf.mxu0
      %3081 = vmatprep.mubr.bf16.mxu0 0
      %3082 = vmatmul.mubr.bf16.gmra.mxu0 %v3008
      %v3083 = vpop.f32.mrf.mxu0
      %v3084 = vadd.f32 0.0, %v3083
      %v3085 = vpop.f32.mrf.mxu0
      %v3086 = vpop.f32.mrf.mxu0
      %v3087 = vadd.f32 0.0, %v3086
      %v3088 = vpop.f32.mrf.mxu0
      %3089 = vmatprep.mubr.bf16.mxu0 0
      %3090 = vmatmul.mubr.bf16.gmra.mxu0 %v3011
      %v3091 = vpop.f32.mrf.mxu0
      %v3092 = vadd.f32 0.0, %v3091
      %v3093 = vpop.f32.mrf.mxu0
      %v3094 = vpop.f32.mrf.mxu0
      %v3095 = vadd.f32 0.0, %v3094
      %v3096 = vpop.f32.mrf.mxu0
      %3097 = vmatprep.mubr.bf16.mxu0 0
      %3098 = vmatmul.mubr.bf16.gmra.mxu0 %v3014
      %v3099 = vpop.f32.mrf.mxu0
      %v3100 = vadd.f32 0.0, %v3099
      %v3101 = vpop.f32.mrf.mxu0
      %v3102 = vpop.f32.mrf.mxu0
      %v3103 = vadd.f32 0.0, %v3102
      %v3104 = vpop.f32.mrf.mxu0
      %3105 = vmatprep.mubr.bf16.mxu0 0
      %3106 = vmatmul.mubr.bf16.gmra.mxu0 %v3017
      %v3107 = vpop.f32.mrf.mxu0
      %v3108 = vadd.f32 0.0, %v3107
      %v3109 = vpop.f32.mrf.mxu0
      %v3110 = vpop.f32.mrf.mxu0
      %v3111 = vadd.f32 0.0, %v3110
      %v3112 = vpop.f32.mrf.mxu0
      %3113 = vmatprep.mubr.bf16.mxu0 0
      %3114 = vmatmul.mubr.bf16.gmra.mxu0 %v3020
      %v3115 = vpop.f32.mrf.mxu0
      %v3116 = vadd.f32 0.0, %v3115
      %v3117 = vpop.f32.mrf.mxu0
      %v3118 = vpop.f32.mrf.mxu0
      %v3119 = vadd.f32 0.0, %v3118
      %v3120 = vpop.f32.mrf.mxu0
      %3121 = vdwg.mxu0
      %v3122 = vadd.f32 %v2740, %v3060
      %v3123 = vadd.f32 %v2741, %v3063
      %v3124 = vadd.f32 %v2742, %v3068
      %v3125 = vadd.f32 %v2743, %v3071
      %v3126 = vadd.f32 %v2744, %v3076
      %v3127 = vadd.f32 %v2745, %v3079
      %v3128 = vadd.f32 %v2746, %v3084
      %v3129 = vadd.f32 %v2747, %v3087
      %v3130 = vadd.f32 %v2748, %v3092
      %v3131 = vadd.f32 %v2749, %v3095
      %v3132 = vadd.f32 %v2750, %v3100
      %v3133 = vadd.f32 %v2751, %v3103
      %v3134 = vadd.f32 %v2752, %v3108
      %v3135 = vadd.f32 %v2753, %v3111
      %v3136 = vadd.f32 %v2754, %v3116
      %v3137 = vadd.f32 %v2755, %v3119
      %v3138 = vld [vmem:[%s2557] sm:$0xe]
      %v3139 = vld [vmem:[%s2557 + $0xc] sm:$0xe]
      %v3140 = vld [vmem:[%s2557 + $0x18] sm:$0xe]
      %v3141 = vld [vmem:[%s2557 + $0x24] sm:$0xe]
      %v3142 = vld [vmem:[%s2557 + $0x30] sm:$0xe]
      %v3143 = vld [vmem:[%s2557 + $0x3c] sm:$0xe]
      %v3144 = vld [vmem:[%s2557 + $0x48] sm:$0xe]
      %v3145 = vld [vmem:[%s2557 + $0x54] sm:$0xe]
      %v3170 = vrot.slane %v3138, 5
      %v3171 = vrot.slane %v3170, 4
      %v3172 = vrot.slane %v2757, 5
      %v3173 = vsel %vm1500, %v3171, %v3172
      %v3174 = vrot.slane %v3172, 4
      %v3175 = vrot.slane %v2758, 5
      %v3176 = vsel %vm1500, %v3174, %v3175
      %v3177 = vrot.slane %v3139, 5
      %v3178 = vrot.slane %v3177, 4
      %v3179 = vrot.slane %v2760, 5
      %v3180 = vsel %vm1500, %v3178, %v3179
      %v3181 = vrot.slane %v3179, 4
      %v3182 = vrot.slane %v2761, 5
      %v3183 = vsel %vm1500, %v3181, %v3182
      %v3184 = vrot.slane %v3140, 5
      %v3185 = vrot.slane %v3184, 4
      %v3186 = vrot.slane %v2763, 5
      %v3187 = vsel %vm1500, %v3185, %v3186
      %v3188 = vrot.slane %v3186, 4
      %v3189 = vrot.slane %v2764, 5
      %v3190 = vsel %vm1500, %v3188, %v3189
      %v3191 = vrot.slane %v3141, 5
      %v3192 = vrot.slane %v3191, 4
      %v3193 = vrot.slane %v2766, 5
      %v3194 = vsel %vm1500, %v3192, %v3193
      %v3195 = vrot.slane %v3193, 4
      %v3196 = vrot.slane %v2767, 5
      %v3197 = vsel %vm1500, %v3195, %v3196
      %v3198 = vrot.slane %v3142, 5
      %v3199 = vrot.slane %v3198, 4
      %v3200 = vrot.slane %v2769, 5
      %v3201 = vsel %vm1500, %v3199, %v3200
      %v3202 = vrot.slane %v3200, 4
      %v3203 = vrot.slane %v2770, 5
      %v3204 = vsel %vm1500, %v3202, %v3203
      %v3205 = vrot.slane %v3143, 5
      %v3206 = vrot.slane %v3205, 4
      %v3207 = vrot.slane %v2772, 5
      %v3208 = vsel %vm1500, %v3206, %v3207
      %v3209 = vrot.slane %v3207, 4
      %v3210 = vrot.slane %v2773, 5
      %v3211 = vsel %vm1500, %v3209, %v3210
      %v3212 = vrot.slane %v3144, 5
      %v3213 = vrot.slane %v3212, 4
      %v3214 = vrot.slane %v2775, 5
      %v3215 = vsel %vm1500, %v3213, %v3214
      %v3216 = vrot.slane %v3214, 4
      %v3217 = vrot.slane %v2776, 5
      %v3218 = vsel %vm1500, %v3216, %v3217
      %v3219 = vrot.slane %v3145, 5
      %v3220 = vrot.slane %v3219, 4
      %v3221 = vrot.slane %v2778, 5
      %v3222 = vsel %vm1500, %v3220, %v3221
      %v3223 = vrot.slane %v3221, 4
      %v3224 = vrot.slane %v2779, 5
      %v3225 = vsel %vm1500, %v3223, %v3224
      %s3226 = scalar_lea.vmem %s3, 16
      %v3227 = vld [vmem:[%s3226] sm:$0x3]
      %v3228 = vunpack.c.l.b16 %v3173
      %v3229 = vunpack.c.l.b16 %v3176
      %v3230 = vunpack.c.l.b16 %v3180
      %v3231 = vunpack.c.l.b16 %v3183
      %v3232 = vunpack.c.l.b16 %v3187
      %v3233 = vunpack.c.l.b16 %v3190
      %v3234 = vunpack.c.l.b16 %v3194
      %v3235 = vunpack.c.l.b16 %v3197
      %v3236 = vunpack.c.l.b16 %v3201
      %v3237 = vunpack.c.l.b16 %v3204
      %v3238 = vunpack.c.l.b16 %v3208
      %v3239 = vunpack.c.l.b16 %v3211
      %v3240 = vunpack.c.l.b16 %v3215
      %v3241 = vunpack.c.l.b16 %v3218
      %v3242 = vunpack.c.l.b16 %v3222
      %v3243 = vunpack.c.l.b16 %v3225
      %v3244 = vpack.c.b16 %v3229, %v3228
      %v3245 = vpack.c.b16 %v3231, %v3230
      %v3246 = vpack.c.b16 %v3233, %v3232
      %v3247 = vpack.c.b16 %v3235, %v3234
      %v3248 = vpack.c.b16 %v3237, %v3236
      %v3249 = vpack.c.b16 %v3239, %v3238
      %v3250 = vpack.c.b16 %v3241, %v3240
      %v3251 = vpack.c.b16 %v3243, %v3242
      %v3253 = vsel %vm1184, %v3244, 0
      %v3256 = vsel %vm1184, %v3245, 0
      %v3259 = vsel %vm1184, %v3246, 0
      %v3262 = vsel %vm1184, %v3247, 0
      %v3265 = vsel %vm1184, %v3248, 0
      %v3268 = vsel %vm1184, %v3249, 0
      %v3271 = vsel %vm1184, %v3250, 0
      %v3274 = vsel %vm1184, %v3251, 0
      %v3277 = vsel %vm1209, %v3227, 0
      %3279 = vmatprep.subr.bf16.mxu0 0
      %3280 = vmatpush1.bf16.msra.mxu0 0
      %3281 = vmatprep.subr.bf16.mxu0 0
      %3282 = vmatpush1.bf16.msra.mxu0 0
      %3283 = vmatprep.subr.bf16.mxu0 0
      %3284 = vmatpush1.bf16.msra.mxu0 0
      %3285 = vmatprep.subr.bf16.mxu0 0
      %3286 = vmatpush1.bf16.msra.mxu0 0
      %3287 = vmatprep.subr.bf16.mxu0 0
      %3288 = vmatpush1.bf16.msra.mxu0 0
      %3289 = vmatprep.subr.bf16.mxu0 0
      %3290 = vmatpush1.bf16.msra.mxu0 0
      %3291 = vmatprep.subr.bf16.mxu0 0
      %3292 = vmatpush1.bf16.msra.mxu0 0
      %3293 = vmatprep.subr.bf16.mxu0 0
      %3294 = vmatpush1.bf16.msra.mxu0 %v3277
      %3295 = vmatprep.subr.bf16.mxu0 0
      %3296 = vmatpush2.bf16.msra.mxu0 0
      %3297 = vmatprep.subr.bf16.mxu0 0
      %3298 = vmatpush2.bf16.msra.mxu0 0
      %3299 = vmatprep.subr.bf16.mxu0 0
      %3300 = vmatpush2.bf16.msra.mxu0 0
      %3301 = vmatprep.subr.bf16.mxu0 0
      %3302 = vmatpush2.bf16.msra.mxu0 0
      %3303 = vmatprep.subr.bf16.mxu0 0
      %3304 = vmatpush2.bf16.msra.mxu0 0
      %3305 = vmatprep.subr.bf16.mxu0 0
      %3306 = vmatpush2.bf16.msra.mxu0 0
      %3307 = vmatprep.subr.bf16.mxu0 0
      %3308 = vmatpush2.bf16.msra.mxu0 0
      %3309 = vmatprep.subr.bf16.mxu0 0
      %3310 = vmatpush2.bf16.msra.mxu0 0
      %3311 = vmatprep.mubr.bf16.mxu0 0
      %3312 = vmatmul.mubr.bf16.gmra.mxu0 %v3253
      %v3313 = vpop.f32.mrf.mxu0
      %v3314 = vadd.f32 0.0, %v3313
      %v3315 = vpop.f32.mrf.mxu0
      %v3316 = vpop.f32.mrf.mxu0
      %v3317 = vadd.f32 0.0, %v3316
      %v3318 = vpop.f32.mrf.mxu0
      %3319 = vmatprep.mubr.bf16.mxu0 0
      %3320 = vmatmul.mubr.bf16.gmra.mxu0 %v3256
      %v3321 = vpop.f32.mrf.mxu0
      %v3322 = vadd.f32 0.0, %v3321
      %v3323 = vpop.f32.mrf.mxu0
      %v3324 = vpop.f32.mrf.mxu0
      %v3325 = vadd.f32 0.0, %v3324
      %v3326 = vpop.f32.mrf.mxu0
      %3327 = vmatprep.mubr.bf16.mxu0 0
      %3328 = vmatmul.mubr.bf16.gmra.mxu0 %v3259
      %v3329 = vpop.f32.mrf.mxu0
      %v3330 = vadd.f32 0.0, %v3329
      %v3331 = vpop.f32.mrf.mxu0
      %v3332 = vpop.f32.mrf.mxu0
      %v3333 = vadd.f32 0.0, %v3332
      %v3334 = vpop.f32.mrf.mxu0
      %3335 = vmatprep.mubr.bf16.mxu0 0
      %3336 = vmatmul.mubr.bf16.gmra.mxu0 %v3262
      %v3337 = vpop.f32.mrf.mxu0
      %v3338 = vadd.f32 0.0, %v3337
      %v3339 = vpop.f32.mrf.mxu0
      %v3340 = vpop.f32.mrf.mxu0
      %v3341 = vadd.f32 0.0, %v3340
      %v3342 = vpop.f32.mrf.mxu0
      %3343 = vmatprep.mubr.bf16.mxu0 0
      %3344 = vmatmul.mubr.bf16.gmra.mxu0 %v3265
      %v3345 = vpop.f32.mrf.mxu0
      %v3346 = vadd.f32 0.0, %v3345
      %v3347 = vpop.f32.mrf.mxu0
      %v3348 = vpop.f32.mrf.mxu0
      %v3349 = vadd.f32 0.0, %v3348
      %v3350 = vpop.f32.mrf.mxu0
      %3351 = vmatprep.mubr.bf16.mxu0 0
      %3352 = vmatmul.mubr.bf16.gmra.mxu0 %v3268
      %v3353 = vpop.f32.mrf.mxu0
      %v3354 = vadd.f32 0.0, %v3353
      %v3355 = vpop.f32.mrf.mxu0
      %v3356 = vpop.f32.mrf.mxu0
      %v3357 = vadd.f32 0.0, %v3356
      %v3358 = vpop.f32.mrf.mxu0
      %3359 = vmatprep.mubr.bf16.mxu0 0
      %3360 = vmatmul.mubr.bf16.gmra.mxu0 %v3271
      %v3361 = vpop.f32.mrf.mxu0
      %v3362 = vadd.f32 0.0, %v3361
      %v3363 = vpop.f32.mrf.mxu0
      %v3364 = vpop.f32.mrf.mxu0
      %v3365 = vadd.f32 0.0, %v3364
      %v3366 = vpop.f32.mrf.mxu0
      %3367 = vmatprep.mubr.bf16.mxu0 0
      %3368 = vmatmul.mubr.bf16.gmra.mxu0 %v3274
      %v3369 = vpop.f32.mrf.mxu0
      %v3370 = vadd.f32 0.0, %v3369
      %v3371 = vpop.f32.mrf.mxu0
      %v3372 = vpop.f32.mrf.mxu0
      %v3373 = vadd.f32 0.0, %v3372
      %v3374 = vpop.f32.mrf.mxu0
      %3375 = vdwg.mxu0
      %v3376 = vadd.f32 %v3122, %v3314
      %v3377 = vadd.f32 %v3123, %v3317
      %v3378 = vadd.f32 %v3124, %v3322
      %v3379 = vadd.f32 %v3125, %v3325
      %v3380 = vadd.f32 %v3126, %v3330
      %v3381 = vadd.f32 %v3127, %v3333
      %v3382 = vadd.f32 %v3128, %v3338
      %v3383 = vadd.f32 %v3129, %v3341
      %v3384 = vadd.f32 %v3130, %v3346
      %v3385 = vadd.f32 %v3131, %v3349
      %v3386 = vadd.f32 %v3132, %v3354
      %v3387 = vadd.f32 %v3133, %v3357
      %v3388 = vadd.f32 %v3134, %v3362
      %v3389 = vadd.f32 %v3135, %v3365
      %v3390 = vadd.f32 %v3136, %v3370
      %v3391 = vadd.f32 %v3137, %v3373
      %v3392 = vld [vmem:[%s4] sm:$0x1]
      %v3394 = vlaneseq
      %v3395 = vshrl.u32 %v3394, 7
      %v3396 = vsub.s32 0, %v3395
      %v3397 = vrot.slane %v3392, %v3396
      %v3399 = vadd.f32 %v3376, %v3397
      %v3400 = vadd.f32 %v3377, %v3397
      %v3401 = vadd.f32 %v3378, %v3397
      %v3402 = vadd.f32 %v3379, %v3397
      %v3403 = vadd.f32 %v3380, %v3397
      %v3404 = vadd.f32 %v3381, %v3397
      %v3405 = vadd.f32 %v3382, %v3397
      %v3406 = vadd.f32 %v3383, %v3397
      %v3407 = vadd.f32 %v3384, %v3397
      %v3408 = vadd.f32 %v3385, %v3397
      %v3409 = vadd.f32 %v3386, %v3397
      %v3410 = vadd.f32 %v3387, %v3397
      %v3411 = vadd.f32 %v3388, %v3397
      %v3412 = vadd.f32 %v3389, %v3397
      %v3413 = vadd.f32 %v3390, %v3397
      %v3414 = vadd.f32 %v3391, %v3397
      %v3415 = vadd.f32 %v3399, %v3400
      %v3416 = vadd.f32 %v3415, %v3401
      %v3417 = vadd.f32 %v3416, %v3402
      %v3418 = vadd.f32 %v3417, %v3403
      %v3419 = vadd.f32 %v3418, %v3404
      %v3420 = vadd.f32 %v3419, %v3405
      %v3421 = vadd.f32 %v3420, %v3406
      %v3422 = vadd.f32 %v3421, %v3407
      %v3423 = vadd.f32 %v3422, %v3408
      %v3424 = vadd.f32 %v3423, %v3409
      %v3425 = vadd.f32 %v3424, %v3410
      %v3426 = vadd.f32 %v3425, %v3411
      %v3427 = vadd.f32 %v3426, %v3412
      %v3428 = vadd.f32 %v3427, %v3413
      %v3429 = vadd.f32 %v3428, %v3414
      %v3430 = vrot.slane %v3429, 4
      %v3431 = vadd.f32 %v3429, %v3430
      %v3432 = vrot.slane %v3431, 2
      %v3433 = vadd.f32 %v3431, %v3432
      %v3434 = vrot.slane %v3433, 1
      %v3435 = vadd.f32 %v3433, %v3434
      %3436 = vst [vmem:[%s474] sm:$0x1] %v3435
      %v3437 = vmul.f32 %v3399, %v3399
      %v3438 = vmul.f32 %v3400, %v3400
      %v3439 = vmul.f32 %v3401, %v3401
      %v3440 = vmul.f32 %v3402, %v3402
      %v3441 = vmul.f32 %v3403, %v3403
      %v3442 = vmul.f32 %v3404, %v3404
      %v3443 = vmul.f32 %v3405, %v3405
      %v3444 = vmul.f32 %v3406, %v3406
      %v3445 = vmul.f32 %v3407, %v3407
      %v3446 = vmul.f32 %v3408, %v3408
      %v3447 = vmul.f32 %v3409, %v3409
      %v3448 = vmul.f32 %v3410, %v3410
      %v3449 = vmul.f32 %v3411, %v3411
      %v3450 = vmul.f32 %v3412, %v3412
      %v3451 = vmul.f32 %v3413, %v3413
      %v3452 = vmul.f32 %v3414, %v3414
      %v3453 = vadd.f32 %v3437, %v3438
      %v3454 = vadd.f32 %v3453, %v3439
      %v3455 = vadd.f32 %v3454, %v3440
      %v3456 = vadd.f32 %v3455, %v3441
      %v3457 = vadd.f32 %v3456, %v3442
      %v3458 = vadd.f32 %v3457, %v3443
      %v3459 = vadd.f32 %v3458, %v3444
      %v3460 = vadd.f32 %v3459, %v3445
      %v3461 = vadd.f32 %v3460, %v3446
      %v3462 = vadd.f32 %v3461, %v3447
      %v3463 = vadd.f32 %v3462, %v3448
      %v3464 = vadd.f32 %v3463, %v3449
      %v3465 = vadd.f32 %v3464, %v3450
      %v3466 = vadd.f32 %v3465, %v3451
      %v3467 = vadd.f32 %v3466, %v3452
      %v3468 = vrot.slane %v3467, 4
      %v3469 = vadd.f32 %v3467, %v3468
      %v3470 = vrot.slane %v3469, 2
      %v3471 = vadd.f32 %v3469, %v3470
      %v3472 = vrot.slane %v3471, 1
      %v3473 = vadd.f32 %v3471, %v3472
      %3474 = vst [vmem:[%s481] sm:$0x1] %v3473
      %v3475 = vpack.c.bf16 %v3400, %v3399
      %v3476 = vpack.c.bf16 %v3402, %v3401
      %v3477 = vpack.c.bf16 %v3404, %v3403
      %v3478 = vpack.c.bf16 %v3406, %v3405
      %v3479 = vpack.c.bf16 %v3408, %v3407
      %v3480 = vpack.c.bf16 %v3410, %v3409
      %v3481 = vpack.c.bf16 %v3412, %v3411
      %v3482 = vpack.c.bf16 %v3414, %v3413
      %v3491 = vunpack.c.l.b16 %v3475
      %v3492 = vunpack.c.h.b16 %v3475
      %v3493 = vunpack.c.l.b16 %v3476
      %v3494 = vunpack.c.h.b16 %v3476
      %v3495 = vunpack.c.l.b16 %v3477
      %v3496 = vunpack.c.h.b16 %v3477
      %v3497 = vunpack.c.l.b16 %v3478
      %v3498 = vunpack.c.h.b16 %v3478
      %v3499 = vunpack.c.l.b16 %v3479
      %v3500 = vunpack.c.h.b16 %v3479
      %v3501 = vunpack.c.l.b16 %v3480
      %v3502 = vunpack.c.h.b16 %v3480
      %v3503 = vunpack.c.l.b16 %v3481
      %v3504 = vunpack.c.h.b16 %v3481
      %v3505 = vunpack.c.l.b16 %v3482
      %v3506 = vunpack.c.h.b16 %v3482
      %v3507 = vpack.c.b16 %v3491, %v3491
      %v3508 = vpack.c.b16 %v3492, %v3492
      %v3509 = vpack.c.b16 %v3493, %v3493
      %v3510 = vpack.c.b16 %v3494, %v3494
      %v3511 = vpack.c.b16 %v3495, %v3495
      %v3512 = vpack.c.b16 %v3496, %v3496
      %v3513 = vpack.c.b16 %v3497, %v3497
      %v3514 = vpack.c.b16 %v3498, %v3498
      %v3515 = vpack.c.b16 %v3499, %v3499
      %v3516 = vpack.c.b16 %v3500, %v3500
      %v3517 = vpack.c.b16 %v3501, %v3501
      %v3518 = vpack.c.b16 %v3502, %v3502
      %v3519 = vpack.c.b16 %v3503, %v3503
      %v3520 = vpack.c.b16 %v3504, %v3504
      %v3521 = vpack.c.b16 %v3505, %v3505
      %v3522 = vpack.c.b16 %v3506, %v3506
      %3539 = vst [vmem:[%s468] sm:$0xf] %v3507
      %3540 = vst [vmem:[%s468 + $0x4] sm:$0xf] %v3508
      %3541 = vst [vmem:[%s468 + $0x8] sm:$0xf] %v3509
      %3542 = vst [vmem:[%s468 + $0xc] sm:$0xf] %v3510
      %3543 = vst [vmem:[%s468 + $0x10] sm:$0xf] %v3511
      %3544 = vst [vmem:[%s468 + $0x14] sm:$0xf] %v3512
      %3545 = vst [vmem:[%s468 + $0x18] sm:$0xf] %v3513
      %3546 = vst [vmem:[%s468 + $0x1c] sm:$0xf] %v3514
      %3547 = vst [vmem:[%s468 + $0x20] sm:$0xf] %v3515
      %3548 = vst [vmem:[%s468 + $0x24] sm:$0xf] %v3516
      %3549 = vst [vmem:[%s468 + $0x28] sm:$0xf] %v3517
      %3550 = vst [vmem:[%s468 + $0x2c] sm:$0xf] %v3518
      %3551 = vst [vmem:[%s468 + $0x30] sm:$0xf] %v3519
      %3552 = vst [vmem:[%s468 + $0x34] sm:$0xf] %v3520
      %3553 = vst [vmem:[%s468 + $0x38] sm:$0xf] %v3521
      %3554 = vst [vmem:[%s468 + $0x3c] sm:$0xf] %v3522
      %s3555 = smul.u32 8, %s24
      %p3556 = scmp.lt.s32.totalorder %s23, 1
      %s3557 = scalar_select %p3556, %s23, 1
      %p3558 = scmp.lt.s32.totalorder %s3555, 15
      %s3559 = scalar_select %p3558, %s3555, 15
      %s3560 = smul.addr %s3559, 2
      %s3561 = smul.addr %s3557, 32
      %s3562 = sadd.s32 %s3560, %s3561
      %s3563 = smul.addr %s3562, 4
      %s3564 = scalar_lea.vmem %s5, %s3563
      %s3565 = smul.u32 %s23, 2
      %s3566 = sadd.s32 %s3565, %s24
      %p3567 = scmp.lt.s32.totalorder %s3566, 3
      %s3568 = scalar_select %p3567, %s3566, 3
      %s3569 = scalar_lea.vmem %s6, %s3568
      %s3570 = smul.u32 %s23, 2
      %s3571 = sadd.s32 %s3570, %s24
      %p3572 = scmp.lt.s32.totalorder %s3571, 3
      %s3573 = scalar_select %p3572, %s3571, 3
      %s3574 = scalar_lea.vmem %s7, %s3573
      // Predicated region
      $region57: #{double_conv.3} parent=39 // pred_check
        %p3575 = pneg %p193
      $region58: #{double_conv.3} parent=39 // pred_check_branch
        %3577 = sbr.rel (%p3575) target = $region60
      $region59: #{double_conv.3} parent=39 // pred_region
        %s3578 = smul.u32 8, %s24
      $region60: #{double_conv.3} parent=39 // pred_fallthru
        _
      // Predicated region
      $region61: #{double_conv.3} parent=39 // pred_check
        %p3579 = pneg %p223
      $region62: #{double_conv.3} parent=39 // pred_check_branch
        %3581 = sbr.rel (%p3579) target = $region64
      $region63: #{double_conv.3} parent=39 // pred_region
        %s3582 = smul.u32 %s23, 2
        %s3583 = sadd.s32 %s3582, %s24
      $region64: #{double_conv.3} parent=39 // pred_fallthru
        _
      // Predicated region
      $region65: #{double_conv.3} parent=39 // pred_check
        %p3584 = pneg %p253
      $region66: #{double_conv.3} parent=39 // pred_check_branch
        %3586 = sbr.rel (%p3584) target = $region68
      $region67: #{double_conv.3} parent=39 // pred_region
        %s3587 = smul.u32 %s23, 2
        %s3588 = sadd.s32 %s3587, %s24
      $region68: #{double_conv.3} parent=39 // pred_fallthru
        _
    $region40: #{double_conv.3} parent=5 // pred_fallthru
      _
    %p3589 = scmp.le.s32.totalorder 2, %s14
    // Predicated region
    $region69: #{double_conv.3} parent=5 // pred_check
      %p3590 = pneg %p3589
    $region70: #{double_conv.3} parent=5 // pred_check_branch
      %3592 = sbr.rel (%p3590) target = $region72
    $region71: #{double_conv.3} parent=5 // pred_region
      %s3593 = ssub.s32 %s14, 2
      // Predicated region
      $region73: #{double_conv.3} parent=71 // pred_check
        %p3594 = pneg %p199
      $region74: #{double_conv.3} parent=71 // pred_check_branch
        %3596 = sbr.rel (%p3594) target = $region76
      $region75: #{double_conv.3} parent=71 // pred_region
        %s3597 = smul.u32 8, %s26
        %p3598 = scmp.lt.s32.totalorder %s25, 1
        %s3599 = scalar_select %p3598, %s25, 1
        %p3600 = scmp.lt.s32.totalorder %s3597, 15
        %s3601 = scalar_select %p3600, %s3597, 15
        %s3602 = smul.addr %s3601, 2
        %s3603 = smul.addr %s3599, 32
        %s3604 = sadd.s32 %s3602, %s3603
        %s3605 = smul.addr %s3604, 4
        %s3606 = scalar_lea.vmem %s5, %s3605
      $region76: #{double_conv.3} parent=71 // pred_fallthru
        _
      // Predicated region
      $region77: #{double_conv.3} parent=71 // pred_check
        %p3607 = pneg %p229
      $region78: #{double_conv.3} parent=71 // pred_check_branch
        %3609 = sbr.rel (%p3607) target = $region80
      $region79: #{double_conv.3} parent=71 // pred_region
        %s3610 = smul.u32 %s25, 2
        %s3611 = sadd.s32 %s3610, %s26
        %p3612 = scmp.lt.s32.totalorder %s3611, 3
        %s3613 = scalar_select %p3612, %s3611, 3
        %s3614 = scalar_lea.vmem %s6, %s3613
      $region80: #{double_conv.3} parent=71 // pred_fallthru
        _
      // Predicated region
      $region81: #{double_conv.3} parent=71 // pred_check
        %p3615 = pneg %p259
      $region82: #{double_conv.3} parent=71 // pred_check_branch
        %3617 = sbr.rel (%p3615) target = $region84
      $region83: #{double_conv.3} parent=71 // pred_region
        %s3618 = smul.u32 %s25, 2
        %s3619 = sadd.s32 %s3618, %s26
        %p3620 = scmp.lt.s32.totalorder %s3619, 3
        %s3621 = scalar_select %p3620, %s3619, 3
        %s3622 = scalar_lea.vmem %s7, %s3621
      $region84: #{double_conv.3} parent=71 // pred_fallthru
        _
    $region72: #{double_conv.3} parent=5 // pred_fallthru
      _
  $region6: #{double_conv.3} parent=0 // loop_footer
    %s18 = sadd.s32 1, %s14
  $region7: #{double_conv.3} parent=0 // loop_footer_branch
    %13 = sbr.rel target = $region3
  $region8: #{double_conv.3} parent=0 // loop_exit
    _

// kernel: double_conv.4
$region0: #{double_conv.4}
  #allocation0 [shape = 'u32[]', space=smem, size = 0x4, offset = 0x4, fixed_abs, tag = 'smem constant byte address 0x4 - core index']
  #allocation1 [shape = 'u32[144,128]{1,0:T(1,128)}', space=vmem, size = 0x12000, scoped, tag = 'internal scratch']
  #allocation2 [shape = 'bf16[10,18,128]{2,1,0:T(8,128)(2,1)}', space=vmem, size = 0xf000, scoped, tag = 'scratch operand']
  #allocation3 [shape = 'bf16[128,1152]{1,0:T(8,128)(2,1)}', space=vmem, size = 0x48000, scoped, tag = 'scratch operand']
  %s0 = inlined_call_operand.vmem [shape: bf16[2,16,16,128], index: 0, kind: input, shape index: {}, may-alias: {0,1,2}]
  %s1 = inlined_call_operand.vmem [shape: bf16[2,16,16,128], index: 1, kind: input, shape index: {}, may-alias: {0,1,2}]
  %s2 = inlined_call_operand.vmem [shape: bf16[2,16,16,128], index: 2, kind: input, shape index: {}, may-alias: {0,1,2}]
  %s3 = inlined_call_operand.vmem [shape: bf16[1152,128], index: 3, kind: input, shape index: {}]
  %s4 = inlined_call_operand.vmem [shape: f32[1,128], index: 4, kind: input, shape index: {}]
  %s5 = inlined_call_operand.vmem [shape: f32[1,1,128], index: 5, kind: input, shape index: {}]
  %s6 = inlined_call_operand.vmem [shape: f32[1,1,128], index: 6, kind: input, shape index: {}]
  %s7 = inlined_call_operand.vmem [shape: bf16[2,16,16,128], index: 7, kind: output, shape index: {0}]
  %s8 = inlined_call_operand.vmem [shape: f32[4,1,128], index: 8, kind: output, shape index: {1}]
  %s9 = inlined_call_operand.vmem [shape: f32[4,1,128], index: 9, kind: output, shape index: {2}]
  %10 = xla_tuple %s7, %s8, %s9
  %s11 = sld [smem:[#allocation0]]
  $region93: #{double_conv.4} parent=0
    _
  %s13 = ssub.s32 1, %s11
  %s14 = scalar_select 0, %s13, %s11
  loop: start=0, step=1, limit=6
  $region2: #{double_conv.4} parent=0 // loop_pre_header
    _
  $region3: #{double_conv.4} parent=0 // loop_header
    %s16 = sphi 0, %s20
    %p17 = scmp.ge.s32.totalorder %s16, 6
    %s23 = sphi 0, %s35
    %s24 = sphi 0, %s31
    %s25 = sphi 0, %s23
    %s26 = sphi 0, %s24
    %s27 = sphi 0, %s25
    %s28 = sphi 0, %s26
    %s40 = sphi 0, %s42
    %s43 = sphi 0, %s40
    %s44 = sphi 0, %s43
    %s60 = sphi 0, %s44
    %s76 = sphi 0, %s78
    %s79 = sphi 0, %s76
    %s80 = sphi 0, %s79
    %s96 = sphi 0, %s80
    %s112 = sphi 0, %s114
    %s115 = sphi 0, %s112
    %s116 = sphi 0, %s115
    %s132 = sphi 0, %s116
    %s136 = sphi 0, %s136
    %s138 = sphi 0, %s136
    %s139 = sphi 0, %s138
    %s153 = sphi 0, %s139
    %s157 = sphi 0, %s157
    %s159 = sphi 0, %s157
    %s160 = sphi 0, %s159
    %s174 = sphi 0, %s160
    %s178 = sphi 0, %s178
    %s180 = sphi 0, %s178
    %s181 = sphi 0, %s180
    %s195 = sphi 0, %s181
    %s199 = sphi 0, %s199
    %s201 = sphi 0, %s199
    %s202 = sphi 0, %s201
    %s216 = sphi 0, %s202
    %s224 = sphi 0, %s226
    %s227 = sphi 0, %s224
    %s228 = sphi 0, %s227
    %s244 = sphi 0, %s228
    %s254 = sphi 0, %s256
    %s257 = sphi 0, %s254
    %s258 = sphi 0, %s257
    %s274 = sphi 0, %s258
    %s284 = sphi 0, %s286
    %s287 = sphi 0, %s284
    %s288 = sphi 0, %s287
    %s304 = sphi 0, %s288
  $region4: #{double_conv.4} parent=0 // loop_header_branch
    %19 = sbr.rel (%p17) target = $region8
  $region5: #{double_conv.4} parent=0 // loop_body
    %s21 = ssub.s32 %s16, 1
    %s22 = ssub.s32 %s16, 2
    %s29 = sadd.s32 1, %s24
    %p30 = scmp.ge.s32.totalorder %s29, 2
    %s31 = scalar_select %p30, 0, %s29
    %s32 = sadd.s32 1, %s23
    %s33 = scalar_select %p30, %s32, %s23
    %p34 = scmp.ge.s32.totalorder %s33, 2
    %s35 = scalar_select %p34, 0, %s33
    %s36 = ssub.s32 %s23, %s35
    %s37 = ssub.s32 %s24, %s31
    %s38 = sor.u32 %s36, %s37
    %p39 = scmp.eq.s32.totalorder %s38, 0
    %s41 = sadd.s32 %s40, 1
    %s42 = scalar_select %p39, %s40, %s41
    %p45 = pneg %p39
    %p46 = scmp.eq.s32.totalorder %s16, 3
    %p47 = por %p45, %p46
    %p48 = scmp.ne.s32.totalorder %s40, %s43
    %p49 = scmp.eq.s32.totalorder %s16, 0
    %p50 = por %p48, %p49
    %p51 = scmp.ne.s32.totalorder %s40, %s43
    %p52 = scmp.eq.s32.totalorder %s21, 3
    %p53 = por %p51, %p52
    %p54 = scmp.ne.s32.totalorder %s43, %s44
    %p55 = scmp.eq.s32.totalorder %s21, 0
    %p56 = por %p54, %p55
    %p57 = scmp.ne.s32.totalorder %s43, %s44
    %p58 = scmp.eq.s32.totalorder %s22, 3
    %p59 = por %p57, %p58
    %p61 = scmp.ne.s32.totalorder %s44, %s60
    %p62 = scmp.eq.s32.totalorder %s22, 0
    %p63 = por %p61, %p62
    %s64 = smul.u32 %s24, 8
    %s65 = ssub.s32 %s64, 1
    %p66 = scmp.gt.s32.totalorder %s65, 0
    %s67 = scalar_select %p66, %s65, 0
    %s68 = smul.u32 %s31, 8
    %s69 = ssub.s32 %s68, 1
    %p70 = scmp.gt.s32.totalorder %s69, 0
    %s71 = scalar_select %p70, %s69, 0
    %s72 = ssub.s32 %s23, %s35
    %s73 = ssub.s32 %s67, %s71
    %s74 = sor.u32 %s72, %s73
    %p75 = scmp.eq.s32.totalorder %s74, 0
    %s77 = sadd.s32 %s76, 1
    %s78 = scalar_select %p75, %s76, %s77
    %p81 = pneg %p75
    %p82 = scmp.eq.s32.totalorder %s16, 3
    %p83 = por %p81, %p82
    %p84 = scmp.ne.s32.totalorder %s76, %s79
    %p85 = scmp.eq.s32.totalorder %s16, 0
    %p86 = por %p84, %p85
    %p87 = scmp.ne.s32.totalorder %s76, %s79
    %p88 = scmp.eq.s32.totalorder %s21, 3
    %p89 = por %p87, %p88
    %p90 = scmp.ne.s32.totalorder %s79, %s80
    %p91 = scmp.eq.s32.totalorder %s21, 0
    %p92 = por %p90, %p91
    %p93 = scmp.ne.s32.totalorder %s79, %s80
    %p94 = scmp.eq.s32.totalorder %s22, 3
    %p95 = por %p93, %p94
    %p97 = scmp.ne.s32.totalorder %s80, %s96
    %p98 = scmp.eq.s32.totalorder %s22, 0
    %p99 = por %p97, %p98
    %s100 = smul.u32 %s24, 8
    %s101 = sadd.s32 %s100, 8
    %p102 = scmp.lt.s32.totalorder %s101, 15
    %s103 = scalar_select %p102, %s101, 15
    %s104 = smul.u32 %s31, 8
    %s105 = sadd.s32 %s104, 8
    %p106 = scmp.lt.s32.totalorder %s105, 15
    %s107 = scalar_select %p106, %s105, 15
    %s108 = ssub.s32 %s23, %s35
    %s109 = ssub.s32 %s103, %s107
    %s110 = sor.u32 %s108, %s109
    %p111 = scmp.eq.s32.totalorder %s110, 0
    %s113 = sadd.s32 %s112, 1
    %s114 = scalar_select %p111, %s112, %s113
    %p117 = pneg %p111
    %p118 = scmp.eq.s32.totalorder %s16, 3
    %p119 = por %p117, %p118
    %p120 = scmp.ne.s32.totalorder %s112, %s115
    %p121 = scmp.eq.s32.totalorder %s16, 0
    %p122 = por %p120, %p121
    %p123 = scmp.ne.s32.totalorder %s112, %s115
    %p124 = scmp.eq.s32.totalorder %s21, 3
    %p125 = por %p123, %p124
    %p126 = scmp.ne.s32.totalorder %s115, %s116
    %p127 = scmp.eq.s32.totalorder %s21, 0
    %p128 = por %p126, %p127
    %p129 = scmp.ne.s32.totalorder %s115, %s116
    %p130 = scmp.eq.s32.totalorder %s22, 3
    %p131 = por %p129, %p130
    %p133 = scmp.ne.s32.totalorder %s116, %s132
    %p134 = scmp.eq.s32.totalorder %s22, 0
    %p135 = por %p133, %p134
    %s137 = sadd.s32 %s136, 1
    %p140 = scmp.eq.s32.totalorder %s16, 3
    %p141 = scmp.ne.s32.totalorder %s136, %s138
    %p142 = scmp.eq.s32.totalorder %s16, 0
    %p143 = por %p141, %p142
    %p144 = scmp.ne.s32.totalorder %s136, %s138
    %p145 = scmp.eq.s32.totalorder %s21, 3
    %p146 = por %p144, %p145
    %p147 = scmp.ne.s32.totalorder %s138, %s139
    %p148 = scmp.eq.s32.totalorder %s21, 0
    %p149 = por %p147, %p148
    %p150 = scmp.ne.s32.totalorder %s138, %s139
    %p151 = scmp.eq.s32.totalorder %s22, 3
    %p152 = por %p150, %p151
    %p154 = scmp.ne.s32.totalorder %s139, %s153
    %p155 = scmp.eq.s32.totalorder %s22, 0
    %p156 = por %p154, %p155
    %s158 = sadd.s32 %s157, 1
    %p161 = scmp.eq.s32.totalorder %s16, 3
    %p162 = scmp.ne.s32.totalorder %s157, %s159
    %p163 = scmp.eq.s32.totalorder %s16, 0
    %p164 = por %p162, %p163
    %p165 = scmp.ne.s32.totalorder %s157, %s159
    %p166 = scmp.eq.s32.totalorder %s21, 3
    %p167 = por %p165, %p166
    %p168 = scmp.ne.s32.totalorder %s159, %s160
    %p169 = scmp.eq.s32.totalorder %s21, 0
    %p170 = por %p168, %p169
    %p171 = scmp.ne.s32.totalorder %s159, %s160
    %p172 = scmp.eq.s32.totalorder %s22, 3
    %p173 = por %p171, %p172
    %p175 = scmp.ne.s32.totalorder %s160, %s174
    %p176 = scmp.eq.s32.totalorder %s22, 0
    %p177 = por %p175, %p176
    %s179 = sadd.s32 %s178, 1
    %p182 = scmp.eq.s32.totalorder %s16, 3
    %p183 = scmp.ne.s32.totalorder %s178, %s180
    %p184 = scmp.eq.s32.totalorder %s16, 0
    %p185 = por %p183, %p184
    %p186 = scmp.ne.s32.totalorder %s178, %s180
    %p187 = scmp.eq.s32.totalorder %s21, 3
    %p188 = por %p186, %p187
    %p189 = scmp.ne.s32.totalorder %s180, %s181
    %p190 = scmp.eq.s32.totalorder %s21, 0
    %p191 = por %p189, %p190
    %p192 = scmp.ne.s32.totalorder %s180, %s181
    %p193 = scmp.eq.s32.totalorder %s22, 3
    %p194 = por %p192, %p193
    %p196 = scmp.ne.s32.totalorder %s181, %s195
    %p197 = scmp.eq.s32.totalorder %s22, 0
    %p198 = por %p196, %p197
    %s200 = sadd.s32 %s199, 1
    %p203 = scmp.eq.s32.totalorder %s16, 3
    %p204 = scmp.ne.s32.totalorder %s199, %s201
    %p205 = scmp.eq.s32.totalorder %s16, 0
    %p206 = por %p204, %p205
    %p207 = scmp.ne.s32.totalorder %s199, %s201
    %p208 = scmp.eq.s32.totalorder %s21, 3
    %p209 = por %p207, %p208
    %p210 = scmp.ne.s32.totalorder %s201, %s202
    %p211 = scmp.eq.s32.totalorder %s21, 0
    %p212 = por %p210, %p211
    %p213 = scmp.ne.s32.totalorder %s201, %s202
    %p214 = scmp.eq.s32.totalorder %s22, 3
    %p215 = por %p213, %p214
    %p217 = scmp.ne.s32.totalorder %s202, %s216
    %p218 = scmp.eq.s32.totalorder %s22, 0
    %p219 = por %p217, %p218
    %s220 = ssub.s32 %s23, %s35
    %s221 = ssub.s32 %s24, %s31
    %s222 = sor.u32 %s220, %s221
    %p223 = scmp.eq.s32.totalorder %s222, 0
    %s225 = sadd.s32 %s224, 1
    %s226 = scalar_select %p223, %s224, %s225
    %p229 = pneg %p223
    %p230 = scmp.eq.s32.totalorder %s16, 3
    %p231 = por %p229, %p230
    %p232 = scmp.ne.s32.totalorder %s224, %s227
    %p233 = scmp.eq.s32.totalorder %s16, 0
    %p234 = por %p232, %p233
    %p235 = scmp.ne.s32.totalorder %s224, %s227
    %p236 = scmp.eq.s32.totalorder %s21, 3
    %p237 = por %p235, %p236
    %p238 = scmp.ne.s32.totalorder %s227, %s228
    %p239 = scmp.eq.s32.totalorder %s21, 0
    %p240 = por %p238, %p239
    %p241 = scmp.ne.s32.totalorder %s227, %s228
    %p242 = scmp.eq.s32.totalorder %s22, 3
    %p243 = por %p241, %p242
    %p245 = scmp.ne.s32.totalorder %s228, %s244
    %p246 = scmp.eq.s32.totalorder %s22, 0
    %p247 = por %p245, %p246
    %s248 = smul.u32 %s23, 2
    %s249 = sadd.s32 %s248, %s24
    %s250 = smul.u32 %s35, 2
    %s251 = sadd.s32 %s250, %s31
    %s252 = ssub.s32 %s249, %s251
    %p253 = scmp.eq.s32.totalorder %s252, 0
    %s255 = sadd.s32 %s254, 1
    %s256 = scalar_select %p253, %s254, %s255
    %p259 = pneg %p253
    %p260 = scmp.eq.s32.totalorder %s16, 3
    %p261 = por %p259, %p260
    %p262 = scmp.ne.s32.totalorder %s254, %s257
    %p263 = scmp.eq.s32.totalorder %s16, 0
    %p264 = por %p262, %p263
    %p265 = scmp.ne.s32.totalorder %s254, %s257
    %p266 = scmp.eq.s32.totalorder %s21, 3
    %p267 = por %p265, %p266
    %p268 = scmp.ne.s32.totalorder %s257, %s258
    %p269 = scmp.eq.s32.totalorder %s21, 0
    %p270 = por %p268, %p269
    %p271 = scmp.ne.s32.totalorder %s257, %s258
    %p272 = scmp.eq.s32.totalorder %s22, 3
    %p273 = por %p271, %p272
    %p275 = scmp.ne.s32.totalorder %s258, %s274
    %p276 = scmp.eq.s32.totalorder %s22, 0
    %p277 = por %p275, %p276
    %s278 = smul.u32 %s23, 2
    %s279 = sadd.s32 %s278, %s24
    %s280 = smul.u32 %s35, 2
    %s281 = sadd.s32 %s280, %s31
    %s282 = ssub.s32 %s279, %s281
    %p283 = scmp.eq.s32.totalorder %s282, 0
    %s285 = sadd.s32 %s284, 1
    %s286 = scalar_select %p283, %s284, %s285
    %p289 = pneg %p283
    %p290 = scmp.eq.s32.totalorder %s16, 3
    %p291 = por %p289, %p290
    %p292 = scmp.ne.s32.totalorder %s284, %s287
    %p293 = scmp.eq.s32.totalorder %s16, 0
    %p294 = por %p292, %p293
    %p295 = scmp.ne.s32.totalorder %s284, %s287
    %p296 = scmp.eq.s32.totalorder %s21, 3
    %p297 = por %p295, %p296
    %p298 = scmp.ne.s32.totalorder %s287, %s288
    %p299 = scmp.eq.s32.totalorder %s21, 0
    %p300 = por %p298, %p299
    %p301 = scmp.ne.s32.totalorder %s287, %s288
    %p302 = scmp.eq.s32.totalorder %s22, 3
    %p303 = por %p301, %p302
    %p305 = scmp.ne.s32.totalorder %s288, %s304
    %p306 = scmp.eq.s32.totalorder %s22, 0
    %p307 = por %p305, %p306
    %p308 = scmp.le.s32.totalorder 1, %s16
    %p309 = scmp.lt.s32.totalorder %s16, 5
    %p310 = pnand %p308, %p309
    %p311 = pneg %p310
    // Predicated region
    $region9: #{double_conv.4} parent=5 // pred_check
      _
    $region10: #{double_conv.4} parent=5 // pred_check_branch
      %313 = sbr.rel (%p310) target = $region12
    $region11: #{double_conv.4} parent=5 // pred_region
      %s314 = ssub.s32 %s16, 1
      // Predicated region
      $region13: #{double_conv.4} parent=11 // pred_check
        %p315 = pneg %p149
      $region14: #{double_conv.4} parent=11 // pred_check_branch
        %317 = sbr.rel (%p315) target = $region16
      $region15: #{double_conv.4} parent=11 // pred_region
        _
      $region16: #{double_conv.4} parent=11 // pred_fallthru
        _
      // Predicated region
      $region17: #{double_conv.4} parent=11 // pred_check
        %p318 = pneg %p170
      $region18: #{double_conv.4} parent=11 // pred_check_branch
        %320 = sbr.rel (%p318) target = $region20
      $region19: #{double_conv.4} parent=11 // pred_region
        _
      $region20: #{double_conv.4} parent=11 // pred_fallthru
        _
      // Predicated region
      $region21: #{double_conv.4} parent=11 // pred_check
        %p321 = pneg %p191
      $region22: #{double_conv.4} parent=11 // pred_check_branch
        %323 = sbr.rel (%p321) target = $region24
      $region23: #{double_conv.4} parent=11 // pred_region
        _
      $region24: #{double_conv.4} parent=11 // pred_fallthru
        _
      // Predicated region
      $region25: #{double_conv.4} parent=11 // pred_check
        %p324 = pneg %p212
      $region26: #{double_conv.4} parent=11 // pred_check_branch
        %326 = sbr.rel (%p324) target = $region28
      $region27: #{double_conv.4} parent=11 // pred_region
        _
      $region28: #{double_conv.4} parent=11 // pred_fallthru
        _
    $region12: #{double_conv.4} parent=5 // pred_fallthru
      _
    %p327 = scmp.lt.s32.totalorder %s16, 4
    // Predicated region
    $region29: #{double_conv.4} parent=5 // pred_check
      %p328 = pneg %p327
    $region30: #{double_conv.4} parent=5 // pred_check_branch
      %330 = sbr.rel (%p328) target = $region32
    $region31: #{double_conv.4} parent=5 // pred_region
      // Predicated region
      $region33: #{double_conv.4} parent=31 // pred_check
        %p331 = pneg %p50
      $region34: #{double_conv.4} parent=31 // pred_check_branch
        %333 = sbr.rel (%p331) target = $region36
      $region35: #{double_conv.4} parent=31 // pred_region
        %s334 = smul.u32 8, %s24
        %p335 = scmp.lt.s32.totalorder %s23, 1
        %s336 = scalar_select %p335, %s23, 1
        %p337 = scmp.lt.s32.totalorder %s334, 15
        %s338 = scalar_select %p337, %s334, 15
        %s339 = smul.addr %s338, 2
        %s340 = smul.addr %s336, 32
        %s341 = sadd.s32 %s339, %s340
        %s342 = smul.addr %s341, 4
        %s343 = scalar_lea.vmem %s0, %s342
        %s344 = smul.u32 8, %s24
      $region36: #{double_conv.4} parent=31 // pred_fallthru
        _
      // Predicated region
      $region37: #{double_conv.4} parent=31 // pred_check
        %p345 = pneg %p86
      $region38: #{double_conv.4} parent=31 // pred_check_branch
        %347 = sbr.rel (%p345) target = $region40
      $region39: #{double_conv.4} parent=31 // pred_region
        %s348 = smul.u32 %s24, 8
        %s349 = ssub.s32 %s348, 1
        %p350 = scmp.gt.s32.totalorder %s349, 0
        %s351 = scalar_select %p350, %s349, 0
        %p352 = scmp.lt.s32.totalorder %s23, 1
        %s353 = scalar_select %p352, %s23, 1
        %p354 = scmp.lt.s32.totalorder %s351, 15
        %s355 = scalar_select %p354, %s351, 15
        %s356 = smul.addr %s355, 2
        %s357 = smul.addr %s353, 32
        %s358 = sadd.s32 %s356, %s357
        %s359 = smul.addr %s358, 4
        %s360 = scalar_lea.vmem %s1, %s359
        %s361 = smul.u32 %s24, 8
        %s362 = ssub.s32 %s361, 1
        %p363 = scmp.gt.s32.totalorder %s362, 0
        %s364 = scalar_select %p363, %s362, 0
      $region40: #{double_conv.4} parent=31 // pred_fallthru
        _
      // Predicated region
      $region41: #{double_conv.4} parent=31 // pred_check
        %p365 = pneg %p122
      $region42: #{double_conv.4} parent=31 // pred_check_branch
        %367 = sbr.rel (%p365) target = $region44
      $region43: #{double_conv.4} parent=31 // pred_region
        %s368 = smul.u32 %s24, 8
        %s369 = sadd.s32 %s368, 8
        %p370 = scmp.lt.s32.totalorder %s369, 15
        %s371 = scalar_select %p370, %s369, 15
        %p372 = scmp.lt.s32.totalorder %s23, 1
        %s373 = scalar_select %p372, %s23, 1
        %p374 = scmp.lt.s32.totalorder %s371, 15
        %s375 = scalar_select %p374, %s371, 15
        %s376 = smul.addr %s375, 2
        %s377 = smul.addr %s373, 32
        %s378 = sadd.s32 %s376, %s377
        %s379 = smul.addr %s378, 4
        %s380 = scalar_lea.vmem %s2, %s379
        %s381 = smul.u32 %s24, 8
        %s382 = sadd.s32 %s381, 8
        %p383 = scmp.lt.s32.totalorder %s382, 15
        %s384 = scalar_select %p383, %s382, 15
      $region44: #{double_conv.4} parent=31 // pred_fallthru
        _
    $region32: #{double_conv.4} parent=5 // pred_fallthru
      _
    %p385 = scmp.le.s32.totalorder 1, %s16
    %p386 = scmp.lt.s32.totalorder %s16, 5
    %p387 = pnand %p385, %p386
    %p388 = pneg %p387
    // Predicated region
    $region45: #{double_conv.4} parent=5 // pred_check
      _
    $region46: #{double_conv.4} parent=5 // pred_check_branch
      %390 = sbr.rel (%p387) target = $region48
    $region47: #{double_conv.4} parent=5 // pred_region
      %s391 = ssub.s32 %s16, 1
      %s392 = smul.u32 8, %s26
      %p393 = scmp.lt.s32.totalorder %s25, 1
      %s394 = scalar_select %p393, %s25, 1
      %p395 = scmp.lt.s32.totalorder %s392, 15
      %s396 = scalar_select %p395, %s392, 15
      %s397 = smul.addr %s396, 2
      %s398 = smul.addr %s394, 32
      %s399 = sadd.s32 %s397, %s398
      %s400 = smul.addr %s399, 4
      %s401 = scalar_lea.vmem %s0, %s400
      %p402 = pneg %p56
      %p403 = pneg %p53
      %s404 = smul.u32 %s26, 8
      %s405 = ssub.s32 %s404, 1
      %p406 = scmp.gt.s32.totalorder %s405, 0
      %s407 = scalar_select %p406, %s405, 0
      %p408 = scmp.lt.s32.totalorder %s25, 1
      %s409 = scalar_select %p408, %s25, 1
      %p410 = scmp.lt.s32.totalorder %s407, 15
      %s411 = scalar_select %p410, %s407, 15
      %s412 = smul.addr %s411, 2
      %s413 = smul.addr %s409, 32
      %s414 = sadd.s32 %s412, %s413
      %s415 = smul.addr %s414, 4
      %s416 = scalar_lea.vmem %s1, %s415
      %p417 = pneg %p92
      %p418 = pneg %p89
      %s419 = smul.u32 %s26, 8
      %s420 = sadd.s32 %s419, 8
      %p421 = scmp.lt.s32.totalorder %s420, 15
      %s422 = scalar_select %p421, %s420, 15
      %p423 = scmp.lt.s32.totalorder %s25, 1
      %s424 = scalar_select %p423, %s25, 1
      %p425 = scmp.lt.s32.totalorder %s422, 15
      %s426 = scalar_select %p425, %s422, 15
      %s427 = smul.addr %s426, 2
      %s428 = smul.addr %s424, 32
      %s429 = sadd.s32 %s427, %s428
      %s430 = smul.addr %s429, 4
      %s431 = scalar_lea.vmem %s2, %s430
      %p432 = pneg %p128
      %p433 = pneg %p125
      %p434 = pneg %p149
      %p435 = pneg %p146
      %p436 = pneg %p170
      %p437 = pneg %p167
      %p438 = pneg %p191
      %p439 = pneg %p188
      %p440 = pneg %p212
      %p441 = pneg %p209
      %p442 = pneg %p240
      %p443 = pneg %p237
      %s444 = smul.u32 8, %s26
      %p445 = scmp.lt.s32.totalorder %s25, 1
      %s446 = scalar_select %p445, %s25, 1
      %p447 = scmp.lt.s32.totalorder %s444, 15
      %s448 = scalar_select %p447, %s444, 15
      %s449 = smul.addr %s448, 2
      %s450 = smul.addr %s446, 32
      %s451 = sadd.s32 %s449, %s450
      %s452 = smul.addr %s451, 4
      %s453 = scalar_lea.vmem %s7, %s452
      %p454 = pneg %p270
      %p455 = pneg %p267
      %s456 = smul.u32 %s25, 2
      %s457 = sadd.s32 %s456, %s26
      %p458 = scmp.lt.s32.totalorder %s457, 3
      %s459 = scalar_select %p458, %s457, 3
      %s460 = scalar_lea.vmem %s8, %s459
      %p461 = pneg %p300
      %p462 = pneg %p297
      %s463 = smul.u32 %s25, 2
      %s464 = sadd.s32 %s463, %s26
      %p465 = scmp.lt.s32.totalorder %s464, 3
      %s466 = scalar_select %p465, %s464, 3
      %s467 = scalar_lea.vmem %s9, %s466
      %s468 = smul.u32 8, %s26
      %p469 = scmp.lt.s32.totalorder %s25, 1
      %s470 = scalar_select %p469, %s25, 1
      %p471 = scmp.lt.s32.totalorder %s468, 15
      %s472 = scalar_select %p471, %s468, 15
      %s473 = smul.addr %s472, 2
      %s474 = smul.addr %s470, 32
      %s475 = sadd.s32 %s473, %s474
      %s476 = smul.addr %s475, 4
      %s477 = scalar_lea.vmem %s0, %s476
      %s478 = smul.u32 8, %s26
      %s479 = smul.u32 %s26, 8
      %s480 = ssub.s32 %s479, 1
      %p481 = scmp.gt.s32.totalorder %s480, 0
      %s482 = scalar_select %p481, %s480, 0
      %p483 = scmp.lt.s32.totalorder %s25, 1
      %s484 = scalar_select %p483, %s25, 1
      %p485 = scmp.lt.s32.totalorder %s482, 15
      %s486 = scalar_select %p485, %s482, 15
      %s487 = smul.addr %s486, 2
      %s488 = smul.addr %s484, 32
      %s489 = sadd.s32 %s487, %s488
      %s490 = smul.addr %s489, 4
      %s491 = scalar_lea.vmem %s1, %s490
      %s492 = smul.u32 %s26, 8
      %s493 = ssub.s32 %s492, 1
      %p494 = scmp.gt.s32.totalorder %s493, 0
      %s495 = scalar_select %p494, %s493, 0
      %s496 = smul.u32 %s26, 8
      %s497 = sadd.s32 %s496, 8
      %p498 = scmp.lt.s32.totalorder %s497, 15
      %s499 = scalar_select %p498, %s497, 15
      %p500 = scmp.lt.s32.totalorder %s25, 1
      %s501 = scalar_select %p500, %s25, 1
      %p502 = scmp.lt.s32.totalorder %s499, 15
      %s503 = scalar_select %p502, %s499, 15
      %s504 = smul.addr %s503, 2
      %s505 = smul.addr %s501, 32
      %s506 = sadd.s32 %s504, %s505
      %s507 = smul.addr %s506, 4
      %s508 = scalar_lea.vmem %s2, %s507
      %s509 = smul.u32 %s26, 8
      %s510 = sadd.s32 %s509, 8
      %p511 = scmp.lt.s32.totalorder %s510, 15
      %s512 = scalar_select %p511, %s510, 15
      %s513 = smul.u32 8, %s26
      %p514 = scmp.lt.s32.totalorder %s25, 1
      %s515 = scalar_select %p514, %s25, 1
      %p516 = scmp.lt.s32.totalorder %s513, 15
      %s517 = scalar_select %p516, %s513, 15
      %s518 = smul.addr %s517, 2
      %s519 = smul.addr %s515, 32
      %s520 = sadd.s32 %s518, %s519
      %s521 = smul.addr %s520, 4
      %s522 = scalar_lea.vmem %s7, %s521
      %s523 = smul.u32 8, %s26
      %s524 = smul.u32 %s25, 2
      %s525 = sadd.s32 %s524, %s26
      %p526 = scmp.lt.s32.totalorder %s525, 3
      %s527 = scalar_select %p526, %s525, 3
      %s528 = scalar_lea.vmem %s8, %s527
      %s529 = smul.u32 %s25, 2
      %s530 = sadd.s32 %s529, %s26
      %s531 = smul.u32 %s25, 2
      %s532 = sadd.s32 %s531, %s26
      %p533 = scmp.lt.s32.totalorder %s532, 3
      %s534 = scalar_select %p533, %s532, 3
      %s535 = scalar_lea.vmem %s9, %s534
      %s536 = smul.u32 %s25, 2
      %s537 = sadd.s32 %s536, %s26
      %v539 = vld [vmem:[%s477] sm:$0xf]
      %v540 = vld [vmem:[%s477 + $0x4] sm:$0xf]
      %v541 = vld [vmem:[%s477 + $0x8] sm:$0xf]
      %v542 = vld [vmem:[%s477 + $0xc] sm:$0xf]
      %v543 = vld [vmem:[%s477 + $0x10] sm:$0xf]
      %v544 = vld [vmem:[%s477 + $0x14] sm:$0xf]
      %v545 = vld [vmem:[%s477 + $0x18] sm:$0xf]
      %v546 = vld [vmem:[%s477 + $0x1c] sm:$0xf]
      %v547 = vld [vmem:[%s477 + $0x20] sm:$0xf]
      %v548 = vld [vmem:[%s477 + $0x24] sm:$0xf]
      %v549 = vld [vmem:[%s477 + $0x28] sm:$0xf]
      %v550 = vld [vmem:[%s477 + $0x2c] sm:$0xf]
      %v551 = vld [vmem:[%s477 + $0x30] sm:$0xf]
      %v552 = vld [vmem:[%s477 + $0x34] sm:$0xf]
      %v553 = vld [vmem:[%s477 + $0x38] sm:$0xf]
      %v554 = vld [vmem:[%s477 + $0x3c] sm:$0xf]
      %v555 = vunpack.c.l.bf16 %v539
      %v556 = vunpack.c.l.bf16 %v540
      %v557 = vunpack.c.l.bf16 %v541
      %v558 = vunpack.c.l.bf16 %v542
      %v559 = vunpack.c.l.bf16 %v543
      %v560 = vunpack.c.l.bf16 %v544
      %v561 = vunpack.c.l.bf16 %v545
      %v562 = vunpack.c.l.bf16 %v546
      %v563 = vunpack.c.l.bf16 %v547
      %v564 = vunpack.c.l.bf16 %v548
      %v565 = vunpack.c.l.bf16 %v549
      %v566 = vunpack.c.l.bf16 %v550
      %v567 = vunpack.c.l.bf16 %v551
      %v568 = vunpack.c.l.bf16 %v552
      %v569 = vunpack.c.l.bf16 %v553
      %v570 = vunpack.c.l.bf16 %v554
      %v571 = vld [vmem:[%s5] sm:$0x1]
      %v573 = vlaneseq
      %v574 = vshrl.u32 %v573, 7
      %v575 = vsub.s32 0, %v574
      %v576 = vrot.slane %v571, %v575
      %v578 = vmul.f32 %v555, %v576
      %v579 = vmul.f32 %v556, %v576
      %v580 = vmul.f32 %v557, %v576
      %v581 = vmul.f32 %v558, %v576
      %v582 = vmul.f32 %v559, %v576
      %v583 = vmul.f32 %v560, %v576
      %v584 = vmul.f32 %v561, %v576
      %v585 = vmul.f32 %v562, %v576
      %v586 = vmul.f32 %v563, %v576
      %v587 = vmul.f32 %v564, %v576
      %v588 = vmul.f32 %v565, %v576
      %v589 = vmul.f32 %v566, %v576
      %v590 = vmul.f32 %v567, %v576
      %v591 = vmul.f32 %v568, %v576
      %v592 = vmul.f32 %v569, %v576
      %v593 = vmul.f32 %v570, %v576
      %v594 = vld [vmem:[%s6] sm:$0x1]
      %v596 = vlaneseq
      %v597 = vshrl.u32 %v596, 7
      %v598 = vsub.s32 0, %v597
      %v599 = vrot.slane %v594, %v598
      %v601 = vadd.f32 %v578, %v599
      %v602 = vadd.f32 %v579, %v599
      %v603 = vadd.f32 %v580, %v599
      %v604 = vadd.f32 %v581, %v599
      %v605 = vadd.f32 %v582, %v599
      %v606 = vadd.f32 %v583, %v599
      %v607 = vadd.f32 %v584, %v599
      %v608 = vadd.f32 %v585, %v599
      %v609 = vadd.f32 %v586, %v599
      %v610 = vadd.f32 %v587, %v599
      %v611 = vadd.f32 %v588, %v599
      %v612 = vadd.f32 %v589, %v599
      %v613 = vadd.f32 %v590, %v599
      %v614 = vadd.f32 %v591, %v599
      %v615 = vadd.f32 %v592, %v599
      %v616 = vadd.f32 %v593, %v599
      %v617 = vmax.f32 %v601, 0.0
      %v618 = vmax.f32 %v602, 0.0
      %v619 = vmax.f32 %v603, 0.0
      %v620 = vmax.f32 %v604, 0.0
      %v621 = vmax.f32 %v605, 0.0
      %v622 = vmax.f32 %v606, 0.0
      %v623 = vmax.f32 %v607, 0.0
      %v624 = vmax.f32 %v608, 0.0
      %v625 = vmax.f32 %v609, 0.0
      %v626 = vmax.f32 %v610, 0.0
      %v627 = vmax.f32 %v611, 0.0
      %v628 = vmax.f32 %v612, 0.0
      %v629 = vmax.f32 %v613, 0.0
      %v630 = vmax.f32 %v614, 0.0
      %v631 = vmax.f32 %v615, 0.0
      %v632 = vmax.f32 %v616, 0.0
      %v633 = vpack.c.bf16 %v618, %v617
      %v634 = vpack.c.bf16 %v620, %v619
      %v635 = vpack.c.bf16 %v622, %v621
      %v636 = vpack.c.bf16 %v624, %v623
      %v637 = vpack.c.bf16 %v626, %v625
      %v638 = vpack.c.bf16 %v628, %v627
      %v639 = vpack.c.bf16 %v630, %v629
      %v640 = vpack.c.bf16 %v632, %v631
      %v641 = vld [vmem:[%s491] sm:$0xf]
      %v642 = vld [vmem:[%s491 + $0x4] sm:$0xf]
      %v643 = vunpack.c.l.bf16 %v641
      %v644 = vunpack.c.l.bf16 %v642
      %v645 = vmul.f32 %v643, %v576
      %v646 = vmul.f32 %v644, %v576
      %v647 = vadd.f32 %v645, %v599
      %v648 = vadd.f32 %v646, %v599
      %v649 = vmax.f32 %v647, 0.0
      %v650 = vmax.f32 %v648, 0.0
      %v651 = vpack.c.bf16 %v650, %v649
      %v652 = vld [vmem:[%s508] sm:$0xf]
      %v653 = vld [vmem:[%s508 + $0x4] sm:$0xf]
      %v654 = vunpack.c.l.bf16 %v652
      %v655 = vunpack.c.l.bf16 %v653
      %v656 = vmul.f32 %v654, %v576
      %v657 = vmul.f32 %v655, %v576
      %v658 = vadd.f32 %v656, %v599
      %v659 = vadd.f32 %v657, %v599
      %v660 = vmax.f32 %v658, 0.0
      %v661 = vmax.f32 %v659, 0.0
      %v662 = vpack.c.bf16 %v661, %v660
      %vm663 = vcmask 1040384
      %vm664 = vsmask.f32 256
      %vm665 = vmand %vm663, %vm664
      %v666 = vld [vmem:[#allocation2] sm:$0x1]
      %v667 = vsel %vm665, 0, %v666
      %668 = vst [vmem:[#allocation2] sm:$0x1] %v667
      %v669 = vld [vmem:[#allocation2 + $0xc] sm:$0x1]
      %v670 = vsel %vm665, 0, %v669
      %671 = vst [vmem:[#allocation2 + $0xc] sm:$0x1] %v670
      %v672 = vld [vmem:[#allocation2 + $0x18] sm:$0x1]
      %v673 = vsel %vm665, 0, %v672
      %674 = vst [vmem:[#allocation2 + $0x18] sm:$0x1] %v673
      %v675 = vld [vmem:[#allocation2 + $0x24] sm:$0x1]
      %v676 = vsel %vm665, 0, %v675
      %677 = vst [vmem:[#allocation2 + $0x24] sm:$0x1] %v676
      %v678 = vld [vmem:[#allocation2 + $0x30] sm:$0x1]
      %v679 = vsel %vm665, 0, %v678
      %680 = vst [vmem:[#allocation2 + $0x30] sm:$0x1] %v679
      %v681 = vld [vmem:[#allocation2 + $0x3c] sm:$0x1]
      %v682 = vsel %vm665, 0, %v681
      %683 = vst [vmem:[#allocation2 + $0x3c] sm:$0x1] %v682
      %v684 = vld [vmem:[#allocation2 + $0x48] sm:$0x1]
      %v685 = vsel %vm665, 0, %v684
      %686 = vst [vmem:[#allocation2 + $0x48] sm:$0x1] %v685
      %v687 = vld [vmem:[#allocation2 + $0x54] sm:$0x1]
      %v688 = vsel %vm665, 0, %v687
      %689 = vst [vmem:[#allocation2 + $0x54] sm:$0x1] %v688
      %v690 = vld [vmem:[#allocation2 + $0x60] sm:$0x1]
      %v691 = vsel %vm665, 0, %v690
      %692 = vst [vmem:[#allocation2 + $0x60] sm:$0x1] %v691
      %v693 = vld [vmem:[#allocation2 + $0x6c] sm:$0x1]
      %v694 = vsel %vm665, 0, %v693
      %695 = vst [vmem:[#allocation2 + $0x6c] sm:$0x1] %v694
      %vm696 = vsmask.f32 7938
      %vm697 = vmand %vm663, %vm696
      %v698 = vld [vmem:[#allocation2 + $0x8] sm:$0x1]
      %v699 = vsel %vm697, 0, %v698
      %700 = vst [vmem:[#allocation2 + $0x8] sm:$0x1] %v699
      %v701 = vld [vmem:[#allocation2 + $0x14] sm:$0x1]
      %v702 = vsel %vm697, 0, %v701
      %703 = vst [vmem:[#allocation2 + $0x14] sm:$0x1] %v702
      %v704 = vld [vmem:[#allocation2 + $0x20] sm:$0x1]
      %v705 = vsel %vm697, 0, %v704
      %706 = vst [vmem:[#allocation2 + $0x20] sm:$0x1] %v705
      %v707 = vld [vmem:[#allocation2 + $0x2c] sm:$0x1]
      %v708 = vsel %vm697, 0, %v707
      %709 = vst [vmem:[#allocation2 + $0x2c] sm:$0x1] %v708
      %v710 = vld [vmem:[#allocation2 + $0x38] sm:$0x1]
      %v711 = vsel %vm697, 0, %v710
      %712 = vst [vmem:[#allocation2 + $0x38] sm:$0x1] %v711
      %v713 = vld [vmem:[#allocation2 + $0x44] sm:$0x1]
      %v714 = vsel %vm697, 0, %v713
      %715 = vst [vmem:[#allocation2 + $0x44] sm:$0x1] %v714
      %v716 = vld [vmem:[#allocation2 + $0x50] sm:$0x1]
      %v717 = vsel %vm697, 0, %v716
      %718 = vst [vmem:[#allocation2 + $0x50] sm:$0x1] %v717
      %v719 = vld [vmem:[#allocation2 + $0x5c] sm:$0x1]
      %v720 = vsel %vm697, 0, %v719
      %721 = vst [vmem:[#allocation2 + $0x5c] sm:$0x1] %v720
      %v722 = vld [vmem:[#allocation2 + $0x68] sm:$0x1]
      %v723 = vsel %vm697, 0, %v722
      %724 = vst [vmem:[#allocation2 + $0x68] sm:$0x1] %v723
      %v725 = vld [vmem:[#allocation2 + $0x74] sm:$0x1]
      %v726 = vsel %vm697, 0, %v725
      %727 = vst [vmem:[#allocation2 + $0x74] sm:$0x1] %v726
      %v736 = vunpack.c.l.b16 %v633
      %v737 = vunpack.c.h.b16 %v633
      %v738 = vunpack.c.l.b16 %v634
      %v739 = vunpack.c.h.b16 %v634
      %v740 = vunpack.c.l.b16 %v635
      %v741 = vunpack.c.h.b16 %v635
      %v742 = vunpack.c.l.b16 %v636
      %v743 = vunpack.c.h.b16 %v636
      %v744 = vunpack.c.l.b16 %v637
      %v745 = vunpack.c.h.b16 %v637
      %v746 = vunpack.c.l.b16 %v638
      %v747 = vunpack.c.h.b16 %v638
      %v748 = vunpack.c.l.b16 %v639
      %v749 = vunpack.c.h.b16 %v639
      %v750 = vunpack.c.l.b16 %v640
      %v751 = vunpack.c.h.b16 %v640
      %v752 = vpack.c.b16 %v736, %v736
      %v753 = vpack.c.b16 %v737, %v737
      %v754 = vpack.c.b16 %v738, %v738
      %v755 = vpack.c.b16 %v739, %v739
      %v756 = vpack.c.b16 %v740, %v740
      %v757 = vpack.c.b16 %v741, %v741
      %v758 = vpack.c.b16 %v742, %v742
      %v759 = vpack.c.b16 %v743, %v743
      %v760 = vpack.c.b16 %v744, %v744
      %v761 = vpack.c.b16 %v745, %v745
      %v762 = vpack.c.b16 %v746, %v746
      %v763 = vpack.c.b16 %v747, %v747
      %v764 = vpack.c.b16 %v748, %v748
      %v765 = vpack.c.b16 %v749, %v749
      %v766 = vpack.c.b16 %v750, %v750
      %v767 = vpack.c.b16 %v751, %v751
      %vm768 = vsmask.f32 4368
      %vm769 = vmor %vm664, %vm768
      %v771 = vshrl.u32 %v752, 16
      %v773 = vrot.slane %v771, 7
      %v774 = vshll.u32 %v752, 16
      %v776 = vor.u32 %v773, %v774
      %v777 = vrot.slane %v773, 4
      %v779 = vshrl.u32 %v753, 16
      %v781 = vrot.slane %v779, 7
      %v782 = vshll.u32 %v753, 16
      %v784 = vor.u32 %v781, %v782
      %v785 = vsel %vm769, %v777, %v784
      %v786 = vrot.slane %v781, 4
      %v788 = vshrl.u32 %v754, 16
      %v790 = vrot.slane %v788, 7
      %v791 = vshll.u32 %v754, 16
      %v793 = vor.u32 %v790, %v791
      %v794 = vrot.slane %v790, 4
      %v796 = vshrl.u32 %v755, 16
      %v798 = vrot.slane %v796, 7
      %v799 = vshll.u32 %v755, 16
      %v801 = vor.u32 %v798, %v799
      %v802 = vsel %vm769, %v794, %v801
      %v803 = vrot.slane %v798, 4
      %v805 = vshrl.u32 %v756, 16
      %v807 = vrot.slane %v805, 7
      %v808 = vshll.u32 %v756, 16
      %v810 = vor.u32 %v807, %v808
      %v811 = vrot.slane %v807, 4
      %v813 = vshrl.u32 %v757, 16
      %v815 = vrot.slane %v813, 7
      %v816 = vshll.u32 %v757, 16
      %v818 = vor.u32 %v815, %v816
      %v819 = vsel %vm769, %v811, %v818
      %v820 = vrot.slane %v815, 4
      %v822 = vshrl.u32 %v758, 16
      %v824 = vrot.slane %v822, 7
      %v825 = vshll.u32 %v758, 16
      %v827 = vor.u32 %v824, %v825
      %v828 = vrot.slane %v824, 4
      %v830 = vshrl.u32 %v759, 16
      %v832 = vrot.slane %v830, 7
      %v833 = vshll.u32 %v759, 16
      %v835 = vor.u32 %v832, %v833
      %v836 = vsel %vm769, %v828, %v835
      %v837 = vrot.slane %v832, 4
      %v839 = vshrl.u32 %v760, 16
      %v841 = vrot.slane %v839, 7
      %v842 = vshll.u32 %v760, 16
      %v844 = vor.u32 %v841, %v842
      %v845 = vrot.slane %v841, 4
      %v847 = vshrl.u32 %v761, 16
      %v849 = vrot.slane %v847, 7
      %v850 = vshll.u32 %v761, 16
      %v852 = vor.u32 %v849, %v850
      %v853 = vsel %vm769, %v845, %v852
      %v854 = vrot.slane %v849, 4
      %v856 = vshrl.u32 %v762, 16
      %v858 = vrot.slane %v856, 7
      %v859 = vshll.u32 %v762, 16
      %v861 = vor.u32 %v858, %v859
      %v862 = vrot.slane %v858, 4
      %v864 = vshrl.u32 %v763, 16
      %v866 = vrot.slane %v864, 7
      %v867 = vshll.u32 %v763, 16
      %v869 = vor.u32 %v866, %v867
      %v870 = vsel %vm769, %v862, %v869
      %v871 = vrot.slane %v866, 4
      %v873 = vshrl.u32 %v764, 16
      %v875 = vrot.slane %v873, 7
      %v876 = vshll.u32 %v764, 16
      %v878 = vor.u32 %v875, %v876
      %v879 = vrot.slane %v875, 4
      %v881 = vshrl.u32 %v765, 16
      %v883 = vrot.slane %v881, 7
      %v884 = vshll.u32 %v765, 16
      %v886 = vor.u32 %v883, %v884
      %v887 = vsel %vm769, %v879, %v886
      %v888 = vrot.slane %v883, 4
      %v890 = vshrl.u32 %v766, 16
      %v892 = vrot.slane %v890, 7
      %v893 = vshll.u32 %v766, 16
      %v895 = vor.u32 %v892, %v893
      %v896 = vrot.slane %v892, 4
      %v898 = vshrl.u32 %v767, 16
      %v900 = vrot.slane %v898, 7
      %v901 = vshll.u32 %v767, 16
      %v903 = vor.u32 %v900, %v901
      %v904 = vsel %vm769, %v896, %v903
      %v905 = vrot.slane %v900, 4
      %s930 = scalar_lea.vmem [#allocation2], 12
      %vm931 = vcmask 1043456
      %vm932 = vmand %vm931, %vm696
      %v933 = vld [vmem:[%s930] sm:$0xf]
      %v934 = vsel %vm932, %v776, %v933
      %935 = vst [vmem:[%s930] sm:$0xf] %v934
      %936 = vst [vmem:[%s930 + $0x4] sm:$0xf] %v785
      %v937 = vld [vmem:[%s930 + $0x8] sm:$0x1]
      %v938 = vsel %vm665, %v786, %v937
      %939 = vst [vmem:[%s930 + $0x8] sm:$0x1] %v938
      %v940 = vld [vmem:[%s930 + $0xc] sm:$0xf]
      %v941 = vsel %vm932, %v793, %v940
      %942 = vst [vmem:[%s930 + $0xc] sm:$0xf] %v941
      %943 = vst [vmem:[%s930 + $0x10] sm:$0xf] %v802
      %v944 = vld [vmem:[%s930 + $0x14] sm:$0x1]
      %v945 = vsel %vm665, %v803, %v944
      %946 = vst [vmem:[%s930 + $0x14] sm:$0x1] %v945
      %v947 = vld [vmem:[%s930 + $0x18] sm:$0xf]
      %v948 = vsel %vm932, %v810, %v947
      %949 = vst [vmem:[%s930 + $0x18] sm:$0xf] %v948
      %950 = vst [vmem:[%s930 + $0x1c] sm:$0xf] %v819
      %v951 = vld [vmem:[%s930 + $0x20] sm:$0x1]
      %v952 = vsel %vm665, %v820, %v951
      %953 = vst [vmem:[%s930 + $0x20] sm:$0x1] %v952
      %v954 = vld [vmem:[%s930 + $0x24] sm:$0xf]
      %v955 = vsel %vm932, %v827, %v954
      %956 = vst [vmem:[%s930 + $0x24] sm:$0xf] %v955
      %957 = vst [vmem:[%s930 + $0x28] sm:$0xf] %v836
      %v958 = vld [vmem:[%s930 + $0x2c] sm:$0x1]
      %v959 = vsel %vm665, %v837, %v958
      %960 = vst [vmem:[%s930 + $0x2c] sm:$0x1] %v959
      %v961 = vld [vmem:[%s930 + $0x30] sm:$0xf]
      %v962 = vsel %vm932, %v844, %v961
      %963 = vst [vmem:[%s930 + $0x30] sm:$0xf] %v962
      %964 = vst [vmem:[%s930 + $0x34] sm:$0xf] %v853
      %v965 = vld [vmem:[%s930 + $0x38] sm:$0x1]
      %v966 = vsel %vm665, %v854, %v965
      %967 = vst [vmem:[%s930 + $0x38] sm:$0x1] %v966
      %v968 = vld [vmem:[%s930 + $0x3c] sm:$0xf]
      %v969 = vsel %vm932, %v861, %v968
      %970 = vst [vmem:[%s930 + $0x3c] sm:$0xf] %v969
      %971 = vst [vmem:[%s930 + $0x40] sm:$0xf] %v870
      %v972 = vld [vmem:[%s930 + $0x44] sm:$0x1]
      %v973 = vsel %vm665, %v871, %v972
      %974 = vst [vmem:[%s930 + $0x44] sm:$0x1] %v973
      %v975 = vld [vmem:[%s930 + $0x48] sm:$0xf]
      %v976 = vsel %vm932, %v878, %v975
      %977 = vst [vmem:[%s930 + $0x48] sm:$0xf] %v976
      %978 = vst [vmem:[%s930 + $0x4c] sm:$0xf] %v887
      %v979 = vld [vmem:[%s930 + $0x50] sm:$0x1]
      %v980 = vsel %vm665, %v888, %v979
      %981 = vst [vmem:[%s930 + $0x50] sm:$0x1] %v980
      %v982 = vld [vmem:[%s930 + $0x54] sm:$0xf]
      %v983 = vsel %vm932, %v895, %v982
      %984 = vst [vmem:[%s930 + $0x54] sm:$0xf] %v983
      %985 = vst [vmem:[%s930 + $0x58] sm:$0xf] %v904
      %v986 = vld [vmem:[%s930 + $0x5c] sm:$0x1]
      %v987 = vsel %vm665, %v905, %v986
      %988 = vst [vmem:[%s930 + $0x5c] sm:$0x1] %v987
      %p989 = scmp.gt.s32.totalorder %s26, 0
      // Predicated region
      $region49: #{double_conv.4} parent=47 // pred_check
        %p990 = pneg %p989
      $region50: #{double_conv.4} parent=47 // pred_check_branch
        %992 = sbr.rel (%p990) target = $region52
      $region51: #{double_conv.4} parent=47 // pred_region
        %v994 = vunpack.c.l.b16 %v651
        %v995 = vunpack.c.h.b16 %v651
        %v996 = vpack.c.b16 %v994, %v994
        %v997 = vpack.c.b16 %v995, %v995
        %v999 = vshrl.u32 %v996, 16
        %v1001 = vrot.slane %v999, 7
        %v1002 = vshll.u32 %v996, 16
        %v1004 = vor.u32 %v1001, %v1002
        %v1005 = vrot.slane %v1001, 4
        %v1007 = vshrl.u32 %v997, 16
        %v1009 = vrot.slane %v1007, 7
        %v1010 = vshll.u32 %v997, 16
        %v1012 = vor.u32 %v1009, %v1010
        %v1013 = vsel %vm769, %v1005, %v1012
        %v1014 = vrot.slane %v1009, 4
        %v1018 = vld [vmem:[#allocation2] sm:$0xf]
        %v1019 = vsel %vm932, %v1004, %v1018
        %1020 = vst [vmem:[#allocation2] sm:$0xf] %v1019
        %1021 = vst [vmem:[#allocation2 + $0x4] sm:$0xf] %v1013
        %v1022 = vld [vmem:[#allocation2 + $0x8] sm:$0x1]
        %v1023 = vsel %vm665, %v1014, %v1022
        %1024 = vst [vmem:[#allocation2 + $0x8] sm:$0x1] %v1023
      $region52: #{double_conv.4} parent=47 // pred_fallthru
        _
      %p1025 = scmp.eq.s32.totalorder %s26, 0
      // Predicated region
      $region53: #{double_conv.4} parent=47 // pred_check
        %p1026 = pneg %p1025
      $region54: #{double_conv.4} parent=47 // pred_check_branch
        %1028 = sbr.rel (%p1026) target = $region56
      $region55: #{double_conv.4} parent=47 // pred_region
        %v1029 = vld [vmem:[#allocation2] sm:$0xf]
        %v1030 = vsel %vm932, 0, %v1029
        %1031 = vst [vmem:[#allocation2] sm:$0xf] %v1030
        %1032 = vst [vmem:[#allocation2 + $0x4] sm:$0xf] 0
        %v1033 = vld [vmem:[#allocation2 + $0x8] sm:$0x1]
        %v1034 = vsel %vm665, 0, %v1033
        %1035 = vst [vmem:[#allocation2 + $0x8] sm:$0x1] %v1034
      $region56: #{double_conv.4} parent=47 // pred_fallthru
        _
      %p1036 = scmp.lt.s32.totalorder %s26, 1
      // Predicated region
      $region57: #{double_conv.4} parent=47 // pred_check
        %p1037 = pneg %p1036
      $region58: #{double_conv.4} parent=47 // pred_check_branch
        %1039 = sbr.rel (%p1037) target = $region60
      $region59: #{double_conv.4} parent=47 // pred_region
        %v1041 = vunpack.c.l.b16 %v662
        %v1042 = vunpack.c.h.b16 %v662
        %v1043 = vpack.c.b16 %v1041, %v1041
        %v1044 = vpack.c.b16 %v1042, %v1042
        %v1046 = vshrl.u32 %v1043, 16
        %v1048 = vrot.slane %v1046, 7
        %v1049 = vshll.u32 %v1043, 16
        %v1051 = vor.u32 %v1048, %v1049
        %v1052 = vrot.slane %v1048, 4
        %v1054 = vshrl.u32 %v1044, 16
        %v1056 = vrot.slane %v1054, 7
        %v1057 = vshll.u32 %v1044, 16
        %v1059 = vor.u32 %v1056, %v1057
        %v1060 = vsel %vm769, %v1052, %v1059
        %v1061 = vrot.slane %v1056, 4
        %s1065 = scalar_lea.vmem [#allocation2], 108
        %v1066 = vld [vmem:[%s1065] sm:$0xf]
        %v1067 = vsel %vm932, %v1051, %v1066
        %1068 = vst [vmem:[%s1065] sm:$0xf] %v1067
        %1069 = vst [vmem:[%s1065 + $0x4] sm:$0xf] %v1060
        %v1070 = vld [vmem:[%s1065 + $0x8] sm:$0x1]
        %v1071 = vsel %vm665, %v1061, %v1070
        %1072 = vst [vmem:[%s1065 + $0x8] sm:$0x1] %v1071
      $region60: #{double_conv.4} parent=47 // pred_fallthru
        _
      %p1073 = scmp.eq.s32.totalorder %s26, 1
      // Predicated region
      $region61: #{double_conv.4} parent=47 // pred_check
        %p1074 = pneg %p1073
      $region62: #{double_conv.4} parent=47 // pred_check_branch
        %1076 = sbr.rel (%p1074) target = $region64
      $region63: #{double_conv.4} parent=47 // pred_region
        %s1077 = scalar_lea.vmem [#allocation2], 108
        %v1078 = vld [vmem:[%s1077] sm:$0xf]
        %v1079 = vsel %vm932, 0, %v1078
        %1080 = vst [vmem:[%s1077] sm:$0xf] %v1079
        %1081 = vst [vmem:[%s1077 + $0x4] sm:$0xf] 0
        %v1082 = vld [vmem:[%s1077 + $0x8] sm:$0x1]
        %v1083 = vsel %vm665, 0, %v1082
        %1084 = vst [vmem:[%s1077 + $0x8] sm:$0x1] %v1083
      $region64: #{double_conv.4} parent=47 // pred_fallthru
        _
      %v1085 = vld [vmem:[#allocation2] sm:$0xf]
      %v1086 = vld [vmem:[#allocation2 + $0x4] sm:$0xf]
      %v1087 = vld [vmem:[#allocation2 + $0xc] sm:$0xf]
      %v1088 = vld [vmem:[#allocation2 + $0x10] sm:$0xf]
      %v1089 = vld [vmem:[#allocation2 + $0x18] sm:$0xf]
      %v1090 = vld [vmem:[#allocation2 + $0x1c] sm:$0xf]
      %v1091 = vld [vmem:[#allocation2 + $0x24] sm:$0xf]
      %v1092 = vld [vmem:[#allocation2 + $0x28] sm:$0xf]
      %v1093 = vld [vmem:[#allocation2 + $0x30] sm:$0xf]
      %v1094 = vld [vmem:[#allocation2 + $0x34] sm:$0xf]
      %v1095 = vld [vmem:[#allocation2 + $0x3c] sm:$0xf]
      %v1096 = vld [vmem:[#allocation2 + $0x40] sm:$0xf]
      %v1097 = vld [vmem:[#allocation2 + $0x48] sm:$0xf]
      %v1098 = vld [vmem:[#allocation2 + $0x4c] sm:$0xf]
      %v1099 = vld [vmem:[#allocation2 + $0x54] sm:$0xf]
      %v1100 = vld [vmem:[#allocation2 + $0x58] sm:$0xf]
      %1101 = vst [vmem:[#allocation3] sm:$0xf] %v1085
      %1102 = vst [vmem:[#allocation3 + $0x24] sm:$0xf] %v1086
      %1103 = vst [vmem:[#allocation3 + $0x48] sm:$0xf] %v1087
      %1104 = vst [vmem:[#allocation3 + $0x6c] sm:$0xf] %v1088
      %1105 = vst [vmem:[#allocation3 + $0x90] sm:$0xf] %v1089
      %1106 = vst [vmem:[#allocation3 + $0xb4] sm:$0xf] %v1090
      %1107 = vst [vmem:[#allocation3 + $0xd8] sm:$0xf] %v1091
      %1108 = vst [vmem:[#allocation3 + $0xfc] sm:$0xf] %v1092
      %1109 = vst [vmem:[#allocation3 + $0x120] sm:$0xf] %v1093
      %1110 = vst [vmem:[#allocation3 + $0x144] sm:$0xf] %v1094
      %1111 = vst [vmem:[#allocation3 + $0x168] sm:$0xf] %v1095
      %1112 = vst [vmem:[#allocation3 + $0x18c] sm:$0xf] %v1096
      %1113 = vst [vmem:[#allocation3 + $0x1b0] sm:$0xf] %v1097
      %1114 = vst [vmem:[#allocation3 + $0x1d4] sm:$0xf] %v1098
      %1115 = vst [vmem:[#allocation3 + $0x1f8] sm:$0xf] %v1099
      %1116 = vst [vmem:[#allocation3 + $0x21c] sm:$0xf] %v1100
      %v1117 = vld [vmem:[#allocation2] sm:$0xf]
      %v1118 = vld [vmem:[#allocation2 + $0x4] sm:$0xf]
      %v1119 = vld [vmem:[#allocation2 + $0x8] sm:$0x1]
      %v1120 = vld [vmem:[#allocation2 + $0xc] sm:$0xf]
      %v1121 = vld [vmem:[#allocation2 + $0x10] sm:$0xf]
      %v1122 = vld [vmem:[#allocation2 + $0x14] sm:$0x1]
      %v1123 = vld [vmem:[#allocation2 + $0x18] sm:$0xf]
      %v1124 = vld [vmem:[#allocation2 + $0x1c] sm:$0xf]
      %v1125 = vld [vmem:[#allocation2 + $0x20] sm:$0x1]
      %v1126 = vld [vmem:[#allocation2 + $0x24] sm:$0xf]
      %v1127 = vld [vmem:[#allocation2 + $0x28] sm:$0xf]
      %v1128 = vld [vmem:[#allocation2 + $0x2c] sm:$0x1]
      %v1129 = vld [vmem:[#allocation2 + $0x30] sm:$0xf]
      %v1130 = vld [vmem:[#allocation2 + $0x34] sm:$0xf]
      %v1131 = vld [vmem:[#allocation2 + $0x38] sm:$0x1]
      %v1132 = vld [vmem:[#allocation2 + $0x3c] sm:$0xf]
      %v1133 = vld [vmem:[#allocation2 + $0x40] sm:$0xf]
      %v1134 = vld [vmem:[#allocation2 + $0x44] sm:$0x1]
      %v1135 = vld [vmem:[#allocation2 + $0x48] sm:$0xf]
      %v1136 = vld [vmem:[#allocation2 + $0x4c] sm:$0xf]
      %v1137 = vld [vmem:[#allocation2 + $0x50] sm:$0x1]
      %v1138 = vld [vmem:[#allocation2 + $0x54] sm:$0xf]
      %v1139 = vld [vmem:[#allocation2 + $0x58] sm:$0xf]
      %v1140 = vld [vmem:[#allocation2 + $0x5c] sm:$0x1]
      %vm1141 = vsmask.f32 3328
      %vm1142 = vsmask.f32 7440
      %vm1143 = vmor %vm1141, %vm1142
      %v1145 = vshrl.u32 %v1117, 16
      %v1147 = vrot.slane %v1145, 4
      %v1148 = vshll.u32 %v1117, 16
      %v1150 = vrot.slane %v1148, 5
      %v1151 = vor.u32 %v1147, %v1150
      %v1152 = vrot.slane %v1151, 4
      %v1154 = vshll.u32 %v1118, 16
      %v1156 = vrot.slane %v1154, 5
      %v1157 = vsel %vm1143, %v1152, %v1156
      %v1158 = vshrl.u32 %v1118, 16
      %v1160 = vrot.slane %v1158, 4
      %v1161 = vor.u32 %v1160, %v1156
      %v1162 = vrot.slane %v1161, 4
      %v1164 = vshll.u32 %v1119, 16
      %v1166 = vrot.slane %v1164, 5
      %v1167 = vsel %vm1143, %v1162, %v1166
      %v1169 = vshrl.u32 %v1120, 16
      %v1171 = vrot.slane %v1169, 4
      %v1172 = vshll.u32 %v1120, 16
      %v1174 = vrot.slane %v1172, 5
      %v1175 = vor.u32 %v1171, %v1174
      %v1176 = vrot.slane %v1175, 4
      %v1178 = vshll.u32 %v1121, 16
      %v1180 = vrot.slane %v1178, 5
      %v1181 = vsel %vm1143, %v1176, %v1180
      %v1182 = vshrl.u32 %v1121, 16
      %v1184 = vrot.slane %v1182, 4
      %v1185 = vor.u32 %v1184, %v1180
      %v1186 = vrot.slane %v1185, 4
      %v1188 = vshll.u32 %v1122, 16
      %v1190 = vrot.slane %v1188, 5
      %v1191 = vsel %vm1143, %v1186, %v1190
      %v1193 = vshrl.u32 %v1123, 16
      %v1195 = vrot.slane %v1193, 4
      %v1196 = vshll.u32 %v1123, 16
      %v1198 = vrot.slane %v1196, 5
      %v1199 = vor.u32 %v1195, %v1198
      %v1200 = vrot.slane %v1199, 4
      %v1202 = vshll.u32 %v1124, 16
      %v1204 = vrot.slane %v1202, 5
      %v1205 = vsel %vm1143, %v1200, %v1204
      %v1206 = vshrl.u32 %v1124, 16
      %v1208 = vrot.slane %v1206, 4
      %v1209 = vor.u32 %v1208, %v1204
      %v1210 = vrot.slane %v1209, 4
      %v1212 = vshll.u32 %v1125, 16
      %v1214 = vrot.slane %v1212, 5
      %v1215 = vsel %vm1143, %v1210, %v1214
      %v1217 = vshrl.u32 %v1126, 16
      %v1219 = vrot.slane %v1217, 4
      %v1220 = vshll.u32 %v1126, 16
      %v1222 = vrot.slane %v1220, 5
      %v1223 = vor.u32 %v1219, %v1222
      %v1224 = vrot.slane %v1223, 4
      %v1226 = vshll.u32 %v1127, 16
      %v1228 = vrot.slane %v1226, 5
      %v1229 = vsel %vm1143, %v1224, %v1228
      %v1230 = vshrl.u32 %v1127, 16
      %v1232 = vrot.slane %v1230, 4
      %v1233 = vor.u32 %v1232, %v1228
      %v1234 = vrot.slane %v1233, 4
      %v1236 = vshll.u32 %v1128, 16
      %v1238 = vrot.slane %v1236, 5
      %v1239 = vsel %vm1143, %v1234, %v1238
      %v1241 = vshrl.u32 %v1129, 16
      %v1243 = vrot.slane %v1241, 4
      %v1244 = vshll.u32 %v1129, 16
      %v1246 = vrot.slane %v1244, 5
      %v1247 = vor.u32 %v1243, %v1246
      %v1248 = vrot.slane %v1247, 4
      %v1250 = vshll.u32 %v1130, 16
      %v1252 = vrot.slane %v1250, 5
      %v1253 = vsel %vm1143, %v1248, %v1252
      %v1254 = vshrl.u32 %v1130, 16
      %v1256 = vrot.slane %v1254, 4
      %v1257 = vor.u32 %v1256, %v1252
      %v1258 = vrot.slane %v1257, 4
      %v1260 = vshll.u32 %v1131, 16
      %v1262 = vrot.slane %v1260, 5
      %v1263 = vsel %vm1143, %v1258, %v1262
      %v1265 = vshrl.u32 %v1132, 16
      %v1267 = vrot.slane %v1265, 4
      %v1268 = vshll.u32 %v1132, 16
      %v1270 = vrot.slane %v1268, 5
      %v1271 = vor.u32 %v1267, %v1270
      %v1272 = vrot.slane %v1271, 4
      %v1274 = vshll.u32 %v1133, 16
      %v1276 = vrot.slane %v1274, 5
      %v1277 = vsel %vm1143, %v1272, %v1276
      %v1278 = vshrl.u32 %v1133, 16
      %v1280 = vrot.slane %v1278, 4
      %v1281 = vor.u32 %v1280, %v1276
      %v1282 = vrot.slane %v1281, 4
      %v1284 = vshll.u32 %v1134, 16
      %v1286 = vrot.slane %v1284, 5
      %v1287 = vsel %vm1143, %v1282, %v1286
      %v1289 = vshrl.u32 %v1135, 16
      %v1291 = vrot.slane %v1289, 4
      %v1292 = vshll.u32 %v1135, 16
      %v1294 = vrot.slane %v1292, 5
      %v1295 = vor.u32 %v1291, %v1294
      %v1296 = vrot.slane %v1295, 4
      %v1298 = vshll.u32 %v1136, 16
      %v1300 = vrot.slane %v1298, 5
      %v1301 = vsel %vm1143, %v1296, %v1300
      %v1302 = vshrl.u32 %v1136, 16
      %v1304 = vrot.slane %v1302, 4
      %v1305 = vor.u32 %v1304, %v1300
      %v1306 = vrot.slane %v1305, 4
      %v1308 = vshll.u32 %v1137, 16
      %v1310 = vrot.slane %v1308, 5
      %v1311 = vsel %vm1143, %v1306, %v1310
      %v1313 = vshrl.u32 %v1138, 16
      %v1315 = vrot.slane %v1313, 4
      %v1316 = vshll.u32 %v1138, 16
      %v1318 = vrot.slane %v1316, 5
      %v1319 = vor.u32 %v1315, %v1318
      %v1320 = vrot.slane %v1319, 4
      %v1322 = vshll.u32 %v1139, 16
      %v1324 = vrot.slane %v1322, 5
      %v1325 = vsel %vm1143, %v1320, %v1324
      %v1326 = vshrl.u32 %v1139, 16
      %v1328 = vrot.slane %v1326, 4
      %v1329 = vor.u32 %v1328, %v1324
      %v1330 = vrot.slane %v1329, 4
      %v1332 = vshll.u32 %v1140, 16
      %v1334 = vrot.slane %v1332, 5
      %v1335 = vsel %vm1143, %v1330, %v1334
      %1352 = vst [vmem:[#allocation3 + $0x4] sm:$0xf] %v1157
      %1353 = vst [vmem:[#allocation3 + $0x28] sm:$0xf] %v1167
      %1354 = vst [vmem:[#allocation3 + $0x4c] sm:$0xf] %v1181
      %1355 = vst [vmem:[#allocation3 + $0x70] sm:$0xf] %v1191
      %1356 = vst [vmem:[#allocation3 + $0x94] sm:$0xf] %v1205
      %1357 = vst [vmem:[#allocation3 + $0xb8] sm:$0xf] %v1215
      %1358 = vst [vmem:[#allocation3 + $0xdc] sm:$0xf] %v1229
      %1359 = vst [vmem:[#allocation3 + $0x100] sm:$0xf] %v1239
      %1360 = vst [vmem:[#allocation3 + $0x124] sm:$0xf] %v1253
      %1361 = vst [vmem:[#allocation3 + $0x148] sm:$0xf] %v1263
      %1362 = vst [vmem:[#allocation3 + $0x16c] sm:$0xf] %v1277
      %1363 = vst [vmem:[#allocation3 + $0x190] sm:$0xf] %v1287
      %1364 = vst [vmem:[#allocation3 + $0x1b4] sm:$0xf] %v1301
      %1365 = vst [vmem:[#allocation3 + $0x1d8] sm:$0xf] %v1311
      %1366 = vst [vmem:[#allocation3 + $0x1fc] sm:$0xf] %v1325
      %1367 = vst [vmem:[#allocation3 + $0x220] sm:$0xf] %v1335
      %v1368 = vld [vmem:[#allocation2] sm:$0xe]
      %v1369 = vld [vmem:[#allocation2 + $0x4] sm:$0xf]
      %v1370 = vld [vmem:[#allocation2 + $0x8] sm:$0x1]
      %v1371 = vld [vmem:[#allocation2 + $0xc] sm:$0xe]
      %v1372 = vld [vmem:[#allocation2 + $0x10] sm:$0xf]
      %v1373 = vld [vmem:[#allocation2 + $0x14] sm:$0x1]
      %v1374 = vld [vmem:[#allocation2 + $0x18] sm:$0xe]
      %v1375 = vld [vmem:[#allocation2 + $0x1c] sm:$0xf]
      %v1376 = vld [vmem:[#allocation2 + $0x20] sm:$0x1]
      %v1377 = vld [vmem:[#allocation2 + $0x24] sm:$0xe]
      %v1378 = vld [vmem:[#allocation2 + $0x28] sm:$0xf]
      %v1379 = vld [vmem:[#allocation2 + $0x2c] sm:$0x1]
      %v1380 = vld [vmem:[#allocation2 + $0x30] sm:$0xe]
      %v1381 = vld [vmem:[#allocation2 + $0x34] sm:$0xf]
      %v1382 = vld [vmem:[#allocation2 + $0x38] sm:$0x1]
      %v1383 = vld [vmem:[#allocation2 + $0x3c] sm:$0xe]
      %v1384 = vld [vmem:[#allocation2 + $0x40] sm:$0xf]
      %v1385 = vld [vmem:[#allocation2 + $0x44] sm:$0x1]
      %v1386 = vld [vmem:[#allocation2 + $0x48] sm:$0xe]
      %v1387 = vld [vmem:[#allocation2 + $0x4c] sm:$0xf]
      %v1388 = vld [vmem:[#allocation2 + $0x50] sm:$0x1]
      %v1389 = vld [vmem:[#allocation2 + $0x54] sm:$0xe]
      %v1390 = vld [vmem:[#allocation2 + $0x58] sm:$0xf]
      %v1391 = vld [vmem:[#allocation2 + $0x5c] sm:$0x1]
      %vm1416 = vcmask 1042432
      %vm1417 = vcmask 1046532
      %vm1418 = vmor %vm1416, %vm1417
      %v1419 = vrot.slane %v1368, 5
      %v1420 = vrot.slane %v1419, 4
      %v1421 = vrot.slane %v1369, 5
      %v1422 = vsel %vm1418, %v1420, %v1421
      %v1423 = vrot.slane %v1421, 4
      %v1424 = vrot.slane %v1370, 5
      %v1425 = vsel %vm1418, %v1423, %v1424
      %v1426 = vrot.slane %v1371, 5
      %v1427 = vrot.slane %v1426, 4
      %v1428 = vrot.slane %v1372, 5
      %v1429 = vsel %vm1418, %v1427, %v1428
      %v1430 = vrot.slane %v1428, 4
      %v1431 = vrot.slane %v1373, 5
      %v1432 = vsel %vm1418, %v1430, %v1431
      %v1433 = vrot.slane %v1374, 5
      %v1434 = vrot.slane %v1433, 4
      %v1435 = vrot.slane %v1375, 5
      %v1436 = vsel %vm1418, %v1434, %v1435
      %v1437 = vrot.slane %v1435, 4
      %v1438 = vrot.slane %v1376, 5
      %v1439 = vsel %vm1418, %v1437, %v1438
      %v1440 = vrot.slane %v1377, 5
      %v1441 = vrot.slane %v1440, 4
      %v1442 = vrot.slane %v1378, 5
      %v1443 = vsel %vm1418, %v1441, %v1442
      %v1444 = vrot.slane %v1442, 4
      %v1445 = vrot.slane %v1379, 5
      %v1446 = vsel %vm1418, %v1444, %v1445
      %v1447 = vrot.slane %v1380, 5
      %v1448 = vrot.slane %v1447, 4
      %v1449 = vrot.slane %v1381, 5
      %v1450 = vsel %vm1418, %v1448, %v1449
      %v1451 = vrot.slane %v1449, 4
      %v1452 = vrot.slane %v1382, 5
      %v1453 = vsel %vm1418, %v1451, %v1452
      %v1454 = vrot.slane %v1383, 5
      %v1455 = vrot.slane %v1454, 4
      %v1456 = vrot.slane %v1384, 5
      %v1457 = vsel %vm1418, %v1455, %v1456
      %v1458 = vrot.slane %v1456, 4
      %v1459 = vrot.slane %v1385, 5
      %v1460 = vsel %vm1418, %v1458, %v1459
      %v1461 = vrot.slane %v1386, 5
      %v1462 = vrot.slane %v1461, 4
      %v1463 = vrot.slane %v1387, 5
      %v1464 = vsel %vm1418, %v1462, %v1463
      %v1465 = vrot.slane %v1463, 4
      %v1466 = vrot.slane %v1388, 5
      %v1467 = vsel %vm1418, %v1465, %v1466
      %v1468 = vrot.slane %v1389, 5
      %v1469 = vrot.slane %v1468, 4
      %v1470 = vrot.slane %v1390, 5
      %v1471 = vsel %vm1418, %v1469, %v1470
      %v1472 = vrot.slane %v1470, 4
      %v1473 = vrot.slane %v1391, 5
      %v1474 = vsel %vm1418, %v1472, %v1473
      %1491 = vst [vmem:[#allocation3 + $0x8] sm:$0xf] %v1422
      %1492 = vst [vmem:[#allocation3 + $0x2c] sm:$0xf] %v1425
      %1493 = vst [vmem:[#allocation3 + $0x50] sm:$0xf] %v1429
      %1494 = vst [vmem:[#allocation3 + $0x74] sm:$0xf] %v1432
      %1495 = vst [vmem:[#allocation3 + $0x98] sm:$0xf] %v1436
      %1496 = vst [vmem:[#allocation3 + $0xbc] sm:$0xf] %v1439
      %1497 = vst [vmem:[#allocation3 + $0xe0] sm:$0xf] %v1443
      %1498 = vst [vmem:[#allocation3 + $0x104] sm:$0xf] %v1446
      %1499 = vst [vmem:[#allocation3 + $0x128] sm:$0xf] %v1450
      %1500 = vst [vmem:[#allocation3 + $0x14c] sm:$0xf] %v1453
      %1501 = vst [vmem:[#allocation3 + $0x170] sm:$0xf] %v1457
      %1502 = vst [vmem:[#allocation3 + $0x194] sm:$0xf] %v1460
      %1503 = vst [vmem:[#allocation3 + $0x1b8] sm:$0xf] %v1464
      %1504 = vst [vmem:[#allocation3 + $0x1dc] sm:$0xf] %v1467
      %1505 = vst [vmem:[#allocation3 + $0x200] sm:$0xf] %v1471
      %1506 = vst [vmem:[#allocation3 + $0x224] sm:$0xf] %v1474
      %v1507 = vld [vmem:[%s930] sm:$0xf]
      %v1508 = vld [vmem:[%s930 + $0x4] sm:$0xf]
      %v1509 = vld [vmem:[%s930 + $0xc] sm:$0xf]
      %v1510 = vld [vmem:[%s930 + $0x10] sm:$0xf]
      %v1511 = vld [vmem:[%s930 + $0x18] sm:$0xf]
      %v1512 = vld [vmem:[%s930 + $0x1c] sm:$0xf]
      %v1513 = vld [vmem:[%s930 + $0x24] sm:$0xf]
      %v1514 = vld [vmem:[%s930 + $0x28] sm:$0xf]
      %v1515 = vld [vmem:[%s930 + $0x30] sm:$0xf]
      %v1516 = vld [vmem:[%s930 + $0x34] sm:$0xf]
      %v1517 = vld [vmem:[%s930 + $0x3c] sm:$0xf]
      %v1518 = vld [vmem:[%s930 + $0x40] sm:$0xf]
      %v1519 = vld [vmem:[%s930 + $0x48] sm:$0xf]
      %v1520 = vld [vmem:[%s930 + $0x4c] sm:$0xf]
      %v1521 = vld [vmem:[%s930 + $0x54] sm:$0xf]
      %v1522 = vld [vmem:[%s930 + $0x58] sm:$0xf]
      %1523 = vst [vmem:[#allocation3 + $0xc] sm:$0xf] %v1507
      %1524 = vst [vmem:[#allocation3 + $0x30] sm:$0xf] %v1508
      %1525 = vst [vmem:[#allocation3 + $0x54] sm:$0xf] %v1509
      %1526 = vst [vmem:[#allocation3 + $0x78] sm:$0xf] %v1510
      %1527 = vst [vmem:[#allocation3 + $0x9c] sm:$0xf] %v1511
      %1528 = vst [vmem:[#allocation3 + $0xc0] sm:$0xf] %v1512
      %1529 = vst [vmem:[#allocation3 + $0xe4] sm:$0xf] %v1513
      %1530 = vst [vmem:[#allocation3 + $0x108] sm:$0xf] %v1514
      %1531 = vst [vmem:[#allocation3 + $0x12c] sm:$0xf] %v1515
      %1532 = vst [vmem:[#allocation3 + $0x150] sm:$0xf] %v1516
      %1533 = vst [vmem:[#allocation3 + $0x174] sm:$0xf] %v1517
      %1534 = vst [vmem:[#allocation3 + $0x198] sm:$0xf] %v1518
      %1535 = vst [vmem:[#allocation3 + $0x1bc] sm:$0xf] %v1519
      %1536 = vst [vmem:[#allocation3 + $0x1e0] sm:$0xf] %v1520
      %1537 = vst [vmem:[#allocation3 + $0x204] sm:$0xf] %v1521
      %1538 = vst [vmem:[#allocation3 + $0x228] sm:$0xf] %v1522
      %v1539 = vld [vmem:[%s930] sm:$0xf]
      %v1540 = vld [vmem:[%s930 + $0x4] sm:$0xf]
      %v1541 = vld [vmem:[%s930 + $0x8] sm:$0x1]
      %v1542 = vld [vmem:[%s930 + $0xc] sm:$0xf]
      %v1543 = vld [vmem:[%s930 + $0x10] sm:$0xf]
      %v1544 = vld [vmem:[%s930 + $0x14] sm:$0x1]
      %v1545 = vld [vmem:[%s930 + $0x18] sm:$0xf]
      %v1546 = vld [vmem:[%s930 + $0x1c] sm:$0xf]
      %v1547 = vld [vmem:[%s930 + $0x20] sm:$0x1]
      %v1548 = vld [vmem:[%s930 + $0x24] sm:$0xf]
      %v1549 = vld [vmem:[%s930 + $0x28] sm:$0xf]
      %v1550 = vld [vmem:[%s930 + $0x2c] sm:$0x1]
      %v1551 = vld [vmem:[%s930 + $0x30] sm:$0xf]
      %v1552 = vld [vmem:[%s930 + $0x34] sm:$0xf]
      %v1553 = vld [vmem:[%s930 + $0x38] sm:$0x1]
      %v1554 = vld [vmem:[%s930 + $0x3c] sm:$0xf]
      %v1555 = vld [vmem:[%s930 + $0x40] sm:$0xf]
      %v1556 = vld [vmem:[%s930 + $0x44] sm:$0x1]
      %v1557 = vld [vmem:[%s930 + $0x48] sm:$0xf]
      %v1558 = vld [vmem:[%s930 + $0x4c] sm:$0xf]
      %v1559 = vld [vmem:[%s930 + $0x50] sm:$0x1]
      %v1560 = vld [vmem:[%s930 + $0x54] sm:$0xf]
      %v1561 = vld [vmem:[%s930 + $0x58] sm:$0xf]
      %v1562 = vld [vmem:[%s930 + $0x5c] sm:$0x1]
      %v1564 = vshrl.u32 %v1539, 16
      %v1566 = vrot.slane %v1564, 4
      %v1567 = vshll.u32 %v1539, 16
      %v1569 = vrot.slane %v1567, 5
      %v1570 = vor.u32 %v1566, %v1569
      %v1571 = vrot.slane %v1570, 4
      %v1573 = vshll.u32 %v1540, 16
      %v1575 = vrot.slane %v1573, 5
      %v1576 = vsel %vm1143, %v1571, %v1575
      %v1577 = vshrl.u32 %v1540, 16
      %v1579 = vrot.slane %v1577, 4
      %v1580 = vor.u32 %v1579, %v1575
      %v1581 = vrot.slane %v1580, 4
      %v1583 = vshll.u32 %v1541, 16
      %v1585 = vrot.slane %v1583, 5
      %v1586 = vsel %vm1143, %v1581, %v1585
      %v1588 = vshrl.u32 %v1542, 16
      %v1590 = vrot.slane %v1588, 4
      %v1591 = vshll.u32 %v1542, 16
      %v1593 = vrot.slane %v1591, 5
      %v1594 = vor.u32 %v1590, %v1593
      %v1595 = vrot.slane %v1594, 4
      %v1597 = vshll.u32 %v1543, 16
      %v1599 = vrot.slane %v1597, 5
      %v1600 = vsel %vm1143, %v1595, %v1599
      %v1601 = vshrl.u32 %v1543, 16
      %v1603 = vrot.slane %v1601, 4
      %v1604 = vor.u32 %v1603, %v1599
      %v1605 = vrot.slane %v1604, 4
      %v1607 = vshll.u32 %v1544, 16
      %v1609 = vrot.slane %v1607, 5
      %v1610 = vsel %vm1143, %v1605, %v1609
      %v1612 = vshrl.u32 %v1545, 16
      %v1614 = vrot.slane %v1612, 4
      %v1615 = vshll.u32 %v1545, 16
      %v1617 = vrot.slane %v1615, 5
      %v1618 = vor.u32 %v1614, %v1617
      %v1619 = vrot.slane %v1618, 4
      %v1621 = vshll.u32 %v1546, 16
      %v1623 = vrot.slane %v1621, 5
      %v1624 = vsel %vm1143, %v1619, %v1623
      %v1625 = vshrl.u32 %v1546, 16
      %v1627 = vrot.slane %v1625, 4
      %v1628 = vor.u32 %v1627, %v1623
      %v1629 = vrot.slane %v1628, 4
      %v1631 = vshll.u32 %v1547, 16
      %v1633 = vrot.slane %v1631, 5
      %v1634 = vsel %vm1143, %v1629, %v1633
      %v1636 = vshrl.u32 %v1548, 16
      %v1638 = vrot.slane %v1636, 4
      %v1639 = vshll.u32 %v1548, 16
      %v1641 = vrot.slane %v1639, 5
      %v1642 = vor.u32 %v1638, %v1641
      %v1643 = vrot.slane %v1642, 4
      %v1645 = vshll.u32 %v1549, 16
      %v1647 = vrot.slane %v1645, 5
      %v1648 = vsel %vm1143, %v1643, %v1647
      %v1649 = vshrl.u32 %v1549, 16
      %v1651 = vrot.slane %v1649, 4
      %v1652 = vor.u32 %v1651, %v1647
      %v1653 = vrot.slane %v1652, 4
      %v1655 = vshll.u32 %v1550, 16
      %v1657 = vrot.slane %v1655, 5
      %v1658 = vsel %vm1143, %v1653, %v1657
      %v1660 = vshrl.u32 %v1551, 16
      %v1662 = vrot.slane %v1660, 4
      %v1663 = vshll.u32 %v1551, 16
      %v1665 = vrot.slane %v1663, 5
      %v1666 = vor.u32 %v1662, %v1665
      %v1667 = vrot.slane %v1666, 4
      %v1669 = vshll.u32 %v1552, 16
      %v1671 = vrot.slane %v1669, 5
      %v1672 = vsel %vm1143, %v1667, %v1671
      %v1673 = vshrl.u32 %v1552, 16
      %v1675 = vrot.slane %v1673, 4
      %v1676 = vor.u32 %v1675, %v1671
      %v1677 = vrot.slane %v1676, 4
      %v1679 = vshll.u32 %v1553, 16
      %v1681 = vrot.slane %v1679, 5
      %v1682 = vsel %vm1143, %v1677, %v1681
      %v1684 = vshrl.u32 %v1554, 16
      %v1686 = vrot.slane %v1684, 4
      %v1687 = vshll.u32 %v1554, 16
      %v1689 = vrot.slane %v1687, 5
      %v1690 = vor.u32 %v1686, %v1689
      %v1691 = vrot.slane %v1690, 4
      %v1693 = vshll.u32 %v1555, 16
      %v1695 = vrot.slane %v1693, 5
      %v1696 = vsel %vm1143, %v1691, %v1695
      %v1697 = vshrl.u32 %v1555, 16
      %v1699 = vrot.slane %v1697, 4
      %v1700 = vor.u32 %v1699, %v1695
      %v1701 = vrot.slane %v1700, 4
      %v1703 = vshll.u32 %v1556, 16
      %v1705 = vrot.slane %v1703, 5
      %v1706 = vsel %vm1143, %v1701, %v1705
      %v1708 = vshrl.u32 %v1557, 16
      %v1710 = vrot.slane %v1708, 4
      %v1711 = vshll.u32 %v1557, 16
      %v1713 = vrot.slane %v1711, 5
      %v1714 = vor.u32 %v1710, %v1713
      %v1715 = vrot.slane %v1714, 4
      %v1717 = vshll.u32 %v1558, 16
      %v1719 = vrot.slane %v1717, 5
      %v1720 = vsel %vm1143, %v1715, %v1719
      %v1721 = vshrl.u32 %v1558, 16
      %v1723 = vrot.slane %v1721, 4
      %v1724 = vor.u32 %v1723, %v1719
      %v1725 = vrot.slane %v1724, 4
      %v1727 = vshll.u32 %v1559, 16
      %v1729 = vrot.slane %v1727, 5
      %v1730 = vsel %vm1143, %v1725, %v1729
      %v1732 = vshrl.u32 %v1560, 16
      %v1734 = vrot.slane %v1732, 4
      %v1735 = vshll.u32 %v1560, 16
      %v1737 = vrot.slane %v1735, 5
      %v1738 = vor.u32 %v1734, %v1737
      %v1739 = vrot.slane %v1738, 4
      %v1741 = vshll.u32 %v1561, 16
      %v1743 = vrot.slane %v1741, 5
      %v1744 = vsel %vm1143, %v1739, %v1743
      %v1745 = vshrl.u32 %v1561, 16
      %v1747 = vrot.slane %v1745, 4
      %v1748 = vor.u32 %v1747, %v1743
      %v1749 = vrot.slane %v1748, 4
      %v1751 = vshll.u32 %v1562, 16
      %v1753 = vrot.slane %v1751, 5
      %v1754 = vsel %vm1143, %v1749, %v1753
      %1771 = vst [vmem:[#allocation3 + $0x10] sm:$0xf] %v1576
      %1772 = vst [vmem:[#allocation3 + $0x34] sm:$0xf] %v1586
      %1773 = vst [vmem:[#allocation3 + $0x58] sm:$0xf] %v1600
      %1774 = vst [vmem:[#allocation3 + $0x7c] sm:$0xf] %v1610
      %1775 = vst [vmem:[#allocation3 + $0xa0] sm:$0xf] %v1624
      %1776 = vst [vmem:[#allocation3 + $0xc4] sm:$0xf] %v1634
      %1777 = vst [vmem:[#allocation3 + $0xe8] sm:$0xf] %v1648
      %1778 = vst [vmem:[#allocation3 + $0x10c] sm:$0xf] %v1658
      %1779 = vst [vmem:[#allocation3 + $0x130] sm:$0xf] %v1672
      %1780 = vst [vmem:[#allocation3 + $0x154] sm:$0xf] %v1682
      %1781 = vst [vmem:[#allocation3 + $0x178] sm:$0xf] %v1696
      %1782 = vst [vmem:[#allocation3 + $0x19c] sm:$0xf] %v1706
      %1783 = vst [vmem:[#allocation3 + $0x1c0] sm:$0xf] %v1720
      %1784 = vst [vmem:[#allocation3 + $0x1e4] sm:$0xf] %v1730
      %1785 = vst [vmem:[#allocation3 + $0x208] sm:$0xf] %v1744
      %1786 = vst [vmem:[#allocation3 + $0x22c] sm:$0xf] %v1754
      %v1787 = vld [vmem:[%s930] sm:$0xe]
      %v1788 = vld [vmem:[%s930 + $0x4] sm:$0xf]
      %v1789 = vld [vmem:[%s930 + $0x8] sm:$0x1]
      %v1790 = vld [vmem:[%s930 + $0xc] sm:$0xe]
      %v1791 = vld [vmem:[%s930 + $0x10] sm:$0xf]
      %v1792 = vld [vmem:[%s930 + $0x14] sm:$0x1]
      %v1793 = vld [vmem:[%s930 + $0x18] sm:$0xe]
      %v1794 = vld [vmem:[%s930 + $0x1c] sm:$0xf]
      %v1795 = vld [vmem:[%s930 + $0x20] sm:$0x1]
      %v1796 = vld [vmem:[%s930 + $0x24] sm:$0xe]
      %v1797 = vld [vmem:[%s930 + $0x28] sm:$0xf]
      %v1798 = vld [vmem:[%s930 + $0x2c] sm:$0x1]
      %v1799 = vld [vmem:[%s930 + $0x30] sm:$0xe]
      %v1800 = vld [vmem:[%s930 + $0x34] sm:$0xf]
      %v1801 = vld [vmem:[%s930 + $0x38] sm:$0x1]
      %v1802 = vld [vmem:[%s930 + $0x3c] sm:$0xe]
      %v1803 = vld [vmem:[%s930 + $0x40] sm:$0xf]
      %v1804 = vld [vmem:[%s930 + $0x44] sm:$0x1]
      %v1805 = vld [vmem:[%s930 + $0x48] sm:$0xe]
      %v1806 = vld [vmem:[%s930 + $0x4c] sm:$0xf]
      %v1807 = vld [vmem:[%s930 + $0x50] sm:$0x1]
      %v1808 = vld [vmem:[%s930 + $0x54] sm:$0xe]
      %v1809 = vld [vmem:[%s930 + $0x58] sm:$0xf]
      %v1810 = vld [vmem:[%s930 + $0x5c] sm:$0x1]
      %v1835 = vrot.slane %v1787, 5
      %v1836 = vrot.slane %v1835, 4
      %v1837 = vrot.slane %v1788, 5
      %v1838 = vsel %vm1418, %v1836, %v1837
      %v1839 = vrot.slane %v1837, 4
      %v1840 = vrot.slane %v1789, 5
      %v1841 = vsel %vm1418, %v1839, %v1840
      %v1842 = vrot.slane %v1790, 5
      %v1843 = vrot.slane %v1842, 4
      %v1844 = vrot.slane %v1791, 5
      %v1845 = vsel %vm1418, %v1843, %v1844
      %v1846 = vrot.slane %v1844, 4
      %v1847 = vrot.slane %v1792, 5
      %v1848 = vsel %vm1418, %v1846, %v1847
      %v1849 = vrot.slane %v1793, 5
      %v1850 = vrot.slane %v1849, 4
      %v1851 = vrot.slane %v1794, 5
      %v1852 = vsel %vm1418, %v1850, %v1851
      %v1853 = vrot.slane %v1851, 4
      %v1854 = vrot.slane %v1795, 5
      %v1855 = vsel %vm1418, %v1853, %v1854
      %v1856 = vrot.slane %v1796, 5
      %v1857 = vrot.slane %v1856, 4
      %v1858 = vrot.slane %v1797, 5
      %v1859 = vsel %vm1418, %v1857, %v1858
      %v1860 = vrot.slane %v1858, 4
      %v1861 = vrot.slane %v1798, 5
      %v1862 = vsel %vm1418, %v1860, %v1861
      %v1863 = vrot.slane %v1799, 5
      %v1864 = vrot.slane %v1863, 4
      %v1865 = vrot.slane %v1800, 5
      %v1866 = vsel %vm1418, %v1864, %v1865
      %v1867 = vrot.slane %v1865, 4
      %v1868 = vrot.slane %v1801, 5
      %v1869 = vsel %vm1418, %v1867, %v1868
      %v1870 = vrot.slane %v1802, 5
      %v1871 = vrot.slane %v1870, 4
      %v1872 = vrot.slane %v1803, 5
      %v1873 = vsel %vm1418, %v1871, %v1872
      %v1874 = vrot.slane %v1872, 4
      %v1875 = vrot.slane %v1804, 5
      %v1876 = vsel %vm1418, %v1874, %v1875
      %v1877 = vrot.slane %v1805, 5
      %v1878 = vrot.slane %v1877, 4
      %v1879 = vrot.slane %v1806, 5
      %v1880 = vsel %vm1418, %v1878, %v1879
      %v1881 = vrot.slane %v1879, 4
      %v1882 = vrot.slane %v1807, 5
      %v1883 = vsel %vm1418, %v1881, %v1882
      %v1884 = vrot.slane %v1808, 5
      %v1885 = vrot.slane %v1884, 4
      %v1886 = vrot.slane %v1809, 5
      %v1887 = vsel %vm1418, %v1885, %v1886
      %v1888 = vrot.slane %v1886, 4
      %v1889 = vrot.slane %v1810, 5
      %v1890 = vsel %vm1418, %v1888, %v1889
      %1907 = vst [vmem:[#allocation3 + $0x14] sm:$0xf] %v1838
      %1908 = vst [vmem:[#allocation3 + $0x38] sm:$0xf] %v1841
      %1909 = vst [vmem:[#allocation3 + $0x5c] sm:$0xf] %v1845
      %1910 = vst [vmem:[#allocation3 + $0x80] sm:$0xf] %v1848
      %1911 = vst [vmem:[#allocation3 + $0xa4] sm:$0xf] %v1852
      %1912 = vst [vmem:[#allocation3 + $0xc8] sm:$0xf] %v1855
      %1913 = vst [vmem:[#allocation3 + $0xec] sm:$0xf] %v1859
      %1914 = vst [vmem:[#allocation3 + $0x110] sm:$0xf] %v1862
      %1915 = vst [vmem:[#allocation3 + $0x134] sm:$0xf] %v1866
      %1916 = vst [vmem:[#allocation3 + $0x158] sm:$0xf] %v1869
      %1917 = vst [vmem:[#allocation3 + $0x17c] sm:$0xf] %v1873
      %1918 = vst [vmem:[#allocation3 + $0x1a0] sm:$0xf] %v1876
      %1919 = vst [vmem:[#allocation3 + $0x1c4] sm:$0xf] %v1880
      %1920 = vst [vmem:[#allocation3 + $0x1e8] sm:$0xf] %v1883
      %1921 = vst [vmem:[#allocation3 + $0x20c] sm:$0xf] %v1887
      %1922 = vst [vmem:[#allocation3 + $0x230] sm:$0xf] %v1890
      %s1923 = scalar_lea.vmem [#allocation2], 24
      %v1924 = vld [vmem:[%s1923] sm:$0xf]
      %v1925 = vld [vmem:[%s1923 + $0x4] sm:$0xf]
      %v1926 = vld [vmem:[%s1923 + $0xc] sm:$0xf]
      %v1927 = vld [vmem:[%s1923 + $0x10] sm:$0xf]
      %v1928 = vld [vmem:[%s1923 + $0x18] sm:$0xf]
      %v1929 = vld [vmem:[%s1923 + $0x1c] sm:$0xf]
      %v1930 = vld [vmem:[%s1923 + $0x24] sm:$0xf]
      %v1931 = vld [vmem:[%s1923 + $0x28] sm:$0xf]
      %v1932 = vld [vmem:[%s1923 + $0x30] sm:$0xf]
      %v1933 = vld [vmem:[%s1923 + $0x34] sm:$0xf]
      %v1934 = vld [vmem:[%s1923 + $0x3c] sm:$0xf]
      %v1935 = vld [vmem:[%s1923 + $0x40] sm:$0xf]
      %v1936 = vld [vmem:[%s1923 + $0x48] sm:$0xf]
      %v1937 = vld [vmem:[%s1923 + $0x4c] sm:$0xf]
      %v1938 = vld [vmem:[%s1923 + $0x54] sm:$0xf]
      %v1939 = vld [vmem:[%s1923 + $0x58] sm:$0xf]
      %1940 = vst [vmem:[#allocation3 + $0x18] sm:$0xf] %v1924
      %1941 = vst [vmem:[#allocation3 + $0x3c] sm:$0xf] %v1925
      %1942 = vst [vmem:[#allocation3 + $0x60] sm:$0xf] %v1926
      %1943 = vst [vmem:[#allocation3 + $0x84] sm:$0xf] %v1927
      %1944 = vst [vmem:[#allocation3 + $0xa8] sm:$0xf] %v1928
      %1945 = vst [vmem:[#allocation3 + $0xcc] sm:$0xf] %v1929
      %1946 = vst [vmem:[#allocation3 + $0xf0] sm:$0xf] %v1930
      %1947 = vst [vmem:[#allocation3 + $0x114] sm:$0xf] %v1931
      %1948 = vst [vmem:[#allocation3 + $0x138] sm:$0xf] %v1932
      %1949 = vst [vmem:[#allocation3 + $0x15c] sm:$0xf] %v1933
      %1950 = vst [vmem:[#allocation3 + $0x180] sm:$0xf] %v1934
      %1951 = vst [vmem:[#allocation3 + $0x1a4] sm:$0xf] %v1935
      %1952 = vst [vmem:[#allocation3 + $0x1c8] sm:$0xf] %v1936
      %1953 = vst [vmem:[#allocation3 + $0x1ec] sm:$0xf] %v1937
      %1954 = vst [vmem:[#allocation3 + $0x210] sm:$0xf] %v1938
      %1955 = vst [vmem:[#allocation3 + $0x234] sm:$0xf] %v1939
      %v1956 = vld [vmem:[%s1923] sm:$0xf]
      %v1957 = vld [vmem:[%s1923 + $0x4] sm:$0xf]
      %v1958 = vld [vmem:[%s1923 + $0x8] sm:$0x1]
      %v1959 = vld [vmem:[%s1923 + $0xc] sm:$0xf]
      %v1960 = vld [vmem:[%s1923 + $0x10] sm:$0xf]
      %v1961 = vld [vmem:[%s1923 + $0x14] sm:$0x1]
      %v1962 = vld [vmem:[%s1923 + $0x18] sm:$0xf]
      %v1963 = vld [vmem:[%s1923 + $0x1c] sm:$0xf]
      %v1964 = vld [vmem:[%s1923 + $0x20] sm:$0x1]
      %v1965 = vld [vmem:[%s1923 + $0x24] sm:$0xf]
      %v1966 = vld [vmem:[%s1923 + $0x28] sm:$0xf]
      %v1967 = vld [vmem:[%s1923 + $0x2c] sm:$0x1]
      %v1968 = vld [vmem:[%s1923 + $0x30] sm:$0xf]
      %v1969 = vld [vmem:[%s1923 + $0x34] sm:$0xf]
      %v1970 = vld [vmem:[%s1923 + $0x38] sm:$0x1]
      %v1971 = vld [vmem:[%s1923 + $0x3c] sm:$0xf]
      %v1972 = vld [vmem:[%s1923 + $0x40] sm:$0xf]
      %v1973 = vld [vmem:[%s1923 + $0x44] sm:$0x1]
      %v1974 = vld [vmem:[%s1923 + $0x48] sm:$0xf]
      %v1975 = vld [vmem:[%s1923 + $0x4c] sm:$0xf]
      %v1976 = vld [vmem:[%s1923 + $0x50] sm:$0x1]
      %v1977 = vld [vmem:[%s1923 + $0x54] sm:$0xf]
      %v1978 = vld [vmem:[%s1923 + $0x58] sm:$0xf]
      %v1979 = vld [vmem:[%s1923 + $0x5c] sm:$0x1]
      %v1981 = vshrl.u32 %v1956, 16
      %v1983 = vrot.slane %v1981, 4
      %v1984 = vshll.u32 %v1956, 16
      %v1986 = vrot.slane %v1984, 5
      %v1987 = vor.u32 %v1983, %v1986
      %v1988 = vrot.slane %v1987, 4
      %v1990 = vshll.u32 %v1957, 16
      %v1992 = vrot.slane %v1990, 5
      %v1993 = vsel %vm1143, %v1988, %v1992
      %v1994 = vshrl.u32 %v1957, 16
      %v1996 = vrot.slane %v1994, 4
      %v1997 = vor.u32 %v1996, %v1992
      %v1998 = vrot.slane %v1997, 4
      %v2000 = vshll.u32 %v1958, 16
      %v2002 = vrot.slane %v2000, 5
      %v2003 = vsel %vm1143, %v1998, %v2002
      %v2005 = vshrl.u32 %v1959, 16
      %v2007 = vrot.slane %v2005, 4
      %v2008 = vshll.u32 %v1959, 16
      %v2010 = vrot.slane %v2008, 5
      %v2011 = vor.u32 %v2007, %v2010
      %v2012 = vrot.slane %v2011, 4
      %v2014 = vshll.u32 %v1960, 16
      %v2016 = vrot.slane %v2014, 5
      %v2017 = vsel %vm1143, %v2012, %v2016
      %v2018 = vshrl.u32 %v1960, 16
      %v2020 = vrot.slane %v2018, 4
      %v2021 = vor.u32 %v2020, %v2016
      %v2022 = vrot.slane %v2021, 4
      %v2024 = vshll.u32 %v1961, 16
      %v2026 = vrot.slane %v2024, 5
      %v2027 = vsel %vm1143, %v2022, %v2026
      %v2029 = vshrl.u32 %v1962, 16
      %v2031 = vrot.slane %v2029, 4
      %v2032 = vshll.u32 %v1962, 16
      %v2034 = vrot.slane %v2032, 5
      %v2035 = vor.u32 %v2031, %v2034
      %v2036 = vrot.slane %v2035, 4
      %v2038 = vshll.u32 %v1963, 16
      %v2040 = vrot.slane %v2038, 5
      %v2041 = vsel %vm1143, %v2036, %v2040
      %v2042 = vshrl.u32 %v1963, 16
      %v2044 = vrot.slane %v2042, 4
      %v2045 = vor.u32 %v2044, %v2040
      %v2046 = vrot.slane %v2045, 4
      %v2048 = vshll.u32 %v1964, 16
      %v2050 = vrot.slane %v2048, 5
      %v2051 = vsel %vm1143, %v2046, %v2050
      %v2053 = vshrl.u32 %v1965, 16
      %v2055 = vrot.slane %v2053, 4
      %v2056 = vshll.u32 %v1965, 16
      %v2058 = vrot.slane %v2056, 5
      %v2059 = vor.u32 %v2055, %v2058
      %v2060 = vrot.slane %v2059, 4
      %v2062 = vshll.u32 %v1966, 16
      %v2064 = vrot.slane %v2062, 5
      %v2065 = vsel %vm1143, %v2060, %v2064
      %v2066 = vshrl.u32 %v1966, 16
      %v2068 = vrot.slane %v2066, 4
      %v2069 = vor.u32 %v2068, %v2064
      %v2070 = vrot.slane %v2069, 4
      %v2072 = vshll.u32 %v1967, 16
      %v2074 = vrot.slane %v2072, 5
      %v2075 = vsel %vm1143, %v2070, %v2074
      %v2077 = vshrl.u32 %v1968, 16
      %v2079 = vrot.slane %v2077, 4
      %v2080 = vshll.u32 %v1968, 16
      %v2082 = vrot.slane %v2080, 5
      %v2083 = vor.u32 %v2079, %v2082
      %v2084 = vrot.slane %v2083, 4
      %v2086 = vshll.u32 %v1969, 16
      %v2088 = vrot.slane %v2086, 5
      %v2089 = vsel %vm1143, %v2084, %v2088
      %v2090 = vshrl.u32 %v1969, 16
      %v2092 = vrot.slane %v2090, 4
      %v2093 = vor.u32 %v2092, %v2088
      %v2094 = vrot.slane %v2093, 4
      %v2096 = vshll.u32 %v1970, 16
      %v2098 = vrot.slane %v2096, 5
      %v2099 = vsel %vm1143, %v2094, %v2098
      %v2101 = vshrl.u32 %v1971, 16
      %v2103 = vrot.slane %v2101, 4
      %v2104 = vshll.u32 %v1971, 16
      %v2106 = vrot.slane %v2104, 5
      %v2107 = vor.u32 %v2103, %v2106
      %v2108 = vrot.slane %v2107, 4
      %v2110 = vshll.u32 %v1972, 16
      %v2112 = vrot.slane %v2110, 5
      %v2113 = vsel %vm1143, %v2108, %v2112
      %v2114 = vshrl.u32 %v1972, 16
      %v2116 = vrot.slane %v2114, 4
      %v2117 = vor.u32 %v2116, %v2112
      %v2118 = vrot.slane %v2117, 4
      %v2120 = vshll.u32 %v1973, 16
      %v2122 = vrot.slane %v2120, 5
      %v2123 = vsel %vm1143, %v2118, %v2122
      %v2125 = vshrl.u32 %v1974, 16
      %v2127 = vrot.slane %v2125, 4
      %v2128 = vshll.u32 %v1974, 16
      %v2130 = vrot.slane %v2128, 5
      %v2131 = vor.u32 %v2127, %v2130
      %v2132 = vrot.slane %v2131, 4
      %v2134 = vshll.u32 %v1975, 16
      %v2136 = vrot.slane %v2134, 5
      %v2137 = vsel %vm1143, %v2132, %v2136
      %v2138 = vshrl.u32 %v1975, 16
      %v2140 = vrot.slane %v2138, 4
      %v2141 = vor.u32 %v2140, %v2136
      %v2142 = vrot.slane %v2141, 4
      %v2144 = vshll.u32 %v1976, 16
      %v2146 = vrot.slane %v2144, 5
      %v2147 = vsel %vm1143, %v2142, %v2146
      %v2149 = vshrl.u32 %v1977, 16
      %v2151 = vrot.slane %v2149, 4
      %v2152 = vshll.u32 %v1977, 16
      %v2154 = vrot.slane %v2152, 5
      %v2155 = vor.u32 %v2151, %v2154
      %v2156 = vrot.slane %v2155, 4
      %v2158 = vshll.u32 %v1978, 16
      %v2160 = vrot.slane %v2158, 5
      %v2161 = vsel %vm1143, %v2156, %v2160
      %v2162 = vshrl.u32 %v1978, 16
      %v2164 = vrot.slane %v2162, 4
      %v2165 = vor.u32 %v2164, %v2160
      %v2166 = vrot.slane %v2165, 4
      %v2168 = vshll.u32 %v1979, 16
      %v2170 = vrot.slane %v2168, 5
      %v2171 = vsel %vm1143, %v2166, %v2170
      %2188 = vst [vmem:[#allocation3 + $0x1c] sm:$0xf] %v1993
      %2189 = vst [vmem:[#allocation3 + $0x40] sm:$0xf] %v2003
      %2190 = vst [vmem:[#allocation3 + $0x64] sm:$0xf] %v2017
      %2191 = vst [vmem:[#allocation3 + $0x88] sm:$0xf] %v2027
      %2192 = vst [vmem:[#allocation3 + $0xac] sm:$0xf] %v2041
      %2193 = vst [vmem:[#allocation3 + $0xd0] sm:$0xf] %v2051
      %2194 = vst [vmem:[#allocation3 + $0xf4] sm:$0xf] %v2065
      %2195 = vst [vmem:[#allocation3 + $0x118] sm:$0xf] %v2075
      %2196 = vst [vmem:[#allocation3 + $0x13c] sm:$0xf] %v2089
      %2197 = vst [vmem:[#allocation3 + $0x160] sm:$0xf] %v2099
      %2198 = vst [vmem:[#allocation3 + $0x184] sm:$0xf] %v2113
      %2199 = vst [vmem:[#allocation3 + $0x1a8] sm:$0xf] %v2123
      %2200 = vst [vmem:[#allocation3 + $0x1cc] sm:$0xf] %v2137
      %2201 = vst [vmem:[#allocation3 + $0x1f0] sm:$0xf] %v2147
      %2202 = vst [vmem:[#allocation3 + $0x214] sm:$0xf] %v2161
      %2203 = vst [vmem:[#allocation3 + $0x238] sm:$0xf] %v2171
      %v2204 = vld [vmem:[%s1923] sm:$0xe]
      %v2205 = vld [vmem:[%s1923 + $0x4] sm:$0xf]
      %v2206 = vld [vmem:[%s1923 + $0x8] sm:$0x1]
      %v2207 = vld [vmem:[%s1923 + $0xc] sm:$0xe]
      %v2208 = vld [vmem:[%s1923 + $0x10] sm:$0xf]
      %v2209 = vld [vmem:[%s1923 + $0x14] sm:$0x1]
      %v2210 = vld [vmem:[%s1923 + $0x18] sm:$0xe]
      %v2211 = vld [vmem:[%s1923 + $0x1c] sm:$0xf]
      %v2212 = vld [vmem:[%s1923 + $0x20] sm:$0x1]
      %v2213 = vld [vmem:[%s1923 + $0x24] sm:$0xe]
      %v2214 = vld [vmem:[%s1923 + $0x28] sm:$0xf]
      %v2215 = vld [vmem:[%s1923 + $0x2c] sm:$0x1]
      %v2216 = vld [vmem:[%s1923 + $0x30] sm:$0xe]
      %v2217 = vld [vmem:[%s1923 + $0x34] sm:$0xf]
      %v2218 = vld [vmem:[%s1923 + $0x38] sm:$0x1]
      %v2219 = vld [vmem:[%s1923 + $0x3c] sm:$0xe]
      %v2220 = vld [vmem:[%s1923 + $0x40] sm:$0xf]
      %v2221 = vld [vmem:[%s1923 + $0x44] sm:$0x1]
      %v2222 = vld [vmem:[%s1923 + $0x48] sm:$0xe]
      %v2223 = vld [vmem:[%s1923 + $0x4c] sm:$0xf]
      %v2224 = vld [vmem:[%s1923 + $0x50] sm:$0x1]
      %v2225 = vld [vmem:[%s1923 + $0x54] sm:$0xe]
      %v2226 = vld [vmem:[%s1923 + $0x58] sm:$0xf]
      %v2227 = vld [vmem:[%s1923 + $0x5c] sm:$0x1]
      %v2252 = vrot.slane %v2204, 5
      %v2253 = vrot.slane %v2252, 4
      %v2254 = vrot.slane %v2205, 5
      %v2255 = vsel %vm1418, %v2253, %v2254
      %v2256 = vrot.slane %v2254, 4
      %v2257 = vrot.slane %v2206, 5
      %v2258 = vsel %vm1418, %v2256, %v2257
      %v2259 = vrot.slane %v2207, 5
      %v2260 = vrot.slane %v2259, 4
      %v2261 = vrot.slane %v2208, 5
      %v2262 = vsel %vm1418, %v2260, %v2261
      %v2263 = vrot.slane %v2261, 4
      %v2264 = vrot.slane %v2209, 5
      %v2265 = vsel %vm1418, %v2263, %v2264
      %v2266 = vrot.slane %v2210, 5
      %v2267 = vrot.slane %v2266, 4
      %v2268 = vrot.slane %v2211, 5
      %v2269 = vsel %vm1418, %v2267, %v2268
      %v2270 = vrot.slane %v2268, 4
      %v2271 = vrot.slane %v2212, 5
      %v2272 = vsel %vm1418, %v2270, %v2271
      %v2273 = vrot.slane %v2213, 5
      %v2274 = vrot.slane %v2273, 4
      %v2275 = vrot.slane %v2214, 5
      %v2276 = vsel %vm1418, %v2274, %v2275
      %v2277 = vrot.slane %v2275, 4
      %v2278 = vrot.slane %v2215, 5
      %v2279 = vsel %vm1418, %v2277, %v2278
      %v2280 = vrot.slane %v2216, 5
      %v2281 = vrot.slane %v2280, 4
      %v2282 = vrot.slane %v2217, 5
      %v2283 = vsel %vm1418, %v2281, %v2282
      %v2284 = vrot.slane %v2282, 4
      %v2285 = vrot.slane %v2218, 5
      %v2286 = vsel %vm1418, %v2284, %v2285
      %v2287 = vrot.slane %v2219, 5
      %v2288 = vrot.slane %v2287, 4
      %v2289 = vrot.slane %v2220, 5
      %v2290 = vsel %vm1418, %v2288, %v2289
      %v2291 = vrot.slane %v2289, 4
      %v2292 = vrot.slane %v2221, 5
      %v2293 = vsel %vm1418, %v2291, %v2292
      %v2294 = vrot.slane %v2222, 5
      %v2295 = vrot.slane %v2294, 4
      %v2296 = vrot.slane %v2223, 5
      %v2297 = vsel %vm1418, %v2295, %v2296
      %v2298 = vrot.slane %v2296, 4
      %v2299 = vrot.slane %v2224, 5
      %v2300 = vsel %vm1418, %v2298, %v2299
      %v2301 = vrot.slane %v2225, 5
      %v2302 = vrot.slane %v2301, 4
      %v2303 = vrot.slane %v2226, 5
      %v2304 = vsel %vm1418, %v2302, %v2303
      %v2305 = vrot.slane %v2303, 4
      %v2306 = vrot.slane %v2227, 5
      %v2307 = vsel %vm1418, %v2305, %v2306
      %2324 = vst [vmem:[#allocation3 + $0x20] sm:$0xf] %v2255
      %2325 = vst [vmem:[#allocation3 + $0x44] sm:$0xf] %v2258
      %2326 = vst [vmem:[#allocation3 + $0x68] sm:$0xf] %v2262
      %2327 = vst [vmem:[#allocation3 + $0x8c] sm:$0xf] %v2265
      %2328 = vst [vmem:[#allocation3 + $0xb0] sm:$0xf] %v2269
      %2329 = vst [vmem:[#allocation3 + $0xd4] sm:$0xf] %v2272
      %2330 = vst [vmem:[#allocation3 + $0xf8] sm:$0xf] %v2276
      %2331 = vst [vmem:[#allocation3 + $0x11c] sm:$0xf] %v2279
      %2332 = vst [vmem:[#allocation3 + $0x140] sm:$0xf] %v2283
      %2333 = vst [vmem:[#allocation3 + $0x164] sm:$0xf] %v2286
      %2334 = vst [vmem:[#allocation3 + $0x188] sm:$0xf] %v2290
      %2335 = vst [vmem:[#allocation3 + $0x1ac] sm:$0xf] %v2293
      %2336 = vst [vmem:[#allocation3 + $0x1d0] sm:$0xf] %v2297
      %2337 = vst [vmem:[#allocation3 + $0x1f4] sm:$0xf] %v2300
      %2338 = vst [vmem:[#allocation3 + $0x218] sm:$0xf] %v2304
      %2339 = vst [vmem:[#allocation3 + $0x23c] sm:$0xf] %v2307
      %v2340 = vld [vmem:[#allocation3] sm:$0xff]
      %v2341 = vld [vmem:[#allocation3 + $0x8] sm:$0xff]
      %v2342 = vld [vmem:[#allocation3 + $0x10] sm:$0xff]
      %v2343 = vld [vmem:[#allocation3 + $0x18] sm:$0xff]
      %v2344 = vld [vmem:[#allocation3 + $0x20] sm:$0xf]
      %v2345 = vld [vmem:[#allocation3 + $0x24] sm:$0xff]
      %v2346 = vld [vmem:[#allocation3 + $0x2c] sm:$0xff]
      %v2347 = vld [vmem:[#allocation3 + $0x34] sm:$0xff]
      %v2348 = vld [vmem:[#allocation3 + $0x3c] sm:$0xff]
      %v2349 = vld [vmem:[#allocation3 + $0x44] sm:$0xf]
      %v2350 = vld [vmem:[#allocation3 + $0x48] sm:$0xff]
      %v2351 = vld [vmem:[#allocation3 + $0x50] sm:$0xff]
      %v2352 = vld [vmem:[#allocation3 + $0x58] sm:$0xff]
      %v2353 = vld [vmem:[#allocation3 + $0x60] sm:$0xff]
      %v2354 = vld [vmem:[#allocation3 + $0x68] sm:$0xf]
      %v2355 = vld [vmem:[#allocation3 + $0x6c] sm:$0xff]
      %v2356 = vld [vmem:[#allocation3 + $0x74] sm:$0xff]
      %v2357 = vld [vmem:[#allocation3 + $0x7c] sm:$0xff]
      %v2358 = vld [vmem:[#allocation3 + $0x84] sm:$0xff]
      %v2359 = vld [vmem:[#allocation3 + $0x8c] sm:$0xf]
      %v2360 = vld [vmem:[#allocation3 + $0x90] sm:$0xff]
      %v2361 = vld [vmem:[#allocation3 + $0x98] sm:$0xff]
      %v2362 = vld [vmem:[#allocation3 + $0xa0] sm:$0xff]
      %v2363 = vld [vmem:[#allocation3 + $0xa8] sm:$0xff]
      %v2364 = vld [vmem:[#allocation3 + $0xb0] sm:$0xf]
      %v2365 = vld [vmem:[#allocation3 + $0xb4] sm:$0xff]
      %v2366 = vld [vmem:[#allocation3 + $0xbc] sm:$0xff]
      %v2367 = vld [vmem:[#allocation3 + $0xc4] sm:$0xff]
      %v2368 = vld [vmem:[#allocation3 + $0xcc] sm:$0xff]
      %v2369 = vld [vmem:[#allocation3 + $0xd4] sm:$0xf]
      %v2370 = vld [vmem:[#allocation3 + $0xd8] sm:$0xff]
      %v2371 = vld [vmem:[#allocation3 + $0xe0] sm:$0xff]
      %v2372 = vld [vmem:[#allocation3 + $0xe8] sm:$0xff]
      %v2373 = vld [vmem:[#allocation3 + $0xf0] sm:$0xff]
      %v2374 = vld [vmem:[#allocation3 + $0xf8] sm:$0xf]
      %v2375 = vld [vmem:[#allocation3 + $0xfc] sm:$0xff]
      %v2376 = vld [vmem:[#allocation3 + $0x104] sm:$0xff]
      %v2377 = vld [vmem:[#allocation3 + $0x10c] sm:$0xff]
      %v2378 = vld [vmem:[#allocation3 + $0x114] sm:$0xff]
      %v2379 = vld [vmem:[#allocation3 + $0x11c] sm:$0xf]
      %v2380 = vld [vmem:[#allocation3 + $0x120] sm:$0xff]
      %v2381 = vld [vmem:[#allocation3 + $0x128] sm:$0xff]
      %v2382 = vld [vmem:[#allocation3 + $0x130] sm:$0xff]
      %v2383 = vld [vmem:[#allocation3 + $0x138] sm:$0xff]
      %v2384 = vld [vmem:[#allocation3 + $0x140] sm:$0xf]
      %v2385 = vld [vmem:[#allocation3 + $0x144] sm:$0xff]
      %v2386 = vld [vmem:[#allocation3 + $0x14c] sm:$0xff]
      %v2387 = vld [vmem:[#allocation3 + $0x154] sm:$0xff]
      %v2388 = vld [vmem:[#allocation3 + $0x15c] sm:$0xff]
      %v2389 = vld [vmem:[#allocation3 + $0x164] sm:$0xf]
      %v2390 = vld [vmem:[#allocation3 + $0x168] sm:$0xff]
      %v2391 = vld [vmem:[#allocation3 + $0x170] sm:$0xff]
      %v2392 = vld [vmem:[#allocation3 + $0x178] sm:$0xff]
      %v2393 = vld [vmem:[#allocation3 + $0x180] sm:$0xff]
      %v2394 = vld [vmem:[#allocation3 + $0x188] sm:$0xf]
      %v2395 = vld [vmem:[#allocation3 + $0x18c] sm:$0xff]
      %v2396 = vld [vmem:[#allocation3 + $0x194] sm:$0xff]
      %v2397 = vld [vmem:[#allocation3 + $0x19c] sm:$0xff]
      %v2398 = vld [vmem:[#allocation3 + $0x1a4] sm:$0xff]
      %v2399 = vld [vmem:[#allocation3 + $0x1ac] sm:$0xf]
      %v2400 = vld [vmem:[#allocation3 + $0x1b0] sm:$0xff]
      %v2401 = vld [vmem:[#allocation3 + $0x1b8] sm:$0xff]
      %v2402 = vld [vmem:[#allocation3 + $0x1c0] sm:$0xff]
      %v2403 = vld [vmem:[#allocation3 + $0x1c8] sm:$0xff]
      %v2404 = vld [vmem:[#allocation3 + $0x1d0] sm:$0xf]
      %v2405 = vld [vmem:[#allocation3 + $0x1d4] sm:$0xff]
      %v2406 = vld [vmem:[#allocation3 + $0x1dc] sm:$0xff]
      %v2407 = vld [vmem:[#allocation3 + $0x1e4] sm:$0xff]
      %v2408 = vld [vmem:[#allocation3 + $0x1ec] sm:$0xff]
      %v2409 = vld [vmem:[#allocation3 + $0x1f4] sm:$0xf]
      %v2410 = vld [vmem:[#allocation3 + $0x1f8] sm:$0xff]
      %v2411 = vld [vmem:[#allocation3 + $0x200] sm:$0xff]
      %v2412 = vld [vmem:[#allocation3 + $0x208] sm:$0xff]
      %v2413 = vld [vmem:[#allocation3 + $0x210] sm:$0xff]
      %v2414 = vld [vmem:[#allocation3 + $0x218] sm:$0xf]
      %v2415 = vld [vmem:[#allocation3 + $0x21c] sm:$0xff]
      %v2416 = vld [vmem:[#allocation3 + $0x224] sm:$0xff]
      %v2417 = vld [vmem:[#allocation3 + $0x22c] sm:$0xff]
      %v2418 = vld [vmem:[#allocation3 + $0x234] sm:$0xff]
      %v2419 = vld [vmem:[#allocation3 + $0x23c] sm:$0xf]
      %v2420 = vld [vmem:[%s3] sm:$0xf]
      %v2421 = vld [vmem:[%s3 + $0x4] sm:$0xf]
      %v2422 = vld [vmem:[%s3 + $0x8] sm:$0xf]
      %v2423 = vld [vmem:[%s3 + $0xc] sm:$0xf]
      %v2424 = vld [vmem:[%s3 + $0x10] sm:$0xf]
      %v2425 = vld [vmem:[%s3 + $0x14] sm:$0xf]
      %v2426 = vld [vmem:[%s3 + $0x18] sm:$0xf]
      %v2427 = vld [vmem:[%s3 + $0x1c] sm:$0xf]
      %v2428 = vld [vmem:[%s3 + $0x20] sm:$0xf]
      %v2429 = vld [vmem:[%s3 + $0x24] sm:$0xf]
      %v2430 = vld [vmem:[%s3 + $0x28] sm:$0xf]
      %v2431 = vld [vmem:[%s3 + $0x2c] sm:$0xf]
      %v2432 = vld [vmem:[%s3 + $0x30] sm:$0xf]
      %v2433 = vld [vmem:[%s3 + $0x34] sm:$0xf]
      %v2434 = vld [vmem:[%s3 + $0x38] sm:$0xf]
      %v2435 = vld [vmem:[%s3 + $0x3c] sm:$0xf]
      %v2436 = vld [vmem:[%s3 + $0x40] sm:$0xf]
      %v2437 = vld [vmem:[%s3 + $0x44] sm:$0xf]
      %v2438 = vld [vmem:[%s3 + $0x48] sm:$0xf]
      %v2439 = vld [vmem:[%s3 + $0x4c] sm:$0xf]
      %v2440 = vld [vmem:[%s3 + $0x50] sm:$0xf]
      %v2441 = vld [vmem:[%s3 + $0x54] sm:$0xf]
      %v2442 = vld [vmem:[%s3 + $0x58] sm:$0xf]
      %v2443 = vld [vmem:[%s3 + $0x5c] sm:$0xf]
      %v2444 = vld [vmem:[%s3 + $0x60] sm:$0xf]
      %v2445 = vld [vmem:[%s3 + $0x64] sm:$0xf]
      %v2446 = vld [vmem:[%s3 + $0x68] sm:$0xf]
      %v2447 = vld [vmem:[%s3 + $0x6c] sm:$0xf]
      %v2448 = vld [vmem:[%s3 + $0x70] sm:$0xf]
      %v2449 = vld [vmem:[%s3 + $0x74] sm:$0xf]
      %v2450 = vld [vmem:[%s3 + $0x78] sm:$0xf]
      %v2451 = vld [vmem:[%s3 + $0x7c] sm:$0xf]
      %v2452 = vld [vmem:[%s3 + $0x80] sm:$0xf]
      %v2453 = vld [vmem:[%s3 + $0x84] sm:$0xf]
      %v2454 = vld [vmem:[%s3 + $0x88] sm:$0xf]
      %v2455 = vld [vmem:[%s3 + $0x8c] sm:$0xf]
      %v2456 = vld [vmem:[%s3 + $0x90] sm:$0xf]
      %v2457 = vld [vmem:[%s3 + $0x94] sm:$0xf]
      %v2458 = vld [vmem:[%s3 + $0x98] sm:$0xf]
      %v2459 = vld [vmem:[%s3 + $0x9c] sm:$0xf]
      %v2460 = vld [vmem:[%s3 + $0xa0] sm:$0xf]
      %v2461 = vld [vmem:[%s3 + $0xa4] sm:$0xf]
      %v2462 = vld [vmem:[%s3 + $0xa8] sm:$0xf]
      %v2463 = vld [vmem:[%s3 + $0xac] sm:$0xf]
      %v2464 = vld [vmem:[%s3 + $0xb0] sm:$0xf]
      %v2465 = vld [vmem:[%s3 + $0xb4] sm:$0xf]
      %v2466 = vld [vmem:[%s3 + $0xb8] sm:$0xf]
      %v2467 = vld [vmem:[%s3 + $0xbc] sm:$0xf]
      %v2468 = vld [vmem:[%s3 + $0xc0] sm:$0xf]
      %v2469 = vld [vmem:[%s3 + $0xc4] sm:$0xf]
      %v2470 = vld [vmem:[%s3 + $0xc8] sm:$0xf]
      %v2471 = vld [vmem:[%s3 + $0xcc] sm:$0xf]
      %v2472 = vld [vmem:[%s3 + $0xd0] sm:$0xf]
      %v2473 = vld [vmem:[%s3 + $0xd4] sm:$0xf]
      %v2474 = vld [vmem:[%s3 + $0xd8] sm:$0xf]
      %v2475 = vld [vmem:[%s3 + $0xdc] sm:$0xf]
      %v2476 = vld [vmem:[%s3 + $0xe0] sm:$0xf]
      %v2477 = vld [vmem:[%s3 + $0xe4] sm:$0xf]
      %v2478 = vld [vmem:[%s3 + $0xe8] sm:$0xf]
      %v2479 = vld [vmem:[%s3 + $0xec] sm:$0xf]
      %v2480 = vld [vmem:[%s3 + $0xf0] sm:$0xf]
      %v2481 = vld [vmem:[%s3 + $0xf4] sm:$0xf]
      %v2482 = vld [vmem:[%s3 + $0xf8] sm:$0xf]
      %v2483 = vld [vmem:[%s3 + $0xfc] sm:$0xf]
      %v2484 = vld [vmem:[%s3 + $0x100] sm:$0xf]
      %v2485 = vld [vmem:[%s3 + $0x104] sm:$0xf]
      %v2486 = vld [vmem:[%s3 + $0x108] sm:$0xf]
      %v2487 = vld [vmem:[%s3 + $0x10c] sm:$0xf]
      %v2488 = vld [vmem:[%s3 + $0x110] sm:$0xf]
      %v2489 = vld [vmem:[%s3 + $0x114] sm:$0xf]
      %v2490 = vld [vmem:[%s3 + $0x118] sm:$0xf]
      %v2491 = vld [vmem:[%s3 + $0x11c] sm:$0xf]
      %v2492 = vld [vmem:[%s3 + $0x120] sm:$0xf]
      %v2493 = vld [vmem:[%s3 + $0x124] sm:$0xf]
      %v2494 = vld [vmem:[%s3 + $0x128] sm:$0xf]
      %v2495 = vld [vmem:[%s3 + $0x12c] sm:$0xf]
      %v2496 = vld [vmem:[%s3 + $0x130] sm:$0xf]
      %v2497 = vld [vmem:[%s3 + $0x134] sm:$0xf]
      %v2498 = vld [vmem:[%s3 + $0x138] sm:$0xf]
      %v2499 = vld [vmem:[%s3 + $0x13c] sm:$0xf]
      %v2500 = vld [vmem:[%s3 + $0x140] sm:$0xf]
      %v2501 = vld [vmem:[%s3 + $0x144] sm:$0xf]
      %v2502 = vld [vmem:[%s3 + $0x148] sm:$0xf]
      %v2503 = vld [vmem:[%s3 + $0x14c] sm:$0xf]
      %v2504 = vld [vmem:[%s3 + $0x150] sm:$0xf]
      %v2505 = vld [vmem:[%s3 + $0x154] sm:$0xf]
      %v2506 = vld [vmem:[%s3 + $0x158] sm:$0xf]
      %v2507 = vld [vmem:[%s3 + $0x15c] sm:$0xf]
      %v2508 = vld [vmem:[%s3 + $0x160] sm:$0xf]
      %v2509 = vld [vmem:[%s3 + $0x164] sm:$0xf]
      %v2510 = vld [vmem:[%s3 + $0x168] sm:$0xf]
      %v2511 = vld [vmem:[%s3 + $0x16c] sm:$0xf]
      %v2512 = vld [vmem:[%s3 + $0x170] sm:$0xf]
      %v2513 = vld [vmem:[%s3 + $0x174] sm:$0xf]
      %v2514 = vld [vmem:[%s3 + $0x178] sm:$0xf]
      %v2515 = vld [vmem:[%s3 + $0x17c] sm:$0xf]
      %v2516 = vld [vmem:[%s3 + $0x180] sm:$0xf]
      %v2517 = vld [vmem:[%s3 + $0x184] sm:$0xf]
      %v2518 = vld [vmem:[%s3 + $0x188] sm:$0xf]
      %v2519 = vld [vmem:[%s3 + $0x18c] sm:$0xf]
      %v2520 = vld [vmem:[%s3 + $0x190] sm:$0xf]
      %v2521 = vld [vmem:[%s3 + $0x194] sm:$0xf]
      %v2522 = vld [vmem:[%s3 + $0x198] sm:$0xf]
      %v2523 = vld [vmem:[%s3 + $0x19c] sm:$0xf]
      %v2524 = vld [vmem:[%s3 + $0x1a0] sm:$0xf]
      %v2525 = vld [vmem:[%s3 + $0x1a4] sm:$0xf]
      %v2526 = vld [vmem:[%s3 + $0x1a8] sm:$0xf]
      %v2527 = vld [vmem:[%s3 + $0x1ac] sm:$0xf]
      %v2528 = vld [vmem:[%s3 + $0x1b0] sm:$0xf]
      %v2529 = vld [vmem:[%s3 + $0x1b4] sm:$0xf]
      %v2530 = vld [vmem:[%s3 + $0x1b8] sm:$0xf]
      %v2531 = vld [vmem:[%s3 + $0x1bc] sm:$0xf]
      %v2532 = vld [vmem:[%s3 + $0x1c0] sm:$0xf]
      %v2533 = vld [vmem:[%s3 + $0x1c4] sm:$0xf]
      %v2534 = vld [vmem:[%s3 + $0x1c8] sm:$0xf]
      %v2535 = vld [vmem:[%s3 + $0x1cc] sm:$0xf]
      %v2536 = vld [vmem:[%s3 + $0x1d0] sm:$0xf]
      %v2537 = vld [vmem:[%s3 + $0x1d4] sm:$0xf]
      %v2538 = vld [vmem:[%s3 + $0x1d8] sm:$0xf]
      %v2539 = vld [vmem:[%s3 + $0x1dc] sm:$0xf]
      %v2540 = vld [vmem:[%s3 + $0x1e0] sm:$0xf]
      %v2541 = vld [vmem:[%s3 + $0x1e4] sm:$0xf]
      %v2542 = vld [vmem:[%s3 + $0x1e8] sm:$0xf]
      %v2543 = vld [vmem:[%s3 + $0x1ec] sm:$0xf]
      %v2544 = vld [vmem:[%s3 + $0x1f0] sm:$0xf]
      %v2545 = vld [vmem:[%s3 + $0x1f4] sm:$0xf]
      %v2546 = vld [vmem:[%s3 + $0x1f8] sm:$0xf]
      %v2547 = vld [vmem:[%s3 + $0x1fc] sm:$0xf]
      %v2548 = vld [vmem:[%s3 + $0x200] sm:$0xf]
      %v2549 = vld [vmem:[%s3 + $0x204] sm:$0xf]
      %v2550 = vld [vmem:[%s3 + $0x208] sm:$0xf]
      %v2551 = vld [vmem:[%s3 + $0x20c] sm:$0xf]
      %v2552 = vld [vmem:[%s3 + $0x210] sm:$0xf]
      %v2553 = vld [vmem:[%s3 + $0x214] sm:$0xf]
      %v2554 = vld [vmem:[%s3 + $0x218] sm:$0xf]
      %v2555 = vld [vmem:[%s3 + $0x21c] sm:$0xf]
      %v2556 = vld [vmem:[%s3 + $0x220] sm:$0xf]
      %v2557 = vld [vmem:[%s3 + $0x224] sm:$0xf]
      %v2558 = vld [vmem:[%s3 + $0x228] sm:$0xf]
      %v2559 = vld [vmem:[%s3 + $0x22c] sm:$0xf]
      %v2560 = vld [vmem:[%s3 + $0x230] sm:$0xf]
      %v2561 = vld [vmem:[%s3 + $0x234] sm:$0xf]
      %v2562 = vld [vmem:[%s3 + $0x238] sm:$0xf]
      %v2563 = vld [vmem:[%s3 + $0x23c] sm:$0xf]
      %v2564 = vld [vmem:[%s4] sm:$0x1]
      %v2566 = vlaneseq
      %v2567 = vshrl.u32 %v2566, 7
      %v2568 = vsub.s32 0, %v2567
      %v2569 = vrot.slane %v2564, %v2568
      %v2651 = vunpack.c.l.b16 %v2340
      %v2652 = vunpack.c.h.b16 %v2340
      %v2653 = vunpack.c.l.b16 %v2341
      %v2654 = vunpack.c.h.b16 %v2341
      %v2655 = vunpack.c.l.b16 %v2342
      %v2656 = vunpack.c.h.b16 %v2342
      %v2657 = vunpack.c.l.b16 %v2343
      %v2658 = vunpack.c.h.b16 %v2343
      %v2659 = vunpack.c.l.b16 %v2344
      %v2660 = vunpack.c.l.b16 %v2345
      %v2661 = vunpack.c.h.b16 %v2345
      %v2662 = vunpack.c.l.b16 %v2346
      %v2663 = vunpack.c.h.b16 %v2346
      %v2664 = vunpack.c.l.b16 %v2347
      %v2665 = vunpack.c.h.b16 %v2347
      %v2666 = vunpack.c.l.b16 %v2348
      %v2667 = vunpack.c.h.b16 %v2348
      %v2668 = vunpack.c.l.b16 %v2349
      %v2669 = vunpack.c.l.b16 %v2350
      %v2670 = vunpack.c.h.b16 %v2350
      %v2671 = vunpack.c.l.b16 %v2351
      %v2672 = vunpack.c.h.b16 %v2351
      %v2673 = vunpack.c.l.b16 %v2352
      %v2674 = vunpack.c.h.b16 %v2352
      %v2675 = vunpack.c.l.b16 %v2353
      %v2676 = vunpack.c.h.b16 %v2353
      %v2677 = vunpack.c.l.b16 %v2354
      %v2678 = vunpack.c.l.b16 %v2355
      %v2679 = vunpack.c.h.b16 %v2355
      %v2680 = vunpack.c.l.b16 %v2356
      %v2681 = vunpack.c.h.b16 %v2356
      %v2682 = vunpack.c.l.b16 %v2357
      %v2683 = vunpack.c.h.b16 %v2357
      %v2684 = vunpack.c.l.b16 %v2358
      %v2685 = vunpack.c.h.b16 %v2358
      %v2686 = vunpack.c.l.b16 %v2359
      %v2687 = vunpack.c.l.b16 %v2360
      %v2688 = vunpack.c.h.b16 %v2360
      %v2689 = vunpack.c.l.b16 %v2361
      %v2690 = vunpack.c.h.b16 %v2361
      %v2691 = vunpack.c.l.b16 %v2362
      %v2692 = vunpack.c.h.b16 %v2362
      %v2693 = vunpack.c.l.b16 %v2363
      %v2694 = vunpack.c.h.b16 %v2363
      %v2695 = vunpack.c.l.b16 %v2364
      %v2696 = vunpack.c.l.b16 %v2365
      %v2697 = vunpack.c.h.b16 %v2365
      %v2698 = vunpack.c.l.b16 %v2366
      %v2699 = vunpack.c.h.b16 %v2366
      %v2700 = vunpack.c.l.b16 %v2367
      %v2701 = vunpack.c.h.b16 %v2367
      %v2702 = vunpack.c.l.b16 %v2368
      %v2703 = vunpack.c.h.b16 %v2368
      %v2704 = vunpack.c.l.b16 %v2369
      %v2705 = vunpack.c.l.b16 %v2370
      %v2706 = vunpack.c.h.b16 %v2370
      %v2707 = vunpack.c.l.b16 %v2371
      %v2708 = vunpack.c.h.b16 %v2371
      %v2709 = vunpack.c.l.b16 %v2372
      %v2710 = vunpack.c.h.b16 %v2372
      %v2711 = vunpack.c.l.b16 %v2373
      %v2712 = vunpack.c.h.b16 %v2373
      %v2713 = vunpack.c.l.b16 %v2374
      %v2714 = vunpack.c.l.b16 %v2375
      %v2715 = vunpack.c.h.b16 %v2375
      %v2716 = vunpack.c.l.b16 %v2376
      %v2717 = vunpack.c.h.b16 %v2376
      %v2718 = vunpack.c.l.b16 %v2377
      %v2719 = vunpack.c.h.b16 %v2377
      %v2720 = vunpack.c.l.b16 %v2378
      %v2721 = vunpack.c.h.b16 %v2378
      %v2722 = vunpack.c.l.b16 %v2379
      %v2723 = vunpack.c.l.b16 %v2380
      %v2724 = vunpack.c.h.b16 %v2380
      %v2725 = vunpack.c.l.b16 %v2381
      %v2726 = vunpack.c.h.b16 %v2381
      %v2727 = vunpack.c.l.b16 %v2382
      %v2728 = vunpack.c.h.b16 %v2382
      %v2729 = vunpack.c.l.b16 %v2383
      %v2730 = vunpack.c.h.b16 %v2383
      %v2731 = vunpack.c.l.b16 %v2384
      %v2732 = vunpack.c.l.b16 %v2385
      %v2733 = vunpack.c.h.b16 %v2385
      %v2734 = vunpack.c.l.b16 %v2386
      %v2735 = vunpack.c.h.b16 %v2386
      %v2736 = vunpack.c.l.b16 %v2387
      %v2737 = vunpack.c.h.b16 %v2387
      %v2738 = vunpack.c.l.b16 %v2388
      %v2739 = vunpack.c.h.b16 %v2388
      %v2740 = vunpack.c.l.b16 %v2389
      %v2741 = vunpack.c.l.b16 %v2390
      %v2742 = vunpack.c.h.b16 %v2390
      %v2743 = vunpack.c.l.b16 %v2391
      %v2744 = vunpack.c.h.b16 %v2391
      %v2745 = vunpack.c.l.b16 %v2392
      %v2746 = vunpack.c.h.b16 %v2392
      %v2747 = vunpack.c.l.b16 %v2393
      %v2748 = vunpack.c.h.b16 %v2393
      %v2749 = vunpack.c.l.b16 %v2394
      %v2750 = vunpack.c.l.b16 %v2395
      %v2751 = vunpack.c.h.b16 %v2395
      %v2752 = vunpack.c.l.b16 %v2396
      %v2753 = vunpack.c.h.b16 %v2396
      %v2754 = vunpack.c.l.b16 %v2397
      %v2755 = vunpack.c.h.b16 %v2397
      %v2756 = vunpack.c.l.b16 %v2398
      %v2757 = vunpack.c.h.b16 %v2398
      %v2758 = vunpack.c.l.b16 %v2399
      %v2759 = vunpack.c.l.b16 %v2400
      %v2760 = vunpack.c.h.b16 %v2400
      %v2761 = vunpack.c.l.b16 %v2401
      %v2762 = vunpack.c.h.b16 %v2401
      %v2763 = vunpack.c.l.b16 %v2402
      %v2764 = vunpack.c.h.b16 %v2402
      %v2765 = vunpack.c.l.b16 %v2403
      %v2766 = vunpack.c.h.b16 %v2403
      %v2767 = vunpack.c.l.b16 %v2404
      %v2768 = vunpack.c.l.b16 %v2405
      %v2769 = vunpack.c.h.b16 %v2405
      %v2770 = vunpack.c.l.b16 %v2406
      %v2771 = vunpack.c.h.b16 %v2406
      %v2772 = vunpack.c.l.b16 %v2407
      %v2773 = vunpack.c.h.b16 %v2407
      %v2774 = vunpack.c.l.b16 %v2408
      %v2775 = vunpack.c.h.b16 %v2408
      %v2776 = vunpack.c.l.b16 %v2409
      %v2777 = vunpack.c.l.b16 %v2410
      %v2778 = vunpack.c.h.b16 %v2410
      %v2779 = vunpack.c.l.b16 %v2411
      %v2780 = vunpack.c.h.b16 %v2411
      %v2781 = vunpack.c.l.b16 %v2412
      %v2782 = vunpack.c.h.b16 %v2412
      %v2783 = vunpack.c.l.b16 %v2413
      %v2784 = vunpack.c.h.b16 %v2413
      %v2785 = vunpack.c.l.b16 %v2414
      %v2786 = vunpack.c.l.b16 %v2415
      %v2787 = vunpack.c.h.b16 %v2415
      %v2788 = vunpack.c.l.b16 %v2416
      %v2789 = vunpack.c.h.b16 %v2416
      %v2790 = vunpack.c.l.b16 %v2417
      %v2791 = vunpack.c.h.b16 %v2417
      %v2792 = vunpack.c.l.b16 %v2418
      %v2793 = vunpack.c.h.b16 %v2418
      %v2794 = vunpack.c.l.b16 %v2419
      %v2795 = vpack.c.b16 %v2660, %v2651
      %v2796 = vpack.c.b16 %v2661, %v2652
      %v2797 = vpack.c.b16 %v2662, %v2653
      %v2798 = vpack.c.b16 %v2663, %v2654
      %v2799 = vpack.c.b16 %v2664, %v2655
      %v2800 = vpack.c.b16 %v2665, %v2656
      %v2801 = vpack.c.b16 %v2666, %v2657
      %v2802 = vpack.c.b16 %v2667, %v2658
      %v2803 = vpack.c.b16 %v2668, %v2659
      %v2804 = vpack.c.b16 %v2678, %v2669
      %v2805 = vpack.c.b16 %v2679, %v2670
      %v2806 = vpack.c.b16 %v2680, %v2671
      %v2807 = vpack.c.b16 %v2681, %v2672
      %v2808 = vpack.c.b16 %v2682, %v2673
      %v2809 = vpack.c.b16 %v2683, %v2674
      %v2810 = vpack.c.b16 %v2684, %v2675
      %v2811 = vpack.c.b16 %v2685, %v2676
      %v2812 = vpack.c.b16 %v2686, %v2677
      %v2813 = vpack.c.b16 %v2696, %v2687
      %v2814 = vpack.c.b16 %v2697, %v2688
      %v2815 = vpack.c.b16 %v2698, %v2689
      %v2816 = vpack.c.b16 %v2699, %v2690
      %v2817 = vpack.c.b16 %v2700, %v2691
      %v2818 = vpack.c.b16 %v2701, %v2692
      %v2819 = vpack.c.b16 %v2702, %v2693
      %v2820 = vpack.c.b16 %v2703, %v2694
      %v2821 = vpack.c.b16 %v2704, %v2695
      %v2822 = vpack.c.b16 %v2714, %v2705
      %v2823 = vpack.c.b16 %v2715, %v2706
      %v2824 = vpack.c.b16 %v2716, %v2707
      %v2825 = vpack.c.b16 %v2717, %v2708
      %v2826 = vpack.c.b16 %v2718, %v2709
      %v2827 = vpack.c.b16 %v2719, %v2710
      %v2828 = vpack.c.b16 %v2720, %v2711
      %v2829 = vpack.c.b16 %v2721, %v2712
      %v2830 = vpack.c.b16 %v2722, %v2713
      %v2831 = vpack.c.b16 %v2732, %v2723
      %v2832 = vpack.c.b16 %v2733, %v2724
      %v2833 = vpack.c.b16 %v2734, %v2725
      %v2834 = vpack.c.b16 %v2735, %v2726
      %v2835 = vpack.c.b16 %v2736, %v2727
      %v2836 = vpack.c.b16 %v2737, %v2728
      %v2837 = vpack.c.b16 %v2738, %v2729
      %v2838 = vpack.c.b16 %v2739, %v2730
      %v2839 = vpack.c.b16 %v2740, %v2731
      %v2840 = vpack.c.b16 %v2750, %v2741
      %v2841 = vpack.c.b16 %v2751, %v2742
      %v2842 = vpack.c.b16 %v2752, %v2743
      %v2843 = vpack.c.b16 %v2753, %v2744
      %v2844 = vpack.c.b16 %v2754, %v2745
      %v2845 = vpack.c.b16 %v2755, %v2746
      %v2846 = vpack.c.b16 %v2756, %v2747
      %v2847 = vpack.c.b16 %v2757, %v2748
      %v2848 = vpack.c.b16 %v2758, %v2749
      %v2849 = vpack.c.b16 %v2768, %v2759
      %v2850 = vpack.c.b16 %v2769, %v2760
      %v2851 = vpack.c.b16 %v2770, %v2761
      %v2852 = vpack.c.b16 %v2771, %v2762
      %v2853 = vpack.c.b16 %v2772, %v2763
      %v2854 = vpack.c.b16 %v2773, %v2764
      %v2855 = vpack.c.b16 %v2774, %v2765
      %v2856 = vpack.c.b16 %v2775, %v2766
      %v2857 = vpack.c.b16 %v2776, %v2767
      %v2858 = vpack.c.b16 %v2786, %v2777
      %v2859 = vpack.c.b16 %v2787, %v2778
      %v2860 = vpack.c.b16 %v2788, %v2779
      %v2861 = vpack.c.b16 %v2789, %v2780
      %v2862 = vpack.c.b16 %v2790, %v2781
      %v2863 = vpack.c.b16 %v2791, %v2782
      %v2864 = vpack.c.b16 %v2792, %v2783
      %v2865 = vpack.c.b16 %v2793, %v2784
      %v2866 = vpack.c.b16 %v2794, %v2785
      %v3083 = vunpack.c.l.b16 %v2420
      %v3084 = vunpack.c.l.b16 %v2421
      %v3085 = vunpack.c.l.b16 %v2422
      %v3086 = vunpack.c.l.b16 %v2423
      %v3087 = vunpack.c.l.b16 %v2424
      %v3088 = vunpack.c.l.b16 %v2425
      %v3089 = vunpack.c.l.b16 %v2426
      %v3090 = vunpack.c.l.b16 %v2427
      %v3091 = vunpack.c.l.b16 %v2428
      %v3092 = vunpack.c.l.b16 %v2429
      %v3093 = vunpack.c.l.b16 %v2430
      %v3094 = vunpack.c.l.b16 %v2431
      %v3095 = vunpack.c.l.b16 %v2432
      %v3096 = vunpack.c.l.b16 %v2433
      %v3097 = vunpack.c.l.b16 %v2434
      %v3098 = vunpack.c.l.b16 %v2435
      %v3099 = vunpack.c.l.b16 %v2436
      %v3100 = vunpack.c.l.b16 %v2437
      %v3101 = vunpack.c.l.b16 %v2438
      %v3102 = vunpack.c.l.b16 %v2439
      %v3103 = vunpack.c.l.b16 %v2440
      %v3104 = vunpack.c.l.b16 %v2441
      %v3105 = vunpack.c.l.b16 %v2442
      %v3106 = vunpack.c.l.b16 %v2443
      %v3107 = vunpack.c.l.b16 %v2444
      %v3108 = vunpack.c.l.b16 %v2445
      %v3109 = vunpack.c.l.b16 %v2446
      %v3110 = vunpack.c.l.b16 %v2447
      %v3111 = vunpack.c.l.b16 %v2448
      %v3112 = vunpack.c.l.b16 %v2449
      %v3113 = vunpack.c.l.b16 %v2450
      %v3114 = vunpack.c.l.b16 %v2451
      %v3115 = vunpack.c.l.b16 %v2452
      %v3116 = vunpack.c.l.b16 %v2453
      %v3117 = vunpack.c.l.b16 %v2454
      %v3118 = vunpack.c.l.b16 %v2455
      %v3119 = vunpack.c.l.b16 %v2456
      %v3120 = vunpack.c.l.b16 %v2457
      %v3121 = vunpack.c.l.b16 %v2458
      %v3122 = vunpack.c.l.b16 %v2459
      %v3123 = vunpack.c.l.b16 %v2460
      %v3124 = vunpack.c.l.b16 %v2461
      %v3125 = vunpack.c.l.b16 %v2462
      %v3126 = vunpack.c.l.b16 %v2463
      %v3127 = vunpack.c.l.b16 %v2464
      %v3128 = vunpack.c.l.b16 %v2465
      %v3129 = vunpack.c.l.b16 %v2466
      %v3130 = vunpack.c.l.b16 %v2467
      %v3131 = vunpack.c.l.b16 %v2468
      %v3132 = vunpack.c.l.b16 %v2469
      %v3133 = vunpack.c.l.b16 %v2470
      %v3134 = vunpack.c.l.b16 %v2471
      %v3135 = vunpack.c.l.b16 %v2472
      %v3136 = vunpack.c.l.b16 %v2473
      %v3137 = vunpack.c.l.b16 %v2474
      %v3138 = vunpack.c.l.b16 %v2475
      %v3139 = vunpack.c.l.b16 %v2476
      %v3140 = vunpack.c.l.b16 %v2477
      %v3141 = vunpack.c.l.b16 %v2478
      %v3142 = vunpack.c.l.b16 %v2479
      %v3143 = vunpack.c.l.b16 %v2480
      %v3144 = vunpack.c.l.b16 %v2481
      %v3145 = vunpack.c.l.b16 %v2482
      %v3146 = vunpack.c.l.b16 %v2483
      %v3147 = vunpack.c.l.b16 %v2484
      %v3148 = vunpack.c.l.b16 %v2485
      %v3149 = vunpack.c.l.b16 %v2486
      %v3150 = vunpack.c.l.b16 %v2487
      %v3151 = vunpack.c.l.b16 %v2488
      %v3152 = vunpack.c.l.b16 %v2489
      %v3153 = vunpack.c.l.b16 %v2490
      %v3154 = vunpack.c.l.b16 %v2491
      %v3155 = vunpack.c.l.b16 %v2492
      %v3156 = vunpack.c.l.b16 %v2493
      %v3157 = vunpack.c.l.b16 %v2494
      %v3158 = vunpack.c.l.b16 %v2495
      %v3159 = vunpack.c.l.b16 %v2496
      %v3160 = vunpack.c.l.b16 %v2497
      %v3161 = vunpack.c.l.b16 %v2498
      %v3162 = vunpack.c.l.b16 %v2499
      %v3163 = vunpack.c.l.b16 %v2500
      %v3164 = vunpack.c.l.b16 %v2501
      %v3165 = vunpack.c.l.b16 %v2502
      %v3166 = vunpack.c.l.b16 %v2503
      %v3167 = vunpack.c.l.b16 %v2504
      %v3168 = vunpack.c.l.b16 %v2505
      %v3169 = vunpack.c.l.b16 %v2506
      %v3170 = vunpack.c.l.b16 %v2507
      %v3171 = vunpack.c.l.b16 %v2508
      %v3172 = vunpack.c.l.b16 %v2509
      %v3173 = vunpack.c.l.b16 %v2510
      %v3174 = vunpack.c.l.b16 %v2511
      %v3175 = vunpack.c.l.b16 %v2512
      %v3176 = vunpack.c.l.b16 %v2513
      %v3177 = vunpack.c.l.b16 %v2514
      %v3178 = vunpack.c.l.b16 %v2515
      %v3179 = vunpack.c.l.b16 %v2516
      %v3180 = vunpack.c.l.b16 %v2517
      %v3181 = vunpack.c.l.b16 %v2518
      %v3182 = vunpack.c.l.b16 %v2519
      %v3183 = vunpack.c.l.b16 %v2520
      %v3184 = vunpack.c.l.b16 %v2521
      %v3185 = vunpack.c.l.b16 %v2522
      %v3186 = vunpack.c.l.b16 %v2523
      %v3187 = vunpack.c.l.b16 %v2524
      %v3188 = vunpack.c.l.b16 %v2525
      %v3189 = vunpack.c.l.b16 %v2526
      %v3190 = vunpack.c.l.b16 %v2527
      %v3191 = vunpack.c.l.b16 %v2528
      %v3192 = vunpack.c.l.b16 %v2529
      %v3193 = vunpack.c.l.b16 %v2530
      %v3194 = vunpack.c.l.b16 %v2531
      %v3195 = vunpack.c.l.b16 %v2532
      %v3196 = vunpack.c.l.b16 %v2533
      %v3197 = vunpack.c.l.b16 %v2534
      %v3198 = vunpack.c.l.b16 %v2535
      %v3199 = vunpack.c.l.b16 %v2536
      %v3200 = vunpack.c.l.b16 %v2537
      %v3201 = vunpack.c.l.b16 %v2538
      %v3202 = vunpack.c.l.b16 %v2539
      %v3203 = vunpack.c.l.b16 %v2540
      %v3204 = vunpack.c.l.b16 %v2541
      %v3205 = vunpack.c.l.b16 %v2542
      %v3206 = vunpack.c.l.b16 %v2543
      %v3207 = vunpack.c.l.b16 %v2544
      %v3208 = vunpack.c.l.b16 %v2545
      %v3209 = vunpack.c.l.b16 %v2546
      %v3210 = vunpack.c.l.b16 %v2547
      %v3211 = vunpack.c.l.b16 %v2548
      %v3212 = vunpack.c.l.b16 %v2549
      %v3213 = vunpack.c.l.b16 %v2550
      %v3214 = vunpack.c.l.b16 %v2551
      %v3215 = vunpack.c.l.b16 %v2552
      %v3216 = vunpack.c.l.b16 %v2553
      %v3217 = vunpack.c.l.b16 %v2554
      %v3218 = vunpack.c.l.b16 %v2555
      %v3219 = vunpack.c.l.b16 %v2556
      %v3220 = vunpack.c.l.b16 %v2557
      %v3221 = vunpack.c.l.b16 %v2558
      %v3222 = vunpack.c.l.b16 %v2559
      %v3223 = vunpack.c.l.b16 %v2560
      %v3224 = vunpack.c.l.b16 %v2561
      %v3225 = vunpack.c.l.b16 %v2562
      %v3226 = vunpack.c.l.b16 %v2563
      %v3227 = vpack.c.b16 %v3084, %v3083
      %v3228 = vpack.c.b16 %v3086, %v3085
      %v3229 = vpack.c.b16 %v3088, %v3087
      %v3230 = vpack.c.b16 %v3090, %v3089
      %v3231 = vpack.c.b16 %v3092, %v3091
      %v3232 = vpack.c.b16 %v3094, %v3093
      %v3233 = vpack.c.b16 %v3096, %v3095
      %v3234 = vpack.c.b16 %v3098, %v3097
      %v3235 = vpack.c.b16 %v3100, %v3099
      %v3236 = vpack.c.b16 %v3102, %v3101
      %v3237 = vpack.c.b16 %v3104, %v3103
      %v3238 = vpack.c.b16 %v3106, %v3105
      %v3239 = vpack.c.b16 %v3108, %v3107
      %v3240 = vpack.c.b16 %v3110, %v3109
      %v3241 = vpack.c.b16 %v3112, %v3111
      %v3242 = vpack.c.b16 %v3114, %v3113
      %v3243 = vpack.c.b16 %v3116, %v3115
      %v3244 = vpack.c.b16 %v3118, %v3117
      %v3245 = vpack.c.b16 %v3120, %v3119
      %v3246 = vpack.c.b16 %v3122, %v3121
      %v3247 = vpack.c.b16 %v3124, %v3123
      %v3248 = vpack.c.b16 %v3126, %v3125
      %v3249 = vpack.c.b16 %v3128, %v3127
      %v3250 = vpack.c.b16 %v3130, %v3129
      %v3251 = vpack.c.b16 %v3132, %v3131
      %v3252 = vpack.c.b16 %v3134, %v3133
      %v3253 = vpack.c.b16 %v3136, %v3135
      %v3254 = vpack.c.b16 %v3138, %v3137
      %v3255 = vpack.c.b16 %v3140, %v3139
      %v3256 = vpack.c.b16 %v3142, %v3141
      %v3257 = vpack.c.b16 %v3144, %v3143
      %v3258 = vpack.c.b16 %v3146, %v3145
      %v3259 = vpack.c.b16 %v3148, %v3147
      %v3260 = vpack.c.b16 %v3150, %v3149
      %v3261 = vpack.c.b16 %v3152, %v3151
      %v3262 = vpack.c.b16 %v3154, %v3153
      %v3263 = vpack.c.b16 %v3156, %v3155
      %v3264 = vpack.c.b16 %v3158, %v3157
      %v3265 = vpack.c.b16 %v3160, %v3159
      %v3266 = vpack.c.b16 %v3162, %v3161
      %v3267 = vpack.c.b16 %v3164, %v3163
      %v3268 = vpack.c.b16 %v3166, %v3165
      %v3269 = vpack.c.b16 %v3168, %v3167
      %v3270 = vpack.c.b16 %v3170, %v3169
      %v3271 = vpack.c.b16 %v3172, %v3171
      %v3272 = vpack.c.b16 %v3174, %v3173
      %v3273 = vpack.c.b16 %v3176, %v3175
      %v3274 = vpack.c.b16 %v3178, %v3177
      %v3275 = vpack.c.b16 %v3180, %v3179
      %v3276 = vpack.c.b16 %v3182, %v3181
      %v3277 = vpack.c.b16 %v3184, %v3183
      %v3278 = vpack.c.b16 %v3186, %v3185
      %v3279 = vpack.c.b16 %v3188, %v3187
      %v3280 = vpack.c.b16 %v3190, %v3189
      %v3281 = vpack.c.b16 %v3192, %v3191
      %v3282 = vpack.c.b16 %v3194, %v3193
      %v3283 = vpack.c.b16 %v3196, %v3195
      %v3284 = vpack.c.b16 %v3198, %v3197
      %v3285 = vpack.c.b16 %v3200, %v3199
      %v3286 = vpack.c.b16 %v3202, %v3201
      %v3287 = vpack.c.b16 %v3204, %v3203
      %v3288 = vpack.c.b16 %v3206, %v3205
      %v3289 = vpack.c.b16 %v3208, %v3207
      %v3290 = vpack.c.b16 %v3210, %v3209
      %v3291 = vpack.c.b16 %v3212, %v3211
      %v3292 = vpack.c.b16 %v3214, %v3213
      %v3293 = vpack.c.b16 %v3216, %v3215
      %v3294 = vpack.c.b16 %v3218, %v3217
      %v3295 = vpack.c.b16 %v3220, %v3219
      %v3296 = vpack.c.b16 %v3222, %v3221
      %v3297 = vpack.c.b16 %v3224, %v3223
      %v3298 = vpack.c.b16 %v3226, %v3225
      %3371 = vmatprep.subr.bf16.mxu0 0
      %3372 = vmatpush1.bf16.msra.mxu0 %v3234
      %3373 = vmatprep.subr.bf16.mxu0 0
      %3374 = vmatpush1.bf16.msra.mxu0 %v3233
      %3375 = vmatprep.subr.bf16.mxu0 0
      %3376 = vmatpush1.bf16.msra.mxu0 %v3232
      %3377 = vmatprep.subr.bf16.mxu0 0
      %3378 = vmatpush1.bf16.msra.mxu0 %v3231
      %3379 = vmatprep.subr.bf16.mxu0 0
      %3380 = vmatpush1.bf16.msra.mxu0 %v3230
      %3381 = vmatprep.subr.bf16.mxu0 0
      %3382 = vmatpush1.bf16.msra.mxu0 %v3229
      %3383 = vmatprep.subr.bf16.mxu0 0
      %3384 = vmatpush1.bf16.msra.mxu0 %v3228
      %3385 = vmatprep.subr.bf16.mxu0 0
      %3386 = vmatpush1.bf16.msra.mxu0 %v3227
      %3387 = vmatprep.subr.bf16.mxu0 0
      %3388 = vmatpush2.bf16.msra.mxu0 %v3242
      %3389 = vmatprep.subr.bf16.mxu0 0
      %3390 = vmatpush2.bf16.msra.mxu0 %v3241
      %3391 = vmatprep.subr.bf16.mxu0 0
      %3392 = vmatpush2.bf16.msra.mxu0 %v3240
      %3393 = vmatprep.subr.bf16.mxu0 0
      %3394 = vmatpush2.bf16.msra.mxu0 %v3239
      %3395 = vmatprep.subr.bf16.mxu0 0
      %3396 = vmatpush2.bf16.msra.mxu0 %v3238
      %3397 = vmatprep.subr.bf16.mxu0 0
      %3398 = vmatpush2.bf16.msra.mxu0 %v3237
      %3399 = vmatprep.subr.bf16.mxu0 0
      %3400 = vmatpush2.bf16.msra.mxu0 %v3236
      %3401 = vmatprep.subr.bf16.mxu0 0
      %3402 = vmatpush2.bf16.msra.mxu0 %v3235
      %3403 = vmatprep.mubr.bf16.mxu0 %v2796
      %3404 = vmatmul.mubr.bf16.gmra.mxu0 %v2795
      %v3405 = vpop.f32.mrf.mxu0
      %v3406 = vadd.f32 %v2569, %v3405
      %v3407 = vpop.f32.mrf.mxu0
      %v3408 = vpop.f32.mrf.mxu0
      %v3409 = vadd.f32 %v2569, %v3408
      %v3410 = vpop.f32.mrf.mxu0
      %3411 = vmatprep.mubr.bf16.mxu0 %v2805
      %3412 = vmatmul.mubr.bf16.gmra.mxu0 %v2804
      %v3413 = vpop.f32.mrf.mxu0
      %v3414 = vadd.f32 %v2569, %v3413
      %v3415 = vpop.f32.mrf.mxu0
      %v3416 = vpop.f32.mrf.mxu0
      %v3417 = vadd.f32 %v2569, %v3416
      %v3418 = vpop.f32.mrf.mxu0
      %3419 = vmatprep.mubr.bf16.mxu0 %v2814
      %3420 = vmatmul.mubr.bf16.gmra.mxu0 %v2813
      %v3421 = vpop.f32.mrf.mxu0
      %v3422 = vadd.f32 %v2569, %v3421
      %v3423 = vpop.f32.mrf.mxu0
      %v3424 = vpop.f32.mrf.mxu0
      %v3425 = vadd.f32 %v2569, %v3424
      %v3426 = vpop.f32.mrf.mxu0
      %3427 = vmatprep.mubr.bf16.mxu0 %v2823
      %3428 = vmatmul.mubr.bf16.gmra.mxu0 %v2822
      %v3429 = vpop.f32.mrf.mxu0
      %v3430 = vadd.f32 %v2569, %v3429
      %v3431 = vpop.f32.mrf.mxu0
      %v3432 = vpop.f32.mrf.mxu0
      %v3433 = vadd.f32 %v2569, %v3432
      %v3434 = vpop.f32.mrf.mxu0
      %3435 = vmatprep.mubr.bf16.mxu0 %v2832
      %3436 = vmatmul.mubr.bf16.gmra.mxu0 %v2831
      %v3437 = vpop.f32.mrf.mxu0
      %v3438 = vadd.f32 %v2569, %v3437
      %v3439 = vpop.f32.mrf.mxu0
      %v3440 = vpop.f32.mrf.mxu0
      %v3441 = vadd.f32 %v2569, %v3440
      %v3442 = vpop.f32.mrf.mxu0
      %3443 = vmatprep.mubr.bf16.mxu0 %v2841
      %3444 = vmatmul.mubr.bf16.gmra.mxu0 %v2840
      %v3445 = vpop.f32.mrf.mxu0
      %v3446 = vadd.f32 %v2569, %v3445
      %v3447 = vpop.f32.mrf.mxu0
      %v3448 = vpop.f32.mrf.mxu0
      %v3449 = vadd.f32 %v2569, %v3448
      %v3450 = vpop.f32.mrf.mxu0
      %3451 = vmatprep.mubr.bf16.mxu0 %v2850
      %3452 = vmatmul.mubr.bf16.gmra.mxu0 %v2849
      %v3453 = vpop.f32.mrf.mxu0
      %v3454 = vadd.f32 %v2569, %v3453
      %v3455 = vpop.f32.mrf.mxu0
      %v3456 = vpop.f32.mrf.mxu0
      %v3457 = vadd.f32 %v2569, %v3456
      %v3458 = vpop.f32.mrf.mxu0
      %3459 = vmatprep.mubr.bf16.mxu0 %v2859
      %3460 = vmatmul.mubr.bf16.gmra.mxu0 %v2858
      %v3461 = vpop.f32.mrf.mxu0
      %v3462 = vadd.f32 %v2569, %v3461
      %v3463 = vpop.f32.mrf.mxu0
      %v3464 = vpop.f32.mrf.mxu0
      %v3465 = vadd.f32 %v2569, %v3464
      %v3466 = vpop.f32.mrf.mxu0
      %3467 = vdwg.mxu0
      %3468 = vmatprep.subr.bf16.mxu0 0
      %3469 = vmatpush1.bf16.msra.mxu0 %v3250
      %3470 = vmatprep.subr.bf16.mxu0 0
      %3471 = vmatpush1.bf16.msra.mxu0 %v3249
      %3472 = vmatprep.subr.bf16.mxu0 0
      %3473 = vmatpush1.bf16.msra.mxu0 %v3248
      %3474 = vmatprep.subr.bf16.mxu0 0
      %3475 = vmatpush1.bf16.msra.mxu0 %v3247
      %3476 = vmatprep.subr.bf16.mxu0 0
      %3477 = vmatpush1.bf16.msra.mxu0 %v3246
      %3478 = vmatprep.subr.bf16.mxu0 0
      %3479 = vmatpush1.bf16.msra.mxu0 %v3245
      %3480 = vmatprep.subr.bf16.mxu0 0
      %3481 = vmatpush1.bf16.msra.mxu0 %v3244
      %3482 = vmatprep.subr.bf16.mxu0 0
      %3483 = vmatpush1.bf16.msra.mxu0 %v3243
      %3484 = vmatprep.subr.bf16.mxu0 0
      %3485 = vmatpush2.bf16.msra.mxu0 %v3258
      %3486 = vmatprep.subr.bf16.mxu0 0
      %3487 = vmatpush2.bf16.msra.mxu0 %v3257
      %3488 = vmatprep.subr.bf16.mxu0 0
      %3489 = vmatpush2.bf16.msra.mxu0 %v3256
      %3490 = vmatprep.subr.bf16.mxu0 0
      %3491 = vmatpush2.bf16.msra.mxu0 %v3255
      %3492 = vmatprep.subr.bf16.mxu0 0
      %3493 = vmatpush2.bf16.msra.mxu0 %v3254
      %3494 = vmatprep.subr.bf16.mxu0 0
      %3495 = vmatpush2.bf16.msra.mxu0 %v3253
      %3496 = vmatprep.subr.bf16.mxu0 0
      %3497 = vmatpush2.bf16.msra.mxu0 %v3252
      %3498 = vmatprep.subr.bf16.mxu0 0
      %3499 = vmatpush2.bf16.msra.mxu0 %v3251
      %3500 = vmatprep.mubr.bf16.mxu0 %v2798
      %3501 = vmatmul.mubr.bf16.gmra.mxu0 %v2797
      %v3502 = vpop.f32.mrf.mxu0
      %v3503 = vadd.f32 %v3406, %v3502
      %v3504 = vpop.f32.mrf.mxu0
      %v3505 = vpop.f32.mrf.mxu0
      %v3506 = vadd.f32 %v3409, %v3505
      %v3507 = vpop.f32.mrf.mxu0
      %3508 = vmatprep.mubr.bf16.mxu0 %v2807
      %3509 = vmatmul.mubr.bf16.gmra.mxu0 %v2806
      %v3510 = vpop.f32.mrf.mxu0
      %v3511 = vadd.f32 %v3414, %v3510
      %v3512 = vpop.f32.mrf.mxu0
      %v3513 = vpop.f32.mrf.mxu0
      %v3514 = vadd.f32 %v3417, %v3513
      %v3515 = vpop.f32.mrf.mxu0
      %3516 = vmatprep.mubr.bf16.mxu0 %v2816
      %3517 = vmatmul.mubr.bf16.gmra.mxu0 %v2815
      %v3518 = vpop.f32.mrf.mxu0
      %v3519 = vadd.f32 %v3422, %v3518
      %v3520 = vpop.f32.mrf.mxu0
      %v3521 = vpop.f32.mrf.mxu0
      %v3522 = vadd.f32 %v3425, %v3521
      %v3523 = vpop.f32.mrf.mxu0
      %3524 = vmatprep.mubr.bf16.mxu0 %v2825
      %3525 = vmatmul.mubr.bf16.gmra.mxu0 %v2824
      %v3526 = vpop.f32.mrf.mxu0
      %v3527 = vadd.f32 %v3430, %v3526
      %v3528 = vpop.f32.mrf.mxu0
      %v3529 = vpop.f32.mrf.mxu0
      %v3530 = vadd.f32 %v3433, %v3529
      %v3531 = vpop.f32.mrf.mxu0
      %3532 = vmatprep.mubr.bf16.mxu0 %v2834
      %3533 = vmatmul.mubr.bf16.gmra.mxu0 %v2833
      %v3534 = vpop.f32.mrf.mxu0
      %v3535 = vadd.f32 %v3438, %v3534
      %v3536 = vpop.f32.mrf.mxu0
      %v3537 = vpop.f32.mrf.mxu0
      %v3538 = vadd.f32 %v3441, %v3537
      %v3539 = vpop.f32.mrf.mxu0
      %3540 = vmatprep.mubr.bf16.mxu0 %v2843
      %3541 = vmatmul.mubr.bf16.gmra.mxu0 %v2842
      %v3542 = vpop.f32.mrf.mxu0
      %v3543 = vadd.f32 %v3446, %v3542
      %v3544 = vpop.f32.mrf.mxu0
      %v3545 = vpop.f32.mrf.mxu0
      %v3546 = vadd.f32 %v3449, %v3545
      %v3547 = vpop.f32.mrf.mxu0
      %3548 = vmatprep.mubr.bf16.mxu0 %v2852
      %3549 = vmatmul.mubr.bf16.gmra.mxu0 %v2851
      %v3550 = vpop.f32.mrf.mxu0
      %v3551 = vadd.f32 %v3454, %v3550
      %v3552 = vpop.f32.mrf.mxu0
      %v3553 = vpop.f32.mrf.mxu0
      %v3554 = vadd.f32 %v3457, %v3553
      %v3555 = vpop.f32.mrf.mxu0
      %3556 = vmatprep.mubr.bf16.mxu0 %v2861
      %3557 = vmatmul.mubr.bf16.gmra.mxu0 %v2860
      %v3558 = vpop.f32.mrf.mxu0
      %v3559 = vadd.f32 %v3462, %v3558
      %v3560 = vpop.f32.mrf.mxu0
      %v3561 = vpop.f32.mrf.mxu0
      %v3562 = vadd.f32 %v3465, %v3561
      %v3563 = vpop.f32.mrf.mxu0
      %3564 = vdwg.mxu0
      %3565 = vmatprep.subr.bf16.mxu0 0
      %3566 = vmatpush1.bf16.msra.mxu0 %v3266
      %3567 = vmatprep.subr.bf16.mxu0 0
      %3568 = vmatpush1.bf16.msra.mxu0 %v3265
      %3569 = vmatprep.subr.bf16.mxu0 0
      %3570 = vmatpush1.bf16.msra.mxu0 %v3264
      %3571 = vmatprep.subr.bf16.mxu0 0
      %3572 = vmatpush1.bf16.msra.mxu0 %v3263
      %3573 = vmatprep.subr.bf16.mxu0 0
      %3574 = vmatpush1.bf16.msra.mxu0 %v3262
      %3575 = vmatprep.subr.bf16.mxu0 0
      %3576 = vmatpush1.bf16.msra.mxu0 %v3261
      %3577 = vmatprep.subr.bf16.mxu0 0
      %3578 = vmatpush1.bf16.msra.mxu0 %v3260
      %3579 = vmatprep.subr.bf16.mxu0 0
      %3580 = vmatpush1.bf16.msra.mxu0 %v3259
      %3581 = vmatprep.subr.bf16.mxu0 0
      %3582 = vmatpush2.bf16.msra.mxu0 %v3274
      %3583 = vmatprep.subr.bf16.mxu0 0
      %3584 = vmatpush2.bf16.msra.mxu0 %v3273
      %3585 = vmatprep.subr.bf16.mxu0 0
      %3586 = vmatpush2.bf16.msra.mxu0 %v3272
      %3587 = vmatprep.subr.bf16.mxu0 0
      %3588 = vmatpush2.bf16.msra.mxu0 %v3271
      %3589 = vmatprep.subr.bf16.mxu0 0
      %3590 = vmatpush2.bf16.msra.mxu0 %v3270
      %3591 = vmatprep.subr.bf16.mxu0 0
      %3592 = vmatpush2.bf16.msra.mxu0 %v3269
      %3593 = vmatprep.subr.bf16.mxu0 0
      %3594 = vmatpush2.bf16.msra.mxu0 %v3268
      %3595 = vmatprep.subr.bf16.mxu0 0
      %3596 = vmatpush2.bf16.msra.mxu0 %v3267
      %3597 = vmatprep.mubr.bf16.mxu0 %v2800
      %3598 = vmatmul.mubr.bf16.gmra.mxu0 %v2799
      %v3599 = vpop.f32.mrf.mxu0
      %v3600 = vadd.f32 %v3503, %v3599
      %v3601 = vpop.f32.mrf.mxu0
      %v3602 = vpop.f32.mrf.mxu0
      %v3603 = vadd.f32 %v3506, %v3602
      %v3604 = vpop.f32.mrf.mxu0
      %3605 = vmatprep.mubr.bf16.mxu0 %v2809
      %3606 = vmatmul.mubr.bf16.gmra.mxu0 %v2808
      %v3607 = vpop.f32.mrf.mxu0
      %v3608 = vadd.f32 %v3511, %v3607
      %v3609 = vpop.f32.mrf.mxu0
      %v3610 = vpop.f32.mrf.mxu0
      %v3611 = vadd.f32 %v3514, %v3610
      %v3612 = vpop.f32.mrf.mxu0
      %3613 = vmatprep.mubr.bf16.mxu0 %v2818
      %3614 = vmatmul.mubr.bf16.gmra.mxu0 %v2817
      %v3615 = vpop.f32.mrf.mxu0
      %v3616 = vadd.f32 %v3519, %v3615
      %v3617 = vpop.f32.mrf.mxu0
      %v3618 = vpop.f32.mrf.mxu0
      %v3619 = vadd.f32 %v3522, %v3618
      %v3620 = vpop.f32.mrf.mxu0
      %3621 = vmatprep.mubr.bf16.mxu0 %v2827
      %3622 = vmatmul.mubr.bf16.gmra.mxu0 %v2826
      %v3623 = vpop.f32.mrf.mxu0
      %v3624 = vadd.f32 %v3527, %v3623
      %v3625 = vpop.f32.mrf.mxu0
      %v3626 = vpop.f32.mrf.mxu0
      %v3627 = vadd.f32 %v3530, %v3626
      %v3628 = vpop.f32.mrf.mxu0
      %3629 = vmatprep.mubr.bf16.mxu0 %v2836
      %3630 = vmatmul.mubr.bf16.gmra.mxu0 %v2835
      %v3631 = vpop.f32.mrf.mxu0
      %v3632 = vadd.f32 %v3535, %v3631
      %v3633 = vpop.f32.mrf.mxu0
      %v3634 = vpop.f32.mrf.mxu0
      %v3635 = vadd.f32 %v3538, %v3634
      %v3636 = vpop.f32.mrf.mxu0
      %3637 = vmatprep.mubr.bf16.mxu0 %v2845
      %3638 = vmatmul.mubr.bf16.gmra.mxu0 %v2844
      %v3639 = vpop.f32.mrf.mxu0
      %v3640 = vadd.f32 %v3543, %v3639
      %v3641 = vpop.f32.mrf.mxu0
      %v3642 = vpop.f32.mrf.mxu0
      %v3643 = vadd.f32 %v3546, %v3642
      %v3644 = vpop.f32.mrf.mxu0
      %3645 = vmatprep.mubr.bf16.mxu0 %v2854
      %3646 = vmatmul.mubr.bf16.gmra.mxu0 %v2853
      %v3647 = vpop.f32.mrf.mxu0
      %v3648 = vadd.f32 %v3551, %v3647
      %v3649 = vpop.f32.mrf.mxu0
      %v3650 = vpop.f32.mrf.mxu0
      %v3651 = vadd.f32 %v3554, %v3650
      %v3652 = vpop.f32.mrf.mxu0
      %3653 = vmatprep.mubr.bf16.mxu0 %v2863
      %3654 = vmatmul.mubr.bf16.gmra.mxu0 %v2862
      %v3655 = vpop.f32.mrf.mxu0
      %v3656 = vadd.f32 %v3559, %v3655
      %v3657 = vpop.f32.mrf.mxu0
      %v3658 = vpop.f32.mrf.mxu0
      %v3659 = vadd.f32 %v3562, %v3658
      %v3660 = vpop.f32.mrf.mxu0
      %3661 = vdwg.mxu0
      %3662 = vmatprep.subr.bf16.mxu0 0
      %3663 = vmatpush1.bf16.msra.mxu0 %v3282
      %3664 = vmatprep.subr.bf16.mxu0 0
      %3665 = vmatpush1.bf16.msra.mxu0 %v3281
      %3666 = vmatprep.subr.bf16.mxu0 0
      %3667 = vmatpush1.bf16.msra.mxu0 %v3280
      %3668 = vmatprep.subr.bf16.mxu0 0
      %3669 = vmatpush1.bf16.msra.mxu0 %v3279
      %3670 = vmatprep.subr.bf16.mxu0 0
      %3671 = vmatpush1.bf16.msra.mxu0 %v3278
      %3672 = vmatprep.subr.bf16.mxu0 0
      %3673 = vmatpush1.bf16.msra.mxu0 %v3277
      %3674 = vmatprep.subr.bf16.mxu0 0
      %3675 = vmatpush1.bf16.msra.mxu0 %v3276
      %3676 = vmatprep.subr.bf16.mxu0 0
      %3677 = vmatpush1.bf16.msra.mxu0 %v3275
      %3678 = vmatprep.subr.bf16.mxu0 0
      %3679 = vmatpush2.bf16.msra.mxu0 %v3290
      %3680 = vmatprep.subr.bf16.mxu0 0
      %3681 = vmatpush2.bf16.msra.mxu0 %v3289
      %3682 = vmatprep.subr.bf16.mxu0 0
      %3683 = vmatpush2.bf16.msra.mxu0 %v3288
      %3684 = vmatprep.subr.bf16.mxu0 0
      %3685 = vmatpush2.bf16.msra.mxu0 %v3287
      %3686 = vmatprep.subr.bf16.mxu0 0
      %3687 = vmatpush2.bf16.msra.mxu0 %v3286
      %3688 = vmatprep.subr.bf16.mxu0 0
      %3689 = vmatpush2.bf16.msra.mxu0 %v3285
      %3690 = vmatprep.subr.bf16.mxu0 0
      %3691 = vmatpush2.bf16.msra.mxu0 %v3284
      %3692 = vmatprep.subr.bf16.mxu0 0
      %3693 = vmatpush2.bf16.msra.mxu0 %v3283
      %3694 = vmatprep.mubr.bf16.mxu0 %v2802
      %3695 = vmatmul.mubr.bf16.gmra.mxu0 %v2801
      %v3696 = vpop.f32.mrf.mxu0
      %v3697 = vadd.f32 %v3600, %v3696
      %v3698 = vpop.f32.mrf.mxu0
      %v3699 = vpop.f32.mrf.mxu0
      %v3700 = vadd.f32 %v3603, %v3699
      %v3701 = vpop.f32.mrf.mxu0
      %3702 = vmatprep.mubr.bf16.mxu0 %v2811
      %3703 = vmatmul.mubr.bf16.gmra.mxu0 %v2810
      %v3704 = vpop.f32.mrf.mxu0
      %v3705 = vadd.f32 %v3608, %v3704
      %v3706 = vpop.f32.mrf.mxu0
      %v3707 = vpop.f32.mrf.mxu0
      %v3708 = vadd.f32 %v3611, %v3707
      %v3709 = vpop.f32.mrf.mxu0
      %3710 = vmatprep.mubr.bf16.mxu0 %v2820
      %3711 = vmatmul.mubr.bf16.gmra.mxu0 %v2819
      %v3712 = vpop.f32.mrf.mxu0
      %v3713 = vadd.f32 %v3616, %v3712
      %v3714 = vpop.f32.mrf.mxu0
      %v3715 = vpop.f32.mrf.mxu0
      %v3716 = vadd.f32 %v3619, %v3715
      %v3717 = vpop.f32.mrf.mxu0
      %3718 = vmatprep.mubr.bf16.mxu0 %v2829
      %3719 = vmatmul.mubr.bf16.gmra.mxu0 %v2828
      %v3720 = vpop.f32.mrf.mxu0
      %v3721 = vadd.f32 %v3624, %v3720
      %v3722 = vpop.f32.mrf.mxu0
      %v3723 = vpop.f32.mrf.mxu0
      %v3724 = vadd.f32 %v3627, %v3723
      %v3725 = vpop.f32.mrf.mxu0
      %3726 = vmatprep.mubr.bf16.mxu0 %v2838
      %3727 = vmatmul.mubr.bf16.gmra.mxu0 %v2837
      %v3728 = vpop.f32.mrf.mxu0
      %v3729 = vadd.f32 %v3632, %v3728
      %v3730 = vpop.f32.mrf.mxu0
      %v3731 = vpop.f32.mrf.mxu0
      %v3732 = vadd.f32 %v3635, %v3731
      %v3733 = vpop.f32.mrf.mxu0
      %3734 = vmatprep.mubr.bf16.mxu0 %v2847
      %3735 = vmatmul.mubr.bf16.gmra.mxu0 %v2846
      %v3736 = vpop.f32.mrf.mxu0
      %v3737 = vadd.f32 %v3640, %v3736
      %v3738 = vpop.f32.mrf.mxu0
      %v3739 = vpop.f32.mrf.mxu0
      %v3740 = vadd.f32 %v3643, %v3739
      %v3741 = vpop.f32.mrf.mxu0
      %3742 = vmatprep.mubr.bf16.mxu0 %v2856
      %3743 = vmatmul.mubr.bf16.gmra.mxu0 %v2855
      %v3744 = vpop.f32.mrf.mxu0
      %v3745 = vadd.f32 %v3648, %v3744
      %v3746 = vpop.f32.mrf.mxu0
      %v3747 = vpop.f32.mrf.mxu0
      %v3748 = vadd.f32 %v3651, %v3747
      %v3749 = vpop.f32.mrf.mxu0
      %3750 = vmatprep.mubr.bf16.mxu0 %v2865
      %3751 = vmatmul.mubr.bf16.gmra.mxu0 %v2864
      %v3752 = vpop.f32.mrf.mxu0
      %v3753 = vadd.f32 %v3656, %v3752
      %v3754 = vpop.f32.mrf.mxu0
      %v3755 = vpop.f32.mrf.mxu0
      %v3756 = vadd.f32 %v3659, %v3755
      %v3757 = vpop.f32.mrf.mxu0
      %3758 = vdwg.mxu0
      %3759 = vmatprep.subr.bf16.mxu0 0
      %3760 = vmatpush1.bf16.msra.mxu0 %v3298
      %3761 = vmatprep.subr.bf16.mxu0 0
      %3762 = vmatpush1.bf16.msra.mxu0 %v3297
      %3763 = vmatprep.subr.bf16.mxu0 0
      %3764 = vmatpush1.bf16.msra.mxu0 %v3296
      %3765 = vmatprep.subr.bf16.mxu0 0
      %3766 = vmatpush1.bf16.msra.mxu0 %v3295
      %3767 = vmatprep.subr.bf16.mxu0 0
      %3768 = vmatpush1.bf16.msra.mxu0 %v3294
      %3769 = vmatprep.subr.bf16.mxu0 0
      %3770 = vmatpush1.bf16.msra.mxu0 %v3293
      %3771 = vmatprep.subr.bf16.mxu0 0
      %3772 = vmatpush1.bf16.msra.mxu0 %v3292
      %3773 = vmatprep.subr.bf16.mxu0 0
      %3774 = vmatpush1.bf16.msra.mxu0 %v3291
      %3775 = vmatprep.subr.bf16.mxu0 0
      %3776 = vmatpush2.bf16.msra.mxu0 0
      %3777 = vmatprep.subr.bf16.mxu0 0
      %3778 = vmatpush2.bf16.msra.mxu0 0
      %3779 = vmatprep.subr.bf16.mxu0 0
      %3780 = vmatpush2.bf16.msra.mxu0 0
      %3781 = vmatprep.subr.bf16.mxu0 0
      %3782 = vmatpush2.bf16.msra.mxu0 0
      %3783 = vmatprep.subr.bf16.mxu0 0
      %3784 = vmatpush2.bf16.msra.mxu0 0
      %3785 = vmatprep.subr.bf16.mxu0 0
      %3786 = vmatpush2.bf16.msra.mxu0 0
      %3787 = vmatprep.subr.bf16.mxu0 0
      %3788 = vmatpush2.bf16.msra.mxu0 0
      %3789 = vmatprep.subr.bf16.mxu0 0
      %3790 = vmatpush2.bf16.msra.mxu0 0
      %3791 = vmatprep.mubr.bf16.mxu0 0
      %3792 = vmatmul.mubr.bf16.gmra.mxu0 %v2803
      %v3793 = vpop.f32.mrf.mxu0
      %v3794 = vadd.f32 %v3697, %v3793
      %v3795 = vpop.f32.mrf.mxu0
      %v3796 = vpop.f32.mrf.mxu0
      %v3797 = vadd.f32 %v3700, %v3796
      %v3798 = vpop.f32.mrf.mxu0
      %3799 = vmatprep.mubr.bf16.mxu0 0
      %3800 = vmatmul.mubr.bf16.gmra.mxu0 %v2812
      %v3801 = vpop.f32.mrf.mxu0
      %v3802 = vadd.f32 %v3705, %v3801
      %v3803 = vpop.f32.mrf.mxu0
      %v3804 = vpop.f32.mrf.mxu0
      %v3805 = vadd.f32 %v3708, %v3804
      %v3806 = vpop.f32.mrf.mxu0
      %3807 = vmatprep.mubr.bf16.mxu0 0
      %3808 = vmatmul.mubr.bf16.gmra.mxu0 %v2821
      %v3809 = vpop.f32.mrf.mxu0
      %v3810 = vadd.f32 %v3713, %v3809
      %v3811 = vpop.f32.mrf.mxu0
      %v3812 = vpop.f32.mrf.mxu0
      %v3813 = vadd.f32 %v3716, %v3812
      %v3814 = vpop.f32.mrf.mxu0
      %3815 = vmatprep.mubr.bf16.mxu0 0
      %3816 = vmatmul.mubr.bf16.gmra.mxu0 %v2830
      %v3817 = vpop.f32.mrf.mxu0
      %v3818 = vadd.f32 %v3721, %v3817
      %v3819 = vpop.f32.mrf.mxu0
      %v3820 = vpop.f32.mrf.mxu0
      %v3821 = vadd.f32 %v3724, %v3820
      %v3822 = vpop.f32.mrf.mxu0
      %3823 = vmatprep.mubr.bf16.mxu0 0
      %3824 = vmatmul.mubr.bf16.gmra.mxu0 %v2839
      %v3825 = vpop.f32.mrf.mxu0
      %v3826 = vadd.f32 %v3729, %v3825
      %v3827 = vpop.f32.mrf.mxu0
      %v3828 = vpop.f32.mrf.mxu0
      %v3829 = vadd.f32 %v3732, %v3828
      %v3830 = vpop.f32.mrf.mxu0
      %3831 = vmatprep.mubr.bf16.mxu0 0
      %3832 = vmatmul.mubr.bf16.gmra.mxu0 %v2848
      %v3833 = vpop.f32.mrf.mxu0
      %v3834 = vadd.f32 %v3737, %v3833
      %v3835 = vpop.f32.mrf.mxu0
      %v3836 = vpop.f32.mrf.mxu0
      %v3837 = vadd.f32 %v3740, %v3836
      %v3838 = vpop.f32.mrf.mxu0
      %3839 = vmatprep.mubr.bf16.mxu0 0
      %3840 = vmatmul.mubr.bf16.gmra.mxu0 %v2857
      %v3841 = vpop.f32.mrf.mxu0
      %v3842 = vadd.f32 %v3745, %v3841
      %v3843 = vpop.f32.mrf.mxu0
      %v3844 = vpop.f32.mrf.mxu0
      %v3845 = vadd.f32 %v3748, %v3844
      %v3846 = vpop.f32.mrf.mxu0
      %3847 = vmatprep.mubr.bf16.mxu0 0
      %3848 = vmatmul.mubr.bf16.gmra.mxu0 %v2866
      %v3849 = vpop.f32.mrf.mxu0
      %v3850 = vadd.f32 %v3753, %v3849
      %v3851 = vpop.f32.mrf.mxu0
      %v3852 = vpop.f32.mrf.mxu0
      %v3853 = vadd.f32 %v3756, %v3852
      %v3854 = vpop.f32.mrf.mxu0
      %3855 = vdwg.mxu0
      %v3856 = vadd.f32 %v3794, %v3797
      %v3857 = vadd.f32 %v3856, %v3802
      %v3858 = vadd.f32 %v3857, %v3805
      %v3859 = vadd.f32 %v3858, %v3810
      %v3860 = vadd.f32 %v3859, %v3813
      %v3861 = vadd.f32 %v3860, %v3818
      %v3862 = vadd.f32 %v3861, %v3821
      %v3863 = vadd.f32 %v3862, %v3826
      %v3864 = vadd.f32 %v3863, %v3829
      %v3865 = vadd.f32 %v3864, %v3834
      %v3866 = vadd.f32 %v3865, %v3837
      %v3867 = vadd.f32 %v3866, %v3842
      %v3868 = vadd.f32 %v3867, %v3845
      %v3869 = vadd.f32 %v3868, %v3850
      %v3870 = vadd.f32 %v3869, %v3853
      %v3871 = vrot.slane %v3870, 4
      %v3872 = vadd.f32 %v3870, %v3871
      %v3873 = vrot.slane %v3872, 2
      %v3874 = vadd.f32 %v3872, %v3873
      %v3875 = vrot.slane %v3874, 1
      %v3876 = vadd.f32 %v3874, %v3875
      %3877 = vst [vmem:[%s528] sm:$0x1] %v3876
      %v3878 = vmul.f32 %v3794, %v3794
      %v3879 = vmul.f32 %v3797, %v3797
      %v3880 = vmul.f32 %v3802, %v3802
      %v3881 = vmul.f32 %v3805, %v3805
      %v3882 = vmul.f32 %v3810, %v3810
      %v3883 = vmul.f32 %v3813, %v3813
      %v3884 = vmul.f32 %v3818, %v3818
      %v3885 = vmul.f32 %v3821, %v3821
      %v3886 = vmul.f32 %v3826, %v3826
      %v3887 = vmul.f32 %v3829, %v3829
      %v3888 = vmul.f32 %v3834, %v3834
      %v3889 = vmul.f32 %v3837, %v3837
      %v3890 = vmul.f32 %v3842, %v3842
      %v3891 = vmul.f32 %v3845, %v3845
      %v3892 = vmul.f32 %v3850, %v3850
      %v3893 = vmul.f32 %v3853, %v3853
      %v3894 = vadd.f32 %v3878, %v3879
      %v3895 = vadd.f32 %v3894, %v3880
      %v3896 = vadd.f32 %v3895, %v3881
      %v3897 = vadd.f32 %v3896, %v3882
      %v3898 = vadd.f32 %v3897, %v3883
      %v3899 = vadd.f32 %v3898, %v3884
      %v3900 = vadd.f32 %v3899, %v3885
      %v3901 = vadd.f32 %v3900, %v3886
      %v3902 = vadd.f32 %v3901, %v3887
      %v3903 = vadd.f32 %v3902, %v3888
      %v3904 = vadd.f32 %v3903, %v3889
      %v3905 = vadd.f32 %v3904, %v3890
      %v3906 = vadd.f32 %v3905, %v3891
      %v3907 = vadd.f32 %v3906, %v3892
      %v3908 = vadd.f32 %v3907, %v3893
      %v3909 = vrot.slane %v3908, 4
      %v3910 = vadd.f32 %v3908, %v3909
      %v3911 = vrot.slane %v3910, 2
      %v3912 = vadd.f32 %v3910, %v3911
      %v3913 = vrot.slane %v3912, 1
      %v3914 = vadd.f32 %v3912, %v3913
      %3915 = vst [vmem:[%s535] sm:$0x1] %v3914
      %v3916 = vpack.c.bf16 %v3797, %v3794
      %v3917 = vpack.c.bf16 %v3805, %v3802
      %v3918 = vpack.c.bf16 %v3813, %v3810
      %v3919 = vpack.c.bf16 %v3821, %v3818
      %v3920 = vpack.c.bf16 %v3829, %v3826
      %v3921 = vpack.c.bf16 %v3837, %v3834
      %v3922 = vpack.c.bf16 %v3845, %v3842
      %v3923 = vpack.c.bf16 %v3853, %v3850
      %v3932 = vunpack.c.l.b16 %v3916
      %v3933 = vunpack.c.h.b16 %v3916
      %v3934 = vunpack.c.l.b16 %v3917
      %v3935 = vunpack.c.h.b16 %v3917
      %v3936 = vunpack.c.l.b16 %v3918
      %v3937 = vunpack.c.h.b16 %v3918
      %v3938 = vunpack.c.l.b16 %v3919
      %v3939 = vunpack.c.h.b16 %v3919
      %v3940 = vunpack.c.l.b16 %v3920
      %v3941 = vunpack.c.h.b16 %v3920
      %v3942 = vunpack.c.l.b16 %v3921
      %v3943 = vunpack.c.h.b16 %v3921
      %v3944 = vunpack.c.l.b16 %v3922
      %v3945 = vunpack.c.h.b16 %v3922
      %v3946 = vunpack.c.l.b16 %v3923
      %v3947 = vunpack.c.h.b16 %v3923
      %v3948 = vpack.c.b16 %v3932, %v3932
      %v3949 = vpack.c.b16 %v3933, %v3933
      %v3950 = vpack.c.b16 %v3934, %v3934
      %v3951 = vpack.c.b16 %v3935, %v3935
      %v3952 = vpack.c.b16 %v3936, %v3936
      %v3953 = vpack.c.b16 %v3937, %v3937
      %v3954 = vpack.c.b16 %v3938, %v3938
      %v3955 = vpack.c.b16 %v3939, %v3939
      %v3956 = vpack.c.b16 %v3940, %v3940
      %v3957 = vpack.c.b16 %v3941, %v3941
      %v3958 = vpack.c.b16 %v3942, %v3942
      %v3959 = vpack.c.b16 %v3943, %v3943
      %v3960 = vpack.c.b16 %v3944, %v3944
      %v3961 = vpack.c.b16 %v3945, %v3945
      %v3962 = vpack.c.b16 %v3946, %v3946
      %v3963 = vpack.c.b16 %v3947, %v3947
      %3980 = vst [vmem:[%s522] sm:$0xf] %v3948
      %3981 = vst [vmem:[%s522 + $0x4] sm:$0xf] %v3949
      %3982 = vst [vmem:[%s522 + $0x8] sm:$0xf] %v3950
      %3983 = vst [vmem:[%s522 + $0xc] sm:$0xf] %v3951
      %3984 = vst [vmem:[%s522 + $0x10] sm:$0xf] %v3952
      %3985 = vst [vmem:[%s522 + $0x14] sm:$0xf] %v3953
      %3986 = vst [vmem:[%s522 + $0x18] sm:$0xf] %v3954
      %3987 = vst [vmem:[%s522 + $0x1c] sm:$0xf] %v3955
      %3988 = vst [vmem:[%s522 + $0x20] sm:$0xf] %v3956
      %3989 = vst [vmem:[%s522 + $0x24] sm:$0xf] %v3957
      %3990 = vst [vmem:[%s522 + $0x28] sm:$0xf] %v3958
      %3991 = vst [vmem:[%s522 + $0x2c] sm:$0xf] %v3959
      %3992 = vst [vmem:[%s522 + $0x30] sm:$0xf] %v3960
      %3993 = vst [vmem:[%s522 + $0x34] sm:$0xf] %v3961
      %3994 = vst [vmem:[%s522 + $0x38] sm:$0xf] %v3962
      %3995 = vst [vmem:[%s522 + $0x3c] sm:$0xf] %v3963
      %s3996 = smul.u32 8, %s26
      %p3997 = scmp.lt.s32.totalorder %s25, 1
      %s3998 = scalar_select %p3997, %s25, 1
      %p3999 = scmp.lt.s32.totalorder %s3996, 15
      %s4000 = scalar_select %p3999, %s3996, 15
      %s4001 = smul.addr %s4000, 2
      %s4002 = smul.addr %s3998, 32
      %s4003 = sadd.s32 %s4001, %s4002
      %s4004 = smul.addr %s4003, 4
      %s4005 = scalar_lea.vmem %s7, %s4004
      %s4006 = smul.u32 %s25, 2
      %s4007 = sadd.s32 %s4006, %s26
      %p4008 = scmp.lt.s32.totalorder %s4007, 3
      %s4009 = scalar_select %p4008, %s4007, 3
      %s4010 = scalar_lea.vmem %s8, %s4009
      %s4011 = smul.u32 %s25, 2
      %s4012 = sadd.s32 %s4011, %s26
      %p4013 = scmp.lt.s32.totalorder %s4012, 3
      %s4014 = scalar_select %p4013, %s4012, 3
      %s4015 = scalar_lea.vmem %s9, %s4014
      // Predicated region
      $region65: #{double_conv.4} parent=47 // pred_check
        %p4016 = pneg %p237
      $region66: #{double_conv.4} parent=47 // pred_check_branch
        %4018 = sbr.rel (%p4016) target = $region68
      $region67: #{double_conv.4} parent=47 // pred_region
        %s4019 = smul.u32 8, %s26
      $region68: #{double_conv.4} parent=47 // pred_fallthru
        _
      // Predicated region
      $region69: #{double_conv.4} parent=47 // pred_check
        %p4020 = pneg %p267
      $region70: #{double_conv.4} parent=47 // pred_check_branch
        %4022 = sbr.rel (%p4020) target = $region72
      $region71: #{double_conv.4} parent=47 // pred_region
        %s4023 = smul.u32 %s25, 2
        %s4024 = sadd.s32 %s4023, %s26
      $region72: #{double_conv.4} parent=47 // pred_fallthru
        _
      // Predicated region
      $region73: #{double_conv.4} parent=47 // pred_check
        %p4025 = pneg %p297
      $region74: #{double_conv.4} parent=47 // pred_check_branch
        %4027 = sbr.rel (%p4025) target = $region76
      $region75: #{double_conv.4} parent=47 // pred_region
        %s4028 = smul.u32 %s25, 2
        %s4029 = sadd.s32 %s4028, %s26
      $region76: #{double_conv.4} parent=47 // pred_fallthru
        _
    $region48: #{double_conv.4} parent=5 // pred_fallthru
      _
    %p4030 = scmp.le.s32.totalorder 2, %s16
    // Predicated region
    $region77: #{double_conv.4} parent=5 // pred_check
      %p4031 = pneg %p4030
    $region78: #{double_conv.4} parent=5 // pred_check_branch
      %4033 = sbr.rel (%p4031) target = $region80
    $region79: #{double_conv.4} parent=5 // pred_region
      %s4034 = ssub.s32 %s16, 2
      // Predicated region
      $region81: #{double_conv.4} parent=79 // pred_check
        %p4035 = pneg %p243
      $region82: #{double_conv.4} parent=79 // pred_check_branch
        %4037 = sbr.rel (%p4035) target = $region84
      $region83: #{double_conv.4} parent=79 // pred_region
        %s4038 = smul.u32 8, %s28
        %p4039 = scmp.lt.s32.totalorder %s27, 1
        %s4040 = scalar_select %p4039, %s27, 1
        %p4041 = scmp.lt.s32.totalorder %s4038, 15
        %s4042 = scalar_select %p4041, %s4038, 15
        %s4043 = smul.addr %s4042, 2
        %s4044 = smul.addr %s4040, 32
        %s4045 = sadd.s32 %s4043, %s4044
        %s4046 = smul.addr %s4045, 4
        %s4047 = scalar_lea.vmem %s7, %s4046
      $region84: #{double_conv.4} parent=79 // pred_fallthru
        _
      // Predicated region
      $region85: #{double_conv.4} parent=79 // pred_check
        %p4048 = pneg %p273
      $region86: #{double_conv.4} parent=79 // pred_check_branch
        %4050 = sbr.rel (%p4048) target = $region88
      $region87: #{double_conv.4} parent=79 // pred_region
        %s4051 = smul.u32 %s27, 2
        %s4052 = sadd.s32 %s4051, %s28
        %p4053 = scmp.lt.s32.totalorder %s4052, 3
        %s4054 = scalar_select %p4053, %s4052, 3
        %s4055 = scalar_lea.vmem %s8, %s4054
      $region88: #{double_conv.4} parent=79 // pred_fallthru
        _
      // Predicated region
      $region89: #{double_conv.4} parent=79 // pred_check
        %p4056 = pneg %p303
      $region90: #{double_conv.4} parent=79 // pred_check_branch
        %4058 = sbr.rel (%p4056) target = $region92
      $region91: #{double_conv.4} parent=79 // pred_region
        %s4059 = smul.u32 %s27, 2
        %s4060 = sadd.s32 %s4059, %s28
        %p4061 = scmp.lt.s32.totalorder %s4060, 3
        %s4062 = scalar_select %p4061, %s4060, 3
        %s4063 = scalar_lea.vmem %s9, %s4062
      $region92: #{double_conv.4} parent=79 // pred_fallthru
        _
    $region80: #{double_conv.4} parent=5 // pred_fallthru
      _
  $region6: #{double_conv.4} parent=0 // loop_footer
    %s20 = sadd.s32 1, %s16
  $region7: #{double_conv.4} parent=0 // loop_footer_branch
    %15 = sbr.rel target = $region3
  $region8: #{double_conv.4} parent=0 // loop_exit
    _

</llo_original>
